<compile_context>
chip_gen: v7x
topology: tpu7x:2x2x1
jax: 0.10.0
libtpu: 0.0.40
codegen_flags: <defaults>
</compile_context>

<pallas_src>
import functools
import math

import jax
import jax.numpy as jnp
from jax import lax
from jax.experimental import pallas as pl
from jax.experimental.pallas import tpu as pltpu

# ----------------------------- config -----------------------------
HIDDEN_SIZE = 32
FF_SIZE = 64
ATT_STEP = 2
ATT_LAYER = 1
ATT_PRIMITIVES = ("self_att", "guided_att", "ffn")
NUM_EDGES = ATT_STEP * (ATT_STEP + 1) // 2  # edges per cell
PACK_X = 256          # [Q_self | K_self | V_self | Q_guided | FFN_l1(64) | zeros(64)]
PACK_Y = 2 * HIDDEN_SIZE
OUT_LANES = 128       # lane-dense output slab width


# ----------------------------- fused Pallas kernel -----------------------------
def _fused_backbone_kernel(
    imag_ref, ques_ref, bii_ref, biq_ref, bqi_ref, bqq_ref, ihot_ref, qhot_ref,
    pffn_l1w_ref, pffn_l1b_ref, pffn_l2w_ref, pffn_l2b_ref,
    mwx_ref, mbx_ref, mwy_ref, mby_ref, mwo_ref, mbo_ref,
    dec_l1w_ref, dec_l1b_ref, dec_l2w_ref, dec_l2b_ref,
    out_ref, *, rows_i, rows_q, att_layer, att_step):
  H = HIDDEN_SIZE
  FF = FF_SIZE
  f32 = jnp.float32
  bf16 = jnp.bfloat16

  def mm(a, w):
    # MXU matmul: bf16 operands (weights already stored bf16), f32 accumulate.
    return jnp.dot(a.astype(bf16), w, preferred_element_type=f32)

  def pffn2d(x, l1w, l1b, l2w, l2b):
    h = jnp.maximum(mm(x, l1w) + l1b, 0.0)
    return x + mm(h, l2w) + l2b

  def layernorm2d(x):
    mu = jnp.mean(x, axis=-1, keepdims=True)
    xc = x - mu
    var = jnp.mean(xc * xc, axis=-1, keepdims=True)
    return xc * lax.rsqrt(var + 1e-5)

  def attn(q, k, v, bias):
    # Whole-batch attention: one score matmul over all B*n rows; `bias` is a
    # precomputed additive mask (-1e9 on cross-batch blocks and padded keys,
    # matching masked_fill(-1e9)).  1/sqrt(H) is folded into the Q weights.
    s = lax.dot_general(q.astype(bf16), k.astype(bf16),
                        (((1,), (1,)), ((), ())),
                        preferred_element_type=f32) + bias
    s = s - jnp.max(s, axis=-1, keepdims=True)
    p = jnp.exp(s)
    p = p * pl.reciprocal(jnp.sum(p, axis=-1, keepdims=True), approx=True)
    return jnp.dot(p.astype(bf16), v.astype(bf16), preferred_element_type=f32)

  def mixed_half(x, y, b_self, b_gd, wx, bx, wy, by, wo, bo, e0, e1, e2):
    # e0*self_att(x) + e1*guided_att(x, y) + e2*ffn(x); x-/y-side projections
    # lane-packed into one matmul each, output projections packed on the K axis.
    px = mm(x, wx) + bx                                   # (rows_x, 256)
    py = mm(y, wy) + by                                   # (rows_y, 64)
    a_self = attn(px[:, 0:H], px[:, H:2 * H], px[:, 2 * H:3 * H], b_self)
    a_gd = attn(px[:, 3 * H:4 * H], py[:, 0:H], py[:, H:2 * H], b_gd)
    h_ffn = jnp.maximum(px[:, 4 * H:4 * H + FF], 0.0)
    z = jnp.concatenate([a_self * e0, a_gd * e1, h_ffn * e2], axis=-1)  # (rows_x, 128)
    bias = e0 * bo[0:1, :] + e1 * bo[1:2, :] + e2 * bo[2:3, :]          # (1, H)
    return mm(z, wo) + bias                               # (rows_x, H)

  imag = imag_ref[...]
  ques = ques_ref[...]
  b_ii = bii_ref[...]
  b_iq = biq_ref[...]
  b_qi = bqi_ref[...]
  b_qq = bqq_ref[...]

  fts_0 = [imag, ques]
  fts_1 = [imag, ques]

  for c in range(att_layer):
    # ---------------- one Cell ----------------
    pre = []
    for idx, x in enumerate(fts_0 + fts_1):  # preproc0[0], preproc0[1], preproc1[0], preproc1[1]
      pre.append(pffn2d(x, pffn_l1w_ref[c, idx], pffn_l1b_ref[c, idx],
                        pffn_l2w_ref[c, idx], pffn_l2b_ref[c, idx]))
    init_i = (pre[0] + pre[2]) * 0.5
    init_q = (pre[1] + pre[3]) * 0.5
    states = [(init_i, init_q)]
    offset = 0
    for _ in range(att_step):
      sum_i = None
      sum_q = None
      for j, (x_i, x_q) in enumerate(states):
        e = offset + j
        fi = mixed_half(x_i, x_q, b_ii, b_iq,
                        mwx_ref[c, e, 0], mbx_ref[c, e, 0],
                        mwy_ref[c, e, 0], mby_ref[c, e, 0],
                        mwo_ref[c, e, 0], mbo_ref[c, e, 0],
                        ihot_ref[e, 0], ihot_ref[e, 1], ihot_ref[e, 2])
        fq = mixed_half(x_q, x_i, b_qq, b_qi,
                        mwx_ref[c, e, 1], mbx_ref[c, e, 1],
                        mwy_ref[c, e, 1], mby_ref[c, e, 1],
                        mwo_ref[c, e, 1], mbo_ref[c, e, 1],
                        qhot_ref[e, 0], qhot_ref[e, 1], qhot_ref[e, 2])
        sum_i = fi if sum_i is None else sum_i + fi
        sum_q = fq if sum_q is None else sum_q + fq
      states.append((layernorm2d(sum_i), layernorm2d(sum_q)))
      offset += len(states) - 1
    last = states[-att_step:]
    acc_i, acc_q = last[0]
    for s_i, s_q in last[1:]:
      acc_i = acc_i + s_i
      acc_q = acc_q + s_q
    fts_0, fts_1 = fts_1, [acc_i * (1.0 / att_step), acc_q * (1.0 / att_step)]

  # ---------------- decoders (PFFN) + lane-dense output slab ----------------
  dec_i = pffn2d(fts_1[0], dec_l1w_ref[0], dec_l1b_ref[0], dec_l2w_ref[0], dec_l2b_ref[0])
  dec_q = pffn2d(fts_1[1], dec_l1w_ref[1], dec_l1b_ref[1], dec_l2w_ref[1], dec_l2b_ref[1])
  out_ref[0:rows_i, :] = jnp.concatenate(
      [dec_i, jnp.zeros((rows_i, OUT_LANES - H), f32)], axis=-1)
  out_ref[rows_i:rows_i + rows_q, :] = jnp.concatenate(
      [dec_q, jnp.zeros((rows_q, OUT_LANES - H), f32)], axis=-1)


@functools.lru_cache(maxsize=None)
def _make_fused_call(B, n_i, n_q):
  rows_i, rows_q = B * n_i, B * n_q
  vmem = pl.BlockSpec(memory_space=pltpu.MemorySpace.VMEM)
  smem = pl.BlockSpec(memory_space=pltpu.MemorySpace.SMEM)
  in_specs = [vmem] * 6 + [smem, smem] + [vmem] * 14
  return pl.pallas_call(
      functools.partial(_fused_backbone_kernel, rows_i=rows_i, rows_q=rows_q,
                        att_layer=ATT_LAYER, att_step=ATT_STEP),
      out_shape=jax.ShapeDtypeStruct((rows_i + rows_q, OUT_LANES), jnp.float32),
      in_specs=in_specs,
      out_specs=vmem,
  )


def _block_attn_bias(key_mask, B, nq, nk):
  # Additive attention bias over the batch-concatenated rows:
  # -1e9 on cross-batch blocks and on padded keys, 0 elsewhere.
  bq = jnp.repeat(jnp.arange(B), nq)
  bk = jnp.repeat(jnp.arange(B), nk)
  cross = bq[:, None] != bk[None, :]
  padded = key_mask.reshape(B * nk)[None, :] > 0.5
  return jnp.where(cross | padded, -1e9, 0.0).astype(jnp.float32)


def backbone_forward(packed, imag, ques, i_mask, q_mask, i_hot_vec, q_hot_vec):
  B, n_i, H = imag.shape
  n_q = ques.shape[1]
  i_mask = i_mask.astype(jnp.float32)
  q_mask = q_mask.astype(jnp.float32)
  b_ii = _block_attn_bias(i_mask, B, n_i, n_i)
  b_iq = _block_attn_bias(q_mask, B, n_i, n_q)
  b_qi = _block_attn_bias(i_mask, B, n_q, n_i)
  b_qq = _block_attn_bias(q_mask, B, n_q, n_q)
  call = _make_fused_call(B, n_i, n_q)
  out = call(
      imag.reshape(B * n_i, H), ques.reshape(B * n_q, H),
      b_ii, b_iq, b_qi, b_qq,
      i_hot_vec.astype(jnp.float32), q_hot_vec.astype(jnp.float32),
      packed["pffn_l1w"], packed["pffn_l1b"], packed["pffn_l2w"], packed["pffn_l2b"],
      packed["mwx"], packed["mbx"], packed["mwy"], packed["mby"],
      packed["mwo"], packed["mbo"],
      packed["dec_l1w"], packed["dec_l1b"], packed["dec_l2w"], packed["dec_l2b"])
  Ri = B * n_i
  out_i = out[:Ri, :H].reshape(B, n_i, H)
  out_q = out[Ri:, :H].reshape(B, n_q, H)
  return out_i, out_q


# ----------------------------- parameter init (module-structured) -----------------------------
def _init_linear(key, fan_in, fan_out):
  w = jax.random.normal(key, (fan_in, fan_out), jnp.float32) / math.sqrt(fan_in)
  b = jnp.zeros((fan_out,), jnp.float32)
  return {"w": w, "b": b}


def _init_att_op(key):
  kq, kk, kv, ko = jax.random.split(key, 4)
  return {"q": _init_linear(kq, HIDDEN_SIZE, HIDDEN_SIZE),
          "k": _init_linear(kk, HIDDEN_SIZE, HIDDEN_SIZE),
          "v": _init_linear(kv, HIDDEN_SIZE, HIDDEN_SIZE),
          "o": _init_linear(ko, HIDDEN_SIZE, HIDDEN_SIZE)}


def _init_ffn_op(key):
  k1, k2 = jax.random.split(key)
  return {"l1": _init_linear(k1, HIDDEN_SIZE, FF_SIZE),
          "l2": _init_linear(k2, FF_SIZE, HIDDEN_SIZE)}


def _init_op(key, prim):
  return _init_att_op(key) if prim in ("self_att", "guided_att") else _init_ffn_op(key)


def _init_mixed_ops(key):
  n = len(ATT_PRIMITIVES)
  keys = jax.random.split(key, 2 * n)
  return {"i_ops": [_init_op(k, p) for k, p in zip(keys[:n], ATT_PRIMITIVES)],
          "q_ops": [_init_op(k, p) for k, p in zip(keys[n:], ATT_PRIMITIVES)]}


def _init_cell(key):
  k0, k1, km = jax.random.split(key, 3)
  return {"preproc0": [_init_ffn_op(k) for k in jax.random.split(k0, 2)],
          "preproc1": [_init_ffn_op(k) for k in jax.random.split(k1, 2)],
          "mops": [_init_mixed_ops(k) for k in jax.random.split(km, NUM_EDGES)]}


def init_backbone(key):
  kc, kd = jax.random.split(key)
  return {"cells": [_init_cell(k) for k in jax.random.split(kc, ATT_LAYER)],
          "decoders": [_init_ffn_op(k) for k in jax.random.split(kd, 2)]}


# ----------------------------- weight packing (done once, outside jit) -----------------------------
def pack_backbone(params):
  scale = 1.0 / math.sqrt(HIDDEN_SIZE)           # folded into Q projections
  pad_w = PACK_X - (4 * HIDDEN_SIZE + FF_SIZE)   # zero columns to reach 256 lanes

  def bf(x):
    return x.astype(jnp.bfloat16)

  def pack_half(ops):  # ops = [self_att, guided_att, ffn]
    sa, ga, ff = ops
    wx = jnp.concatenate(
        [sa["q"]["w"] * scale, sa["k"]["w"], sa["v"]["w"],
         ga["q"]["w"] * scale, ff["l1"]["w"],
         jnp.zeros((HIDDEN_SIZE, pad_w), jnp.float32)], axis=1)              # (32, 256)
    bx = jnp.concatenate(
        [sa["q"]["b"] * scale, sa["k"]["b"], sa["v"]["b"],
         ga["q"]["b"] * scale, ff["l1"]["b"],
         jnp.zeros((pad_w,), jnp.float32)])[None, :]                          # (1, 256)
    wy = jnp.concatenate([ga["k"]["w"], ga["v"]["w"]], axis=1)                # (32, 64)
    by = jnp.concatenate([ga["k"]["b"], ga["v"]["b"]])[None, :]               # (1, 64)
    wo = jnp.concatenate([sa["o"]["w"], ga["o"]["w"], ff["l2"]["w"]], axis=0)  # (128, 32)
    bo = jnp.stack([sa["o"]["b"], ga["o"]["b"], ff["l2"]["b"]], axis=0)       # (3, 32)
    return wx, bx, wy, by, wo, bo

  mwx, mbx, mwy, mby, mwo, mbo = [], [], [], [], [], []
  p1w, p1b, p2w, p2b = [], [], [], []
  for cell in params["cells"]:
    pffns = cell["preproc0"] + cell["preproc1"]
    p1w.append(jnp.stack([p["l1"]["w"] for p in pffns]))
    p1b.append(jnp.stack([p["l1"]["b"][None, :] for p in pffns]))
    p2w.append(jnp.stack([p["l2"]["w"] for p in pffns]))
    p2b.append(jnp.stack([p["l2"]["b"][None, :] for p in pffns]))
    cwx, cbx, cwy, cby, cwo, cbo = [], [], [], [], [], []
    for mops in cell["mops"]:
      halves = [pack_half(mops["i_ops"]), pack_half(mops["q_ops"])]
      cwx.append(jnp.stack([h[0] for h in halves]))
      cbx.append(jnp.stack([h[1] for h in halves]))
      cwy.append(jnp.stack([h[2] for h in halves]))
      cby.append(jnp.stack([h[3] for h in halves]))
      cwo.append(jnp.stack([h[4] for h in halves]))
      cbo.append(jnp.stack([h[5] for h in halves]))
    mwx.append(jnp.stack(cwx)); mbx.append(jnp.stack(cbx))
    mwy.append(jnp.stack(cwy)); mby.append(jnp.stack(cby))
    mwo.append(jnp.stack(cwo)); mbo.append(jnp.stack(cbo))
  dec = params["decoders"]
  return {
      # matmul weights in bf16 (MXU operands), biases in f32.
      "pffn_l1w": bf(jnp.stack(p1w)), "pffn_l1b": jnp.stack(p1b),
      "pffn_l2w": bf(jnp.stack(p2w)), "pffn_l2b": jnp.stack(p2b),
      "mwx": bf(jnp.stack(mwx)), "mbx": jnp.stack(mbx),
      "mwy": bf(jnp.stack(mwy)), "mby": jnp.stack(mby),
      "mwo": bf(jnp.stack(mwo)), "mbo": jnp.stack(mbo),
      "dec_l1w": bf(jnp.stack([d["l1"]["w"] for d in dec])),
      "dec_l1b": jnp.stack([d["l1"]["b"][None, :] for d in dec]),
      "dec_l2w": bf(jnp.stack([d["l2"]["w"] for d in dec])),
      "dec_l2b": jnp.stack([d["l2"]["b"][None, :] for d in dec]),
  }


# ----------------------------- pure-JAX reference (mirrors the PyTorch module) -----------------------------
def _ref_linear(x, p, act=None):
  y = jnp.dot(x, p["w"]) + p["b"]
  return jnp.maximum(y, 0.0) if act == "relu" else y


def _ref_pffn(p, x):
  return x + _ref_linear(_ref_linear(x, p["l1"], "relu"), p["l2"])


def _ref_attention(q, k, v, kv_mask):
  s = jnp.einsum("bqd,bkd->bqk", q, k) / math.sqrt(HIDDEN_SIZE)
  s = jnp.where(kv_mask[:, None, :] > 0.5, -1e9, s)
  return jnp.einsum("bqk,bkd->bqd", jax.nn.softmax(s, axis=-1), v)


def _ref_op(prim, p, inputs, masks):
  x, y = inputs
  xm, ym = masks
  if prim == "self_att":
    a = _ref_attention(_ref_linear(x, p["q"]), _ref_linear(x, p["k"]),
                       _ref_linear(x, p["v"]), xm)
    return _ref_linear(a, p["o"])
  if prim == "guided_att":
    a = _ref_attention(_ref_linear(x, p["q"]), _ref_linear(y, p["k"]),
                       _ref_linear(y, p["v"]), ym)
    return _ref_linear(a, p["o"])
  return _ref_linear(_ref_linear(x, p["l1"], "relu"), p["l2"])


def _ref_layernorm(x):
  mu = jnp.mean(x, -1, keepdims=True)
  var = jnp.mean(jnp.square(x - mu), -1, keepdims=True)
  return (x - mu) / jnp.sqrt(var + 1e-5)


def _ref_mixed(p, inputs, masks, i_hot_row, q_hot_row):
  i_feat = sum(i_hot_row[k] * _ref_op(prim, p["i_ops"][k], inputs, masks)
               for k, prim in enumerate(ATT_PRIMITIVES))
  q_feat = sum(q_hot_row[k] * _ref_op(prim, p["q_ops"][k], inputs[::-1], masks[::-1])
               for k, prim in enumerate(ATT_PRIMITIVES))
  return (i_feat, q_feat)


def _ref_cell(p, f_pre_prev, f_prev, masks, i_hot_vec, q_hot_vec):
  f_pp = [_ref_pffn(q, x) for q, x in zip(p["preproc0"], f_pre_prev)]
  f_p = [_ref_pffn(q, x) for q, x in zip(p["preproc1"], f_prev)]
  states = [[(a + b) / 2.0 for a, b in zip(f_pp, f_p)]]
  offset = 0
  for _ in range(ATT_STEP):
    outs = [_ref_mixed(p["mops"][offset + j], h, masks,
                       i_hot_vec[offset + j], q_hot_vec[offset + j])
            for j, h in enumerate(states)]
    curr = [_ref_layernorm(sum(fs)) for fs in zip(*outs)]
    offset += len(states)
    states.append(curr)
  last = states[-ATT_STEP:]
  return [sum(fs) / len(last) for fs in zip(*last)]


def _ref_backbone(params, imag, ques, i_mask, q_mask, i_hot_vec, q_hot_vec):
  fts_0 = [imag, ques]
  fts_1 = [imag, ques]
  masks = [i_mask, q_mask]
  for cp in params["cells"]:
    fts_0, fts_1 = fts_1, _ref_cell(cp, fts_0, fts_1, masks, i_hot_vec, q_hot_vec)
  return tuple(_ref_pffn(p, x) for p, x in zip(params["decoders"], fts_1))


# ----------------------------- main -----------------------------
if __name__ == "__main__":
  key = jax.random.PRNGKey(0)
  kp, ki, kq, kh1, kh2 = jax.random.split(key, 5)

  B, N_I, N_Q = 2, 16, 8
  params = init_backbone(kp)
  packed = pack_backbone(params)

  imag = jax.random.normal(ki, (B, N_I, HIDDEN_SIZE), jnp.float32)
  ques = jax.random.normal(kq, (B, N_Q, HIDDEN_SIZE), jnp.float32)
  # 1.0 marks padded positions (score set to -1e9 before softmax).
  i_mask = jnp.zeros((B, N_I), jnp.float32).at[:, N_I - 2:].set(1.0)
  q_mask = jnp.zeros((B, N_Q), jnp.float32).at[:, N_Q - 2:].set(1.0)
  i_hot_vec = jax.nn.softmax(
      jax.random.normal(kh1, (NUM_EDGES, len(ATT_PRIMITIVES)), jnp.float32), axis=-1)
  q_hot_vec = jax.nn.softmax(
      jax.random.normal(kh2, (NUM_EDGES, len(ATT_PRIMITIVES)), jnp.float32), axis=-1)

  fwd = jax.jit(backbone_forward)
  out_i, out_q = fwd(packed, imag, ques, i_mask, q_mask, i_hot_vec, q_hot_vec)
  jax.block_until_ready((out_i, out_q))

  assert out_i.shape == (B, N_I, HIDDEN_SIZE)
  assert out_q.shape == (B, N_Q, HIDDEN_SIZE)
  assert bool(jnp.all(jnp.isfinite(out_i))) and bool(jnp.all(jnp.isfinite(out_q)))

  # Validate fused kernel + weight packing against a pure-JAX (f32) mirror of
  # the module.  Tolerance 2e-2 accounts for bf16 MXU operands + approx recip.
  ref_i, ref_q = _ref_backbone(params, imag, ques, i_mask, q_mask, i_hot_vec, q_hot_vec)
  assert bool(jnp.allclose(out_i, ref_i, rtol=2e-2, atol=2e-2))
  assert bool(jnp.allclose(out_q, ref_q, rtol=2e-2, atol=2e-2))

  print("KERNEL_OK")
</pallas_src>

<mosaic_0001>
module attributes {stable_mosaic.version = 11 : i64} {
  func.func @_fused_backbone_kernel(%arg0: memref<32x32xf32, #tpu.memory_space<vmem>>, %arg1: memref<16x32xf32, #tpu.memory_space<vmem>>, %arg2: memref<32x32xf32, #tpu.memory_space<vmem>>, %arg3: memref<32x16xf32, #tpu.memory_space<vmem>>, %arg4: memref<16x32xf32, #tpu.memory_space<vmem>>, %arg5: memref<16x16xf32, #tpu.memory_space<vmem>>, %arg6: memref<3x3xf32, #tpu.memory_space<smem>>, %arg7: memref<3x3xf32, #tpu.memory_space<smem>>, %arg8: memref<1x4x32x64xbf16, #tpu.memory_space<vmem>>, %arg9: memref<1x4x1x64xf32, #tpu.memory_space<vmem>>, %arg10: memref<1x4x64x32xbf16, #tpu.memory_space<vmem>>, %arg11: memref<1x4x1x32xf32, #tpu.memory_space<vmem>>, %arg12: memref<1x3x2x32x256xbf16, #tpu.memory_space<vmem>>, %arg13: memref<1x3x2x1x256xf32, #tpu.memory_space<vmem>>, %arg14: memref<1x3x2x32x64xbf16, #tpu.memory_space<vmem>>, %arg15: memref<1x3x2x1x64xf32, #tpu.memory_space<vmem>>, %arg16: memref<1x3x2x128x32xbf16, #tpu.memory_space<vmem>>, %arg17: memref<1x3x2x3x32xf32, #tpu.memory_space<vmem>>, %arg18: memref<2x32x64xbf16, #tpu.memory_space<vmem>>, %arg19: memref<2x1x64xf32, #tpu.memory_space<vmem>>, %arg20: memref<2x64x32xbf16, #tpu.memory_space<vmem>>, %arg21: memref<2x1x32xf32, #tpu.memory_space<vmem>>, %arg22: memref<48x128xf32, #tpu.memory_space<vmem>>) attributes {dimension_semantics = [], scalar_prefetch = 0 : i64, scratch_operands = 0 : i64, tpu.core_type = #tpu.core_type<tc>} {
    %c0 = arith.constant 0 : index
    %c0_0 = arith.constant 0 : index
    %0 = vector.load %arg0[%c0, %c0_0] : memref<32x32xf32, #tpu.memory_space<vmem>>, vector<32x32xf32>
    %c0_1 = arith.constant 0 : index
    %c0_2 = arith.constant 0 : index
    %1 = vector.load %arg1[%c0_1, %c0_2] : memref<16x32xf32, #tpu.memory_space<vmem>>, vector<16x32xf32>
    %c0_3 = arith.constant 0 : index
    %c0_4 = arith.constant 0 : index
    %2 = vector.load %arg2[%c0_3, %c0_4] : memref<32x32xf32, #tpu.memory_space<vmem>>, vector<32x32xf32>
    %c0_5 = arith.constant 0 : index
    %c0_6 = arith.constant 0 : index
    %3 = vector.load %arg3[%c0_5, %c0_6] : memref<32x16xf32, #tpu.memory_space<vmem>>, vector<32x16xf32>
    %c0_7 = arith.constant 0 : index
    %c0_8 = arith.constant 0 : index
    %4 = vector.load %arg4[%c0_7, %c0_8] : memref<16x32xf32, #tpu.memory_space<vmem>>, vector<16x32xf32>
    %c0_9 = arith.constant 0 : index
    %c0_10 = arith.constant 0 : index
    %5 = vector.load %arg5[%c0_9, %c0_10] : memref<16x16xf32, #tpu.memory_space<vmem>>, vector<16x16xf32>
    %c0_11 = arith.constant 0 : index
    %c0_12 = arith.constant 0 : index
    %c0_13 = arith.constant 0 : index
    %c0_14 = arith.constant 0 : index
    %6 = vector.load %arg8[%c0_11, %c0_12, %c0_13, %c0_14] : memref<1x4x32x64xbf16, #tpu.memory_space<vmem>>, vector<1x1x32x64xbf16>
    %7 = vector.shape_cast %6 : vector<1x1x32x64xbf16> to vector<32x64xbf16>
    %c0_15 = arith.constant 0 : index
    %c0_16 = arith.constant 0 : index
    %c0_17 = arith.constant 0 : index
    %c0_18 = arith.constant 0 : index
    %8 = vector.load %arg9[%c0_15, %c0_16, %c0_17, %c0_18] : memref<1x4x1x64xf32, #tpu.memory_space<vmem>>, vector<1x1x1x64xf32>
    %9 = vector.shape_cast %8 : vector<1x1x1x64xf32> to vector<1x64xf32>
    %c0_19 = arith.constant 0 : index
    %c0_20 = arith.constant 0 : index
    %c0_21 = arith.constant 0 : index
    %c0_22 = arith.constant 0 : index
    %10 = vector.load %arg10[%c0_19, %c0_20, %c0_21, %c0_22] : memref<1x4x64x32xbf16, #tpu.memory_space<vmem>>, vector<1x1x64x32xbf16>
    %11 = vector.shape_cast %10 : vector<1x1x64x32xbf16> to vector<64x32xbf16>
    %c0_23 = arith.constant 0 : index
    %c0_24 = arith.constant 0 : index
    %c0_25 = arith.constant 0 : index
    %c0_26 = arith.constant 0 : index
    %12 = vector.load %arg11[%c0_23, %c0_24, %c0_25, %c0_26] : memref<1x4x1x32xf32, #tpu.memory_space<vmem>>, vector<1x1x1x32xf32>
    %13 = vector.shape_cast %12 : vector<1x1x1x32xf32> to vector<1x32xf32>
    %14 = arith.truncf %0 : vector<32x32xf32> to vector<32x32xbf16>
    %cst = arith.constant dense<0.000000e+00> : vector<32x64xf32>
    %15 = tpu.matmul %14, %7, %cst {dimension_numbers = #tpu.dot_dimension_numbers<[1], [0], [0], [1], [0, 0, 1, 1], [], []>} : vector<32x32xbf16>, vector<32x64xbf16>, vector<32x64xf32> -> vector<32x64xf32>
    %16 = vector.broadcast %9 : vector<1x64xf32> to vector<32x64xf32>
    %17 = arith.addf %15, %16 : vector<32x64xf32>
    %cst_27 = arith.constant 0.000000e+00 : f32
    %18 = vector.broadcast %cst_27 : f32 to vector<32x64xf32>
    %19 = arith.maximumf %17, %18 : vector<32x64xf32>
    %20 = arith.truncf %19 : vector<32x64xf32> to vector<32x64xbf16>
    %cst_28 = arith.constant dense<0.000000e+00> : vector<32x32xf32>
    %21 = tpu.matmul %20, %11, %cst_28 {dimension_numbers = #tpu.dot_dimension_numbers<[1], [0], [0], [1], [0, 0, 1, 1], [], []>} : vector<32x64xbf16>, vector<64x32xbf16>, vector<32x32xf32> -> vector<32x32xf32>
    %22 = arith.addf %0, %21 : vector<32x32xf32>
    %23 = vector.broadcast %13 : vector<1x32xf32> to vector<32x32xf32>
    %24 = arith.addf %22, %23 : vector<32x32xf32>
    %c0_29 = arith.constant 0 : index
    %c1 = arith.constant 1 : index
    %c0_30 = arith.constant 0 : index
    %c0_31 = arith.constant 0 : index
    %25 = vector.load %arg8[%c0_29, %c1, %c0_30, %c0_31] : memref<1x4x32x64xbf16, #tpu.memory_space<vmem>>, vector<1x1x32x64xbf16>
    %26 = vector.shape_cast %25 : vector<1x1x32x64xbf16> to vector<32x64xbf16>
    %c0_32 = arith.constant 0 : index
    %c1_33 = arith.constant 1 : index
    %c0_34 = arith.constant 0 : index
    %c0_35 = arith.constant 0 : index
    %27 = vector.load %arg9[%c0_32, %c1_33, %c0_34, %c0_35] : memref<1x4x1x64xf32, #tpu.memory_space<vmem>>, vector<1x1x1x64xf32>
    %28 = vector.shape_cast %27 : vector<1x1x1x64xf32> to vector<1x64xf32>
    %c0_36 = arith.constant 0 : index
    %c1_37 = arith.constant 1 : index
    %c0_38 = arith.constant 0 : index
    %c0_39 = arith.constant 0 : index
    %29 = vector.load %arg10[%c0_36, %c1_37, %c0_38, %c0_39] : memref<1x4x64x32xbf16, #tpu.memory_space<vmem>>, vector<1x1x64x32xbf16>
    %30 = vector.shape_cast %29 : vector<1x1x64x32xbf16> to vector<64x32xbf16>
    %c0_40 = arith.constant 0 : index
    %c1_41 = arith.constant 1 : index
    %c0_42 = arith.constant 0 : index
    %c0_43 = arith.constant 0 : index
    %31 = vector.load %arg11[%c0_40, %c1_41, %c0_42, %c0_43] : memref<1x4x1x32xf32, #tpu.memory_space<vmem>>, vector<1x1x1x32xf32>
    %32 = vector.shape_cast %31 : vector<1x1x1x32xf32> to vector<1x32xf32>
    %33 = arith.truncf %1 : vector<16x32xf32> to vector<16x32xbf16>
    %cst_44 = arith.constant dense<0.000000e+00> : vector<16x64xf32>
    %34 = tpu.matmul %33, %26, %cst_44 {dimension_numbers = #tpu.dot_dimension_numbers<[1], [0], [0], [1], [0, 0, 1, 1], [], []>} : vector<16x32xbf16>, vector<32x64xbf16>, vector<16x64xf32> -> vector<16x64xf32>
    %35 = vector.broadcast %28 : vector<1x64xf32> to vector<16x64xf32>
    %36 = arith.addf %34, %35 : vector<16x64xf32>
    %cst_45 = arith.constant 0.000000e+00 : f32
    %37 = vector.broadcast %cst_45 : f32 to vector<16x64xf32>
    %38 = arith.maximumf %36, %37 : vector<16x64xf32>
    %39 = arith.truncf %38 : vector<16x64xf32> to vector<16x64xbf16>
    %cst_46 = arith.constant dense<0.000000e+00> : vector<16x32xf32>
    %40 = tpu.matmul %39, %30, %cst_46 {dimension_numbers = #tpu.dot_dimension_numbers<[1], [0], [0], [1], [0, 0, 1, 1], [], []>} : vector<16x64xbf16>, vector<64x32xbf16>, vector<16x32xf32> -> vector<16x32xf32>
    %41 = arith.addf %1, %40 : vector<16x32xf32>
    %42 = vector.broadcast %32 : vector<1x32xf32> to vector<16x32xf32>
    %43 = arith.addf %41, %42 : vector<16x32xf32>
    %c0_47 = arith.constant 0 : index
    %c2 = arith.constant 2 : index
    %c0_48 = arith.constant 0 : index
    %c0_49 = arith.constant 0 : index
    %44 = vector.load %arg8[%c0_47, %c2, %c0_48, %c0_49] : memref<1x4x32x64xbf16, #tpu.memory_space<vmem>>, vector<1x1x32x64xbf16>
    %45 = vector.shape_cast %44 : vector<1x1x32x64xbf16> to vector<32x64xbf16>
    %c0_50 = arith.constant 0 : index
    %c2_51 = arith.constant 2 : index
    %c0_52 = arith.constant 0 : index
    %c0_53 = arith.constant 0 : index
    %46 = vector.load %arg9[%c0_50, %c2_51, %c0_52, %c0_53] : memref<1x4x1x64xf32, #tpu.memory_space<vmem>>, vector<1x1x1x64xf32>
    %47 = vector.shape_cast %46 : vector<1x1x1x64xf32> to vector<1x64xf32>
    %c0_54 = arith.constant 0 : index
    %c2_55 = arith.constant 2 : index
    %c0_56 = arith.constant 0 : index
    %c0_57 = arith.constant 0 : index
    %48 = vector.load %arg10[%c0_54, %c2_55, %c0_56, %c0_57] : memref<1x4x64x32xbf16, #tpu.memory_space<vmem>>, vector<1x1x64x32xbf16>
    %49 = vector.shape_cast %48 : vector<1x1x64x32xbf16> to vector<64x32xbf16>
    %c0_58 = arith.constant 0 : index
    %c2_59 = arith.constant 2 : index
    %c0_60 = arith.constant 0 : index
    %c0_61 = arith.constant 0 : index
    %50 = vector.load %arg11[%c0_58, %c2_59, %c0_60, %c0_61] : memref<1x4x1x32xf32, #tpu.memory_space<vmem>>, vector<1x1x1x32xf32>
    %51 = vector.shape_cast %50 : vector<1x1x1x32xf32> to vector<1x32xf32>
    %52 = arith.truncf %0 : vector<32x32xf32> to vector<32x32xbf16>
    %cst_62 = arith.constant dense<0.000000e+00> : vector<32x64xf32>
    %53 = tpu.matmul %52, %45, %cst_62 {dimension_numbers = #tpu.dot_dimension_numbers<[1], [0], [0], [1], [0, 0, 1, 1], [], []>} : vector<32x32xbf16>, vector<32x64xbf16>, vector<32x64xf32> -> vector<32x64xf32>
    %54 = vector.broadcast %47 : vector<1x64xf32> to vector<32x64xf32>
    %55 = arith.addf %53, %54 : vector<32x64xf32>
    %cst_63 = arith.constant 0.000000e+00 : f32
    %56 = vector.broadcast %cst_63 : f32 to vector<32x64xf32>
    %57 = arith.maximumf %55, %56 : vector<32x64xf32>
    %58 = arith.truncf %57 : vector<32x64xf32> to vector<32x64xbf16>
    %cst_64 = arith.constant dense<0.000000e+00> : vector<32x32xf32>
    %59 = tpu.matmul %58, %49, %cst_64 {dimension_numbers = #tpu.dot_dimension_numbers<[1], [0], [0], [1], [0, 0, 1, 1], [], []>} : vector<32x64xbf16>, vector<64x32xbf16>, vector<32x32xf32> -> vector<32x32xf32>
    %60 = arith.addf %0, %59 : vector<32x32xf32>
    %61 = vector.broadcast %51 : vector<1x32xf32> to vector<32x32xf32>
    %62 = arith.addf %60, %61 : vector<32x32xf32>
    %c0_65 = arith.constant 0 : index
    %c3 = arith.constant 3 : index
    %c0_66 = arith.constant 0 : index
    %c0_67 = arith.constant 0 : index
    %63 = vector.load %arg8[%c0_65, %c3, %c0_66, %c0_67] : memref<1x4x32x64xbf16, #tpu.memory_space<vmem>>, vector<1x1x32x64xbf16>
    %64 = vector.shape_cast %63 : vector<1x1x32x64xbf16> to vector<32x64xbf16>
    %c0_68 = arith.constant 0 : index
    %c3_69 = arith.constant 3 : index
    %c0_70 = arith.constant 0 : index
    %c0_71 = arith.constant 0 : index
    %65 = vector.load %arg9[%c0_68, %c3_69, %c0_70, %c0_71] : memref<1x4x1x64xf32, #tpu.memory_space<vmem>>, vector<1x1x1x64xf32>
    %66 = vector.shape_cast %65 : vector<1x1x1x64xf32> to vector<1x64xf32>
    %c0_72 = arith.constant 0 : index
    %c3_73 = arith.constant 3 : index
    %c0_74 = arith.constant 0 : index
    %c0_75 = arith.constant 0 : index
    %67 = vector.load %arg10[%c0_72, %c3_73, %c0_74, %c0_75] : memref<1x4x64x32xbf16, #tpu.memory_space<vmem>>, vector<1x1x64x32xbf16>
    %68 = vector.shape_cast %67 : vector<1x1x64x32xbf16> to vector<64x32xbf16>
    %c0_76 = arith.constant 0 : index
    %c3_77 = arith.constant 3 : index
    %c0_78 = arith.constant 0 : index
    %c0_79 = arith.constant 0 : index
    %69 = vector.load %arg11[%c0_76, %c3_77, %c0_78, %c0_79] : memref<1x4x1x32xf32, #tpu.memory_space<vmem>>, vector<1x1x1x32xf32>
    %70 = vector.shape_cast %69 : vector<1x1x1x32xf32> to vector<1x32xf32>
    %71 = arith.truncf %1 : vector<16x32xf32> to vector<16x32xbf16>
    %cst_80 = arith.constant dense<0.000000e+00> : vector<16x64xf32>
    %72 = tpu.matmul %71, %64, %cst_80 {dimension_numbers = #tpu.dot_dimension_numbers<[1], [0], [0], [1], [0, 0, 1, 1], [], []>} : vector<16x32xbf16>, vector<32x64xbf16>, vector<16x64xf32> -> vector<16x64xf32>
    %73 = vector.broadcast %66 : vector<1x64xf32> to vector<16x64xf32>
    %74 = arith.addf %72, %73 : vector<16x64xf32>
    %cst_81 = arith.constant 0.000000e+00 : f32
    %75 = vector.broadcast %cst_81 : f32 to vector<16x64xf32>
    %76 = arith.maximumf %74, %75 : vector<16x64xf32>
    %77 = arith.truncf %76 : vector<16x64xf32> to vector<16x64xbf16>
    %cst_82 = arith.constant dense<0.000000e+00> : vector<16x32xf32>
    %78 = tpu.matmul %77, %68, %cst_82 {dimension_numbers = #tpu.dot_dimension_numbers<[1], [0], [0], [1], [0, 0, 1, 1], [], []>} : vector<16x64xbf16>, vector<64x32xbf16>, vector<16x32xf32> -> vector<16x32xf32>
    %79 = arith.addf %1, %78 : vector<16x32xf32>
    %80 = vector.broadcast %70 : vector<1x32xf32> to vector<16x32xf32>
    %81 = arith.addf %79, %80 : vector<16x32xf32>
    %82 = arith.addf %24, %62 : vector<32x32xf32>
    %cst_83 = arith.constant 5.000000e-01 : f32
    %83 = vector.broadcast %cst_83 : f32 to vector<32x32xf32>
    %84 = arith.mulf %82, %83 : vector<32x32xf32>
    %85 = arith.addf %43, %81 : vector<16x32xf32>
    %cst_84 = arith.constant 5.000000e-01 : f32
    %86 = vector.broadcast %cst_84 : f32 to vector<16x32xf32>
    %87 = arith.mulf %85, %86 : vector<16x32xf32>
    %c0_85 = arith.constant 0 : index
    %c0_86 = arith.constant 0 : index
    %c0_87 = arith.constant 0 : index
    %c0_88 = arith.constant 0 : index
    %c0_89 = arith.constant 0 : index
    %88 = vector.load %arg12[%c0_85, %c0_86, %c0_87, %c0_88, %c0_89] : memref<1x3x2x32x256xbf16, #tpu.memory_space<vmem>>, vector<1x1x1x32x256xbf16>
    %89 = vector.shape_cast %88 : vector<1x1x1x32x256xbf16> to vector<32x256xbf16>
    %c0_90 = arith.constant 0 : index
    %c0_91 = arith.constant 0 : index
    %c0_92 = arith.constant 0 : index
    %c0_93 = arith.constant 0 : index
    %c0_94 = arith.constant 0 : index
    %90 = vector.load %arg13[%c0_90, %c0_91, %c0_92, %c0_93, %c0_94] : memref<1x3x2x1x256xf32, #tpu.memory_space<vmem>>, vector<1x1x1x1x256xf32>
    %91 = vector.shape_cast %90 : vector<1x1x1x1x256xf32> to vector<1x256xf32>
    %c0_95 = arith.constant 0 : index
    %c0_96 = arith.constant 0 : index
    %c0_97 = arith.constant 0 : index
    %c0_98 = arith.constant 0 : index
    %c0_99 = arith.constant 0 : index
    %92 = vector.load %arg14[%c0_95, %c0_96, %c0_97, %c0_98, %c0_99] : memref<1x3x2x32x64xbf16, #tpu.memory_space<vmem>>, vector<1x1x1x32x64xbf16>
    %93 = vector.shape_cast %92 : vector<1x1x1x32x64xbf16> to vector<32x64xbf16>
    %c0_100 = arith.constant 0 : index
    %c0_101 = arith.constant 0 : index
    %c0_102 = arith.constant 0 : index
    %c0_103 = arith.constant 0 : index
    %c0_104 = arith.constant 0 : index
    %94 = vector.load %arg15[%c0_100, %c0_101, %c0_102, %c0_103, %c0_104] : memref<1x3x2x1x64xf32, #tpu.memory_space<vmem>>, vector<1x1x1x1x64xf32>
    %95 = vector.shape_cast %94 : vector<1x1x1x1x64xf32> to vector<1x64xf32>
    %c0_105 = arith.constant 0 : index
    %c0_106 = arith.constant 0 : index
    %c0_107 = arith.constant 0 : index
    %c0_108 = arith.constant 0 : index
    %c0_109 = arith.constant 0 : index
    %96 = vector.load %arg16[%c0_105, %c0_106, %c0_107, %c0_108, %c0_109] : memref<1x3x2x128x32xbf16, #tpu.memory_space<vmem>>, vector<1x1x1x128x32xbf16>
    %97 = vector.shape_cast %96 : vector<1x1x1x128x32xbf16> to vector<128x32xbf16>
    %c0_110 = arith.constant 0 : index
    %c0_111 = arith.constant 0 : index
    %c0_112 = arith.constant 0 : index
    %c0_113 = arith.constant 0 : index
    %c0_114 = arith.constant 0 : index
    %98 = vector.load %arg17[%c0_110, %c0_111, %c0_112, %c0_113, %c0_114] : memref<1x3x2x3x32xf32, #tpu.memory_space<vmem>>, vector<1x1x1x3x32xf32>
    %99 = vector.shape_cast %98 : vector<1x1x1x3x32xf32> to vector<3x32xf32>
    %c0_115 = arith.constant 0 : index
    %c0_116 = arith.constant 0 : index
    %100 = memref.load %arg6[%c0_115, %c0_116] : memref<3x3xf32, #tpu.memory_space<smem>>
    %c0_117 = arith.constant 0 : index
    %c1_118 = arith.constant 1 : index
    %101 = memref.load %arg6[%c0_117, %c1_118] : memref<3x3xf32, #tpu.memory_space<smem>>
    %c0_119 = arith.constant 0 : index
    %c2_120 = arith.constant 2 : index
    %102 = memref.load %arg6[%c0_119, %c2_120] : memref<3x3xf32, #tpu.memory_space<smem>>
    %103 = arith.truncf %84 : vector<32x32xf32> to vector<32x32xbf16>
    %cst_121 = arith.constant dense<0.000000e+00> : vector<32x256xf32>
    %104 = tpu.matmul %103, %89, %cst_121 {dimension_numbers = #tpu.dot_dimension_numbers<[1], [0], [0], [1], [0, 0, 1, 1], [], []>} : vector<32x32xbf16>, vector<32x256xbf16>, vector<32x256xf32> -> vector<32x256xf32>
    %105 = vector.broadcast %91 : vector<1x256xf32> to vector<32x256xf32>
    %106 = arith.addf %104, %105 : vector<32x256xf32>
    %107 = arith.truncf %87 : vector<16x32xf32> to vector<16x32xbf16>
    %cst_122 = arith.constant dense<0.000000e+00> : vector<16x64xf32>
    %108 = tpu.matmul %107, %93, %cst_122 {dimension_numbers = #tpu.dot_dimension_numbers<[1], [0], [0], [1], [0, 0, 1, 1], [], []>} : vector<16x32xbf16>, vector<32x64xbf16>, vector<16x64xf32> -> vector<16x64xf32>
    %109 = vector.broadcast %95 : vector<1x64xf32> to vector<16x64xf32>
    %110 = arith.addf %108, %109 : vector<16x64xf32>
    %111 = vector.extract_strided_slice %106 {offsets = [0, 0], sizes = [32, 32], strides = [1, 1]} : vector<32x256xf32> to vector<32x32xf32>
    %112 = vector.extract_strided_slice %106 {offsets = [0, 32], sizes = [32, 32], strides = [1, 1]} : vector<32x256xf32> to vector<32x32xf32>
    %113 = vector.extract_strided_slice %106 {offsets = [0, 64], sizes = [32, 32], strides = [1, 1]} : vector<32x256xf32> to vector<32x32xf32>
    %114 = arith.truncf %111 : vector<32x32xf32> to vector<32x32xbf16>
    %115 = arith.truncf %112 : vector<32x32xf32> to vector<32x32xbf16>
    %cst_123 = arith.constant dense<0.000000e+00> : vector<32x32xf32>
    %116 = tpu.matmul %114, %115, %cst_123 {dimension_numbers = #tpu.dot_dimension_numbers<[1], [1], [0], [0], [0, 0, 1, 0], [], []>} : vector<32x32xbf16>, vector<32x32xbf16>, vector<32x32xf32> -> vector<32x32xf32>
    %117 = arith.addf %116, %2 : vector<32x32xf32>
    %cst_124 = arith.constant dense<0xFF800000> : vector<32xf32>
    %118 = vector.multi_reduction <maximumf>, %117, %cst_124 [1] : vector<32x32xf32> to vector<32xf32>
    %119 = vector.shape_cast %118 : vector<32xf32> to vector<32x1xf32>
    %120 = vector.broadcast %119 : vector<32x1xf32> to vector<32x32xf32>
    %121 = arith.subf %117, %120 : vector<32x32xf32>
    %122 = math.exp %121 : vector<32x32xf32>
    %cst_125 = arith.constant dense<0.000000e+00> : vector<32xf32>
    %123 = vector.multi_reduction <add>, %122, %cst_125 [1] : vector<32x32xf32> to vector<32xf32>
    %124 = vector.shape_cast %123 : vector<32xf32> to vector<32x1xf32>
    %125 = tpu.reciprocal %124 {approx = true} : vector<32x1xf32> -> vector<32x1xf32>
    %126 = vector.broadcast %125 : vector<32x1xf32> to vector<32x32xf32>
    %127 = arith.mulf %122, %126 : vector<32x32xf32>
    %128 = arith.truncf %127 : vector<32x32xf32> to vector<32x32xbf16>
    %129 = arith.truncf %113 : vector<32x32xf32> to vector<32x32xbf16>
    %cst_126 = arith.constant dense<0.000000e+00> : vector<32x32xf32>
    %130 = tpu.matmul %128, %129, %cst_126 {dimension_numbers = #tpu.dot_dimension_numbers<[1], [0], [0], [1], [0, 0, 1, 1], [], []>} : vector<32x32xbf16>, vector<32x32xbf16>, vector<32x32xf32> -> vector<32x32xf32>
    %131 = vector.extract_strided_slice %106 {offsets = [0, 96], sizes = [32, 32], strides = [1, 1]} : vector<32x256xf32> to vector<32x32xf32>
    %132 = vector.extract_strided_slice %110 {offsets = [0, 0], sizes = [16, 32], strides = [1, 1]} : vector<16x64xf32> to vector<16x32xf32>
    %133 = vector.extract_strided_slice %110 {offsets = [0, 32], sizes = [16, 32], strides = [1, 1]} : vector<16x64xf32> to vector<16x32xf32>
    %134 = arith.truncf %131 : vector<32x32xf32> to vector<32x32xbf16>
    %135 = arith.truncf %132 : vector<16x32xf32> to vector<16x32xbf16>
    %cst_127 = arith.constant dense<0.000000e+00> : vector<32x16xf32>
    %136 = tpu.matmul %134, %135, %cst_127 {dimension_numbers = #tpu.dot_dimension_numbers<[1], [1], [0], [0], [0, 0, 1, 0], [], []>} : vector<32x32xbf16>, vector<16x32xbf16>, vector<32x16xf32> -> vector<32x16xf32>
    %137 = arith.addf %136, %3 : vector<32x16xf32>
    %cst_128 = arith.constant dense<0xFF800000> : vector<32xf32>
    %138 = vector.multi_reduction <maximumf>, %137, %cst_128 [1] : vector<32x16xf32> to vector<32xf32>
    %139 = vector.shape_cast %138 : vector<32xf32> to vector<32x1xf32>
    %140 = vector.broadcast %139 : vector<32x1xf32> to vector<32x16xf32>
    %141 = arith.subf %137, %140 : vector<32x16xf32>
    %142 = math.exp %141 : vector<32x16xf32>
    %cst_129 = arith.constant dense<0.000000e+00> : vector<32xf32>
    %143 = vector.multi_reduction <add>, %142, %cst_129 [1] : vector<32x16xf32> to vector<32xf32>
    %144 = vector.shape_cast %143 : vector<32xf32> to vector<32x1xf32>
    %145 = tpu.reciprocal %144 {approx = true} : vector<32x1xf32> -> vector<32x1xf32>
    %146 = vector.broadcast %145 : vector<32x1xf32> to vector<32x16xf32>
    %147 = arith.mulf %142, %146 : vector<32x16xf32>
    %148 = arith.truncf %147 : vector<32x16xf32> to vector<32x16xbf16>
    %149 = arith.truncf %133 : vector<16x32xf32> to vector<16x32xbf16>
    %cst_130 = arith.constant dense<0.000000e+00> : vector<32x32xf32>
    %150 = tpu.matmul %148, %149, %cst_130 {dimension_numbers = #tpu.dot_dimension_numbers<[1], [0], [0], [1], [0, 0, 1, 1], [], []>} : vector<32x16xbf16>, vector<16x32xbf16>, vector<32x32xf32> -> vector<32x32xf32>
    %151 = vector.extract_strided_slice %106 {offsets = [0, 128], sizes = [32, 64], strides = [1, 1]} : vector<32x256xf32> to vector<32x64xf32>
    %cst_131 = arith.constant 0.000000e+00 : f32
    %152 = vector.broadcast %cst_131 : f32 to vector<32x64xf32>
    %153 = arith.maximumf %151, %152 : vector<32x64xf32>
    %154 = vector.broadcast %100 : f32 to vector<32x32xf32>
    %155 = arith.mulf %130, %154 : vector<32x32xf32>
    %156 = vector.broadcast %101 : f32 to vector<32x32xf32>
    %157 = arith.mulf %150, %156 : vector<32x32xf32>
    %158 = vector.broadcast %102 : f32 to vector<32x64xf32>
    %159 = arith.mulf %153, %158 : vector<32x64xf32>
    %160 = tpu.concatenate %155, %157, %159 in 1 : vector<32x32xf32>, vector<32x32xf32>, vector<32x64xf32> -> vector<32x128xf32>
    %161 = vector.extract_strided_slice %99 {offsets = [0, 0], sizes = [1, 32], strides = [1, 1]} : vector<3x32xf32> to vector<1x32xf32>
    %162 = vector.broadcast %100 : f32 to vector<1x32xf32>
    %163 = arith.mulf %162, %161 : vector<1x32xf32>
    %164 = vector.extract_strided_slice %99 {offsets = [1, 0], sizes = [1, 32], strides = [1, 1]} : vector<3x32xf32> to vector<1x32xf32>
    %165 = vector.broadcast %101 : f32 to vector<1x32xf32>
    %166 = arith.mulf %165, %164 : vector<1x32xf32>
    %167 = arith.addf %163, %166 : vector<1x32xf32>
    %168 = vector.extract_strided_slice %99 {offsets = [2, 0], sizes = [1, 32], strides = [1, 1]} : vector<3x32xf32> to vector<1x32xf32>
    %169 = vector.broadcast %102 : f32 to vector<1x32xf32>
    %170 = arith.mulf %169, %168 : vector<1x32xf32>
    %171 = arith.addf %167, %170 : vector<1x32xf32>
    %172 = arith.truncf %160 : vector<32x128xf32> to vector<32x128xbf16>
    %cst_132 = arith.constant dense<0.000000e+00> : vector<32x32xf32>
    %173 = tpu.matmul %172, %97, %cst_132 {dimension_numbers = #tpu.dot_dimension_numbers<[1], [0], [0], [1], [0, 0, 1, 1], [], []>} : vector<32x128xbf16>, vector<128x32xbf16>, vector<32x32xf32> -> vector<32x32xf32>
    %174 = vector.broadcast %171 : vector<1x32xf32> to vector<32x32xf32>
    %175 = arith.addf %173, %174 : vector<32x32xf32>
    %c0_133 = arith.constant 0 : index
    %c0_134 = arith.constant 0 : index
    %c1_135 = arith.constant 1 : index
    %c0_136 = arith.constant 0 : index
    %c0_137 = arith.constant 0 : index
    %176 = vector.load %arg12[%c0_133, %c0_134, %c1_135, %c0_136, %c0_137] : memref<1x3x2x32x256xbf16, #tpu.memory_space<vmem>>, vector<1x1x1x32x256xbf16>
    %177 = vector.shape_cast %176 : vector<1x1x1x32x256xbf16> to vector<32x256xbf16>
    %c0_138 = arith.constant 0 : index
    %c0_139 = arith.constant 0 : index
    %c1_140 = arith.constant 1 : index
    %c0_141 = arith.constant 0 : index
    %c0_142 = arith.constant 0 : index
    %178 = vector.load %arg13[%c0_138, %c0_139, %c1_140, %c0_141, %c0_142] : memref<1x3x2x1x256xf32, #tpu.memory_space<vmem>>, vector<1x1x1x1x256xf32>
    %179 = vector.shape_cast %178 : vector<1x1x1x1x256xf32> to vector<1x256xf32>
    %c0_143 = arith.constant 0 : index
    %c0_144 = arith.constant 0 : index
    %c1_145 = arith.constant 1 : index
    %c0_146 = arith.constant 0 : index
    %c0_147 = arith.constant 0 : index
    %180 = vector.load %arg14[%c0_143, %c0_144, %c1_145, %c0_146, %c0_147] : memref<1x3x2x32x64xbf16, #tpu.memory_space<vmem>>, vector<1x1x1x32x64xbf16>
    %181 = vector.shape_cast %180 : vector<1x1x1x32x64xbf16> to vector<32x64xbf16>
    %c0_148 = arith.constant 0 : index
    %c0_149 = arith.constant 0 : index
    %c1_150 = arith.constant 1 : index
    %c0_151 = arith.constant 0 : index
    %c0_152 = arith.constant 0 : index
    %182 = vector.load %arg15[%c0_148, %c0_149, %c1_150, %c0_151, %c0_152] : memref<1x3x2x1x64xf32, #tpu.memory_space<vmem>>, vector<1x1x1x1x64xf32>
    %183 = vector.shape_cast %182 : vector<1x1x1x1x64xf32> to vector<1x64xf32>
    %c0_153 = arith.constant 0 : index
    %c0_154 = arith.constant 0 : index
    %c1_155 = arith.constant 1 : index
    %c0_156 = arith.constant 0 : index
    %c0_157 = arith.constant 0 : index
    %184 = vector.load %arg16[%c0_153, %c0_154, %c1_155, %c0_156, %c0_157] : memref<1x3x2x128x32xbf16, #tpu.memory_space<vmem>>, vector<1x1x1x128x32xbf16>
    %185 = vector.shape_cast %184 : vector<1x1x1x128x32xbf16> to vector<128x32xbf16>
    %c0_158 = arith.constant 0 : index
    %c0_159 = arith.constant 0 : index
    %c1_160 = arith.constant 1 : index
    %c0_161 = arith.constant 0 : index
    %c0_162 = arith.constant 0 : index
    %186 = vector.load %arg17[%c0_158, %c0_159, %c1_160, %c0_161, %c0_162] : memref<1x3x2x3x32xf32, #tpu.memory_space<vmem>>, vector<1x1x1x3x32xf32>
    %187 = vector.shape_cast %186 : vector<1x1x1x3x32xf32> to vector<3x32xf32>
    %c0_163 = arith.constant 0 : index
    %c0_164 = arith.constant 0 : index
    %188 = memref.load %arg7[%c0_163, %c0_164] : memref<3x3xf32, #tpu.memory_space<smem>>
    %c0_165 = arith.constant 0 : index
    %c1_166 = arith.constant 1 : index
    %189 = memref.load %arg7[%c0_165, %c1_166] : memref<3x3xf32, #tpu.memory_space<smem>>
    %c0_167 = arith.constant 0 : index
    %c2_168 = arith.constant 2 : index
    %190 = memref.load %arg7[%c0_167, %c2_168] : memref<3x3xf32, #tpu.memory_space<smem>>
    %191 = arith.truncf %87 : vector<16x32xf32> to vector<16x32xbf16>
    %cst_169 = arith.constant dense<0.000000e+00> : vector<16x256xf32>
    %192 = tpu.matmul %191, %177, %cst_169 {dimension_numbers = #tpu.dot_dimension_numbers<[1], [0], [0], [1], [0, 0, 1, 1], [], []>} : vector<16x32xbf16>, vector<32x256xbf16>, vector<16x256xf32> -> vector<16x256xf32>
    %193 = vector.broadcast %179 : vector<1x256xf32> to vector<16x256xf32>
    %194 = arith.addf %192, %193 : vector<16x256xf32>
    %195 = arith.truncf %84 : vector<32x32xf32> to vector<32x32xbf16>
    %cst_170 = arith.constant dense<0.000000e+00> : vector<32x64xf32>
    %196 = tpu.matmul %195, %181, %cst_170 {dimension_numbers = #tpu.dot_dimension_numbers<[1], [0], [0], [1], [0, 0, 1, 1], [], []>} : vector<32x32xbf16>, vector<32x64xbf16>, vector<32x64xf32> -> vector<32x64xf32>
    %197 = vector.broadcast %183 : vector<1x64xf32> to vector<32x64xf32>
    %198 = arith.addf %196, %197 : vector<32x64xf32>
    %199 = vector.extract_strided_slice %194 {offsets = [0, 0], sizes = [16, 32], strides = [1, 1]} : vector<16x256xf32> to vector<16x32xf32>
    %200 = vector.extract_strided_slice %194 {offsets = [0, 32], sizes = [16, 32], strides = [1, 1]} : vector<16x256xf32> to vector<16x32xf32>
    %201 = vector.extract_strided_slice %194 {offsets = [0, 64], sizes = [16, 32], strides = [1, 1]} : vector<16x256xf32> to vector<16x32xf32>
    %202 = arith.truncf %199 : vector<16x32xf32> to vector<16x32xbf16>
    %203 = arith.truncf %200 : vector<16x32xf32> to vector<16x32xbf16>
    %cst_171 = arith.constant dense<0.000000e+00> : vector<16x16xf32>
    %204 = tpu.matmul %202, %203, %cst_171 {dimension_numbers = #tpu.dot_dimension_numbers<[1], [1], [0], [0], [0, 0, 1, 0], [], []>} : vector<16x32xbf16>, vector<16x32xbf16>, vector<16x16xf32> -> vector<16x16xf32>
    %205 = arith.addf %204, %5 : vector<16x16xf32>
    %cst_172 = arith.constant dense<0xFF800000> : vector<16xf32>
    %206 = vector.multi_reduction <maximumf>, %205, %cst_172 [1] : vector<16x16xf32> to vector<16xf32>
    %207 = vector.shape_cast %206 : vector<16xf32> to vector<16x1xf32>
    %208 = vector.broadcast %207 : vector<16x1xf32> to vector<16x16xf32>
    %209 = arith.subf %205, %208 : vector<16x16xf32>
    %210 = math.exp %209 : vector<16x16xf32>
    %cst_173 = arith.constant dense<0.000000e+00> : vector<16xf32>
    %211 = vector.multi_reduction <add>, %210, %cst_173 [1] : vector<16x16xf32> to vector<16xf32>
    %212 = vector.shape_cast %211 : vector<16xf32> to vector<16x1xf32>
    %213 = tpu.reciprocal %212 {approx = true} : vector<16x1xf32> -> vector<16x1xf32>
    %214 = vector.broadcast %213 : vector<16x1xf32> to vector<16x16xf32>
    %215 = arith.mulf %210, %214 : vector<16x16xf32>
    %216 = arith.truncf %215 : vector<16x16xf32> to vector<16x16xbf16>
    %217 = arith.truncf %201 : vector<16x32xf32> to vector<16x32xbf16>
    %cst_174 = arith.constant dense<0.000000e+00> : vector<16x32xf32>
    %218 = tpu.matmul %216, %217, %cst_174 {dimension_numbers = #tpu.dot_dimension_numbers<[1], [0], [0], [1], [0, 0, 1, 1], [], []>} : vector<16x16xbf16>, vector<16x32xbf16>, vector<16x32xf32> -> vector<16x32xf32>
    %219 = vector.extract_strided_slice %194 {offsets = [0, 96], sizes = [16, 32], strides = [1, 1]} : vector<16x256xf32> to vector<16x32xf32>
    %220 = vector.extract_strided_slice %198 {offsets = [0, 0], sizes = [32, 32], strides = [1, 1]} : vector<32x64xf32> to vector<32x32xf32>
    %221 = vector.extract_strided_slice %198 {offsets = [0, 32], sizes = [32, 32], strides = [1, 1]} : vector<32x64xf32> to vector<32x32xf32>
    %222 = arith.truncf %219 : vector<16x32xf32> to vector<16x32xbf16>
    %223 = arith.truncf %220 : vector<32x32xf32> to vector<32x32xbf16>
    %cst_175 = arith.constant dense<0.000000e+00> : vector<16x32xf32>
    %224 = tpu.matmul %222, %223, %cst_175 {dimension_numbers = #tpu.dot_dimension_numbers<[1], [1], [0], [0], [0, 0, 1, 0], [], []>} : vector<16x32xbf16>, vector<32x32xbf16>, vector<16x32xf32> -> vector<16x32xf32>
    %225 = arith.addf %224, %4 : vector<16x32xf32>
    %cst_176 = arith.constant dense<0xFF800000> : vector<16xf32>
    %226 = vector.multi_reduction <maximumf>, %225, %cst_176 [1] : vector<16x32xf32> to vector<16xf32>
    %227 = vector.shape_cast %226 : vector<16xf32> to vector<16x1xf32>
    %228 = vector.broadcast %227 : vector<16x1xf32> to vector<16x32xf32>
    %229 = arith.subf %225, %228 : vector<16x32xf32>
    %230 = math.exp %229 : vector<16x32xf32>
    %cst_177 = arith.constant dense<0.000000e+00> : vector<16xf32>
    %231 = vector.multi_reduction <add>, %230, %cst_177 [1] : vector<16x32xf32> to vector<16xf32>
    %232 = vector.shape_cast %231 : vector<16xf32> to vector<16x1xf32>
    %233 = tpu.reciprocal %232 {approx = true} : vector<16x1xf32> -> vector<16x1xf32>
    %234 = vector.broadcast %233 : vector<16x1xf32> to vector<16x32xf32>
    %235 = arith.mulf %230, %234 : vector<16x32xf32>
    %236 = arith.truncf %235 : vector<16x32xf32> to vector<16x32xbf16>
    %237 = arith.truncf %221 : vector<32x32xf32> to vector<32x32xbf16>
    %cst_178 = arith.constant dense<0.000000e+00> : vector<16x32xf32>
    %238 = tpu.matmul %236, %237, %cst_178 {dimension_numbers = #tpu.dot_dimension_numbers<[1], [0], [0], [1], [0, 0, 1, 1], [], []>} : vector<16x32xbf16>, vector<32x32xbf16>, vector<16x32xf32> -> vector<16x32xf32>
    %239 = vector.extract_strided_slice %194 {offsets = [0, 128], sizes = [16, 64], strides = [1, 1]} : vector<16x256xf32> to vector<16x64xf32>
    %cst_179 = arith.constant 0.000000e+00 : f32
    %240 = vector.broadcast %cst_179 : f32 to vector<16x64xf32>
    %241 = arith.maximumf %239, %240 : vector<16x64xf32>
    %242 = vector.broadcast %188 : f32 to vector<16x32xf32>
    %243 = arith.mulf %218, %242 : vector<16x32xf32>
    %244 = vector.broadcast %189 : f32 to vector<16x32xf32>
    %245 = arith.mulf %238, %244 : vector<16x32xf32>
    %246 = vector.broadcast %190 : f32 to vector<16x64xf32>
    %247 = arith.mulf %241, %246 : vector<16x64xf32>
    %248 = tpu.concatenate %243, %245, %247 in 1 : vector<16x32xf32>, vector<16x32xf32>, vector<16x64xf32> -> vector<16x128xf32>
    %249 = vector.extract_strided_slice %187 {offsets = [0, 0], sizes = [1, 32], strides = [1, 1]} : vector<3x32xf32> to vector<1x32xf32>
    %250 = vector.broadcast %188 : f32 to vector<1x32xf32>
    %251 = arith.mulf %250, %249 : vector<1x32xf32>
    %252 = vector.extract_strided_slice %187 {offsets = [1, 0], sizes = [1, 32], strides = [1, 1]} : vector<3x32xf32> to vector<1x32xf32>
    %253 = vector.broadcast %189 : f32 to vector<1x32xf32>
    %254 = arith.mulf %253, %252 : vector<1x32xf32>
    %255 = arith.addf %251, %254 : vector<1x32xf32>
    %256 = vector.extract_strided_slice %187 {offsets = [2, 0], sizes = [1, 32], strides = [1, 1]} : vector<3x32xf32> to vector<1x32xf32>
    %257 = vector.broadcast %190 : f32 to vector<1x32xf32>
    %258 = arith.mulf %257, %256 : vector<1x32xf32>
    %259 = arith.addf %255, %258 : vector<1x32xf32>
    %260 = arith.truncf %248 : vector<16x128xf32> to vector<16x128xbf16>
    %cst_180 = arith.constant dense<0.000000e+00> : vector<16x32xf32>
    %261 = tpu.matmul %260, %185, %cst_180 {dimension_numbers = #tpu.dot_dimension_numbers<[1], [0], [0], [1], [0, 0, 1, 1], [], []>} : vector<16x128xbf16>, vector<128x32xbf16>, vector<16x32xf32> -> vector<16x32xf32>
    %262 = vector.broadcast %259 : vector<1x32xf32> to vector<16x32xf32>
    %263 = arith.addf %261, %262 : vector<16x32xf32>
    %cst_181 = arith.constant dense<0.000000e+00> : vector<32xf32>
    %264 = vector.multi_reduction <add>, %175, %cst_181 [1] : vector<32x32xf32> to vector<32xf32>
    %265 = vector.shape_cast %264 : vector<32xf32> to vector<32x1xf32>
    %cst_182 = arith.constant 3.200000e+01 : f32
    %266 = vector.broadcast %cst_182 : f32 to vector<32x1xf32>
    %267 = arith.divf %265, %266 : vector<32x1xf32>
    %268 = vector.broadcast %267 : vector<32x1xf32> to vector<32x32xf32>
    %269 = arith.subf %175, %268 : vector<32x32xf32>
    %270 = arith.mulf %269, %269 : vector<32x32xf32>
    %cst_183 = arith.constant dense<0.000000e+00> : vector<32xf32>
    %271 = vector.multi_reduction <add>, %270, %cst_183 [1] : vector<32x32xf32> to vector<32xf32>
    %272 = vector.shape_cast %271 : vector<32xf32> to vector<32x1xf32>
    %cst_184 = arith.constant 3.200000e+01 : f32
    %273 = vector.broadcast %cst_184 : f32 to vector<32x1xf32>
    %274 = arith.divf %272, %273 : vector<32x1xf32>
    %cst_185 = arith.constant 9.99999974E-6 : f32
    %275 = vector.broadcast %cst_185 : f32 to vector<32x1xf32>
    %276 = arith.addf %274, %275 : vector<32x1xf32>
    %277 = math.rsqrt %276 : vector<32x1xf32>
    %278 = vector.broadcast %277 : vector<32x1xf32> to vector<32x32xf32>
    %279 = arith.mulf %269, %278 : vector<32x32xf32>
    %cst_186 = arith.constant dense<0.000000e+00> : vector<16xf32>
    %280 = vector.multi_reduction <add>, %263, %cst_186 [1] : vector<16x32xf32> to vector<16xf32>
    %281 = vector.shape_cast %280 : vector<16xf32> to vector<16x1xf32>
    %cst_187 = arith.constant 3.200000e+01 : f32
    %282 = vector.broadcast %cst_187 : f32 to vector<16x1xf32>
    %283 = arith.divf %281, %282 : vector<16x1xf32>
    %284 = vector.broadcast %283 : vector<16x1xf32> to vector<16x32xf32>
    %285 = arith.subf %263, %284 : vector<16x32xf32>
    %286 = arith.mulf %285, %285 : vector<16x32xf32>
    %cst_188 = arith.constant dense<0.000000e+00> : vector<16xf32>
    %287 = vector.multi_reduction <add>, %286, %cst_188 [1] : vector<16x32xf32> to vector<16xf32>
    %288 = vector.shape_cast %287 : vector<16xf32> to vector<16x1xf32>
    %cst_189 = arith.constant 3.200000e+01 : f32
    %289 = vector.broadcast %cst_189 : f32 to vector<16x1xf32>
    %290 = arith.divf %288, %289 : vector<16x1xf32>
    %cst_190 = arith.constant 9.99999974E-6 : f32
    %291 = vector.broadcast %cst_190 : f32 to vector<16x1xf32>
    %292 = arith.addf %290, %291 : vector<16x1xf32>
    %293 = math.rsqrt %292 : vector<16x1xf32>
    %294 = vector.broadcast %293 : vector<16x1xf32> to vector<16x32xf32>
    %295 = arith.mulf %285, %294 : vector<16x32xf32>
    %c0_191 = arith.constant 0 : index
    %c1_192 = arith.constant 1 : index
    %c0_193 = arith.constant 0 : index
    %c0_194 = arith.constant 0 : index
    %c0_195 = arith.constant 0 : index
    %296 = vector.load %arg12[%c0_191, %c1_192, %c0_193, %c0_194, %c0_195] : memref<1x3x2x32x256xbf16, #tpu.memory_space<vmem>>, vector<1x1x1x32x256xbf16>
    %297 = vector.shape_cast %296 : vector<1x1x1x32x256xbf16> to vector<32x256xbf16>
    %c0_196 = arith.constant 0 : index
    %c1_197 = arith.constant 1 : index
    %c0_198 = arith.constant 0 : index
    %c0_199 = arith.constant 0 : index
    %c0_200 = arith.constant 0 : index
    %298 = vector.load %arg13[%c0_196, %c1_197, %c0_198, %c0_199, %c0_200] : memref<1x3x2x1x256xf32, #tpu.memory_space<vmem>>, vector<1x1x1x1x256xf32>
    %299 = vector.shape_cast %298 : vector<1x1x1x1x256xf32> to vector<1x256xf32>
    %c0_201 = arith.constant 0 : index
    %c1_202 = arith.constant 1 : index
    %c0_203 = arith.constant 0 : index
    %c0_204 = arith.constant 0 : index
    %c0_205 = arith.constant 0 : index
    %300 = vector.load %arg14[%c0_201, %c1_202, %c0_203, %c0_204, %c0_205] : memref<1x3x2x32x64xbf16, #tpu.memory_space<vmem>>, vector<1x1x1x32x64xbf16>
    %301 = vector.shape_cast %300 : vector<1x1x1x32x64xbf16> to vector<32x64xbf16>
    %c0_206 = arith.constant 0 : index
    %c1_207 = arith.constant 1 : index
    %c0_208 = arith.constant 0 : index
    %c0_209 = arith.constant 0 : index
    %c0_210 = arith.constant 0 : index
    %302 = vector.load %arg15[%c0_206, %c1_207, %c0_208, %c0_209, %c0_210] : memref<1x3x2x1x64xf32, #tpu.memory_space<vmem>>, vector<1x1x1x1x64xf32>
    %303 = vector.shape_cast %302 : vector<1x1x1x1x64xf32> to vector<1x64xf32>
    %c0_211 = arith.constant 0 : index
    %c1_212 = arith.constant 1 : index
    %c0_213 = arith.constant 0 : index
    %c0_214 = arith.constant 0 : index
    %c0_215 = arith.constant 0 : index
    %304 = vector.load %arg16[%c0_211, %c1_212, %c0_213, %c0_214, %c0_215] : memref<1x3x2x128x32xbf16, #tpu.memory_space<vmem>>, vector<1x1x1x128x32xbf16>
    %305 = vector.shape_cast %304 : vector<1x1x1x128x32xbf16> to vector<128x32xbf16>
    %c0_216 = arith.constant 0 : index
    %c1_217 = arith.constant 1 : index
    %c0_218 = arith.constant 0 : index
    %c0_219 = arith.constant 0 : index
    %c0_220 = arith.constant 0 : index
    %306 = vector.load %arg17[%c0_216, %c1_217, %c0_218, %c0_219, %c0_220] : memref<1x3x2x3x32xf32, #tpu.memory_space<vmem>>, vector<1x1x1x3x32xf32>
    %307 = vector.shape_cast %306 : vector<1x1x1x3x32xf32> to vector<3x32xf32>
    %c1_221 = arith.constant 1 : index
    %c0_222 = arith.constant 0 : index
    %308 = memref.load %arg6[%c1_221, %c0_222] : memref<3x3xf32, #tpu.memory_space<smem>>
    %c1_223 = arith.constant 1 : index
    %c1_224 = arith.constant 1 : index
    %309 = memref.load %arg6[%c1_223, %c1_224] : memref<3x3xf32, #tpu.memory_space<smem>>
    %c1_225 = arith.constant 1 : index
    %c2_226 = arith.constant 2 : index
    %310 = memref.load %arg6[%c1_225, %c2_226] : memref<3x3xf32, #tpu.memory_space<smem>>
    %311 = arith.truncf %84 : vector<32x32xf32> to vector<32x32xbf16>
    %cst_227 = arith.constant dense<0.000000e+00> : vector<32x256xf32>
    %312 = tpu.matmul %311, %297, %cst_227 {dimension_numbers = #tpu.dot_dimension_numbers<[1], [0], [0], [1], [0, 0, 1, 1], [], []>} : vector<32x32xbf16>, vector<32x256xbf16>, vector<32x256xf32> -> vector<32x256xf32>
    %313 = vector.broadcast %299 : vector<1x256xf32> to vector<32x256xf32>
    %314 = arith.addf %312, %313 : vector<32x256xf32>
    %315 = arith.truncf %87 : vector<16x32xf32> to vector<16x32xbf16>
    %cst_228 = arith.constant dense<0.000000e+00> : vector<16x64xf32>
    %316 = tpu.matmul %315, %301, %cst_228 {dimension_numbers = #tpu.dot_dimension_numbers<[1], [0], [0], [1], [0, 0, 1, 1], [], []>} : vector<16x32xbf16>, vector<32x64xbf16>, vector<16x64xf32> -> vector<16x64xf32>
    %317 = vector.broadcast %303 : vector<1x64xf32> to vector<16x64xf32>
    %318 = arith.addf %316, %317 : vector<16x64xf32>
    %319 = vector.extract_strided_slice %314 {offsets = [0, 0], sizes = [32, 32], strides = [1, 1]} : vector<32x256xf32> to vector<32x32xf32>
    %320 = vector.extract_strided_slice %314 {offsets = [0, 32], sizes = [32, 32], strides = [1, 1]} : vector<32x256xf32> to vector<32x32xf32>
    %321 = vector.extract_strided_slice %314 {offsets = [0, 64], sizes = [32, 32], strides = [1, 1]} : vector<32x256xf32> to vector<32x32xf32>
    %322 = arith.truncf %319 : vector<32x32xf32> to vector<32x32xbf16>
    %323 = arith.truncf %320 : vector<32x32xf32> to vector<32x32xbf16>
    %cst_229 = arith.constant dense<0.000000e+00> : vector<32x32xf32>
    %324 = tpu.matmul %322, %323, %cst_229 {dimension_numbers = #tpu.dot_dimension_numbers<[1], [1], [0], [0], [0, 0, 1, 0], [], []>} : vector<32x32xbf16>, vector<32x32xbf16>, vector<32x32xf32> -> vector<32x32xf32>
    %325 = arith.addf %324, %2 : vector<32x32xf32>
    %cst_230 = arith.constant dense<0xFF800000> : vector<32xf32>
    %326 = vector.multi_reduction <maximumf>, %325, %cst_230 [1] : vector<32x32xf32> to vector<32xf32>
    %327 = vector.shape_cast %326 : vector<32xf32> to vector<32x1xf32>
    %328 = vector.broadcast %327 : vector<32x1xf32> to vector<32x32xf32>
    %329 = arith.subf %325, %328 : vector<32x32xf32>
    %330 = math.exp %329 : vector<32x32xf32>
    %cst_231 = arith.constant dense<0.000000e+00> : vector<32xf32>
    %331 = vector.multi_reduction <add>, %330, %cst_231 [1] : vector<32x32xf32> to vector<32xf32>
    %332 = vector.shape_cast %331 : vector<32xf32> to vector<32x1xf32>
    %333 = tpu.reciprocal %332 {approx = true} : vector<32x1xf32> -> vector<32x1xf32>
    %334 = vector.broadcast %333 : vector<32x1xf32> to vector<32x32xf32>
    %335 = arith.mulf %330, %334 : vector<32x32xf32>
    %336 = arith.truncf %335 : vector<32x32xf32> to vector<32x32xbf16>
    %337 = arith.truncf %321 : vector<32x32xf32> to vector<32x32xbf16>
    %cst_232 = arith.constant dense<0.000000e+00> : vector<32x32xf32>
    %338 = tpu.matmul %336, %337, %cst_232 {dimension_numbers = #tpu.dot_dimension_numbers<[1], [0], [0], [1], [0, 0, 1, 1], [], []>} : vector<32x32xbf16>, vector<32x32xbf16>, vector<32x32xf32> -> vector<32x32xf32>
    %339 = vector.extract_strided_slice %314 {offsets = [0, 96], sizes = [32, 32], strides = [1, 1]} : vector<32x256xf32> to vector<32x32xf32>
    %340 = vector.extract_strided_slice %318 {offsets = [0, 0], sizes = [16, 32], strides = [1, 1]} : vector<16x64xf32> to vector<16x32xf32>
    %341 = vector.extract_strided_slice %318 {offsets = [0, 32], sizes = [16, 32], strides = [1, 1]} : vector<16x64xf32> to vector<16x32xf32>
    %342 = arith.truncf %339 : vector<32x32xf32> to vector<32x32xbf16>
    %343 = arith.truncf %340 : vector<16x32xf32> to vector<16x32xbf16>
    %cst_233 = arith.constant dense<0.000000e+00> : vector<32x16xf32>
    %344 = tpu.matmul %342, %343, %cst_233 {dimension_numbers = #tpu.dot_dimension_numbers<[1], [1], [0], [0], [0, 0, 1, 0], [], []>} : vector<32x32xbf16>, vector<16x32xbf16>, vector<32x16xf32> -> vector<32x16xf32>
    %345 = arith.addf %344, %3 : vector<32x16xf32>
    %cst_234 = arith.constant dense<0xFF800000> : vector<32xf32>
    %346 = vector.multi_reduction <maximumf>, %345, %cst_234 [1] : vector<32x16xf32> to vector<32xf32>
    %347 = vector.shape_cast %346 : vector<32xf32> to vector<32x1xf32>
    %348 = vector.broadcast %347 : vector<32x1xf32> to vector<32x16xf32>
    %349 = arith.subf %345, %348 : vector<32x16xf32>
    %350 = math.exp %349 : vector<32x16xf32>
    %cst_235 = arith.constant dense<0.000000e+00> : vector<32xf32>
    %351 = vector.multi_reduction <add>, %350, %cst_235 [1] : vector<32x16xf32> to vector<32xf32>
    %352 = vector.shape_cast %351 : vector<32xf32> to vector<32x1xf32>
    %353 = tpu.reciprocal %352 {approx = true} : vector<32x1xf32> -> vector<32x1xf32>
    %354 = vector.broadcast %353 : vector<32x1xf32> to vector<32x16xf32>
    %355 = arith.mulf %350, %354 : vector<32x16xf32>
    %356 = arith.truncf %355 : vector<32x16xf32> to vector<32x16xbf16>
    %357 = arith.truncf %341 : vector<16x32xf32> to vector<16x32xbf16>
    %cst_236 = arith.constant dense<0.000000e+00> : vector<32x32xf32>
    %358 = tpu.matmul %356, %357, %cst_236 {dimension_numbers = #tpu.dot_dimension_numbers<[1], [0], [0], [1], [0, 0, 1, 1], [], []>} : vector<32x16xbf16>, vector<16x32xbf16>, vector<32x32xf32> -> vector<32x32xf32>
    %359 = vector.extract_strided_slice %314 {offsets = [0, 128], sizes = [32, 64], strides = [1, 1]} : vector<32x256xf32> to vector<32x64xf32>
    %cst_237 = arith.constant 0.000000e+00 : f32
    %360 = vector.broadcast %cst_237 : f32 to vector<32x64xf32>
    %361 = arith.maximumf %359, %360 : vector<32x64xf32>
    %362 = vector.broadcast %308 : f32 to vector<32x32xf32>
    %363 = arith.mulf %338, %362 : vector<32x32xf32>
    %364 = vector.broadcast %309 : f32 to vector<32x32xf32>
    %365 = arith.mulf %358, %364 : vector<32x32xf32>
    %366 = vector.broadcast %310 : f32 to vector<32x64xf32>
    %367 = arith.mulf %361, %366 : vector<32x64xf32>
    %368 = tpu.concatenate %363, %365, %367 in 1 : vector<32x32xf32>, vector<32x32xf32>, vector<32x64xf32> -> vector<32x128xf32>
    %369 = vector.extract_strided_slice %307 {offsets = [0, 0], sizes = [1, 32], strides = [1, 1]} : vector<3x32xf32> to vector<1x32xf32>
    %370 = vector.broadcast %308 : f32 to vector<1x32xf32>
    %371 = arith.mulf %370, %369 : vector<1x32xf32>
    %372 = vector.extract_strided_slice %307 {offsets = [1, 0], sizes = [1, 32], strides = [1, 1]} : vector<3x32xf32> to vector<1x32xf32>
    %373 = vector.broadcast %309 : f32 to vector<1x32xf32>
    %374 = arith.mulf %373, %372 : vector<1x32xf32>
    %375 = arith.addf %371, %374 : vector<1x32xf32>
    %376 = vector.extract_strided_slice %307 {offsets = [2, 0], sizes = [1, 32], strides = [1, 1]} : vector<3x32xf32> to vector<1x32xf32>
    %377 = vector.broadcast %310 : f32 to vector<1x32xf32>
    %378 = arith.mulf %377, %376 : vector<1x32xf32>
    %379 = arith.addf %375, %378 : vector<1x32xf32>
    %380 = arith.truncf %368 : vector<32x128xf32> to vector<32x128xbf16>
    %cst_238 = arith.constant dense<0.000000e+00> : vector<32x32xf32>
    %381 = tpu.matmul %380, %305, %cst_238 {dimension_numbers = #tpu.dot_dimension_numbers<[1], [0], [0], [1], [0, 0, 1, 1], [], []>} : vector<32x128xbf16>, vector<128x32xbf16>, vector<32x32xf32> -> vector<32x32xf32>
    %382 = vector.broadcast %379 : vector<1x32xf32> to vector<32x32xf32>
    %383 = arith.addf %381, %382 : vector<32x32xf32>
    %c0_239 = arith.constant 0 : index
    %c1_240 = arith.constant 1 : index
    %c1_241 = arith.constant 1 : index
    %c0_242 = arith.constant 0 : index
    %c0_243 = arith.constant 0 : index
    %384 = vector.load %arg12[%c0_239, %c1_240, %c1_241, %c0_242, %c0_243] : memref<1x3x2x32x256xbf16, #tpu.memory_space<vmem>>, vector<1x1x1x32x256xbf16>
    %385 = vector.shape_cast %384 : vector<1x1x1x32x256xbf16> to vector<32x256xbf16>
    %c0_244 = arith.constant 0 : index
    %c1_245 = arith.constant 1 : index
    %c1_246 = arith.constant 1 : index
    %c0_247 = arith.constant 0 : index
    %c0_248 = arith.constant 0 : index
    %386 = vector.load %arg13[%c0_244, %c1_245, %c1_246, %c0_247, %c0_248] : memref<1x3x2x1x256xf32, #tpu.memory_space<vmem>>, vector<1x1x1x1x256xf32>
    %387 = vector.shape_cast %386 : vector<1x1x1x1x256xf32> to vector<1x256xf32>
    %c0_249 = arith.constant 0 : index
    %c1_250 = arith.constant 1 : index
    %c1_251 = arith.constant 1 : index
    %c0_252 = arith.constant 0 : index
    %c0_253 = arith.constant 0 : index
    %388 = vector.load %arg14[%c0_249, %c1_250, %c1_251, %c0_252, %c0_253] : memref<1x3x2x32x64xbf16, #tpu.memory_space<vmem>>, vector<1x1x1x32x64xbf16>
    %389 = vector.shape_cast %388 : vector<1x1x1x32x64xbf16> to vector<32x64xbf16>
    %c0_254 = arith.constant 0 : index
    %c1_255 = arith.constant 1 : index
    %c1_256 = arith.constant 1 : index
    %c0_257 = arith.constant 0 : index
    %c0_258 = arith.constant 0 : index
    %390 = vector.load %arg15[%c0_254, %c1_255, %c1_256, %c0_257, %c0_258] : memref<1x3x2x1x64xf32, #tpu.memory_space<vmem>>, vector<1x1x1x1x64xf32>
    %391 = vector.shape_cast %390 : vector<1x1x1x1x64xf32> to vector<1x64xf32>
    %c0_259 = arith.constant 0 : index
    %c1_260 = arith.constant 1 : index
    %c1_261 = arith.constant 1 : index
    %c0_262 = arith.constant 0 : index
    %c0_263 = arith.constant 0 : index
    %392 = vector.load %arg16[%c0_259, %c1_260, %c1_261, %c0_262, %c0_263] : memref<1x3x2x128x32xbf16, #tpu.memory_space<vmem>>, vector<1x1x1x128x32xbf16>
    %393 = vector.shape_cast %392 : vector<1x1x1x128x32xbf16> to vector<128x32xbf16>
    %c0_264 = arith.constant 0 : index
    %c1_265 = arith.constant 1 : index
    %c1_266 = arith.constant 1 : index
    %c0_267 = arith.constant 0 : index
    %c0_268 = arith.constant 0 : index
    %394 = vector.load %arg17[%c0_264, %c1_265, %c1_266, %c0_267, %c0_268] : memref<1x3x2x3x32xf32, #tpu.memory_space<vmem>>, vector<1x1x1x3x32xf32>
    %395 = vector.shape_cast %394 : vector<1x1x1x3x32xf32> to vector<3x32xf32>
    %c1_269 = arith.constant 1 : index
    %c0_270 = arith.constant 0 : index
    %396 = memref.load %arg7[%c1_269, %c0_270] : memref<3x3xf32, #tpu.memory_space<smem>>
    %c1_271 = arith.constant 1 : index
    %c1_272 = arith.constant 1 : index
    %397 = memref.load %arg7[%c1_271, %c1_272] : memref<3x3xf32, #tpu.memory_space<smem>>
    %c1_273 = arith.constant 1 : index
    %c2_274 = arith.constant 2 : index
    %398 = memref.load %arg7[%c1_273, %c2_274] : memref<3x3xf32, #tpu.memory_space<smem>>
    %399 = arith.truncf %87 : vector<16x32xf32> to vector<16x32xbf16>
    %cst_275 = arith.constant dense<0.000000e+00> : vector<16x256xf32>
    %400 = tpu.matmul %399, %385, %cst_275 {dimension_numbers = #tpu.dot_dimension_numbers<[1], [0], [0], [1], [0, 0, 1, 1], [], []>} : vector<16x32xbf16>, vector<32x256xbf16>, vector<16x256xf32> -> vector<16x256xf32>
    %401 = vector.broadcast %387 : vector<1x256xf32> to vector<16x256xf32>
    %402 = arith.addf %400, %401 : vector<16x256xf32>
    %403 = arith.truncf %84 : vector<32x32xf32> to vector<32x32xbf16>
    %cst_276 = arith.constant dense<0.000000e+00> : vector<32x64xf32>
    %404 = tpu.matmul %403, %389, %cst_276 {dimension_numbers = #tpu.dot_dimension_numbers<[1], [0], [0], [1], [0, 0, 1, 1], [], []>} : vector<32x32xbf16>, vector<32x64xbf16>, vector<32x64xf32> -> vector<32x64xf32>
    %405 = vector.broadcast %391 : vector<1x64xf32> to vector<32x64xf32>
    %406 = arith.addf %404, %405 : vector<32x64xf32>
    %407 = vector.extract_strided_slice %402 {offsets = [0, 0], sizes = [16, 32], strides = [1, 1]} : vector<16x256xf32> to vector<16x32xf32>
    %408 = vector.extract_strided_slice %402 {offsets = [0, 32], sizes = [16, 32], strides = [1, 1]} : vector<16x256xf32> to vector<16x32xf32>
    %409 = vector.extract_strided_slice %402 {offsets = [0, 64], sizes = [16, 32], strides = [1, 1]} : vector<16x256xf32> to vector<16x32xf32>
    %410 = arith.truncf %407 : vector<16x32xf32> to vector<16x32xbf16>
    %411 = arith.truncf %408 : vector<16x32xf32> to vector<16x32xbf16>
    %cst_277 = arith.constant dense<0.000000e+00> : vector<16x16xf32>
    %412 = tpu.matmul %410, %411, %cst_277 {dimension_numbers = #tpu.dot_dimension_numbers<[1], [1], [0], [0], [0, 0, 1, 0], [], []>} : vector<16x32xbf16>, vector<16x32xbf16>, vector<16x16xf32> -> vector<16x16xf32>
    %413 = arith.addf %412, %5 : vector<16x16xf32>
    %cst_278 = arith.constant dense<0xFF800000> : vector<16xf32>
    %414 = vector.multi_reduction <maximumf>, %413, %cst_278 [1] : vector<16x16xf32> to vector<16xf32>
    %415 = vector.shape_cast %414 : vector<16xf32> to vector<16x1xf32>
    %416 = vector.broadcast %415 : vector<16x1xf32> to vector<16x16xf32>
    %417 = arith.subf %413, %416 : vector<16x16xf32>
    %418 = math.exp %417 : vector<16x16xf32>
    %cst_279 = arith.constant dense<0.000000e+00> : vector<16xf32>
    %419 = vector.multi_reduction <add>, %418, %cst_279 [1] : vector<16x16xf32> to vector<16xf32>
    %420 = vector.shape_cast %419 : vector<16xf32> to vector<16x1xf32>
    %421 = tpu.reciprocal %420 {approx = true} : vector<16x1xf32> -> vector<16x1xf32>
    %422 = vector.broadcast %421 : vector<16x1xf32> to vector<16x16xf32>
    %423 = arith.mulf %418, %422 : vector<16x16xf32>
    %424 = arith.truncf %423 : vector<16x16xf32> to vector<16x16xbf16>
    %425 = arith.truncf %409 : vector<16x32xf32> to vector<16x32xbf16>
    %cst_280 = arith.constant dense<0.000000e+00> : vector<16x32xf32>
    %426 = tpu.matmul %424, %425, %cst_280 {dimension_numbers = #tpu.dot_dimension_numbers<[1], [0], [0], [1], [0, 0, 1, 1], [], []>} : vector<16x16xbf16>, vector<16x32xbf16>, vector<16x32xf32> -> vector<16x32xf32>
    %427 = vector.extract_strided_slice %402 {offsets = [0, 96], sizes = [16, 32], strides = [1, 1]} : vector<16x256xf32> to vector<16x32xf32>
    %428 = vector.extract_strided_slice %406 {offsets = [0, 0], sizes = [32, 32], strides = [1, 1]} : vector<32x64xf32> to vector<32x32xf32>
    %429 = vector.extract_strided_slice %406 {offsets = [0, 32], sizes = [32, 32], strides = [1, 1]} : vector<32x64xf32> to vector<32x32xf32>
    %430 = arith.truncf %427 : vector<16x32xf32> to vector<16x32xbf16>
    %431 = arith.truncf %428 : vector<32x32xf32> to vector<32x32xbf16>
    %cst_281 = arith.constant dense<0.000000e+00> : vector<16x32xf32>
    %432 = tpu.matmul %430, %431, %cst_281 {dimension_numbers = #tpu.dot_dimension_numbers<[1], [1], [0], [0], [0, 0, 1, 0], [], []>} : vector<16x32xbf16>, vector<32x32xbf16>, vector<16x32xf32> -> vector<16x32xf32>
    %433 = arith.addf %432, %4 : vector<16x32xf32>
    %cst_282 = arith.constant dense<0xFF800000> : vector<16xf32>
    %434 = vector.multi_reduction <maximumf>, %433, %cst_282 [1] : vector<16x32xf32> to vector<16xf32>
    %435 = vector.shape_cast %434 : vector<16xf32> to vector<16x1xf32>
    %436 = vector.broadcast %435 : vector<16x1xf32> to vector<16x32xf32>
    %437 = arith.subf %433, %436 : vector<16x32xf32>
    %438 = math.exp %437 : vector<16x32xf32>
    %cst_283 = arith.constant dense<0.000000e+00> : vector<16xf32>
    %439 = vector.multi_reduction <add>, %438, %cst_283 [1] : vector<16x32xf32> to vector<16xf32>
    %440 = vector.shape_cast %439 : vector<16xf32> to vector<16x1xf32>
    %441 = tpu.reciprocal %440 {approx = true} : vector<16x1xf32> -> vector<16x1xf32>
    %442 = vector.broadcast %441 : vector<16x1xf32> to vector<16x32xf32>
    %443 = arith.mulf %438, %442 : vector<16x32xf32>
    %444 = arith.truncf %443 : vector<16x32xf32> to vector<16x32xbf16>
    %445 = arith.truncf %429 : vector<32x32xf32> to vector<32x32xbf16>
    %cst_284 = arith.constant dense<0.000000e+00> : vector<16x32xf32>
    %446 = tpu.matmul %444, %445, %cst_284 {dimension_numbers = #tpu.dot_dimension_numbers<[1], [0], [0], [1], [0, 0, 1, 1], [], []>} : vector<16x32xbf16>, vector<32x32xbf16>, vector<16x32xf32> -> vector<16x32xf32>
    %447 = vector.extract_strided_slice %402 {offsets = [0, 128], sizes = [16, 64], strides = [1, 1]} : vector<16x256xf32> to vector<16x64xf32>
    %cst_285 = arith.constant 0.000000e+00 : f32
    %448 = vector.broadcast %cst_285 : f32 to vector<16x64xf32>
    %449 = arith.maximumf %447, %448 : vector<16x64xf32>
    %450 = vector.broadcast %396 : f32 to vector<16x32xf32>
    %451 = arith.mulf %426, %450 : vector<16x32xf32>
    %452 = vector.broadcast %397 : f32 to vector<16x32xf32>
    %453 = arith.mulf %446, %452 : vector<16x32xf32>
    %454 = vector.broadcast %398 : f32 to vector<16x64xf32>
    %455 = arith.mulf %449, %454 : vector<16x64xf32>
    %456 = tpu.concatenate %451, %453, %455 in 1 : vector<16x32xf32>, vector<16x32xf32>, vector<16x64xf32> -> vector<16x128xf32>
    %457 = vector.extract_strided_slice %395 {offsets = [0, 0], sizes = [1, 32], strides = [1, 1]} : vector<3x32xf32> to vector<1x32xf32>
    %458 = vector.broadcast %396 : f32 to vector<1x32xf32>
    %459 = arith.mulf %458, %457 : vector<1x32xf32>
    %460 = vector.extract_strided_slice %395 {offsets = [1, 0], sizes = [1, 32], strides = [1, 1]} : vector<3x32xf32> to vector<1x32xf32>
    %461 = vector.broadcast %397 : f32 to vector<1x32xf32>
    %462 = arith.mulf %461, %460 : vector<1x32xf32>
    %463 = arith.addf %459, %462 : vector<1x32xf32>
    %464 = vector.extract_strided_slice %395 {offsets = [2, 0], sizes = [1, 32], strides = [1, 1]} : vector<3x32xf32> to vector<1x32xf32>
    %465 = vector.broadcast %398 : f32 to vector<1x32xf32>
    %466 = arith.mulf %465, %464 : vector<1x32xf32>
    %467 = arith.addf %463, %466 : vector<1x32xf32>
    %468 = arith.truncf %456 : vector<16x128xf32> to vector<16x128xbf16>
    %cst_286 = arith.constant dense<0.000000e+00> : vector<16x32xf32>
    %469 = tpu.matmul %468, %393, %cst_286 {dimension_numbers = #tpu.dot_dimension_numbers<[1], [0], [0], [1], [0, 0, 1, 1], [], []>} : vector<16x128xbf16>, vector<128x32xbf16>, vector<16x32xf32> -> vector<16x32xf32>
    %470 = vector.broadcast %467 : vector<1x32xf32> to vector<16x32xf32>
    %471 = arith.addf %469, %470 : vector<16x32xf32>
    %c0_287 = arith.constant 0 : index
    %c2_288 = arith.constant 2 : index
    %c0_289 = arith.constant 0 : index
    %c0_290 = arith.constant 0 : index
    %c0_291 = arith.constant 0 : index
    %472 = vector.load %arg12[%c0_287, %c2_288, %c0_289, %c0_290, %c0_291] : memref<1x3x2x32x256xbf16, #tpu.memory_space<vmem>>, vector<1x1x1x32x256xbf16>
    %473 = vector.shape_cast %472 : vector<1x1x1x32x256xbf16> to vector<32x256xbf16>
    %c0_292 = arith.constant 0 : index
    %c2_293 = arith.constant 2 : index
    %c0_294 = arith.constant 0 : index
    %c0_295 = arith.constant 0 : index
    %c0_296 = arith.constant 0 : index
    %474 = vector.load %arg13[%c0_292, %c2_293, %c0_294, %c0_295, %c0_296] : memref<1x3x2x1x256xf32, #tpu.memory_space<vmem>>, vector<1x1x1x1x256xf32>
    %475 = vector.shape_cast %474 : vector<1x1x1x1x256xf32> to vector<1x256xf32>
    %c0_297 = arith.constant 0 : index
    %c2_298 = arith.constant 2 : index
    %c0_299 = arith.constant 0 : index
    %c0_300 = arith.constant 0 : index
    %c0_301 = arith.constant 0 : index
    %476 = vector.load %arg14[%c0_297, %c2_298, %c0_299, %c0_300, %c0_301] : memref<1x3x2x32x64xbf16, #tpu.memory_space<vmem>>, vector<1x1x1x32x64xbf16>
    %477 = vector.shape_cast %476 : vector<1x1x1x32x64xbf16> to vector<32x64xbf16>
    %c0_302 = arith.constant 0 : index
    %c2_303 = arith.constant 2 : index
    %c0_304 = arith.constant 0 : index
    %c0_305 = arith.constant 0 : index
    %c0_306 = arith.constant 0 : index
    %478 = vector.load %arg15[%c0_302, %c2_303, %c0_304, %c0_305, %c0_306] : memref<1x3x2x1x64xf32, #tpu.memory_space<vmem>>, vector<1x1x1x1x64xf32>
    %479 = vector.shape_cast %478 : vector<1x1x1x1x64xf32> to vector<1x64xf32>
    %c0_307 = arith.constant 0 : index
    %c2_308 = arith.constant 2 : index
    %c0_309 = arith.constant 0 : index
    %c0_310 = arith.constant 0 : index
    %c0_311 = arith.constant 0 : index
    %480 = vector.load %arg16[%c0_307, %c2_308, %c0_309, %c0_310, %c0_311] : memref<1x3x2x128x32xbf16, #tpu.memory_space<vmem>>, vector<1x1x1x128x32xbf16>
    %481 = vector.shape_cast %480 : vector<1x1x1x128x32xbf16> to vector<128x32xbf16>
    %c0_312 = arith.constant 0 : index
    %c2_313 = arith.constant 2 : index
    %c0_314 = arith.constant 0 : index
    %c0_315 = arith.constant 0 : index
    %c0_316 = arith.constant 0 : index
    %482 = vector.load %arg17[%c0_312, %c2_313, %c0_314, %c0_315, %c0_316] : memref<1x3x2x3x32xf32, #tpu.memory_space<vmem>>, vector<1x1x1x3x32xf32>
    %483 = vector.shape_cast %482 : vector<1x1x1x3x32xf32> to vector<3x32xf32>
    %c2_317 = arith.constant 2 : index
    %c0_318 = arith.constant 0 : index
    %484 = memref.load %arg6[%c2_317, %c0_318] : memref<3x3xf32, #tpu.memory_space<smem>>
    %c2_319 = arith.constant 2 : index
    %c1_320 = arith.constant 1 : index
    %485 = memref.load %arg6[%c2_319, %c1_320] : memref<3x3xf32, #tpu.memory_space<smem>>
    %c2_321 = arith.constant 2 : index
    %c2_322 = arith.constant 2 : index
    %486 = memref.load %arg6[%c2_321, %c2_322] : memref<3x3xf32, #tpu.memory_space<smem>>
    %487 = arith.truncf %279 : vector<32x32xf32> to vector<32x32xbf16>
    %cst_323 = arith.constant dense<0.000000e+00> : vector<32x256xf32>
    %488 = tpu.matmul %487, %473, %cst_323 {dimension_numbers = #tpu.dot_dimension_numbers<[1], [0], [0], [1], [0, 0, 1, 1], [], []>} : vector<32x32xbf16>, vector<32x256xbf16>, vector<32x256xf32> -> vector<32x256xf32>
    %489 = vector.broadcast %475 : vector<1x256xf32> to vector<32x256xf32>
    %490 = arith.addf %488, %489 : vector<32x256xf32>
    %491 = arith.truncf %295 : vector<16x32xf32> to vector<16x32xbf16>
    %cst_324 = arith.constant dense<0.000000e+00> : vector<16x64xf32>
    %492 = tpu.matmul %491, %477, %cst_324 {dimension_numbers = #tpu.dot_dimension_numbers<[1], [0], [0], [1], [0, 0, 1, 1], [], []>} : vector<16x32xbf16>, vector<32x64xbf16>, vector<16x64xf32> -> vector<16x64xf32>
    %493 = vector.broadcast %479 : vector<1x64xf32> to vector<16x64xf32>
    %494 = arith.addf %492, %493 : vector<16x64xf32>
    %495 = vector.extract_strided_slice %490 {offsets = [0, 0], sizes = [32, 32], strides = [1, 1]} : vector<32x256xf32> to vector<32x32xf32>
    %496 = vector.extract_strided_slice %490 {offsets = [0, 32], sizes = [32, 32], strides = [1, 1]} : vector<32x256xf32> to vector<32x32xf32>
    %497 = vector.extract_strided_slice %490 {offsets = [0, 64], sizes = [32, 32], strides = [1, 1]} : vector<32x256xf32> to vector<32x32xf32>
    %498 = arith.truncf %495 : vector<32x32xf32> to vector<32x32xbf16>
    %499 = arith.truncf %496 : vector<32x32xf32> to vector<32x32xbf16>
    %cst_325 = arith.constant dense<0.000000e+00> : vector<32x32xf32>
    %500 = tpu.matmul %498, %499, %cst_325 {dimension_numbers = #tpu.dot_dimension_numbers<[1], [1], [0], [0], [0, 0, 1, 0], [], []>} : vector<32x32xbf16>, vector<32x32xbf16>, vector<32x32xf32> -> vector<32x32xf32>
    %501 = arith.addf %500, %2 : vector<32x32xf32>
    %cst_326 = arith.constant dense<0xFF800000> : vector<32xf32>
    %502 = vector.multi_reduction <maximumf>, %501, %cst_326 [1] : vector<32x32xf32> to vector<32xf32>
    %503 = vector.shape_cast %502 : vector<32xf32> to vector<32x1xf32>
    %504 = vector.broadcast %503 : vector<32x1xf32> to vector<32x32xf32>
    %505 = arith.subf %501, %504 : vector<32x32xf32>
    %506 = math.exp %505 : vector<32x32xf32>
    %cst_327 = arith.constant dense<0.000000e+00> : vector<32xf32>
    %507 = vector.multi_reduction <add>, %506, %cst_327 [1] : vector<32x32xf32> to vector<32xf32>
    %508 = vector.shape_cast %507 : vector<32xf32> to vector<32x1xf32>
    %509 = tpu.reciprocal %508 {approx = true} : vector<32x1xf32> -> vector<32x1xf32>
    %510 = vector.broadcast %509 : vector<32x1xf32> to vector<32x32xf32>
    %511 = arith.mulf %506, %510 : vector<32x32xf32>
    %512 = arith.truncf %511 : vector<32x32xf32> to vector<32x32xbf16>
    %513 = arith.truncf %497 : vector<32x32xf32> to vector<32x32xbf16>
    %cst_328 = arith.constant dense<0.000000e+00> : vector<32x32xf32>
    %514 = tpu.matmul %512, %513, %cst_328 {dimension_numbers = #tpu.dot_dimension_numbers<[1], [0], [0], [1], [0, 0, 1, 1], [], []>} : vector<32x32xbf16>, vector<32x32xbf16>, vector<32x32xf32> -> vector<32x32xf32>
    %515 = vector.extract_strided_slice %490 {offsets = [0, 96], sizes = [32, 32], strides = [1, 1]} : vector<32x256xf32> to vector<32x32xf32>
    %516 = vector.extract_strided_slice %494 {offsets = [0, 0], sizes = [16, 32], strides = [1, 1]} : vector<16x64xf32> to vector<16x32xf32>
    %517 = vector.extract_strided_slice %494 {offsets = [0, 32], sizes = [16, 32], strides = [1, 1]} : vector<16x64xf32> to vector<16x32xf32>
    %518 = arith.truncf %515 : vector<32x32xf32> to vector<32x32xbf16>
    %519 = arith.truncf %516 : vector<16x32xf32> to vector<16x32xbf16>
    %cst_329 = arith.constant dense<0.000000e+00> : vector<32x16xf32>
    %520 = tpu.matmul %518, %519, %cst_329 {dimension_numbers = #tpu.dot_dimension_numbers<[1], [1], [0], [0], [0, 0, 1, 0], [], []>} : vector<32x32xbf16>, vector<16x32xbf16>, vector<32x16xf32> -> vector<32x16xf32>
    %521 = arith.addf %520, %3 : vector<32x16xf32>
    %cst_330 = arith.constant dense<0xFF800000> : vector<32xf32>
    %522 = vector.multi_reduction <maximumf>, %521, %cst_330 [1] : vector<32x16xf32> to vector<32xf32>
    %523 = vector.shape_cast %522 : vector<32xf32> to vector<32x1xf32>
    %524 = vector.broadcast %523 : vector<32x1xf32> to vector<32x16xf32>
    %525 = arith.subf %521, %524 : vector<32x16xf32>
    %526 = math.exp %525 : vector<32x16xf32>
    %cst_331 = arith.constant dense<0.000000e+00> : vector<32xf32>
    %527 = vector.multi_reduction <add>, %526, %cst_331 [1] : vector<32x16xf32> to vector<32xf32>
    %528 = vector.shape_cast %527 : vector<32xf32> to vector<32x1xf32>
    %529 = tpu.reciprocal %528 {approx = true} : vector<32x1xf32> -> vector<32x1xf32>
    %530 = vector.broadcast %529 : vector<32x1xf32> to vector<32x16xf32>
    %531 = arith.mulf %526, %530 : vector<32x16xf32>
    %532 = arith.truncf %531 : vector<32x16xf32> to vector<32x16xbf16>
    %533 = arith.truncf %517 : vector<16x32xf32> to vector<16x32xbf16>
    %cst_332 = arith.constant dense<0.000000e+00> : vector<32x32xf32>
    %534 = tpu.matmul %532, %533, %cst_332 {dimension_numbers = #tpu.dot_dimension_numbers<[1], [0], [0], [1], [0, 0, 1, 1], [], []>} : vector<32x16xbf16>, vector<16x32xbf16>, vector<32x32xf32> -> vector<32x32xf32>
    %535 = vector.extract_strided_slice %490 {offsets = [0, 128], sizes = [32, 64], strides = [1, 1]} : vector<32x256xf32> to vector<32x64xf32>
    %cst_333 = arith.constant 0.000000e+00 : f32
    %536 = vector.broadcast %cst_333 : f32 to vector<32x64xf32>
    %537 = arith.maximumf %535, %536 : vector<32x64xf32>
    %538 = vector.broadcast %484 : f32 to vector<32x32xf32>
    %539 = arith.mulf %514, %538 : vector<32x32xf32>
    %540 = vector.broadcast %485 : f32 to vector<32x32xf32>
    %541 = arith.mulf %534, %540 : vector<32x32xf32>
    %542 = vector.broadcast %486 : f32 to vector<32x64xf32>
    %543 = arith.mulf %537, %542 : vector<32x64xf32>
    %544 = tpu.concatenate %539, %541, %543 in 1 : vector<32x32xf32>, vector<32x32xf32>, vector<32x64xf32> -> vector<32x128xf32>
    %545 = vector.extract_strided_slice %483 {offsets = [0, 0], sizes = [1, 32], strides = [1, 1]} : vector<3x32xf32> to vector<1x32xf32>
    %546 = vector.broadcast %484 : f32 to vector<1x32xf32>
    %547 = arith.mulf %546, %545 : vector<1x32xf32>
    %548 = vector.extract_strided_slice %483 {offsets = [1, 0], sizes = [1, 32], strides = [1, 1]} : vector<3x32xf32> to vector<1x32xf32>
    %549 = vector.broadcast %485 : f32 to vector<1x32xf32>
    %550 = arith.mulf %549, %548 : vector<1x32xf32>
    %551 = arith.addf %547, %550 : vector<1x32xf32>
    %552 = vector.extract_strided_slice %483 {offsets = [2, 0], sizes = [1, 32], strides = [1, 1]} : vector<3x32xf32> to vector<1x32xf32>
    %553 = vector.broadcast %486 : f32 to vector<1x32xf32>
    %554 = arith.mulf %553, %552 : vector<1x32xf32>
    %555 = arith.addf %551, %554 : vector<1x32xf32>
    %556 = arith.truncf %544 : vector<32x128xf32> to vector<32x128xbf16>
    %cst_334 = arith.constant dense<0.000000e+00> : vector<32x32xf32>
    %557 = tpu.matmul %556, %481, %cst_334 {dimension_numbers = #tpu.dot_dimension_numbers<[1], [0], [0], [1], [0, 0, 1, 1], [], []>} : vector<32x128xbf16>, vector<128x32xbf16>, vector<32x32xf32> -> vector<32x32xf32>
    %558 = vector.broadcast %555 : vector<1x32xf32> to vector<32x32xf32>
    %559 = arith.addf %557, %558 : vector<32x32xf32>
    %c0_335 = arith.constant 0 : index
    %c2_336 = arith.constant 2 : index
    %c1_337 = arith.constant 1 : index
    %c0_338 = arith.constant 0 : index
    %c0_339 = arith.constant 0 : index
    %560 = vector.load %arg12[%c0_335, %c2_336, %c1_337, %c0_338, %c0_339] : memref<1x3x2x32x256xbf16, #tpu.memory_space<vmem>>, vector<1x1x1x32x256xbf16>
    %561 = vector.shape_cast %560 : vector<1x1x1x32x256xbf16> to vector<32x256xbf16>
    %c0_340 = arith.constant 0 : index
    %c2_341 = arith.constant 2 : index
    %c1_342 = arith.constant 1 : index
    %c0_343 = arith.constant 0 : index
    %c0_344 = arith.constant 0 : index
    %562 = vector.load %arg13[%c0_340, %c2_341, %c1_342, %c0_343, %c0_344] : memref<1x3x2x1x256xf32, #tpu.memory_space<vmem>>, vector<1x1x1x1x256xf32>
    %563 = vector.shape_cast %562 : vector<1x1x1x1x256xf32> to vector<1x256xf32>
    %c0_345 = arith.constant 0 : index
    %c2_346 = arith.constant 2 : index
    %c1_347 = arith.constant 1 : index
    %c0_348 = arith.constant 0 : index
    %c0_349 = arith.constant 0 : index
    %564 = vector.load %arg14[%c0_345, %c2_346, %c1_347, %c0_348, %c0_349] : memref<1x3x2x32x64xbf16, #tpu.memory_space<vmem>>, vector<1x1x1x32x64xbf16>
    %565 = vector.shape_cast %564 : vector<1x1x1x32x64xbf16> to vector<32x64xbf16>
    %c0_350 = arith.constant 0 : index
    %c2_351 = arith.constant 2 : index
    %c1_352 = arith.constant 1 : index
    %c0_353 = arith.constant 0 : index
    %c0_354 = arith.constant 0 : index
    %566 = vector.load %arg15[%c0_350, %c2_351, %c1_352, %c0_353, %c0_354] : memref<1x3x2x1x64xf32, #tpu.memory_space<vmem>>, vector<1x1x1x1x64xf32>
    %567 = vector.shape_cast %566 : vector<1x1x1x1x64xf32> to vector<1x64xf32>
    %c0_355 = arith.constant 0 : index
    %c2_356 = arith.constant 2 : index
    %c1_357 = arith.constant 1 : index
    %c0_358 = arith.constant 0 : index
    %c0_359 = arith.constant 0 : index
    %568 = vector.load %arg16[%c0_355, %c2_356, %c1_357, %c0_358, %c0_359] : memref<1x3x2x128x32xbf16, #tpu.memory_space<vmem>>, vector<1x1x1x128x32xbf16>
    %569 = vector.shape_cast %568 : vector<1x1x1x128x32xbf16> to vector<128x32xbf16>
    %c0_360 = arith.constant 0 : index
    %c2_361 = arith.constant 2 : index
    %c1_362 = arith.constant 1 : index
    %c0_363 = arith.constant 0 : index
    %c0_364 = arith.constant 0 : index
    %570 = vector.load %arg17[%c0_360, %c2_361, %c1_362, %c0_363, %c0_364] : memref<1x3x2x3x32xf32, #tpu.memory_space<vmem>>, vector<1x1x1x3x32xf32>
    %571 = vector.shape_cast %570 : vector<1x1x1x3x32xf32> to vector<3x32xf32>
    %c2_365 = arith.constant 2 : index
    %c0_366 = arith.constant 0 : index
    %572 = memref.load %arg7[%c2_365, %c0_366] : memref<3x3xf32, #tpu.memory_space<smem>>
    %c2_367 = arith.constant 2 : index
    %c1_368 = arith.constant 1 : index
    %573 = memref.load %arg7[%c2_367, %c1_368] : memref<3x3xf32, #tpu.memory_space<smem>>
    %c2_369 = arith.constant 2 : index
    %c2_370 = arith.constant 2 : index
    %574 = memref.load %arg7[%c2_369, %c2_370] : memref<3x3xf32, #tpu.memory_space<smem>>
    %575 = arith.truncf %295 : vector<16x32xf32> to vector<16x32xbf16>
    %cst_371 = arith.constant dense<0.000000e+00> : vector<16x256xf32>
    %576 = tpu.matmul %575, %561, %cst_371 {dimension_numbers = #tpu.dot_dimension_numbers<[1], [0], [0], [1], [0, 0, 1, 1], [], []>} : vector<16x32xbf16>, vector<32x256xbf16>, vector<16x256xf32> -> vector<16x256xf32>
    %577 = vector.broadcast %563 : vector<1x256xf32> to vector<16x256xf32>
    %578 = arith.addf %576, %577 : vector<16x256xf32>
    %579 = arith.truncf %279 : vector<32x32xf32> to vector<32x32xbf16>
    %cst_372 = arith.constant dense<0.000000e+00> : vector<32x64xf32>
    %580 = tpu.matmul %579, %565, %cst_372 {dimension_numbers = #tpu.dot_dimension_numbers<[1], [0], [0], [1], [0, 0, 1, 1], [], []>} : vector<32x32xbf16>, vector<32x64xbf16>, vector<32x64xf32> -> vector<32x64xf32>
    %581 = vector.broadcast %567 : vector<1x64xf32> to vector<32x64xf32>
    %582 = arith.addf %580, %581 : vector<32x64xf32>
    %583 = vector.extract_strided_slice %578 {offsets = [0, 0], sizes = [16, 32], strides = [1, 1]} : vector<16x256xf32> to vector<16x32xf32>
    %584 = vector.extract_strided_slice %578 {offsets = [0, 32], sizes = [16, 32], strides = [1, 1]} : vector<16x256xf32> to vector<16x32xf32>
    %585 = vector.extract_strided_slice %578 {offsets = [0, 64], sizes = [16, 32], strides = [1, 1]} : vector<16x256xf32> to vector<16x32xf32>
    %586 = arith.truncf %583 : vector<16x32xf32> to vector<16x32xbf16>
    %587 = arith.truncf %584 : vector<16x32xf32> to vector<16x32xbf16>
    %cst_373 = arith.constant dense<0.000000e+00> : vector<16x16xf32>
    %588 = tpu.matmul %586, %587, %cst_373 {dimension_numbers = #tpu.dot_dimension_numbers<[1], [1], [0], [0], [0, 0, 1, 0], [], []>} : vector<16x32xbf16>, vector<16x32xbf16>, vector<16x16xf32> -> vector<16x16xf32>
    %589 = arith.addf %588, %5 : vector<16x16xf32>
    %cst_374 = arith.constant dense<0xFF800000> : vector<16xf32>
    %590 = vector.multi_reduction <maximumf>, %589, %cst_374 [1] : vector<16x16xf32> to vector<16xf32>
    %591 = vector.shape_cast %590 : vector<16xf32> to vector<16x1xf32>
    %592 = vector.broadcast %591 : vector<16x1xf32> to vector<16x16xf32>
    %593 = arith.subf %589, %592 : vector<16x16xf32>
    %594 = math.exp %593 : vector<16x16xf32>
    %cst_375 = arith.constant dense<0.000000e+00> : vector<16xf32>
    %595 = vector.multi_reduction <add>, %594, %cst_375 [1] : vector<16x16xf32> to vector<16xf32>
    %596 = vector.shape_cast %595 : vector<16xf32> to vector<16x1xf32>
    %597 = tpu.reciprocal %596 {approx = true} : vector<16x1xf32> -> vector<16x1xf32>
    %598 = vector.broadcast %597 : vector<16x1xf32> to vector<16x16xf32>
    %599 = arith.mulf %594, %598 : vector<16x16xf32>
    %600 = arith.truncf %599 : vector<16x16xf32> to vector<16x16xbf16>
    %601 = arith.truncf %585 : vector<16x32xf32> to vector<16x32xbf16>
    %cst_376 = arith.constant dense<0.000000e+00> : vector<16x32xf32>
    %602 = tpu.matmul %600, %601, %cst_376 {dimension_numbers = #tpu.dot_dimension_numbers<[1], [0], [0], [1], [0, 0, 1, 1], [], []>} : vector<16x16xbf16>, vector<16x32xbf16>, vector<16x32xf32> -> vector<16x32xf32>
    %603 = vector.extract_strided_slice %578 {offsets = [0, 96], sizes = [16, 32], strides = [1, 1]} : vector<16x256xf32> to vector<16x32xf32>
    %604 = vector.extract_strided_slice %582 {offsets = [0, 0], sizes = [32, 32], strides = [1, 1]} : vector<32x64xf32> to vector<32x32xf32>
    %605 = vector.extract_strided_slice %582 {offsets = [0, 32], sizes = [32, 32], strides = [1, 1]} : vector<32x64xf32> to vector<32x32xf32>
    %606 = arith.truncf %603 : vector<16x32xf32> to vector<16x32xbf16>
    %607 = arith.truncf %604 : vector<32x32xf32> to vector<32x32xbf16>
    %cst_377 = arith.constant dense<0.000000e+00> : vector<16x32xf32>
    %608 = tpu.matmul %606, %607, %cst_377 {dimension_numbers = #tpu.dot_dimension_numbers<[1], [1], [0], [0], [0, 0, 1, 0], [], []>} : vector<16x32xbf16>, vector<32x32xbf16>, vector<16x32xf32> -> vector<16x32xf32>
    %609 = arith.addf %608, %4 : vector<16x32xf32>
    %cst_378 = arith.constant dense<0xFF800000> : vector<16xf32>
    %610 = vector.multi_reduction <maximumf>, %609, %cst_378 [1] : vector<16x32xf32> to vector<16xf32>
    %611 = vector.shape_cast %610 : vector<16xf32> to vector<16x1xf32>
    %612 = vector.broadcast %611 : vector<16x1xf32> to vector<16x32xf32>
    %613 = arith.subf %609, %612 : vector<16x32xf32>
    %614 = math.exp %613 : vector<16x32xf32>
    %cst_379 = arith.constant dense<0.000000e+00> : vector<16xf32>
    %615 = vector.multi_reduction <add>, %614, %cst_379 [1] : vector<16x32xf32> to vector<16xf32>
    %616 = vector.shape_cast %615 : vector<16xf32> to vector<16x1xf32>
    %617 = tpu.reciprocal %616 {approx = true} : vector<16x1xf32> -> vector<16x1xf32>
    %618 = vector.broadcast %617 : vector<16x1xf32> to vector<16x32xf32>
    %619 = arith.mulf %614, %618 : vector<16x32xf32>
    %620 = arith.truncf %619 : vector<16x32xf32> to vector<16x32xbf16>
    %621 = arith.truncf %605 : vector<32x32xf32> to vector<32x32xbf16>
    %cst_380 = arith.constant dense<0.000000e+00> : vector<16x32xf32>
    %622 = tpu.matmul %620, %621, %cst_380 {dimension_numbers = #tpu.dot_dimension_numbers<[1], [0], [0], [1], [0, 0, 1, 1], [], []>} : vector<16x32xbf16>, vector<32x32xbf16>, vector<16x32xf32> -> vector<16x32xf32>
    %623 = vector.extract_strided_slice %578 {offsets = [0, 128], sizes = [16, 64], strides = [1, 1]} : vector<16x256xf32> to vector<16x64xf32>
    %cst_381 = arith.constant 0.000000e+00 : f32
    %624 = vector.broadcast %cst_381 : f32 to vector<16x64xf32>
    %625 = arith.maximumf %623, %624 : vector<16x64xf32>
    %626 = vector.broadcast %572 : f32 to vector<16x32xf32>
    %627 = arith.mulf %602, %626 : vector<16x32xf32>
    %628 = vector.broadcast %573 : f32 to vector<16x32xf32>
    %629 = arith.mulf %622, %628 : vector<16x32xf32>
    %630 = vector.broadcast %574 : f32 to vector<16x64xf32>
    %631 = arith.mulf %625, %630 : vector<16x64xf32>
    %632 = tpu.concatenate %627, %629, %631 in 1 : vector<16x32xf32>, vector<16x32xf32>, vector<16x64xf32> -> vector<16x128xf32>
    %633 = vector.extract_strided_slice %571 {offsets = [0, 0], sizes = [1, 32], strides = [1, 1]} : vector<3x32xf32> to vector<1x32xf32>
    %634 = vector.broadcast %572 : f32 to vector<1x32xf32>
    %635 = arith.mulf %634, %633 : vector<1x32xf32>
    %636 = vector.extract_strided_slice %571 {offsets = [1, 0], sizes = [1, 32], strides = [1, 1]} : vector<3x32xf32> to vector<1x32xf32>
    %637 = vector.broadcast %573 : f32 to vector<1x32xf32>
    %638 = arith.mulf %637, %636 : vector<1x32xf32>
    %639 = arith.addf %635, %638 : vector<1x32xf32>
    %640 = vector.extract_strided_slice %571 {offsets = [2, 0], sizes = [1, 32], strides = [1, 1]} : vector<3x32xf32> to vector<1x32xf32>
    %641 = vector.broadcast %574 : f32 to vector<1x32xf32>
    %642 = arith.mulf %641, %640 : vector<1x32xf32>
    %643 = arith.addf %639, %642 : vector<1x32xf32>
    %644 = arith.truncf %632 : vector<16x128xf32> to vector<16x128xbf16>
    %cst_382 = arith.constant dense<0.000000e+00> : vector<16x32xf32>
    %645 = tpu.matmul %644, %569, %cst_382 {dimension_numbers = #tpu.dot_dimension_numbers<[1], [0], [0], [1], [0, 0, 1, 1], [], []>} : vector<16x128xbf16>, vector<128x32xbf16>, vector<16x32xf32> -> vector<16x32xf32>
    %646 = vector.broadcast %643 : vector<1x32xf32> to vector<16x32xf32>
    %647 = arith.addf %645, %646 : vector<16x32xf32>
    %648 = arith.addf %383, %559 : vector<32x32xf32>
    %649 = arith.addf %471, %647 : vector<16x32xf32>
    %cst_383 = arith.constant dense<0.000000e+00> : vector<32xf32>
    %650 = vector.multi_reduction <add>, %648, %cst_383 [1] : vector<32x32xf32> to vector<32xf32>
    %651 = vector.shape_cast %650 : vector<32xf32> to vector<32x1xf32>
    %cst_384 = arith.constant 3.200000e+01 : f32
    %652 = vector.broadcast %cst_384 : f32 to vector<32x1xf32>
    %653 = arith.divf %651, %652 : vector<32x1xf32>
    %654 = vector.broadcast %653 : vector<32x1xf32> to vector<32x32xf32>
    %655 = arith.subf %648, %654 : vector<32x32xf32>
    %656 = arith.mulf %655, %655 : vector<32x32xf32>
    %cst_385 = arith.constant dense<0.000000e+00> : vector<32xf32>
    %657 = vector.multi_reduction <add>, %656, %cst_385 [1] : vector<32x32xf32> to vector<32xf32>
    %658 = vector.shape_cast %657 : vector<32xf32> to vector<32x1xf32>
    %cst_386 = arith.constant 3.200000e+01 : f32
    %659 = vector.broadcast %cst_386 : f32 to vector<32x1xf32>
    %660 = arith.divf %658, %659 : vector<32x1xf32>
    %cst_387 = arith.constant 9.99999974E-6 : f32
    %661 = vector.broadcast %cst_387 : f32 to vector<32x1xf32>
    %662 = arith.addf %660, %661 : vector<32x1xf32>
    %663 = math.rsqrt %662 : vector<32x1xf32>
    %664 = vector.broadcast %663 : vector<32x1xf32> to vector<32x32xf32>
    %665 = arith.mulf %655, %664 : vector<32x32xf32>
    %cst_388 = arith.constant dense<0.000000e+00> : vector<16xf32>
    %666 = vector.multi_reduction <add>, %649, %cst_388 [1] : vector<16x32xf32> to vector<16xf32>
    %667 = vector.shape_cast %666 : vector<16xf32> to vector<16x1xf32>
    %cst_389 = arith.constant 3.200000e+01 : f32
    %668 = vector.broadcast %cst_389 : f32 to vector<16x1xf32>
    %669 = arith.divf %667, %668 : vector<16x1xf32>
    %670 = vector.broadcast %669 : vector<16x1xf32> to vector<16x32xf32>
    %671 = arith.subf %649, %670 : vector<16x32xf32>
    %672 = arith.mulf %671, %671 : vector<16x32xf32>
    %cst_390 = arith.constant dense<0.000000e+00> : vector<16xf32>
    %673 = vector.multi_reduction <add>, %672, %cst_390 [1] : vector<16x32xf32> to vector<16xf32>
    %674 = vector.shape_cast %673 : vector<16xf32> to vector<16x1xf32>
    %cst_391 = arith.constant 3.200000e+01 : f32
    %675 = vector.broadcast %cst_391 : f32 to vector<16x1xf32>
    %676 = arith.divf %674, %675 : vector<16x1xf32>
    %cst_392 = arith.constant 9.99999974E-6 : f32
    %677 = vector.broadcast %cst_392 : f32 to vector<16x1xf32>
    %678 = arith.addf %676, %677 : vector<16x1xf32>
    %679 = math.rsqrt %678 : vector<16x1xf32>
    %680 = vector.broadcast %679 : vector<16x1xf32> to vector<16x32xf32>
    %681 = arith.mulf %671, %680 : vector<16x32xf32>
    %682 = arith.addf %279, %665 : vector<32x32xf32>
    %683 = arith.addf %295, %681 : vector<16x32xf32>
    %cst_393 = arith.constant 5.000000e-01 : f32
    %684 = vector.broadcast %cst_393 : f32 to vector<32x32xf32>
    %685 = arith.mulf %682, %684 : vector<32x32xf32>
    %cst_394 = arith.constant 5.000000e-01 : f32
    %686 = vector.broadcast %cst_394 : f32 to vector<16x32xf32>
    %687 = arith.mulf %683, %686 : vector<16x32xf32>
    %c0_395 = arith.constant 0 : index
    %c0_396 = arith.constant 0 : index
    %c0_397 = arith.constant 0 : index
    %688 = vector.load %arg18[%c0_395, %c0_396, %c0_397] : memref<2x32x64xbf16, #tpu.memory_space<vmem>>, vector<1x32x64xbf16>
    %689 = vector.shape_cast %688 : vector<1x32x64xbf16> to vector<32x64xbf16>
    %c0_398 = arith.constant 0 : index
    %c0_399 = arith.constant 0 : index
    %c0_400 = arith.constant 0 : index
    %690 = vector.load %arg19[%c0_398, %c0_399, %c0_400] : memref<2x1x64xf32, #tpu.memory_space<vmem>>, vector<1x1x64xf32>
    %691 = vector.shape_cast %690 : vector<1x1x64xf32> to vector<1x64xf32>
    %c0_401 = arith.constant 0 : index
    %c0_402 = arith.constant 0 : index
    %c0_403 = arith.constant 0 : index
    %692 = vector.load %arg20[%c0_401, %c0_402, %c0_403] : memref<2x64x32xbf16, #tpu.memory_space<vmem>>, vector<1x64x32xbf16>
    %693 = vector.shape_cast %692 : vector<1x64x32xbf16> to vector<64x32xbf16>
    %c0_404 = arith.constant 0 : index
    %c0_405 = arith.constant 0 : index
    %c0_406 = arith.constant 0 : index
    %694 = vector.load %arg21[%c0_404, %c0_405, %c0_406] : memref<2x1x32xf32, #tpu.memory_space<vmem>>, vector<1x1x32xf32>
    %695 = vector.shape_cast %694 : vector<1x1x32xf32> to vector<1x32xf32>
    %696 = arith.truncf %685 : vector<32x32xf32> to vector<32x32xbf16>
    %cst_407 = arith.constant dense<0.000000e+00> : vector<32x64xf32>
    %697 = tpu.matmul %696, %689, %cst_407 {dimension_numbers = #tpu.dot_dimension_numbers<[1], [0], [0], [1], [0, 0, 1, 1], [], []>} : vector<32x32xbf16>, vector<32x64xbf16>, vector<32x64xf32> -> vector<32x64xf32>
    %698 = vector.broadcast %691 : vector<1x64xf32> to vector<32x64xf32>
    %699 = arith.addf %697, %698 : vector<32x64xf32>
    %cst_408 = arith.constant 0.000000e+00 : f32
    %700 = vector.broadcast %cst_408 : f32 to vector<32x64xf32>
    %701 = arith.maximumf %699, %700 : vector<32x64xf32>
    %702 = arith.truncf %701 : vector<32x64xf32> to vector<32x64xbf16>
    %cst_409 = arith.constant dense<0.000000e+00> : vector<32x32xf32>
    %703 = tpu.matmul %702, %693, %cst_409 {dimension_numbers = #tpu.dot_dimension_numbers<[1], [0], [0], [1], [0, 0, 1, 1], [], []>} : vector<32x64xbf16>, vector<64x32xbf16>, vector<32x32xf32> -> vector<32x32xf32>
    %704 = arith.addf %685, %703 : vector<32x32xf32>
    %705 = vector.broadcast %695 : vector<1x32xf32> to vector<32x32xf32>
    %706 = arith.addf %704, %705 : vector<32x32xf32>
    %c1_410 = arith.constant 1 : index
    %c0_411 = arith.constant 0 : index
    %c0_412 = arith.constant 0 : index
    %707 = vector.load %arg18[%c1_410, %c0_411, %c0_412] : memref<2x32x64xbf16, #tpu.memory_space<vmem>>, vector<1x32x64xbf16>
    %708 = vector.shape_cast %707 : vector<1x32x64xbf16> to vector<32x64xbf16>
    %c1_413 = arith.constant 1 : index
    %c0_414 = arith.constant 0 : index
    %c0_415 = arith.constant 0 : index
    %709 = vector.load %arg19[%c1_413, %c0_414, %c0_415] : memref<2x1x64xf32, #tpu.memory_space<vmem>>, vector<1x1x64xf32>
    %710 = vector.shape_cast %709 : vector<1x1x64xf32> to vector<1x64xf32>
    %c1_416 = arith.constant 1 : index
    %c0_417 = arith.constant 0 : index
    %c0_418 = arith.constant 0 : index
    %711 = vector.load %arg20[%c1_416, %c0_417, %c0_418] : memref<2x64x32xbf16, #tpu.memory_space<vmem>>, vector<1x64x32xbf16>
    %712 = vector.shape_cast %711 : vector<1x64x32xbf16> to vector<64x32xbf16>
    %c1_419 = arith.constant 1 : index
    %c0_420 = arith.constant 0 : index
    %c0_421 = arith.constant 0 : index
    %713 = vector.load %arg21[%c1_419, %c0_420, %c0_421] : memref<2x1x32xf32, #tpu.memory_space<vmem>>, vector<1x1x32xf32>
    %714 = vector.shape_cast %713 : vector<1x1x32xf32> to vector<1x32xf32>
    %715 = arith.truncf %687 : vector<16x32xf32> to vector<16x32xbf16>
    %cst_422 = arith.constant dense<0.000000e+00> : vector<16x64xf32>
    %716 = tpu.matmul %715, %708, %cst_422 {dimension_numbers = #tpu.dot_dimension_numbers<[1], [0], [0], [1], [0, 0, 1, 1], [], []>} : vector<16x32xbf16>, vector<32x64xbf16>, vector<16x64xf32> -> vector<16x64xf32>
    %717 = vector.broadcast %710 : vector<1x64xf32> to vector<16x64xf32>
    %718 = arith.addf %716, %717 : vector<16x64xf32>
    %cst_423 = arith.constant 0.000000e+00 : f32
    %719 = vector.broadcast %cst_423 : f32 to vector<16x64xf32>
    %720 = arith.maximumf %718, %719 : vector<16x64xf32>
    %721 = arith.truncf %720 : vector<16x64xf32> to vector<16x64xbf16>
    %cst_424 = arith.constant dense<0.000000e+00> : vector<16x32xf32>
    %722 = tpu.matmul %721, %712, %cst_424 {dimension_numbers = #tpu.dot_dimension_numbers<[1], [0], [0], [1], [0, 0, 1, 1], [], []>} : vector<16x64xbf16>, vector<64x32xbf16>, vector<16x32xf32> -> vector<16x32xf32>
    %723 = arith.addf %687, %722 : vector<16x32xf32>
    %724 = vector.broadcast %714 : vector<1x32xf32> to vector<16x32xf32>
    %725 = arith.addf %723, %724 : vector<16x32xf32>
    %cst_425 = arith.constant 0.000000e+00 : f32
    %726 = vector.broadcast %cst_425 : f32 to vector<32x96xf32>
    %727 = tpu.concatenate %706, %726 in 1 : vector<32x32xf32>, vector<32x96xf32> -> vector<32x128xf32>
    %c0_426 = arith.constant 0 : index
    %c0_427 = arith.constant 0 : index
    %728 = vector.load %arg22[%c0_426, %c0_427] : memref<48x128xf32, #tpu.memory_space<vmem>>, vector<32x128xf32>
    tpu.vector_store %arg22[%c0_426, %c0_427], %727 {strides = array<i32>} : memref<48x128xf32, #tpu.memory_space<vmem>>, vector<32x128xf32>,
    %cst_428 = arith.constant 0.000000e+00 : f32
    %729 = vector.broadcast %cst_428 : f32 to vector<16x96xf32>
    %730 = tpu.concatenate %725, %729 in 1 : vector<16x32xf32>, vector<16x96xf32> -> vector<16x128xf32>
    %c32 = arith.constant 32 : index
    %c0_429 = arith.constant 0 : index
    %731 = vector.load %arg22[%c32, %c0_429] : memref<48x128xf32, #tpu.memory_space<vmem>>, vector<16x128xf32>
    tpu.vector_store %arg22[%c32, %c0_429], %730 {strides = array<i32>} : memref<48x128xf32, #tpu.memory_space<vmem>>, vector<16x128xf32>,
    return
  }
}

</mosaic_0001>

<llo_original>
// kernel: ne.39
$region0: #{ne.39}
  %s0 = inlined_call_operand.vmem [shape: s32[2,8], index: 0, kind: input, shape index: {}]
  %s1 = inlined_call_operand.vmem [shape: s32[16], index: 1, kind: output, shape index: {}]
  $region1: #{ne.39} parent=0
    #allocation0 [shape = 'u8[4096]{0}', space=vmem, size = 0x1000, scoped, tag = 'scoped mem for output reshape']
    #allocation1 [shape = 'u8[4096]{0}', space=vmem, size = 0x1000, scoped, tag = 'scoped mem for input reshape']
    %s3 = sshllo.u32 0, 2
    %v4 = vld [vmem:[%s0] sm:%s3]
    %5 = vst [vmem:[#allocation1] sm:%s3] %v4
    %v6 = vld [vmem:[#allocation1] sm:$0x1]
    %vm7 = vcmask 64512
    %8 = vst.msk [vmem:[#allocation0] sm:$0x1] %vm7, %v6
    %s9 = scalar_lea.vmem [#allocation1], 1
    %v10 = vld [vmem:[%s9] sm:$0x1]
    %11 = vrot.lane.b32.xlu0 %v10, 8
    %v12 = vpop.permute.xlu0 %11
    %vm13 = vcmask 130112
    %14 = vst.msk [vmem:[#allocation0] sm:$0x1] %vm13, %v12
    %s16 = sshllo.u32 0, 1
    %v18 = vld [vmem:[#allocation0] sm:%s16]
    %s19 = sshllo.u32 0, 1
    %20 = vst [vmem:[%s1] sm:%s19] %v18

// kernel: ne.29
$region0: #{ne.29}
  %s0 = inlined_call_operand.vmem [shape: s32[2,16], index: 0, kind: input, shape index: {}]
  %s1 = inlined_call_operand.vmem [shape: s32[32], index: 1, kind: output, shape index: {}]
  $region1: #{ne.29} parent=0
    #allocation0 [shape = 'u8[4096]{0}', space=vmem, size = 0x1000, scoped, tag = 'scoped mem for output reshape']
    #allocation1 [shape = 'u8[4096]{0}', space=vmem, size = 0x1000, scoped, tag = 'scoped mem for input reshape']
    %s3 = sshllo.u32 0, 2
    %v4 = vld [vmem:[%s0] sm:%s3]
    %5 = vst [vmem:[#allocation1] sm:%s3] %v4
    %v6 = vld [vmem:[#allocation1] sm:$0x1]
    %vm7 = vcmask 130048
    %8 = vst.msk [vmem:[#allocation0] sm:$0x1] %vm7, %v6
    %s9 = scalar_lea.vmem [#allocation1], 1
    %v10 = vld [vmem:[%s9] sm:$0x1]
    %11 = vrot.lane.b32.xlu0 %v10, 16
    %v12 = vpop.permute.xlu0 %11
    %vm13 = vcmask 261248
    %14 = vst.msk [vmem:[#allocation0] sm:$0x1] %vm13, %v12
    %s16 = sshllo.u32 0, 1
    %v18 = vld [vmem:[#allocation0] sm:%s16]
    %s19 = sshllo.u32 0, 1
    %20 = vst [vmem:[%s1] sm:%s19] %v18

// kernel: backbone_forward.1
$region0: #{backbone_forward.1}
  #allocation0 [shape = 'u32[]', space=smem, size = 0x4, offset = 0x4, fixed_abs, tag = 'smem constant byte address 0x4 - core index']
  #allocation1 [shape = 'u32[144,128]{1,0:T(1,128)}', space=vmem, size = 0x12000, scoped, tag = 'internal scratch']
  %s0 = inlined_call_operand.vmem [shape: f32[32,32], index: 0, kind: input, shape index: {}]
  %s1 = inlined_call_operand.vmem [shape: f32[16,32], index: 1, kind: input, shape index: {}]
  %s2 = inlined_call_operand.vmem [shape: f32[32,32], index: 2, kind: input, shape index: {}]
  %s3 = inlined_call_operand.vmem [shape: f32[32,16], index: 3, kind: input, shape index: {}]
  %s4 = inlined_call_operand.vmem [shape: f32[16,32], index: 4, kind: input, shape index: {}]
  %s5 = inlined_call_operand.vmem [shape: f32[16,16], index: 5, kind: input, shape index: {}]
  %s6 = inlined_call_operand.vmem [shape: f32[3,3], index: 6, kind: input, shape index: {}]
  %s7 = inlined_call_operand.vmem [shape: f32[3,3], index: 7, kind: input, shape index: {}]
  %s8 = inlined_call_operand.vmem [shape: bf16[1,4,32,64], index: 8, kind: input, shape index: {}]
  %s9 = inlined_call_operand.vmem [shape: f32[1,4,1,64], index: 9, kind: input, shape index: {}]
  %s10 = inlined_call_operand.vmem [shape: bf16[1,4,64,32], index: 10, kind: input, shape index: {}]
  %s11 = inlined_call_operand.vmem [shape: f32[1,4,1,32], index: 11, kind: input, shape index: {}]
  %s12 = inlined_call_operand.vmem [shape: bf16[1,3,2,32,256], index: 12, kind: input, shape index: {}]
  %s13 = inlined_call_operand.vmem [shape: f32[1,3,2,1,256], index: 13, kind: input, shape index: {}]
  %s14 = inlined_call_operand.vmem [shape: bf16[1,3,2,32,64], index: 14, kind: input, shape index: {}]
  %s15 = inlined_call_operand.vmem [shape: f32[1,3,2,1,64], index: 15, kind: input, shape index: {}]
  %s16 = inlined_call_operand.vmem [shape: bf16[1,3,2,128,32], index: 16, kind: input, shape index: {}]
  %s17 = inlined_call_operand.vmem [shape: f32[1,3,2,3,32], index: 17, kind: input, shape index: {}]
  %s18 = inlined_call_operand.vmem [shape: bf16[2,32,64], index: 18, kind: input, shape index: {}]
  %s19 = inlined_call_operand.vmem [shape: f32[2,1,64], index: 19, kind: input, shape index: {}]
  %s20 = inlined_call_operand.vmem [shape: bf16[2,64,32], index: 20, kind: input, shape index: {}]
  %s21 = inlined_call_operand.vmem [shape: f32[2,1,32], index: 21, kind: input, shape index: {}]
  %s22 = inlined_call_operand.vmem [shape: f32[48,128], index: 22, kind: output, shape index: {}]
  %s23 = sld [smem:[#allocation0]]
  $region106: #{backbone_forward.1} parent=0
    _
  %s25 = ssub.s32 1, %s23
  %s26 = scalar_select 0, %s25, %s23
  $region1: #{backbone_forward.1} parent=0
    #allocation2 [shape = 'u8[2048]{0}', space=smem, size = 0x800, scoped, tag = 'input window, operand 6, single buffered']
    #allocation3 [shape = 's32[1]{0}', space=sflag, size = 0x4, scoped, tag = 'scoped memory for backbone_forward.1']
    #allocation4 [shape = 'u8[2048]{0}', space=smem, size = 0x800, scoped, tag = 'input window, operand 7, single buffered']
    #allocation5 [shape = 's32[1]{0}', space=sflag, size = 0x4, scoped, tag = 'scoped memory for backbone_forward.1']
    %27 = vsyncpa [#allocation3], 0
    %28 = vsyncpa [#allocation5], 0
    // Predicated region
    $region2: #{backbone_forward.1} parent=1 // pred_check
      _
    $region3: #{backbone_forward.1} parent=1 // pred_check_branch
      %30 = sbr.rel (0) target = $region5
    $region4: #{backbone_forward.1} parent=1 // pred_region
      _
    $region5: #{backbone_forward.1} parent=1 // pred_fallthru
      _
    // Predicated region
    $region6: #{backbone_forward.1} parent=1 // pred_check
      _
    $region7: #{backbone_forward.1} parent=1 // pred_check_branch
      %32 = sbr.rel (0) target = $region9
    $region8: #{backbone_forward.1} parent=1 // pred_region
      _
    $region9: #{backbone_forward.1} parent=1 // pred_fallthru
      _
    // Predicated region
    $region10: #{backbone_forward.1} parent=1 // pred_check
      _
    $region11: #{backbone_forward.1} parent=1 // pred_check_branch
      %34 = sbr.rel (0) target = $region13
    $region12: #{backbone_forward.1} parent=1 // pred_region
      _
    $region13: #{backbone_forward.1} parent=1 // pred_fallthru
      _
    // Predicated region
    $region14: #{backbone_forward.1} parent=1 // pred_check
      _
    $region15: #{backbone_forward.1} parent=1 // pred_check_branch
      %36 = sbr.rel (0) target = $region17
    $region16: #{backbone_forward.1} parent=1 // pred_region
      _
    $region17: #{backbone_forward.1} parent=1 // pred_fallthru
      _
    // Predicated region
    $region18: #{backbone_forward.1} parent=1 // pred_check
      _
    $region19: #{backbone_forward.1} parent=1 // pred_check_branch
      %38 = sbr.rel (0) target = $region21
    $region20: #{backbone_forward.1} parent=1 // pred_region
      _
    $region21: #{backbone_forward.1} parent=1 // pred_fallthru
      _
    // Predicated region
    $region22: #{backbone_forward.1} parent=1 // pred_check
      _
    $region23: #{backbone_forward.1} parent=1 // pred_check_branch
      %40 = sbr.rel (0) target = $region25
    $region24: #{backbone_forward.1} parent=1 // pred_region
      _
    $region25: #{backbone_forward.1} parent=1 // pred_fallthru
      _
    // Predicated region
    $region26: #{backbone_forward.1} parent=1 // pred_check
      _
    $region27: #{backbone_forward.1} parent=1 // pred_check_branch
      %42 = sbr.rel (0) target = $region29
    $region28: #{backbone_forward.1} parent=1 // pred_region
      %s44 = ssub.s32 64, 64
      %45 = vsyncadd [#allocation3], %s44
      %s47 = sshll.u32 %s6, 4
      %s48 = int_to_ptr.vmem [resolvable:$true] %s47
      %50 = dma.vmem_to_smem %s48, 64, [#allocation2], [#allocation3]
    $region29: #{backbone_forward.1} parent=1 // pred_fallthru
      _
    // Predicated region
    $region30: #{backbone_forward.1} parent=1 // pred_check
      _
    $region31: #{backbone_forward.1} parent=1 // pred_check_branch
      %52 = sbr.rel (0) target = $region33
    $region32: #{backbone_forward.1} parent=1 // pred_region
      %s54 = ssub.s32 64, 64
      %55 = vsyncadd [#allocation5], %s54
      %s57 = sshll.u32 %s7, 4
      %s58 = int_to_ptr.vmem [resolvable:$true] %s57
      %60 = dma.vmem_to_smem %s58, 64, [#allocation4], [#allocation5]
    $region33: #{backbone_forward.1} parent=1 // pred_fallthru
      _
    // Predicated region
    $region34: #{backbone_forward.1} parent=1 // pred_check
      _
    $region35: #{backbone_forward.1} parent=1 // pred_check_branch
      %62 = sbr.rel (0) target = $region37
    $region36: #{backbone_forward.1} parent=1 // pred_region
      _
    $region37: #{backbone_forward.1} parent=1 // pred_fallthru
      _
    // Predicated region
    $region38: #{backbone_forward.1} parent=1 // pred_check
      _
    $region39: #{backbone_forward.1} parent=1 // pred_check_branch
      %64 = sbr.rel (0) target = $region41
    $region40: #{backbone_forward.1} parent=1 // pred_region
      _
    $region41: #{backbone_forward.1} parent=1 // pred_fallthru
      _
    // Predicated region
    $region42: #{backbone_forward.1} parent=1 // pred_check
      _
    $region43: #{backbone_forward.1} parent=1 // pred_check_branch
      %66 = sbr.rel (0) target = $region45
    $region44: #{backbone_forward.1} parent=1 // pred_region
      _
    $region45: #{backbone_forward.1} parent=1 // pred_fallthru
      _
    // Predicated region
    $region46: #{backbone_forward.1} parent=1 // pred_check
      _
    $region47: #{backbone_forward.1} parent=1 // pred_check_branch
      %68 = sbr.rel (0) target = $region49
    $region48: #{backbone_forward.1} parent=1 // pred_region
      _
    $region49: #{backbone_forward.1} parent=1 // pred_fallthru
      _
    // Predicated region
    $region50: #{backbone_forward.1} parent=1 // pred_check
      _
    $region51: #{backbone_forward.1} parent=1 // pred_check_branch
      %70 = sbr.rel (0) target = $region53
    $region52: #{backbone_forward.1} parent=1 // pred_region
      _
    $region53: #{backbone_forward.1} parent=1 // pred_fallthru
      _
    // Predicated region
    $region54: #{backbone_forward.1} parent=1 // pred_check
      _
    $region55: #{backbone_forward.1} parent=1 // pred_check_branch
      %72 = sbr.rel (0) target = $region57
    $region56: #{backbone_forward.1} parent=1 // pred_region
      _
    $region57: #{backbone_forward.1} parent=1 // pred_fallthru
      _
    // Predicated region
    $region58: #{backbone_forward.1} parent=1 // pred_check
      _
    $region59: #{backbone_forward.1} parent=1 // pred_check_branch
      %74 = sbr.rel (0) target = $region61
    $region60: #{backbone_forward.1} parent=1 // pred_region
      _
    $region61: #{backbone_forward.1} parent=1 // pred_fallthru
      _
    // Predicated region
    $region62: #{backbone_forward.1} parent=1 // pred_check
      _
    $region63: #{backbone_forward.1} parent=1 // pred_check_branch
      %76 = sbr.rel (0) target = $region65
    $region64: #{backbone_forward.1} parent=1 // pred_region
      _
    $region65: #{backbone_forward.1} parent=1 // pred_fallthru
      _
    // Predicated region
    $region66: #{backbone_forward.1} parent=1 // pred_check
      _
    $region67: #{backbone_forward.1} parent=1 // pred_check_branch
      %78 = sbr.rel (0) target = $region69
    $region68: #{backbone_forward.1} parent=1 // pred_region
      _
    $region69: #{backbone_forward.1} parent=1 // pred_fallthru
      _
    // Predicated region
    $region70: #{backbone_forward.1} parent=1 // pred_check
      _
    $region71: #{backbone_forward.1} parent=1 // pred_check_branch
      %80 = sbr.rel (0) target = $region73
    $region72: #{backbone_forward.1} parent=1 // pred_region
      _
    $region73: #{backbone_forward.1} parent=1 // pred_fallthru
      _
    // Predicated region
    $region74: #{backbone_forward.1} parent=1 // pred_check
      _
    $region75: #{backbone_forward.1} parent=1 // pred_check_branch
      %82 = sbr.rel (0) target = $region77
    $region76: #{backbone_forward.1} parent=1 // pred_region
      _
    $region77: #{backbone_forward.1} parent=1 // pred_fallthru
      _
    // Predicated region
    $region78: #{backbone_forward.1} parent=1 // pred_check
      _
    $region79: #{backbone_forward.1} parent=1 // pred_check_branch
      %84 = sbr.rel (0) target = $region81
    $region80: #{backbone_forward.1} parent=1 // pred_region
      _
    $region81: #{backbone_forward.1} parent=1 // pred_fallthru
      _
    // Predicated region
    $region82: #{backbone_forward.1} parent=1 // pred_check
      _
    $region83: #{backbone_forward.1} parent=1 // pred_check_branch
      %86 = sbr.rel (0) target = $region85
    $region84: #{backbone_forward.1} parent=1 // pred_region
      _
    $region85: #{backbone_forward.1} parent=1 // pred_fallthru
      _
    // Predicated region
    $region86: #{backbone_forward.1} parent=1 // pred_check
      _
    $region87: #{backbone_forward.1} parent=1 // pred_check_branch
      %88 = sbr.rel (0) target = $region89
    $region88: #{backbone_forward.1} parent=1 // pred_region
      _
    $region89: #{backbone_forward.1} parent=1 // pred_fallthru
      _
    // Predicated region
    $region90: #{backbone_forward.1} parent=1 // pred_check
      _
    $region91: #{backbone_forward.1} parent=1 // pred_check_branch
      %90 = sbr.rel (0) target = $region93
    $region92: #{backbone_forward.1} parent=1 // pred_region
      %91 = dma.done [#allocation3], 64
    $region93: #{backbone_forward.1} parent=1 // pred_fallthru
      _
    // Predicated region
    $region94: #{backbone_forward.1} parent=1 // pred_check
      _
    $region95: #{backbone_forward.1} parent=1 // pred_check_branch
      %93 = sbr.rel (0) target = $region97
    $region96: #{backbone_forward.1} parent=1 // pred_region
      %94 = dma.done [#allocation5], 64
    $region97: #{backbone_forward.1} parent=1 // pred_fallthru
      _
    %95 = sfence
    %v97 = vld [vmem:[%s0] sm:$0xff]
    %v98 = vld [vmem:[%s0 + $0x8] sm:$0xff]
    %v99 = vld [vmem:[%s0 + $0x10] sm:$0xff]
    %v100 = vld [vmem:[%s0 + $0x18] sm:$0xff]
    %v101 = vld [vmem:[%s1] sm:$0xff]
    %v102 = vld [vmem:[%s1 + $0x8] sm:$0xff]
    %v103 = vld [vmem:[%s2] sm:$0xff]
    %v104 = vld [vmem:[%s2 + $0x8] sm:$0xff]
    %v105 = vld [vmem:[%s2 + $0x10] sm:$0xff]
    %v106 = vld [vmem:[%s2 + $0x18] sm:$0xff]
    %v107 = vld [vmem:[%s3] sm:$0xff]
    %v108 = vld [vmem:[%s3 + $0x8] sm:$0xff]
    %v109 = vld [vmem:[%s3 + $0x10] sm:$0xff]
    %v110 = vld [vmem:[%s3 + $0x18] sm:$0xff]
    %v111 = vld [vmem:[%s4] sm:$0xff]
    %v112 = vld [vmem:[%s4 + $0x8] sm:$0xff]
    %v113 = vld [vmem:[%s5] sm:$0xff]
    %v114 = vld [vmem:[%s5 + $0x8] sm:$0xff]
    %v115 = vld [vmem:[%s8] sm:$0xf]
    %v116 = vld [vmem:[%s8 + $0x4] sm:$0xf]
    %v117 = vld [vmem:[%s8 + $0x8] sm:$0xf]
    %v118 = vld [vmem:[%s8 + $0xc] sm:$0xf]
    %v119 = vld [vmem:[%s9] sm:$0x1]
    %v120 = vld [vmem:[%s10] sm:$0xf]
    %v121 = vld [vmem:[%s10 + $0x4] sm:$0xf]
    %v122 = vld [vmem:[%s10 + $0x8] sm:$0xf]
    %v123 = vld [vmem:[%s10 + $0xc] sm:$0xf]
    %v124 = vld [vmem:[%s10 + $0x10] sm:$0xf]
    %v125 = vld [vmem:[%s10 + $0x14] sm:$0xf]
    %v126 = vld [vmem:[%s10 + $0x18] sm:$0xf]
    %v127 = vld [vmem:[%s10 + $0x1c] sm:$0xf]
    %v128 = vld [vmem:[%s11] sm:$0x1]
    %v129 = vpack.c.bf16 %v98, %v97
    %v130 = vpack.c.bf16 %v100, %v99
    %v132 = vlaneseq
    %v133 = vshrl.u32 %v132, 7
    %v134 = vsub.s32 0, %v133
    %v135 = vrot.slane %v119, %v134
    %v141 = vunpack.c.l.b16 %v115
    %v142 = vunpack.c.l.b16 %v116
    %v143 = vunpack.c.l.b16 %v117
    %v144 = vunpack.c.l.b16 %v118
    %v145 = vpack.c.b16 %v142, %v141
    %v146 = vpack.c.b16 %v144, %v143
    %vm149 = vcmask 261120
    %v151 = vsel %vm149, %v129, 0
    %v154 = vsel %vm149, %v130, 0
    %156 = vmatprep.subr.bf16.mxu0 0
    %157 = vmatpush1.bf16.msra.mxu0 %v145
    %158 = vmatprep.subr.bf16.mxu0 0
    %159 = vmatpush1.bf16.msra.mxu0 %v146
    %160 = vmatprep.subr.bf16.mxu0 0
    %161 = vmatpush1.bf16.msra.mxu0 0
    %162 = vmatprep.subr.bf16.mxu0 0
    %163 = vmatpush1.bf16.msra.mxu0 0
    %164 = vmatprep.subr.bf16.mxu0 0
    %165 = vmatpush1.bf16.msra.mxu0 0
    %166 = vmatprep.subr.bf16.mxu0 0
    %167 = vmatpush1.bf16.msra.mxu0 0
    %168 = vmatprep.subr.bf16.mxu0 0
    %169 = vmatpush1.bf16.msra.mxu0 0
    %170 = vmatprep.subr.bf16.mxu0 0
    %171 = vmatpush1.bf16.msra.mxu0 0
    %172 = vmatprep.subr.bf16.mxu0 0
    %173 = vmatpush1.bf16.msra.mxu0 0
    %174 = vmatprep.subr.bf16.mxu0 0
    %175 = vmatpush1.bf16.msra.mxu0 0
    %176 = vmatprep.subr.bf16.mxu0 0
    %177 = vmatpush1.bf16.msra.mxu0 0
    %178 = vmatprep.subr.bf16.mxu0 0
    %179 = vmatpush1.bf16.msra.mxu0 0
    %180 = vmatprep.subr.bf16.mxu0 0
    %181 = vmatpush1.bf16.msra.mxu0 0
    %182 = vmatprep.subr.bf16.mxu0 0
    %183 = vmatpush1.bf16.msra.mxu0 0
    %184 = vmatprep.subr.bf16.mxu0 0
    %185 = vmatpush1.bf16.msra.mxu0 0
    %186 = vmatprep.subr.bf16.mxu0 0
    %187 = vmatpush1.bf16.msra.mxu0 0
    %188 = vmatprep.mubr.bf16.mxu0 0
    %189 = vmatmul.mubr.bf16.gmra.mrb[0].mxu0 %v151
    %v190 = vpop.f32.mrb[0].mxu0
    %v191 = vadd.f32 %v135, %v190
    %v192 = vpop.f32.mrb[0].mxu0
    %v193 = vpop.f32.mrb[0].mxu0
    %v194 = vadd.f32 %v135, %v193
    %v195 = vpop.f32.mrb[0].mxu0
    %196 = vmatprep.mubr.bf16.mxu0 0
    %197 = vmatmul.mubr.bf16.gmra.mrb[0].mxu0 %v154
    %v198 = vpop.f32.mrb[0].mxu0
    %v199 = vadd.f32 %v135, %v198
    %v200 = vpop.f32.mrb[0].mxu0
    %v201 = vpop.f32.mrb[0].mxu0
    %v202 = vadd.f32 %v135, %v201
    %v203 = vpop.f32.mrb[0].mxu0
    %204 = vdwg.mxu0
    %v205 = vmax.f32 %v191, 0.0
    %v206 = vmax.f32 %v194, 0.0
    %v207 = vmax.f32 %v199, 0.0
    %v208 = vmax.f32 %v202, 0.0
    %v209 = vpack.c.bf16 %v206, %v205
    %v210 = vpack.c.bf16 %v208, %v207
    %v219 = vunpack.c.l.b16 %v120
    %v220 = vunpack.c.l.b16 %v121
    %v221 = vunpack.c.l.b16 %v122
    %v222 = vunpack.c.l.b16 %v123
    %v223 = vunpack.c.l.b16 %v124
    %v224 = vunpack.c.l.b16 %v125
    %v225 = vunpack.c.l.b16 %v126
    %v226 = vunpack.c.l.b16 %v127
    %v227 = vpack.c.b16 %v220, %v219
    %v228 = vpack.c.b16 %v222, %v221
    %v229 = vpack.c.b16 %v224, %v223
    %v230 = vpack.c.b16 %v226, %v225
    %vm235 = vcmask 523264
    %v237 = vsel %vm235, %v209, 0
    %v240 = vsel %vm235, %v210, 0
    %242 = vmatprep.subr.bf16.mxu0 0
    %243 = vmatpush1.bf16.msra.mxu0 %v227
    %244 = vmatprep.subr.bf16.mxu0 0
    %245 = vmatpush1.bf16.msra.mxu0 %v228
    %246 = vmatprep.subr.bf16.mxu0 0
    %247 = vmatpush1.bf16.msra.mxu0 %v229
    %248 = vmatprep.subr.bf16.mxu0 0
    %249 = vmatpush1.bf16.msra.mxu0 %v230
    %250 = vmatprep.subr.bf16.mxu0 0
    %251 = vmatpush1.bf16.msra.mxu0 0
    %252 = vmatprep.subr.bf16.mxu0 0
    %253 = vmatpush1.bf16.msra.mxu0 0
    %254 = vmatprep.subr.bf16.mxu0 0
    %255 = vmatpush1.bf16.msra.mxu0 0
    %256 = vmatprep.subr.bf16.mxu0 0
    %257 = vmatpush1.bf16.msra.mxu0 0
    %258 = vmatprep.subr.bf16.mxu0 0
    %259 = vmatpush1.bf16.msra.mxu0 0
    %260 = vmatprep.subr.bf16.mxu0 0
    %261 = vmatpush1.bf16.msra.mxu0 0
    %262 = vmatprep.subr.bf16.mxu0 0
    %263 = vmatpush1.bf16.msra.mxu0 0
    %264 = vmatprep.subr.bf16.mxu0 0
    %265 = vmatpush1.bf16.msra.mxu0 0
    %266 = vmatprep.subr.bf16.mxu0 0
    %267 = vmatpush1.bf16.msra.mxu0 0
    %268 = vmatprep.subr.bf16.mxu0 0
    %269 = vmatpush1.bf16.msra.mxu0 0
    %270 = vmatprep.subr.bf16.mxu0 0
    %271 = vmatpush1.bf16.msra.mxu0 0
    %272 = vmatprep.subr.bf16.mxu0 0
    %273 = vmatpush1.bf16.msra.mxu0 0
    %274 = vmatprep.mubr.bf16.mxu0 0
    %275 = vmatmul.mubr.bf16.gmra.mrb[0].mxu0 %v237
    %v276 = vpop.f32.mrb[0].mxu0
    %v277 = vadd.f32 0.0, %v276
    %v278 = vpop.f32.mrb[0].mxu0
    %v279 = vpop.f32.mrb[0].mxu0
    %v280 = vadd.f32 0.0, %v279
    %v281 = vpop.f32.mrb[0].mxu0
    %282 = vmatprep.mubr.bf16.mxu0 0
    %283 = vmatmul.mubr.bf16.gmra.mrb[0].mxu0 %v240
    %v284 = vpop.f32.mrb[0].mxu0
    %v285 = vadd.f32 0.0, %v284
    %v286 = vpop.f32.mrb[0].mxu0
    %v287 = vpop.f32.mrb[0].mxu0
    %v288 = vadd.f32 0.0, %v287
    %v289 = vpop.f32.mrb[0].mxu0
    %290 = vdwg.mxu0
    %v291 = vadd.f32 %v97, %v277
    %v292 = vadd.f32 %v98, %v280
    %v293 = vadd.f32 %v99, %v285
    %v294 = vadd.f32 %v100, %v288
    %v296 = vlaneseq
    %v297 = vshrl.u32 %v296, 7
    %v298 = vsub.s32 0, %v297
    %v299 = vrot.slane %v128, %v298
    %v301 = vadd.f32 %v291, %v299
    %v302 = vadd.f32 %v292, %v299
    %v303 = vadd.f32 %v293, %v299
    %v304 = vadd.f32 %v294, %v299
    %s305 = scalar_lea.vmem %s8, 16
    %v306 = vld [vmem:[%s305] sm:$0xf]
    %v307 = vld [vmem:[%s305 + $0x4] sm:$0xf]
    %v308 = vld [vmem:[%s305 + $0x8] sm:$0xf]
    %v309 = vld [vmem:[%s305 + $0xc] sm:$0xf]
    %s310 = scalar_lea.vmem %s9, 1
    %v311 = vld [vmem:[%s310] sm:$0x1]
    %s312 = scalar_lea.vmem %s10, 32
    %v313 = vld [vmem:[%s312] sm:$0xf]
    %v314 = vld [vmem:[%s312 + $0x4] sm:$0xf]
    %v315 = vld [vmem:[%s312 + $0x8] sm:$0xf]
    %v316 = vld [vmem:[%s312 + $0xc] sm:$0xf]
    %v317 = vld [vmem:[%s312 + $0x10] sm:$0xf]
    %v318 = vld [vmem:[%s312 + $0x14] sm:$0xf]
    %v319 = vld [vmem:[%s312 + $0x18] sm:$0xf]
    %v320 = vld [vmem:[%s312 + $0x1c] sm:$0xf]
    %s321 = scalar_lea.vmem %s11, 1
    %v322 = vld [vmem:[%s321] sm:$0x1]
    %v323 = vpack.c.bf16 %v102, %v101
    %v325 = vlaneseq
    %v326 = vshrl.u32 %v325, 7
    %v327 = vsub.s32 0, %v326
    %v328 = vrot.slane %v311, %v327
    %v334 = vunpack.c.l.b16 %v306
    %v335 = vunpack.c.l.b16 %v307
    %v336 = vunpack.c.l.b16 %v308
    %v337 = vunpack.c.l.b16 %v309
    %v338 = vpack.c.b16 %v335, %v334
    %v339 = vpack.c.b16 %v337, %v336
    %v343 = vsel %vm149, %v323, 0
    %345 = vmatprep.subr.bf16.mxu0 0
    %346 = vmatpush1.bf16.msra.mxu0 %v338
    %347 = vmatprep.subr.bf16.mxu0 0
    %348 = vmatpush1.bf16.msra.mxu0 %v339
    %349 = vmatprep.subr.bf16.mxu0 0
    %350 = vmatpush1.bf16.msra.mxu0 0
    %351 = vmatprep.subr.bf16.mxu0 0
    %352 = vmatpush1.bf16.msra.mxu0 0
    %353 = vmatprep.subr.bf16.mxu0 0
    %354 = vmatpush1.bf16.msra.mxu0 0
    %355 = vmatprep.subr.bf16.mxu0 0
    %356 = vmatpush1.bf16.msra.mxu0 0
    %357 = vmatprep.subr.bf16.mxu0 0
    %358 = vmatpush1.bf16.msra.mxu0 0
    %359 = vmatprep.subr.bf16.mxu0 0
    %360 = vmatpush1.bf16.msra.mxu0 0
    %361 = vmatprep.subr.bf16.mxu0 0
    %362 = vmatpush1.bf16.msra.mxu0 0
    %363 = vmatprep.subr.bf16.mxu0 0
    %364 = vmatpush1.bf16.msra.mxu0 0
    %365 = vmatprep.subr.bf16.mxu0 0
    %366 = vmatpush1.bf16.msra.mxu0 0
    %367 = vmatprep.subr.bf16.mxu0 0
    %368 = vmatpush1.bf16.msra.mxu0 0
    %369 = vmatprep.subr.bf16.mxu0 0
    %370 = vmatpush1.bf16.msra.mxu0 0
    %371 = vmatprep.subr.bf16.mxu0 0
    %372 = vmatpush1.bf16.msra.mxu0 0
    %373 = vmatprep.subr.bf16.mxu0 0
    %374 = vmatpush1.bf16.msra.mxu0 0
    %375 = vmatprep.subr.bf16.mxu0 0
    %376 = vmatpush1.bf16.msra.mxu0 0
    %377 = vmatprep.mubr.bf16.mxu0 0
    %378 = vmatmul.mubr.bf16.gmra.mrb[0].mxu0 %v343
    %v379 = vpop.f32.mrb[0].mxu0
    %v380 = vadd.f32 %v328, %v379
    %v381 = vpop.f32.mrb[0].mxu0
    %v382 = vpop.f32.mrb[0].mxu0
    %v383 = vadd.f32 %v328, %v382
    %v384 = vpop.f32.mrb[0].mxu0
    %385 = vdwg.mxu0
    %v386 = vmax.f32 %v380, 0.0
    %v387 = vmax.f32 %v383, 0.0
    %v388 = vpack.c.bf16 %v387, %v386
    %v397 = vunpack.c.l.b16 %v313
    %v398 = vunpack.c.l.b16 %v314
    %v399 = vunpack.c.l.b16 %v315
    %v400 = vunpack.c.l.b16 %v316
    %v401 = vunpack.c.l.b16 %v317
    %v402 = vunpack.c.l.b16 %v318
    %v403 = vunpack.c.l.b16 %v319
    %v404 = vunpack.c.l.b16 %v320
    %v405 = vpack.c.b16 %v398, %v397
    %v406 = vpack.c.b16 %v400, %v399
    %v407 = vpack.c.b16 %v402, %v401
    %v408 = vpack.c.b16 %v404, %v403
    %v414 = vsel %vm235, %v388, 0
    %416 = vmatprep.subr.bf16.mxu0 0
    %417 = vmatpush1.bf16.msra.mxu0 %v405
    %418 = vmatprep.subr.bf16.mxu0 0
    %419 = vmatpush1.bf16.msra.mxu0 %v406
    %420 = vmatprep.subr.bf16.mxu0 0
    %421 = vmatpush1.bf16.msra.mxu0 %v407
    %422 = vmatprep.subr.bf16.mxu0 0
    %423 = vmatpush1.bf16.msra.mxu0 %v408
    %424 = vmatprep.subr.bf16.mxu0 0
    %425 = vmatpush1.bf16.msra.mxu0 0
    %426 = vmatprep.subr.bf16.mxu0 0
    %427 = vmatpush1.bf16.msra.mxu0 0
    %428 = vmatprep.subr.bf16.mxu0 0
    %429 = vmatpush1.bf16.msra.mxu0 0
    %430 = vmatprep.subr.bf16.mxu0 0
    %431 = vmatpush1.bf16.msra.mxu0 0
    %432 = vmatprep.subr.bf16.mxu0 0
    %433 = vmatpush1.bf16.msra.mxu0 0
    %434 = vmatprep.subr.bf16.mxu0 0
    %435 = vmatpush1.bf16.msra.mxu0 0
    %436 = vmatprep.subr.bf16.mxu0 0
    %437 = vmatpush1.bf16.msra.mxu0 0
    %438 = vmatprep.subr.bf16.mxu0 0
    %439 = vmatpush1.bf16.msra.mxu0 0
    %440 = vmatprep.subr.bf16.mxu0 0
    %441 = vmatpush1.bf16.msra.mxu0 0
    %442 = vmatprep.subr.bf16.mxu0 0
    %443 = vmatpush1.bf16.msra.mxu0 0
    %444 = vmatprep.subr.bf16.mxu0 0
    %445 = vmatpush1.bf16.msra.mxu0 0
    %446 = vmatprep.subr.bf16.mxu0 0
    %447 = vmatpush1.bf16.msra.mxu0 0
    %448 = vmatprep.mubr.bf16.mxu0 0
    %449 = vmatmul.mubr.bf16.gmra.mrb[0].mxu0 %v414
    %v450 = vpop.f32.mrb[0].mxu0
    %v451 = vadd.f32 0.0, %v450
    %v452 = vpop.f32.mrb[0].mxu0
    %v453 = vpop.f32.mrb[0].mxu0
    %v454 = vadd.f32 0.0, %v453
    %v455 = vpop.f32.mrb[0].mxu0
    %456 = vdwg.mxu0
    %v457 = vadd.f32 %v101, %v451
    %v458 = vadd.f32 %v102, %v454
    %v460 = vlaneseq
    %v461 = vshrl.u32 %v460, 7
    %v462 = vsub.s32 0, %v461
    %v463 = vrot.slane %v322, %v462
    %v465 = vadd.f32 %v457, %v463
    %v466 = vadd.f32 %v458, %v463
    %s467 = scalar_lea.vmem %s8, 32
    %v468 = vld [vmem:[%s467] sm:$0xf]
    %v469 = vld [vmem:[%s467 + $0x4] sm:$0xf]
    %v470 = vld [vmem:[%s467 + $0x8] sm:$0xf]
    %v471 = vld [vmem:[%s467 + $0xc] sm:$0xf]
    %s472 = scalar_lea.vmem %s9, 2
    %v473 = vld [vmem:[%s472] sm:$0x1]
    %s474 = scalar_lea.vmem %s10, 64
    %v475 = vld [vmem:[%s474] sm:$0xf]
    %v476 = vld [vmem:[%s474 + $0x4] sm:$0xf]
    %v477 = vld [vmem:[%s474 + $0x8] sm:$0xf]
    %v478 = vld [vmem:[%s474 + $0xc] sm:$0xf]
    %v479 = vld [vmem:[%s474 + $0x10] sm:$0xf]
    %v480 = vld [vmem:[%s474 + $0x14] sm:$0xf]
    %v481 = vld [vmem:[%s474 + $0x18] sm:$0xf]
    %v482 = vld [vmem:[%s474 + $0x1c] sm:$0xf]
    %s483 = scalar_lea.vmem %s11, 2
    %v484 = vld [vmem:[%s483] sm:$0x1]
    %v486 = vlaneseq
    %v487 = vshrl.u32 %v486, 7
    %v488 = vsub.s32 0, %v487
    %v489 = vrot.slane %v473, %v488
    %v495 = vunpack.c.l.b16 %v468
    %v496 = vunpack.c.l.b16 %v469
    %v497 = vunpack.c.l.b16 %v470
    %v498 = vunpack.c.l.b16 %v471
    %v499 = vpack.c.b16 %v496, %v495
    %v500 = vpack.c.b16 %v498, %v497
    %503 = vmatprep.subr.bf16.mxu0 0
    %504 = vmatpush1.bf16.msra.mxu0 %v499
    %505 = vmatprep.subr.bf16.mxu0 0
    %506 = vmatpush1.bf16.msra.mxu0 %v500
    %507 = vmatprep.subr.bf16.mxu0 0
    %508 = vmatpush1.bf16.msra.mxu0 0
    %509 = vmatprep.subr.bf16.mxu0 0
    %510 = vmatpush1.bf16.msra.mxu0 0
    %511 = vmatprep.subr.bf16.mxu0 0
    %512 = vmatpush1.bf16.msra.mxu0 0
    %513 = vmatprep.subr.bf16.mxu0 0
    %514 = vmatpush1.bf16.msra.mxu0 0
    %515 = vmatprep.subr.bf16.mxu0 0
    %516 = vmatpush1.bf16.msra.mxu0 0
    %517 = vmatprep.subr.bf16.mxu0 0
    %518 = vmatpush1.bf16.msra.mxu0 0
    %519 = vmatprep.subr.bf16.mxu0 0
    %520 = vmatpush1.bf16.msra.mxu0 0
    %521 = vmatprep.subr.bf16.mxu0 0
    %522 = vmatpush1.bf16.msra.mxu0 0
    %523 = vmatprep.subr.bf16.mxu0 0
    %524 = vmatpush1.bf16.msra.mxu0 0
    %525 = vmatprep.subr.bf16.mxu0 0
    %526 = vmatpush1.bf16.msra.mxu0 0
    %527 = vmatprep.subr.bf16.mxu0 0
    %528 = vmatpush1.bf16.msra.mxu0 0
    %529 = vmatprep.subr.bf16.mxu0 0
    %530 = vmatpush1.bf16.msra.mxu0 0
    %531 = vmatprep.subr.bf16.mxu0 0
    %532 = vmatpush1.bf16.msra.mxu0 0
    %533 = vmatprep.subr.bf16.mxu0 0
    %534 = vmatpush1.bf16.msra.mxu0 0
    %535 = vmatprep.mubr.bf16.mxu0 0
    %536 = vmatmul.mubr.bf16.gmra.mrb[0].mxu0 %v151
    %v537 = vpop.f32.mrb[0].mxu0
    %v538 = vadd.f32 %v489, %v537
    %v539 = vpop.f32.mrb[0].mxu0
    %v540 = vpop.f32.mrb[0].mxu0
    %v541 = vadd.f32 %v489, %v540
    %v542 = vpop.f32.mrb[0].mxu0
    %543 = vmatprep.mubr.bf16.mxu0 0
    %544 = vmatmul.mubr.bf16.gmra.mrb[0].mxu0 %v154
    %v545 = vpop.f32.mrb[0].mxu0
    %v546 = vadd.f32 %v489, %v545
    %v547 = vpop.f32.mrb[0].mxu0
    %v548 = vpop.f32.mrb[0].mxu0
    %v549 = vadd.f32 %v489, %v548
    %v550 = vpop.f32.mrb[0].mxu0
    %551 = vdwg.mxu0
    %v552 = vmax.f32 %v538, 0.0
    %v553 = vmax.f32 %v541, 0.0
    %v554 = vmax.f32 %v546, 0.0
    %v555 = vmax.f32 %v549, 0.0
    %v556 = vpack.c.bf16 %v553, %v552
    %v557 = vpack.c.bf16 %v555, %v554
    %v566 = vunpack.c.l.b16 %v475
    %v567 = vunpack.c.l.b16 %v476
    %v568 = vunpack.c.l.b16 %v477
    %v569 = vunpack.c.l.b16 %v478
    %v570 = vunpack.c.l.b16 %v479
    %v571 = vunpack.c.l.b16 %v480
    %v572 = vunpack.c.l.b16 %v481
    %v573 = vunpack.c.l.b16 %v482
    %v574 = vpack.c.b16 %v567, %v566
    %v575 = vpack.c.b16 %v569, %v568
    %v576 = vpack.c.b16 %v571, %v570
    %v577 = vpack.c.b16 %v573, %v572
    %v583 = vsel %vm235, %v556, 0
    %v586 = vsel %vm235, %v557, 0
    %588 = vmatprep.subr.bf16.mxu0 0
    %589 = vmatpush1.bf16.msra.mxu0 %v574
    %590 = vmatprep.subr.bf16.mxu0 0
    %591 = vmatpush1.bf16.msra.mxu0 %v575
    %592 = vmatprep.subr.bf16.mxu0 0
    %593 = vmatpush1.bf16.msra.mxu0 %v576
    %594 = vmatprep.subr.bf16.mxu0 0
    %595 = vmatpush1.bf16.msra.mxu0 %v577
    %596 = vmatprep.subr.bf16.mxu0 0
    %597 = vmatpush1.bf16.msra.mxu0 0
    %598 = vmatprep.subr.bf16.mxu0 0
    %599 = vmatpush1.bf16.msra.mxu0 0
    %600 = vmatprep.subr.bf16.mxu0 0
    %601 = vmatpush1.bf16.msra.mxu0 0
    %602 = vmatprep.subr.bf16.mxu0 0
    %603 = vmatpush1.bf16.msra.mxu0 0
    %604 = vmatprep.subr.bf16.mxu0 0
    %605 = vmatpush1.bf16.msra.mxu0 0
    %606 = vmatprep.subr.bf16.mxu0 0
    %607 = vmatpush1.bf16.msra.mxu0 0
    %608 = vmatprep.subr.bf16.mxu0 0
    %609 = vmatpush1.bf16.msra.mxu0 0
    %610 = vmatprep.subr.bf16.mxu0 0
    %611 = vmatpush1.bf16.msra.mxu0 0
    %612 = vmatprep.subr.bf16.mxu0 0
    %613 = vmatpush1.bf16.msra.mxu0 0
    %614 = vmatprep.subr.bf16.mxu0 0
    %615 = vmatpush1.bf16.msra.mxu0 0
    %616 = vmatprep.subr.bf16.mxu0 0
    %617 = vmatpush1.bf16.msra.mxu0 0
    %618 = vmatprep.subr.bf16.mxu0 0
    %619 = vmatpush1.bf16.msra.mxu0 0
    %620 = vmatprep.mubr.bf16.mxu0 0
    %621 = vmatmul.mubr.bf16.gmra.mrb[0].mxu0 %v583
    %v622 = vpop.f32.mrb[0].mxu0
    %v623 = vadd.f32 0.0, %v622
    %v624 = vpop.f32.mrb[0].mxu0
    %v625 = vpop.f32.mrb[0].mxu0
    %v626 = vadd.f32 0.0, %v625
    %v627 = vpop.f32.mrb[0].mxu0
    %628 = vmatprep.mubr.bf16.mxu0 0
    %629 = vmatmul.mubr.bf16.gmra.mrb[0].mxu0 %v586
    %v630 = vpop.f32.mrb[0].mxu0
    %v631 = vadd.f32 0.0, %v630
    %v632 = vpop.f32.mrb[0].mxu0
    %v633 = vpop.f32.mrb[0].mxu0
    %v634 = vadd.f32 0.0, %v633
    %v635 = vpop.f32.mrb[0].mxu0
    %636 = vdwg.mxu0
    %v637 = vadd.f32 %v97, %v623
    %v638 = vadd.f32 %v98, %v626
    %v639 = vadd.f32 %v99, %v631
    %v640 = vadd.f32 %v100, %v634
    %v642 = vlaneseq
    %v643 = vshrl.u32 %v642, 7
    %v644 = vsub.s32 0, %v643
    %v645 = vrot.slane %v484, %v644
    %v647 = vadd.f32 %v637, %v645
    %v648 = vadd.f32 %v638, %v645
    %v649 = vadd.f32 %v639, %v645
    %v650 = vadd.f32 %v640, %v645
    %s651 = scalar_lea.vmem %s8, 48
    %v652 = vld [vmem:[%s651] sm:$0xf]
    %v653 = vld [vmem:[%s651 + $0x4] sm:$0xf]
    %v654 = vld [vmem:[%s651 + $0x8] sm:$0xf]
    %v655 = vld [vmem:[%s651 + $0xc] sm:$0xf]
    %s656 = scalar_lea.vmem %s9, 3
    %v657 = vld [vmem:[%s656] sm:$0x1]
    %s658 = scalar_lea.vmem %s10, 96
    %v659 = vld [vmem:[%s658] sm:$0xf]
    %v660 = vld [vmem:[%s658 + $0x4] sm:$0xf]
    %v661 = vld [vmem:[%s658 + $0x8] sm:$0xf]
    %v662 = vld [vmem:[%s658 + $0xc] sm:$0xf]
    %v663 = vld [vmem:[%s658 + $0x10] sm:$0xf]
    %v664 = vld [vmem:[%s658 + $0x14] sm:$0xf]
    %v665 = vld [vmem:[%s658 + $0x18] sm:$0xf]
    %v666 = vld [vmem:[%s658 + $0x1c] sm:$0xf]
    %s667 = scalar_lea.vmem %s11, 3
    %v668 = vld [vmem:[%s667] sm:$0x1]
    %v670 = vlaneseq
    %v671 = vshrl.u32 %v670, 7
    %v672 = vsub.s32 0, %v671
    %v673 = vrot.slane %v657, %v672
    %v679 = vunpack.c.l.b16 %v652
    %v680 = vunpack.c.l.b16 %v653
    %v681 = vunpack.c.l.b16 %v654
    %v682 = vunpack.c.l.b16 %v655
    %v683 = vpack.c.b16 %v680, %v679
    %v684 = vpack.c.b16 %v682, %v681
    %687 = vmatprep.subr.bf16.mxu0 0
    %688 = vmatpush1.bf16.msra.mxu0 %v683
    %689 = vmatprep.subr.bf16.mxu0 0
    %690 = vmatpush1.bf16.msra.mxu0 %v684
    %691 = vmatprep.subr.bf16.mxu0 0
    %692 = vmatpush1.bf16.msra.mxu0 0
    %693 = vmatprep.subr.bf16.mxu0 0
    %694 = vmatpush1.bf16.msra.mxu0 0
    %695 = vmatprep.subr.bf16.mxu0 0
    %696 = vmatpush1.bf16.msra.mxu0 0
    %697 = vmatprep.subr.bf16.mxu0 0
    %698 = vmatpush1.bf16.msra.mxu0 0
    %699 = vmatprep.subr.bf16.mxu0 0
    %700 = vmatpush1.bf16.msra.mxu0 0
    %701 = vmatprep.subr.bf16.mxu0 0
    %702 = vmatpush1.bf16.msra.mxu0 0
    %703 = vmatprep.subr.bf16.mxu0 0
    %704 = vmatpush1.bf16.msra.mxu0 0
    %705 = vmatprep.subr.bf16.mxu0 0
    %706 = vmatpush1.bf16.msra.mxu0 0
    %707 = vmatprep.subr.bf16.mxu0 0
    %708 = vmatpush1.bf16.msra.mxu0 0
    %709 = vmatprep.subr.bf16.mxu0 0
    %710 = vmatpush1.bf16.msra.mxu0 0
    %711 = vmatprep.subr.bf16.mxu0 0
    %712 = vmatpush1.bf16.msra.mxu0 0
    %713 = vmatprep.subr.bf16.mxu0 0
    %714 = vmatpush1.bf16.msra.mxu0 0
    %715 = vmatprep.subr.bf16.mxu0 0
    %716 = vmatpush1.bf16.msra.mxu0 0
    %717 = vmatprep.subr.bf16.mxu0 0
    %718 = vmatpush1.bf16.msra.mxu0 0
    %719 = vmatprep.mubr.bf16.mxu0 0
    %720 = vmatmul.mubr.bf16.gmra.mrb[0].mxu0 %v343
    %v721 = vpop.f32.mrb[0].mxu0
    %v722 = vadd.f32 %v673, %v721
    %v723 = vpop.f32.mrb[0].mxu0
    %v724 = vpop.f32.mrb[0].mxu0
    %v725 = vadd.f32 %v673, %v724
    %v726 = vpop.f32.mrb[0].mxu0
    %727 = vdwg.mxu0
    %v728 = vmax.f32 %v722, 0.0
    %v729 = vmax.f32 %v725, 0.0
    %v730 = vpack.c.bf16 %v729, %v728
    %v739 = vunpack.c.l.b16 %v659
    %v740 = vunpack.c.l.b16 %v660
    %v741 = vunpack.c.l.b16 %v661
    %v742 = vunpack.c.l.b16 %v662
    %v743 = vunpack.c.l.b16 %v663
    %v744 = vunpack.c.l.b16 %v664
    %v745 = vunpack.c.l.b16 %v665
    %v746 = vunpack.c.l.b16 %v666
    %v747 = vpack.c.b16 %v740, %v739
    %v748 = vpack.c.b16 %v742, %v741
    %v749 = vpack.c.b16 %v744, %v743
    %v750 = vpack.c.b16 %v746, %v745
    %v756 = vsel %vm235, %v730, 0
    %758 = vmatprep.subr.bf16.mxu0 0
    %759 = vmatpush1.bf16.msra.mxu0 %v747
    %760 = vmatprep.subr.bf16.mxu0 0
    %761 = vmatpush1.bf16.msra.mxu0 %v748
    %762 = vmatprep.subr.bf16.mxu0 0
    %763 = vmatpush1.bf16.msra.mxu0 %v749
    %764 = vmatprep.subr.bf16.mxu0 0
    %765 = vmatpush1.bf16.msra.mxu0 %v750
    %766 = vmatprep.subr.bf16.mxu0 0
    %767 = vmatpush1.bf16.msra.mxu0 0
    %768 = vmatprep.subr.bf16.mxu0 0
    %769 = vmatpush1.bf16.msra.mxu0 0
    %770 = vmatprep.subr.bf16.mxu0 0
    %771 = vmatpush1.bf16.msra.mxu0 0
    %772 = vmatprep.subr.bf16.mxu0 0
    %773 = vmatpush1.bf16.msra.mxu0 0
    %774 = vmatprep.subr.bf16.mxu0 0
    %775 = vmatpush1.bf16.msra.mxu0 0
    %776 = vmatprep.subr.bf16.mxu0 0
    %777 = vmatpush1.bf16.msra.mxu0 0
    %778 = vmatprep.subr.bf16.mxu0 0
    %779 = vmatpush1.bf16.msra.mxu0 0
    %780 = vmatprep.subr.bf16.mxu0 0
    %781 = vmatpush1.bf16.msra.mxu0 0
    %782 = vmatprep.subr.bf16.mxu0 0
    %783 = vmatpush1.bf16.msra.mxu0 0
    %784 = vmatprep.subr.bf16.mxu0 0
    %785 = vmatpush1.bf16.msra.mxu0 0
    %786 = vmatprep.subr.bf16.mxu0 0
    %787 = vmatpush1.bf16.msra.mxu0 0
    %788 = vmatprep.subr.bf16.mxu0 0
    %789 = vmatpush1.bf16.msra.mxu0 0
    %790 = vmatprep.mubr.bf16.mxu0 0
    %791 = vmatmul.mubr.bf16.gmra.mrb[0].mxu0 %v756
    %v792 = vpop.f32.mrb[0].mxu0
    %v793 = vadd.f32 0.0, %v792
    %v794 = vpop.f32.mrb[0].mxu0
    %v795 = vpop.f32.mrb[0].mxu0
    %v796 = vadd.f32 0.0, %v795
    %v797 = vpop.f32.mrb[0].mxu0
    %798 = vdwg.mxu0
    %v799 = vadd.f32 %v101, %v793
    %v800 = vadd.f32 %v102, %v796
    %v802 = vlaneseq
    %v803 = vshrl.u32 %v802, 7
    %v804 = vsub.s32 0, %v803
    %v805 = vrot.slane %v668, %v804
    %v807 = vadd.f32 %v799, %v805
    %v808 = vadd.f32 %v800, %v805
    %v809 = vadd.f32 %v301, %v647
    %v810 = vadd.f32 %v302, %v648
    %v811 = vadd.f32 %v303, %v649
    %v812 = vadd.f32 %v304, %v650
    %v813 = vmul.f32 %v809, 0.5
    %v814 = vmul.f32 %v810, 0.5
    %v815 = vmul.f32 %v811, 0.5
    %v816 = vmul.f32 %v812, 0.5
    %v817 = vadd.f32 %v465, %v807
    %v818 = vadd.f32 %v466, %v808
    %v819 = vmul.f32 %v817, 0.5
    %v820 = vmul.f32 %v818, 0.5
    %v821 = vld [vmem:[%s12] sm:$0xff]
    %v822 = vld [vmem:[%s12 + $0x8] sm:$0xff]
    %v823 = vld [vmem:[%s12 + $0x10] sm:$0xff]
    %v824 = vld [vmem:[%s12 + $0x18] sm:$0xff]
    %v825 = vld [vmem:[%s13] sm:$0x3]
    %v826 = vld [vmem:[%s14] sm:$0xf]
    %v827 = vld [vmem:[%s14 + $0x4] sm:$0xf]
    %v828 = vld [vmem:[%s14 + $0x8] sm:$0xf]
    %v829 = vld [vmem:[%s14 + $0xc] sm:$0xf]
    %v830 = vld [vmem:[%s15] sm:$0x1]
    %v831 = vld [vmem:[%s16] sm:$0xf]
    %v832 = vld [vmem:[%s16 + $0x4] sm:$0xf]
    %v833 = vld [vmem:[%s16 + $0x8] sm:$0xf]
    %v834 = vld [vmem:[%s16 + $0xc] sm:$0xf]
    %v835 = vld [vmem:[%s16 + $0x10] sm:$0xf]
    %v836 = vld [vmem:[%s16 + $0x14] sm:$0xf]
    %v837 = vld [vmem:[%s16 + $0x18] sm:$0xf]
    %v838 = vld [vmem:[%s16 + $0x1c] sm:$0xf]
    %v839 = vld [vmem:[%s16 + $0x20] sm:$0xf]
    %v840 = vld [vmem:[%s16 + $0x24] sm:$0xf]
    %v841 = vld [vmem:[%s16 + $0x28] sm:$0xf]
    %v842 = vld [vmem:[%s16 + $0x2c] sm:$0xf]
    %v843 = vld [vmem:[%s16 + $0x30] sm:$0xf]
    %v844 = vld [vmem:[%s16 + $0x34] sm:$0xf]
    %v845 = vld [vmem:[%s16 + $0x38] sm:$0xf]
    %v846 = vld [vmem:[%s16 + $0x3c] sm:$0xf]
    %v847 = vld [vmem:[%s17] sm:$0x7]
    %s848 = sld [smem:[#allocation2]]
    %s849 = sld [smem:[#allocation2 + $0x1]]
    %s850 = sld [smem:[#allocation2 + $0x2]]
    %v851 = vpack.c.bf16 %v814, %v813
    %v852 = vpack.c.bf16 %v816, %v815
    %v854 = vlaneseq
    %v855 = vshrl.u32 %v854, 7
    %v856 = vsub.s32 0, %v855
    %v857 = vrot.slane %v825, %v856
    %v858 = vlaneseq
    %v859 = vshrl.u32 %v858, 7
    %v860 = vsub.s32 1, %v859
    %v861 = vrot.slane %v825, %v860
    %v868 = vunpack.c.l.b16 %v821
    %v869 = vunpack.c.h.b16 %v821
    %v870 = vunpack.c.l.b16 %v822
    %v871 = vunpack.c.h.b16 %v822
    %v872 = vunpack.c.l.b16 %v823
    %v873 = vunpack.c.h.b16 %v823
    %v874 = vunpack.c.l.b16 %v824
    %v875 = vunpack.c.h.b16 %v824
    %v876 = vpack.c.b16 %v870, %v868
    %v877 = vpack.c.b16 %v871, %v869
    %v878 = vpack.c.b16 %v874, %v872
    %v879 = vpack.c.b16 %v875, %v873
    %v885 = vsel %vm149, %v851, 0
    %v888 = vsel %vm149, %v852, 0
    %890 = vmatprep.subr.bf16.mxu0 %v877
    %891 = vmatpush1.bf16.msra.mxu0 %v876
    %892 = vmatprep.subr.bf16.mxu0 %v879
    %893 = vmatpush1.bf16.msra.mxu0 %v878
    %894 = vmatprep.subr.bf16.mxu0 0
    %895 = vmatpush1.bf16.msra.mxu0 0
    %896 = vmatprep.subr.bf16.mxu0 0
    %897 = vmatpush1.bf16.msra.mxu0 0
    %898 = vmatprep.subr.bf16.mxu0 0
    %899 = vmatpush1.bf16.msra.mxu0 0
    %900 = vmatprep.subr.bf16.mxu0 0
    %901 = vmatpush1.bf16.msra.mxu0 0
    %902 = vmatprep.subr.bf16.mxu0 0
    %903 = vmatpush1.bf16.msra.mxu0 0
    %904 = vmatprep.subr.bf16.mxu0 0
    %905 = vmatpush1.bf16.msra.mxu0 0
    %906 = vmatprep.subr.bf16.mxu0 0
    %907 = vmatpush1.bf16.msra.mxu0 0
    %908 = vmatprep.subr.bf16.mxu0 0
    %909 = vmatpush1.bf16.msra.mxu0 0
    %910 = vmatprep.subr.bf16.mxu0 0
    %911 = vmatpush1.bf16.msra.mxu0 0
    %912 = vmatprep.subr.bf16.mxu0 0
    %913 = vmatpush1.bf16.msra.mxu0 0
    %914 = vmatprep.subr.bf16.mxu0 0
    %915 = vmatpush1.bf16.msra.mxu0 0
    %916 = vmatprep.subr.bf16.mxu0 0
    %917 = vmatpush1.bf16.msra.mxu0 0
    %918 = vmatprep.subr.bf16.mxu0 0
    %919 = vmatpush1.bf16.msra.mxu0 0
    %920 = vmatprep.subr.bf16.mxu0 0
    %921 = vmatpush1.bf16.msra.mxu0 0
    %922 = vmatprep.mubr.bf16.mxu0 0
    %923 = vmatmul.mubr.bf16.gmra.mrb[0].mxu0 %v885
    %v924 = vpop.f32.mrb[0].mxu0
    %v925 = vadd.f32 %v857, %v924
    %v926 = vpop.f32.mrb[0].mxu0
    %v927 = vadd.f32 %v861, %v926
    %v928 = vpop.f32.mrb[0].mxu0
    %v929 = vadd.f32 %v857, %v928
    %v930 = vpop.f32.mrb[0].mxu0
    %v931 = vadd.f32 %v861, %v930
    %932 = vmatprep.mubr.bf16.mxu0 0
    %933 = vmatmul.mubr.bf16.gmra.mrb[0].mxu0 %v888
    %v934 = vpop.f32.mrb[0].mxu0
    %v935 = vadd.f32 %v857, %v934
    %v936 = vpop.f32.mrb[0].mxu0
    %v937 = vadd.f32 %v861, %v936
    %v938 = vpop.f32.mrb[0].mxu0
    %v939 = vadd.f32 %v857, %v938
    %v940 = vpop.f32.mrb[0].mxu0
    %v941 = vadd.f32 %v861, %v940
    %942 = vdwg.mxu0
    %v943 = vpack.c.bf16 %v820, %v819
    %v945 = vlaneseq
    %v946 = vshrl.u32 %v945, 7
    %v947 = vsub.s32 0, %v946
    %v948 = vrot.slane %v830, %v947
    %v954 = vunpack.c.l.b16 %v826
    %v955 = vunpack.c.l.b16 %v827
    %v956 = vunpack.c.l.b16 %v828
    %v957 = vunpack.c.l.b16 %v829
    %v958 = vpack.c.b16 %v955, %v954
    %v959 = vpack.c.b16 %v957, %v956
    %v963 = vsel %vm149, %v943, 0
    %965 = vmatprep.subr.bf16.mxu0 0
    %966 = vmatpush1.bf16.msra.mxu0 %v958
    %967 = vmatprep.subr.bf16.mxu0 0
    %968 = vmatpush1.bf16.msra.mxu0 %v959
    %969 = vmatprep.subr.bf16.mxu0 0
    %970 = vmatpush1.bf16.msra.mxu0 0
    %971 = vmatprep.subr.bf16.mxu0 0
    %972 = vmatpush1.bf16.msra.mxu0 0
    %973 = vmatprep.subr.bf16.mxu0 0
    %974 = vmatpush1.bf16.msra.mxu0 0
    %975 = vmatprep.subr.bf16.mxu0 0
    %976 = vmatpush1.bf16.msra.mxu0 0
    %977 = vmatprep.subr.bf16.mxu0 0
    %978 = vmatpush1.bf16.msra.mxu0 0
    %979 = vmatprep.subr.bf16.mxu0 0
    %980 = vmatpush1.bf16.msra.mxu0 0
    %981 = vmatprep.subr.bf16.mxu0 0
    %982 = vmatpush1.bf16.msra.mxu0 0
    %983 = vmatprep.subr.bf16.mxu0 0
    %984 = vmatpush1.bf16.msra.mxu0 0
    %985 = vmatprep.subr.bf16.mxu0 0
    %986 = vmatpush1.bf16.msra.mxu0 0
    %987 = vmatprep.subr.bf16.mxu0 0
    %988 = vmatpush1.bf16.msra.mxu0 0
    %989 = vmatprep.subr.bf16.mxu0 0
    %990 = vmatpush1.bf16.msra.mxu0 0
    %991 = vmatprep.subr.bf16.mxu0 0
    %992 = vmatpush1.bf16.msra.mxu0 0
    %993 = vmatprep.subr.bf16.mxu0 0
    %994 = vmatpush1.bf16.msra.mxu0 0
    %995 = vmatprep.subr.bf16.mxu0 0
    %996 = vmatpush1.bf16.msra.mxu0 0
    %997 = vmatprep.mubr.bf16.mxu0 0
    %998 = vmatmul.mubr.bf16.gmra.mrb[0].mxu0 %v963
    %v999 = vpop.f32.mrb[0].mxu0
    %v1000 = vadd.f32 %v948, %v999
    %v1001 = vpop.f32.mrb[0].mxu0
    %v1002 = vpop.f32.mrb[0].mxu0
    %v1003 = vadd.f32 %v948, %v1002
    %v1004 = vpop.f32.mrb[0].mxu0
    %1005 = vdwg.mxu0
    %v1006 = vpack.c.bf16 %v929, %v925
    %v1007 = vpack.c.bf16 %v939, %v935
    %1010 = vrot.lane.b32.xlu0 %v1006, 96
    %v1011 = vpop.permute.xlu0 %1010
    %1012 = vrot.lane.b32.xlu0 %v1007, 96
    %v1013 = vpop.permute.xlu0 %1012
    %v1015 = vsel %vm149, %v1006, 0
    %v1018 = vsel %vm149, %v1007, 0
    %v1021 = vsel %vm149, %v1011, 0
    %v1024 = vsel %vm149, %v1013, 0
    %1026 = vmatprep.subr.bf16.mxu0 0
    %1027 = vmatpush1.bf16.xpose.msra.mxu0 %v1021
    %1028 = vmatprep.subr.bf16.mxu0 0
    %1029 = vmatpush1.bf16.xpose.msra.mxu0 %v1024
    %1030 = vmatprep.subr.bf16.mxu0 0
    %1031 = vmatpush1.bf16.xpose.msra.mxu0 0
    %1032 = vmatprep.subr.bf16.mxu0 0
    %1033 = vmatpush1.bf16.xpose.msra.mxu0 0
    %1034 = vmatprep.subr.bf16.mxu0 0
    %1035 = vmatpush1.bf16.xpose.msra.mxu0 0
    %1036 = vmatprep.subr.bf16.mxu0 0
    %1037 = vmatpush1.bf16.xpose.msra.mxu0 0
    %1038 = vmatprep.subr.bf16.mxu0 0
    %1039 = vmatpush1.bf16.xpose.msra.mxu0 0
    %1040 = vmatprep.subr.bf16.mxu0 0
    %1041 = vmatpush1.bf16.xpose.msra.mxu0 0
    %1042 = vmatprep.subr.bf16.mxu0 0
    %1043 = vmatpush1.bf16.xpose.msra.mxu0 0
    %1044 = vmatprep.subr.bf16.mxu0 0
    %1045 = vmatpush1.bf16.xpose.msra.mxu0 0
    %1046 = vmatprep.subr.bf16.mxu0 0
    %1047 = vmatpush1.bf16.xpose.msra.mxu0 0
    %1048 = vmatprep.subr.bf16.mxu0 0
    %1049 = vmatpush1.bf16.xpose.msra.mxu0 0
    %1050 = vmatprep.subr.bf16.mxu0 0
    %1051 = vmatpush1.bf16.xpose.msra.mxu0 0
    %1052 = vmatprep.subr.bf16.mxu0 0
    %1053 = vmatpush1.bf16.xpose.msra.mxu0 0
    %1054 = vmatprep.subr.bf16.mxu0 0
    %1055 = vmatpush1.bf16.xpose.msra.mxu0 0
    %1056 = vmatprep.subr.bf16.mxu0 0
    %1057 = vmatpush1.bf16.xpose.msra.mxu0 0
    %1058 = vmatprep.mubr.bf16.mxu0 0
    %1059 = vmatmul.mubr.bf16.gmra.mrb[0].mxu0 %v1015
    %v1060 = vpop.f32.mrb[0].mxu0
    %v1061 = vadd.f32 %v103, %v1060
    %v1062 = vpop.f32.mrb[0].mxu0
    %v1063 = vpop.f32.mrb[0].mxu0
    %v1064 = vadd.f32 %v104, %v1063
    %v1065 = vpop.f32.mrb[0].mxu0
    %1066 = vmatprep.mubr.bf16.mxu0 0
    %1067 = vmatmul.mubr.bf16.gmra.mrb[0].mxu0 %v1018
    %v1068 = vpop.f32.mrb[0].mxu0
    %v1069 = vadd.f32 %v105, %v1068
    %v1070 = vpop.f32.mrb[0].mxu0
    %v1071 = vpop.f32.mrb[0].mxu0
    %v1072 = vadd.f32 %v106, %v1071
    %v1073 = vpop.f32.mrb[0].mxu0
    %1074 = vdwg.mxu0
    %v1075 = vsel %vm149, %v1061, -inf
    %1076 = vmax.xlane.f32.xlu0 %v1075
    %v1077 = vpop.xlane.xlu0 %1076
    %v1078 = vsel %vm149, %v1064, -inf
    %1079 = vmax.xlane.f32.xlu0 %v1078
    %v1080 = vpop.xlane.xlu0 %1079
    %v1081 = vsel %vm149, %v1069, -inf
    %1082 = vmax.xlane.f32.xlu0 %v1081
    %v1083 = vpop.xlane.xlu0 %1082
    %v1084 = vsel %vm149, %v1072, -inf
    %1085 = vmax.xlane.f32.xlu0 %v1084
    %v1086 = vpop.xlane.xlu0 %1085
    %v1087 = vsub.f32 %v1061, %v1077
    %v1088 = vsub.f32 %v1064, %v1080
    %v1089 = vsub.f32 %v1069, %v1083
    %v1090 = vsub.f32 %v1072, %v1086
    %v1091 = vmul.f32 %v1087, 1.442695
    %v1092 = vpow.pop %v1091
    %v1093 = vmul.f32 %v1088, 1.442695
    %v1094 = vpow.pop %v1093
    %v1095 = vmul.f32 %v1089, 1.442695
    %v1096 = vpow.pop %v1095
    %v1097 = vmul.f32 %v1090, 1.442695
    %v1098 = vpow.pop %v1097
    %v1099 = vsel %vm149, %v1092, 0.0
    %1100 = vadd.xlane.f32.xlu0 %v1099
    %v1101 = vpop.xlane.xlu0 %1100
    %v1102 = vsel %vm149, %v1094, 0.0
    %1103 = vadd.xlane.f32.xlu0 %v1102
    %v1104 = vpop.xlane.xlu0 %1103
    %v1105 = vsel %vm149, %v1096, 0.0
    %1106 = vadd.xlane.f32.xlu0 %v1105
    %v1107 = vpop.xlane.xlu0 %1106
    %v1108 = vsel %vm149, %v1098, 0.0
    %1109 = vadd.xlane.f32.xlu0 %v1108
    %v1110 = vpop.xlane.xlu0 %1109
    %v1111 = vrcp.pop %v1101
    %v1112 = vrcp.pop %v1104
    %v1113 = vrcp.pop %v1107
    %v1114 = vrcp.pop %v1110
    %v1115 = vmul.f32 %v1092, %v1111
    %v1116 = vmul.f32 %v1094, %v1112
    %v1117 = vmul.f32 %v1096, %v1113
    %v1118 = vmul.f32 %v1098, %v1114
    %v1119 = vpack.c.bf16 %v1116, %v1115
    %v1120 = vpack.c.bf16 %v1118, %v1117
    %1121 = vrot.lane.b32.xlu0 %v1006, 64
    %v1122 = vpop.permute.xlu0 %1121
    %1123 = vrot.lane.b32.xlu0 %v1007, 64
    %v1124 = vpop.permute.xlu0 %1123
    %v1128 = vsel %vm149, %v1119, 0
    %v1131 = vsel %vm149, %v1120, 0
    %1133 = vmatprep.subr.bf16.mxu0 0
    %1134 = vmatpush1.bf16.msra.mxu0 %v1122
    %1135 = vmatprep.subr.bf16.mxu0 0
    %1136 = vmatpush1.bf16.msra.mxu0 %v1124
    %1137 = vmatprep.subr.bf16.mxu0 0
    %1138 = vmatpush1.bf16.msra.mxu0 0
    %1139 = vmatprep.subr.bf16.mxu0 0
    %1140 = vmatpush1.bf16.msra.mxu0 0
    %1141 = vmatprep.subr.bf16.mxu0 0
    %1142 = vmatpush1.bf16.msra.mxu0 0
    %1143 = vmatprep.subr.bf16.mxu0 0
    %1144 = vmatpush1.bf16.msra.mxu0 0
    %1145 = vmatprep.subr.bf16.mxu0 0
    %1146 = vmatpush1.bf16.msra.mxu0 0
    %1147 = vmatprep.subr.bf16.mxu0 0
    %1148 = vmatpush1.bf16.msra.mxu0 0
    %1149 = vmatprep.subr.bf16.mxu0 0
    %1150 = vmatpush1.bf16.msra.mxu0 0
    %1151 = vmatprep.subr.bf16.mxu0 0
    %1152 = vmatpush1.bf16.msra.mxu0 0
    %1153 = vmatprep.subr.bf16.mxu0 0
    %1154 = vmatpush1.bf16.msra.mxu0 0
    %1155 = vmatprep.subr.bf16.mxu0 0
    %1156 = vmatpush1.bf16.msra.mxu0 0
    %1157 = vmatprep.subr.bf16.mxu0 0
    %1158 = vmatpush1.bf16.msra.mxu0 0
    %1159 = vmatprep.subr.bf16.mxu0 0
    %1160 = vmatpush1.bf16.msra.mxu0 0
    %1161 = vmatprep.subr.bf16.mxu0 0
    %1162 = vmatpush1.bf16.msra.mxu0 0
    %1163 = vmatprep.subr.bf16.mxu0 0
    %1164 = vmatpush1.bf16.msra.mxu0 0
    %1165 = vmatprep.mubr.bf16.mxu0 0
    %1166 = vmatmul.mubr.bf16.gmra.mrb[0].mxu0 %v1128
    %v1167 = vpop.f32.mrb[0].mxu0
    %v1168 = vadd.f32 0.0, %v1167
    %v1169 = vpop.f32.mrb[0].mxu0
    %v1170 = vpop.f32.mrb[0].mxu0
    %v1171 = vadd.f32 0.0, %v1170
    %v1172 = vpop.f32.mrb[0].mxu0
    %1173 = vmatprep.mubr.bf16.mxu0 0
    %1174 = vmatmul.mubr.bf16.gmra.mrb[0].mxu0 %v1131
    %v1175 = vpop.f32.mrb[0].mxu0
    %v1176 = vadd.f32 0.0, %v1175
    %v1177 = vpop.f32.mrb[0].mxu0
    %v1178 = vpop.f32.mrb[0].mxu0
    %v1179 = vadd.f32 0.0, %v1178
    %v1180 = vpop.f32.mrb[0].mxu0
    %1181 = vdwg.mxu0
    %v1182 = vpack.c.bf16 %v1003, %v1000
    %1183 = vrot.lane.b32.xlu0 %v1006, 32
    %v1184 = vpop.permute.xlu0 %1183
    %1185 = vrot.lane.b32.xlu0 %v1007, 32
    %v1186 = vpop.permute.xlu0 %1185
    %v1188 = vsel %vm149, %v1184, 0
    %v1191 = vsel %vm149, %v1186, 0
    %v1194 = vsel %vm149, %v1182, 0
    %1196 = vmatprep.subr.bf16.mxu0 0
    %1197 = vmatpush1.bf16.xpose.msra.mxu0 %v1194
    %1198 = vmatprep.subr.bf16.mxu0 0
    %1199 = vmatpush1.bf16.xpose.msra.mxu0 0
    %1200 = vmatprep.subr.bf16.mxu0 0
    %1201 = vmatpush1.bf16.xpose.msra.mxu0 0
    %1202 = vmatprep.subr.bf16.mxu0 0
    %1203 = vmatpush1.bf16.xpose.msra.mxu0 0
    %1204 = vmatprep.subr.bf16.mxu0 0
    %1205 = vmatpush1.bf16.xpose.msra.mxu0 0
    %1206 = vmatprep.subr.bf16.mxu0 0
    %1207 = vmatpush1.bf16.xpose.msra.mxu0 0
    %1208 = vmatprep.subr.bf16.mxu0 0
    %1209 = vmatpush1.bf16.xpose.msra.mxu0 0
    %1210 = vmatprep.subr.bf16.mxu0 0
    %1211 = vmatpush1.bf16.xpose.msra.mxu0 0
    %1212 = vmatprep.subr.bf16.mxu0 0
    %1213 = vmatpush1.bf16.xpose.msra.mxu0 0
    %1214 = vmatprep.subr.bf16.mxu0 0
    %1215 = vmatpush1.bf16.xpose.msra.mxu0 0
    %1216 = vmatprep.subr.bf16.mxu0 0
    %1217 = vmatpush1.bf16.xpose.msra.mxu0 0
    %1218 = vmatprep.subr.bf16.mxu0 0
    %1219 = vmatpush1.bf16.xpose.msra.mxu0 0
    %1220 = vmatprep.subr.bf16.mxu0 0
    %1221 = vmatpush1.bf16.xpose.msra.mxu0 0
    %1222 = vmatprep.subr.bf16.mxu0 0
    %1223 = vmatpush1.bf16.xpose.msra.mxu0 0
    %1224 = vmatprep.subr.bf16.mxu0 0
    %1225 = vmatpush1.bf16.xpose.msra.mxu0 0
    %1226 = vmatprep.subr.bf16.mxu0 0
    %1227 = vmatpush1.bf16.xpose.msra.mxu0 0
    %1228 = vmatprep.mubr.bf16.mxu0 0
    %1229 = vmatmul.mubr.bf16.gmra.mrb[0].mxu0 %v1188
    %v1230 = vpop.f32.mrb[0].mxu0
    %v1231 = vadd.f32 %v107, %v1230
    %v1232 = vpop.f32.mrb[0].mxu0
    %v1233 = vpop.f32.mrb[0].mxu0
    %v1234 = vadd.f32 %v108, %v1233
    %v1235 = vpop.f32.mrb[0].mxu0
    %1236 = vmatprep.mubr.bf16.mxu0 0
    %1237 = vmatmul.mubr.bf16.gmra.mrb[0].mxu0 %v1191
    %v1238 = vpop.f32.mrb[0].mxu0
    %v1239 = vadd.f32 %v109, %v1238
    %v1240 = vpop.f32.mrb[0].mxu0
    %v1241 = vpop.f32.mrb[0].mxu0
    %v1242 = vadd.f32 %v110, %v1241
    %v1243 = vpop.f32.mrb[0].mxu0
    %1244 = vdwg.mxu0
    %vm1245 = vcmask 130048
    %v1246 = vsel %vm1245, %v1231, -inf
    %1247 = vmax.xlane.f32.xlu0 %v1246
    %v1248 = vpop.xlane.xlu0 %1247
    %v1249 = vsel %vm1245, %v1234, -inf
    %1250 = vmax.xlane.f32.xlu0 %v1249
    %v1251 = vpop.xlane.xlu0 %1250
    %v1252 = vsel %vm1245, %v1239, -inf
    %1253 = vmax.xlane.f32.xlu0 %v1252
    %v1254 = vpop.xlane.xlu0 %1253
    %v1255 = vsel %vm1245, %v1242, -inf
    %1256 = vmax.xlane.f32.xlu0 %v1255
    %v1257 = vpop.xlane.xlu0 %1256
    %v1258 = vsub.f32 %v1231, %v1248
    %v1259 = vsub.f32 %v1234, %v1251
    %v1260 = vsub.f32 %v1239, %v1254
    %v1261 = vsub.f32 %v1242, %v1257
    %v1262 = vmul.f32 %v1258, 1.442695
    %v1263 = vpow.pop %v1262
    %v1264 = vmul.f32 %v1259, 1.442695
    %v1265 = vpow.pop %v1264
    %v1266 = vmul.f32 %v1260, 1.442695
    %v1267 = vpow.pop %v1266
    %v1268 = vmul.f32 %v1261, 1.442695
    %v1269 = vpow.pop %v1268
    %v1270 = vsel %vm1245, %v1263, 0.0
    %1271 = vadd.xlane.f32.xlu0 %v1270
    %v1272 = vpop.xlane.xlu0 %1271
    %v1273 = vsel %vm1245, %v1265, 0.0
    %1274 = vadd.xlane.f32.xlu0 %v1273
    %v1275 = vpop.xlane.xlu0 %1274
    %v1276 = vsel %vm1245, %v1267, 0.0
    %1277 = vadd.xlane.f32.xlu0 %v1276
    %v1278 = vpop.xlane.xlu0 %1277
    %v1279 = vsel %vm1245, %v1269, 0.0
    %1280 = vadd.xlane.f32.xlu0 %v1279
    %v1281 = vpop.xlane.xlu0 %1280
    %v1282 = vrcp.pop %v1272
    %v1283 = vrcp.pop %v1275
    %v1284 = vrcp.pop %v1278
    %v1285 = vrcp.pop %v1281
    %v1286 = vmul.f32 %v1263, %v1282
    %v1287 = vmul.f32 %v1265, %v1283
    %v1288 = vmul.f32 %v1267, %v1284
    %v1289 = vmul.f32 %v1269, %v1285
    %v1290 = vpack.c.bf16 %v1287, %v1286
    %v1291 = vpack.c.bf16 %v1289, %v1288
    %1293 = vrot.lane.b32.xlu0 %v1182, 96
    %v1294 = vpop.permute.xlu0 %1293
    %v1297 = vsel %vm1245, %v1290, 0
    %v1300 = vsel %vm1245, %v1291, 0
    %1302 = vmatprep.subr.bf16.mxu0 0
    %1303 = vmatpush1.bf16.msra.mxu0 %v1294
    %1304 = vmatprep.subr.bf16.mxu0 0
    %1305 = vmatpush1.bf16.msra.mxu0 0
    %1306 = vmatprep.subr.bf16.mxu0 0
    %1307 = vmatpush1.bf16.msra.mxu0 0
    %1308 = vmatprep.subr.bf16.mxu0 0
    %1309 = vmatpush1.bf16.msra.mxu0 0
    %1310 = vmatprep.subr.bf16.mxu0 0
    %1311 = vmatpush1.bf16.msra.mxu0 0
    %1312 = vmatprep.subr.bf16.mxu0 0
    %1313 = vmatpush1.bf16.msra.mxu0 0
    %1314 = vmatprep.subr.bf16.mxu0 0
    %1315 = vmatpush1.bf16.msra.mxu0 0
    %1316 = vmatprep.subr.bf16.mxu0 0
    %1317 = vmatpush1.bf16.msra.mxu0 0
    %1318 = vmatprep.subr.bf16.mxu0 0
    %1319 = vmatpush1.bf16.msra.mxu0 0
    %1320 = vmatprep.subr.bf16.mxu0 0
    %1321 = vmatpush1.bf16.msra.mxu0 0
    %1322 = vmatprep.subr.bf16.mxu0 0
    %1323 = vmatpush1.bf16.msra.mxu0 0
    %1324 = vmatprep.subr.bf16.mxu0 0
    %1325 = vmatpush1.bf16.msra.mxu0 0
    %1326 = vmatprep.subr.bf16.mxu0 0
    %1327 = vmatpush1.bf16.msra.mxu0 0
    %1328 = vmatprep.subr.bf16.mxu0 0
    %1329 = vmatpush1.bf16.msra.mxu0 0
    %1330 = vmatprep.subr.bf16.mxu0 0
    %1331 = vmatpush1.bf16.msra.mxu0 0
    %1332 = vmatprep.subr.bf16.mxu0 0
    %1333 = vmatpush1.bf16.msra.mxu0 0
    %1334 = vmatprep.mubr.bf16.mxu0 0
    %1335 = vmatmul.mubr.bf16.gmra.mrb[0].mxu0 %v1297
    %v1336 = vpop.f32.mrb[0].mxu0
    %v1337 = vadd.f32 0.0, %v1336
    %v1338 = vpop.f32.mrb[0].mxu0
    %v1339 = vpop.f32.mrb[0].mxu0
    %v1340 = vadd.f32 0.0, %v1339
    %v1341 = vpop.f32.mrb[0].mxu0
    %1342 = vmatprep.mubr.bf16.mxu0 0
    %1343 = vmatmul.mubr.bf16.gmra.mrb[0].mxu0 %v1300
    %v1344 = vpop.f32.mrb[0].mxu0
    %v1345 = vadd.f32 0.0, %v1344
    %v1346 = vpop.f32.mrb[0].mxu0
    %v1347 = vpop.f32.mrb[0].mxu0
    %v1348 = vadd.f32 0.0, %v1347
    %v1349 = vpop.f32.mrb[0].mxu0
    %1350 = vdwg.mxu0
    %v1351 = vmax.f32 %v927, 0.0
    %v1352 = vmax.f32 %v931, 0.0
    %v1353 = vmax.f32 %v937, 0.0
    %v1354 = vmax.f32 %v941, 0.0
    %v1355 = vstv %s848
    %v1356 = vmul.f32 %v1168, %v1355
    %v1357 = vmul.f32 %v1171, %v1355
    %v1358 = vmul.f32 %v1176, %v1355
    %v1359 = vmul.f32 %v1179, %v1355
    %v1360 = vstv %s849
    %v1361 = vmul.f32 %v1337, %v1360
    %v1362 = vmul.f32 %v1340, %v1360
    %v1363 = vmul.f32 %v1345, %v1360
    %v1364 = vmul.f32 %v1348, %v1360
    %v1365 = vstv %s850
    %v1366 = vmul.f32 %v1351, %v1365
    %v1367 = vmul.f32 %v1352, %v1365
    %v1368 = vmul.f32 %v1353, %v1365
    %v1369 = vmul.f32 %v1354, %v1365
    %1374 = vrot.lane.b32.xlu0 %v1361, 32
    %v1375 = vpop.permute.xlu0 %1374
    %1376 = vrot.lane.b32.xlu0 %v1362, 32
    %v1377 = vpop.permute.xlu0 %1376
    %1378 = vrot.lane.b32.xlu0 %v1363, 32
    %v1379 = vpop.permute.xlu0 %1378
    %1380 = vrot.lane.b32.xlu0 %v1364, 32
    %v1381 = vpop.permute.xlu0 %1380
    %1390 = vrot.lane.b32.xlu0 %v1366, 64
    %v1391 = vpop.permute.xlu0 %1390
    %1392 = vrot.lane.b32.xlu0 %v1367, 64
    %v1393 = vpop.permute.xlu0 %1392
    %1394 = vrot.lane.b32.xlu0 %v1368, 64
    %v1395 = vpop.permute.xlu0 %1394
    %1396 = vrot.lane.b32.xlu0 %v1369, 64
    %v1397 = vpop.permute.xlu0 %1396
    %v1402 = vsel %vm149, %v1356, %v1375
    %v1403 = vsel %vm149, %v1357, %v1377
    %v1404 = vsel %vm149, %v1358, %v1379
    %v1405 = vsel %vm149, %v1359, %v1381
    %v1406 = vsel %vm235, %v1402, %v1391
    %v1407 = vsel %vm235, %v1403, %v1393
    %v1408 = vsel %vm235, %v1404, %v1395
    %v1409 = vsel %vm235, %v1405, %v1397
    %v1410 = vmul.f32 %v1355, %v847
    %v1411 = vmul.f32 %v1360, %v847
    %v1413 = vrot.slane %v1411, 1
    %v1415 = vadd.f32 %v1410, %v1413
    %v1416 = vmul.f32 %v1365, %v847
    %v1418 = vrot.slane %v1416, 2
    %v1420 = vadd.f32 %v1415, %v1418
    %v1421 = vpack.c.bf16 %v1407, %v1406
    %v1422 = vpack.c.bf16 %v1409, %v1408
    %v1423 = vlaneseq
    %v1424 = vshrl.u32 %v1423, 7
    %v1425 = vsub.s32 0, %v1424
    %v1426 = vrot.slane %v1420, %v1425
    %v1443 = vunpack.c.l.b16 %v831
    %v1444 = vunpack.c.l.b16 %v832
    %v1445 = vunpack.c.l.b16 %v833
    %v1446 = vunpack.c.l.b16 %v834
    %v1447 = vunpack.c.l.b16 %v835
    %v1448 = vunpack.c.l.b16 %v836
    %v1449 = vunpack.c.l.b16 %v837
    %v1450 = vunpack.c.l.b16 %v838
    %v1451 = vunpack.c.l.b16 %v839
    %v1452 = vunpack.c.l.b16 %v840
    %v1453 = vunpack.c.l.b16 %v841
    %v1454 = vunpack.c.l.b16 %v842
    %v1455 = vunpack.c.l.b16 %v843
    %v1456 = vunpack.c.l.b16 %v844
    %v1457 = vunpack.c.l.b16 %v845
    %v1458 = vunpack.c.l.b16 %v846
    %v1459 = vpack.c.b16 %v1444, %v1443
    %v1460 = vpack.c.b16 %v1446, %v1445
    %v1461 = vpack.c.b16 %v1448, %v1447
    %v1462 = vpack.c.b16 %v1450, %v1449
    %v1463 = vpack.c.b16 %v1452, %v1451
    %v1464 = vpack.c.b16 %v1454, %v1453
    %v1465 = vpack.c.b16 %v1456, %v1455
    %v1466 = vpack.c.b16 %v1458, %v1457
    %1475 = vmatprep.subr.bf16.mxu0 0
    %1476 = vmatpush1.bf16.msra.mxu0 %v1459
    %1477 = vmatprep.subr.bf16.mxu0 0
    %1478 = vmatpush1.bf16.msra.mxu0 %v1460
    %1479 = vmatprep.subr.bf16.mxu0 0
    %1480 = vmatpush1.bf16.msra.mxu0 %v1461
    %1481 = vmatprep.subr.bf16.mxu0 0
    %1482 = vmatpush1.bf16.msra.mxu0 %v1462
    %1483 = vmatprep.subr.bf16.mxu0 0
    %1484 = vmatpush1.bf16.msra.mxu0 %v1463
    %1485 = vmatprep.subr.bf16.mxu0 0
    %1486 = vmatpush1.bf16.msra.mxu0 %v1464
    %1487 = vmatprep.subr.bf16.mxu0 0
    %1488 = vmatpush1.bf16.msra.mxu0 %v1465
    %1489 = vmatprep.subr.bf16.mxu0 0
    %1490 = vmatpush1.bf16.msra.mxu0 %v1466
    %1491 = vmatprep.subr.bf16.mxu0 0
    %1492 = vmatpush1.bf16.msra.mxu0 0
    %1493 = vmatprep.subr.bf16.mxu0 0
    %1494 = vmatpush1.bf16.msra.mxu0 0
    %1495 = vmatprep.subr.bf16.mxu0 0
    %1496 = vmatpush1.bf16.msra.mxu0 0
    %1497 = vmatprep.subr.bf16.mxu0 0
    %1498 = vmatpush1.bf16.msra.mxu0 0
    %1499 = vmatprep.subr.bf16.mxu0 0
    %1500 = vmatpush1.bf16.msra.mxu0 0
    %1501 = vmatprep.subr.bf16.mxu0 0
    %1502 = vmatpush1.bf16.msra.mxu0 0
    %1503 = vmatprep.subr.bf16.mxu0 0
    %1504 = vmatpush1.bf16.msra.mxu0 0
    %1505 = vmatprep.subr.bf16.mxu0 0
    %1506 = vmatpush1.bf16.msra.mxu0 0
    %1507 = vmatprep.mubr.bf16.mxu0 0
    %1508 = vmatmul.mubr.bf16.gmra.mrb[0].mxu0 %v1421
    %v1509 = vpop.f32.mrb[0].mxu0
    %v1510 = vadd.f32 %v1426, %v1509
    %v1511 = vpop.f32.mrb[0].mxu0
    %v1512 = vpop.f32.mrb[0].mxu0
    %v1513 = vadd.f32 %v1426, %v1512
    %v1514 = vpop.f32.mrb[0].mxu0
    %1515 = vmatprep.mubr.bf16.mxu0 0
    %1516 = vmatmul.mubr.bf16.gmra.mrb[0].mxu0 %v1422
    %v1517 = vpop.f32.mrb[0].mxu0
    %v1518 = vadd.f32 %v1426, %v1517
    %v1519 = vpop.f32.mrb[0].mxu0
    %v1520 = vpop.f32.mrb[0].mxu0
    %v1521 = vadd.f32 %v1426, %v1520
    %v1522 = vpop.f32.mrb[0].mxu0
    %1523 = vdwg.mxu0
    %s1524 = scalar_lea.vmem %s12, 32
    %v1525 = vld [vmem:[%s1524] sm:$0xff]
    %v1526 = vld [vmem:[%s1524 + $0x8] sm:$0xff]
    %v1527 = vld [vmem:[%s1524 + $0x10] sm:$0xff]
    %v1528 = vld [vmem:[%s1524 + $0x18] sm:$0xff]
    %s1529 = scalar_lea.vmem %s13, 2
    %v1530 = vld [vmem:[%s1529] sm:$0x3]
    %s1531 = scalar_lea.vmem %s14, 16
    %v1532 = vld [vmem:[%s1531] sm:$0xf]
    %v1533 = vld [vmem:[%s1531 + $0x4] sm:$0xf]
    %v1534 = vld [vmem:[%s1531 + $0x8] sm:$0xf]
    %v1535 = vld [vmem:[%s1531 + $0xc] sm:$0xf]
    %s1536 = scalar_lea.vmem %s15, 1
    %v1537 = vld [vmem:[%s1536] sm:$0x1]
    %s1538 = scalar_lea.vmem %s16, 64
    %v1539 = vld [vmem:[%s1538] sm:$0xf]
    %v1540 = vld [vmem:[%s1538 + $0x4] sm:$0xf]
    %v1541 = vld [vmem:[%s1538 + $0x8] sm:$0xf]
    %v1542 = vld [vmem:[%s1538 + $0xc] sm:$0xf]
    %v1543 = vld [vmem:[%s1538 + $0x10] sm:$0xf]
    %v1544 = vld [vmem:[%s1538 + $0x14] sm:$0xf]
    %v1545 = vld [vmem:[%s1538 + $0x18] sm:$0xf]
    %v1546 = vld [vmem:[%s1538 + $0x1c] sm:$0xf]
    %v1547 = vld [vmem:[%s1538 + $0x20] sm:$0xf]
    %v1548 = vld [vmem:[%s1538 + $0x24] sm:$0xf]
    %v1549 = vld [vmem:[%s1538 + $0x28] sm:$0xf]
    %v1550 = vld [vmem:[%s1538 + $0x2c] sm:$0xf]
    %v1551 = vld [vmem:[%s1538 + $0x30] sm:$0xf]
    %v1552 = vld [vmem:[%s1538 + $0x34] sm:$0xf]
    %v1553 = vld [vmem:[%s1538 + $0x38] sm:$0xf]
    %v1554 = vld [vmem:[%s1538 + $0x3c] sm:$0xf]
    %s1555 = scalar_lea.vmem %s17, 4
    %v1556 = vld [vmem:[%s1555] sm:$0x7]
    %s1557 = sld [smem:[#allocation4]]
    %s1558 = sld [smem:[#allocation4 + $0x1]]
    %s1559 = sld [smem:[#allocation4 + $0x2]]
    %v1561 = vlaneseq
    %v1562 = vshrl.u32 %v1561, 7
    %v1563 = vsub.s32 0, %v1562
    %v1564 = vrot.slane %v1530, %v1563
    %v1565 = vlaneseq
    %v1566 = vshrl.u32 %v1565, 7
    %v1567 = vsub.s32 1, %v1566
    %v1568 = vrot.slane %v1530, %v1567
    %v1575 = vunpack.c.l.b16 %v1525
    %v1576 = vunpack.c.h.b16 %v1525
    %v1577 = vunpack.c.l.b16 %v1526
    %v1578 = vunpack.c.h.b16 %v1526
    %v1579 = vunpack.c.l.b16 %v1527
    %v1580 = vunpack.c.h.b16 %v1527
    %v1581 = vunpack.c.l.b16 %v1528
    %v1582 = vunpack.c.h.b16 %v1528
    %v1583 = vpack.c.b16 %v1577, %v1575
    %v1584 = vpack.c.b16 %v1578, %v1576
    %v1585 = vpack.c.b16 %v1581, %v1579
    %v1586 = vpack.c.b16 %v1582, %v1580
    %1591 = vmatprep.subr.bf16.mxu0 %v1584
    %1592 = vmatpush1.bf16.msra.mxu0 %v1583
    %1593 = vmatprep.subr.bf16.mxu0 %v1586
    %1594 = vmatpush1.bf16.msra.mxu0 %v1585
    %1595 = vmatprep.subr.bf16.mxu0 0
    %1596 = vmatpush1.bf16.msra.mxu0 0
    %1597 = vmatprep.subr.bf16.mxu0 0
    %1598 = vmatpush1.bf16.msra.mxu0 0
    %1599 = vmatprep.subr.bf16.mxu0 0
    %1600 = vmatpush1.bf16.msra.mxu0 0
    %1601 = vmatprep.subr.bf16.mxu0 0
    %1602 = vmatpush1.bf16.msra.mxu0 0
    %1603 = vmatprep.subr.bf16.mxu0 0
    %1604 = vmatpush1.bf16.msra.mxu0 0
    %1605 = vmatprep.subr.bf16.mxu0 0
    %1606 = vmatpush1.bf16.msra.mxu0 0
    %1607 = vmatprep.subr.bf16.mxu0 0
    %1608 = vmatpush1.bf16.msra.mxu0 0
    %1609 = vmatprep.subr.bf16.mxu0 0
    %1610 = vmatpush1.bf16.msra.mxu0 0
    %1611 = vmatprep.subr.bf16.mxu0 0
    %1612 = vmatpush1.bf16.msra.mxu0 0
    %1613 = vmatprep.subr.bf16.mxu0 0
    %1614 = vmatpush1.bf16.msra.mxu0 0
    %1615 = vmatprep.subr.bf16.mxu0 0
    %1616 = vmatpush1.bf16.msra.mxu0 0
    %1617 = vmatprep.subr.bf16.mxu0 0
    %1618 = vmatpush1.bf16.msra.mxu0 0
    %1619 = vmatprep.subr.bf16.mxu0 0
    %1620 = vmatpush1.bf16.msra.mxu0 0
    %1621 = vmatprep.subr.bf16.mxu0 0
    %1622 = vmatpush1.bf16.msra.mxu0 0
    %1623 = vmatprep.mubr.bf16.mxu0 0
    %1624 = vmatmul.mubr.bf16.gmra.mrb[0].mxu0 %v963
    %v1625 = vpop.f32.mrb[0].mxu0
    %v1626 = vadd.f32 %v1564, %v1625
    %v1627 = vpop.f32.mrb[0].mxu0
    %v1628 = vadd.f32 %v1568, %v1627
    %v1629 = vpop.f32.mrb[0].mxu0
    %v1630 = vadd.f32 %v1564, %v1629
    %v1631 = vpop.f32.mrb[0].mxu0
    %v1632 = vadd.f32 %v1568, %v1631
    %1633 = vdwg.mxu0
    %v1635 = vlaneseq
    %v1636 = vshrl.u32 %v1635, 7
    %v1637 = vsub.s32 0, %v1636
    %v1638 = vrot.slane %v1537, %v1637
    %v1644 = vunpack.c.l.b16 %v1532
    %v1645 = vunpack.c.l.b16 %v1533
    %v1646 = vunpack.c.l.b16 %v1534
    %v1647 = vunpack.c.l.b16 %v1535
    %v1648 = vpack.c.b16 %v1645, %v1644
    %v1649 = vpack.c.b16 %v1647, %v1646
    %1652 = vmatprep.subr.bf16.mxu0 0
    %1653 = vmatpush1.bf16.msra.mxu0 %v1648
    %1654 = vmatprep.subr.bf16.mxu0 0
    %1655 = vmatpush1.bf16.msra.mxu0 %v1649
    %1656 = vmatprep.subr.bf16.mxu0 0
    %1657 = vmatpush1.bf16.msra.mxu0 0
    %1658 = vmatprep.subr.bf16.mxu0 0
    %1659 = vmatpush1.bf16.msra.mxu0 0
    %1660 = vmatprep.subr.bf16.mxu0 0
    %1661 = vmatpush1.bf16.msra.mxu0 0
    %1662 = vmatprep.subr.bf16.mxu0 0
    %1663 = vmatpush1.bf16.msra.mxu0 0
    %1664 = vmatprep.subr.bf16.mxu0 0
    %1665 = vmatpush1.bf16.msra.mxu0 0
    %1666 = vmatprep.subr.bf16.mxu0 0
    %1667 = vmatpush1.bf16.msra.mxu0 0
    %1668 = vmatprep.subr.bf16.mxu0 0
    %1669 = vmatpush1.bf16.msra.mxu0 0
    %1670 = vmatprep.subr.bf16.mxu0 0
    %1671 = vmatpush1.bf16.msra.mxu0 0
    %1672 = vmatprep.subr.bf16.mxu0 0
    %1673 = vmatpush1.bf16.msra.mxu0 0
    %1674 = vmatprep.subr.bf16.mxu0 0
    %1675 = vmatpush1.bf16.msra.mxu0 0
    %1676 = vmatprep.subr.bf16.mxu0 0
    %1677 = vmatpush1.bf16.msra.mxu0 0
    %1678 = vmatprep.subr.bf16.mxu0 0
    %1679 = vmatpush1.bf16.msra.mxu0 0
    %1680 = vmatprep.subr.bf16.mxu0 0
    %1681 = vmatpush1.bf16.msra.mxu0 0
    %1682 = vmatprep.subr.bf16.mxu0 0
    %1683 = vmatpush1.bf16.msra.mxu0 0
    %1684 = vmatprep.mubr.bf16.mxu0 0
    %1685 = vmatmul.mubr.bf16.gmra.mrb[0].mxu0 %v885
    %v1686 = vpop.f32.mrb[0].mxu0
    %v1687 = vadd.f32 %v1638, %v1686
    %v1688 = vpop.f32.mrb[0].mxu0
    %v1689 = vpop.f32.mrb[0].mxu0
    %v1690 = vadd.f32 %v1638, %v1689
    %v1691 = vpop.f32.mrb[0].mxu0
    %1692 = vmatprep.mubr.bf16.mxu0 0
    %1693 = vmatmul.mubr.bf16.gmra.mrb[0].mxu0 %v888
    %v1694 = vpop.f32.mrb[0].mxu0
    %v1695 = vadd.f32 %v1638, %v1694
    %v1696 = vpop.f32.mrb[0].mxu0
    %v1697 = vpop.f32.mrb[0].mxu0
    %v1698 = vadd.f32 %v1638, %v1697
    %v1699 = vpop.f32.mrb[0].mxu0
    %1700 = vdwg.mxu0
    %v1701 = vpack.c.bf16 %v1630, %v1626
    %1703 = vrot.lane.b32.xlu0 %v1701, 96
    %v1704 = vpop.permute.xlu0 %1703
    %v1706 = vsel %vm149, %v1701, 0
    %v1709 = vsel %vm149, %v1704, 0
    %1711 = vmatprep.subr.bf16.mxu0 0
    %1712 = vmatpush1.bf16.xpose.msra.mxu0 %v1709
    %1713 = vmatprep.subr.bf16.mxu0 0
    %1714 = vmatpush1.bf16.xpose.msra.mxu0 0
    %1715 = vmatprep.subr.bf16.mxu0 0
    %1716 = vmatpush1.bf16.xpose.msra.mxu0 0
    %1717 = vmatprep.subr.bf16.mxu0 0
    %1718 = vmatpush1.bf16.xpose.msra.mxu0 0
    %1719 = vmatprep.subr.bf16.mxu0 0
    %1720 = vmatpush1.bf16.xpose.msra.mxu0 0
    %1721 = vmatprep.subr.bf16.mxu0 0
    %1722 = vmatpush1.bf16.xpose.msra.mxu0 0
    %1723 = vmatprep.subr.bf16.mxu0 0
    %1724 = vmatpush1.bf16.xpose.msra.mxu0 0
    %1725 = vmatprep.subr.bf16.mxu0 0
    %1726 = vmatpush1.bf16.xpose.msra.mxu0 0
    %1727 = vmatprep.subr.bf16.mxu0 0
    %1728 = vmatpush1.bf16.xpose.msra.mxu0 0
    %1729 = vmatprep.subr.bf16.mxu0 0
    %1730 = vmatpush1.bf16.xpose.msra.mxu0 0
    %1731 = vmatprep.subr.bf16.mxu0 0
    %1732 = vmatpush1.bf16.xpose.msra.mxu0 0
    %1733 = vmatprep.subr.bf16.mxu0 0
    %1734 = vmatpush1.bf16.xpose.msra.mxu0 0
    %1735 = vmatprep.subr.bf16.mxu0 0
    %1736 = vmatpush1.bf16.xpose.msra.mxu0 0
    %1737 = vmatprep.subr.bf16.mxu0 0
    %1738 = vmatpush1.bf16.xpose.msra.mxu0 0
    %1739 = vmatprep.subr.bf16.mxu0 0
    %1740 = vmatpush1.bf16.xpose.msra.mxu0 0
    %1741 = vmatprep.subr.bf16.mxu0 0
    %1742 = vmatpush1.bf16.xpose.msra.mxu0 0
    %1743 = vmatprep.mubr.bf16.mxu0 0
    %1744 = vmatmul.mubr.bf16.gmra.mrb[0].mxu0 %v1706
    %v1745 = vpop.f32.mrb[0].mxu0
    %v1746 = vadd.f32 %v113, %v1745
    %v1747 = vpop.f32.mrb[0].mxu0
    %v1748 = vpop.f32.mrb[0].mxu0
    %v1749 = vadd.f32 %v114, %v1748
    %v1750 = vpop.f32.mrb[0].mxu0
    %1751 = vdwg.mxu0
    %v1752 = vsel %vm1245, %v1746, -inf
    %1753 = vmax.xlane.f32.xlu0 %v1752
    %v1754 = vpop.xlane.xlu0 %1753
    %v1755 = vsel %vm1245, %v1749, -inf
    %1756 = vmax.xlane.f32.xlu0 %v1755
    %v1757 = vpop.xlane.xlu0 %1756
    %v1758 = vsub.f32 %v1746, %v1754
    %v1759 = vsub.f32 %v1749, %v1757
    %v1760 = vmul.f32 %v1758, 1.442695
    %v1761 = vpow.pop %v1760
    %v1762 = vmul.f32 %v1759, 1.442695
    %v1763 = vpow.pop %v1762
    %v1764 = vsel %vm1245, %v1761, 0.0
    %1765 = vadd.xlane.f32.xlu0 %v1764
    %v1766 = vpop.xlane.xlu0 %1765
    %v1767 = vsel %vm1245, %v1763, 0.0
    %1768 = vadd.xlane.f32.xlu0 %v1767
    %v1769 = vpop.xlane.xlu0 %1768
    %v1770 = vrcp.pop %v1766
    %v1771 = vrcp.pop %v1769
    %v1772 = vmul.f32 %v1761, %v1770
    %v1773 = vmul.f32 %v1763, %v1771
    %v1774 = vpack.c.bf16 %v1773, %v1772
    %1775 = vrot.lane.b32.xlu0 %v1701, 64
    %v1776 = vpop.permute.xlu0 %1775
    %v1779 = vsel %vm1245, %v1774, 0
    %1781 = vmatprep.subr.bf16.mxu0 0
    %1782 = vmatpush1.bf16.msra.mxu0 %v1776
    %1783 = vmatprep.subr.bf16.mxu0 0
    %1784 = vmatpush1.bf16.msra.mxu0 0
    %1785 = vmatprep.subr.bf16.mxu0 0
    %1786 = vmatpush1.bf16.msra.mxu0 0
    %1787 = vmatprep.subr.bf16.mxu0 0
    %1788 = vmatpush1.bf16.msra.mxu0 0
    %1789 = vmatprep.subr.bf16.mxu0 0
    %1790 = vmatpush1.bf16.msra.mxu0 0
    %1791 = vmatprep.subr.bf16.mxu0 0
    %1792 = vmatpush1.bf16.msra.mxu0 0
    %1793 = vmatprep.subr.bf16.mxu0 0
    %1794 = vmatpush1.bf16.msra.mxu0 0
    %1795 = vmatprep.subr.bf16.mxu0 0
    %1796 = vmatpush1.bf16.msra.mxu0 0
    %1797 = vmatprep.subr.bf16.mxu0 0
    %1798 = vmatpush1.bf16.msra.mxu0 0
    %1799 = vmatprep.subr.bf16.mxu0 0
    %1800 = vmatpush1.bf16.msra.mxu0 0
    %1801 = vmatprep.subr.bf16.mxu0 0
    %1802 = vmatpush1.bf16.msra.mxu0 0
    %1803 = vmatprep.subr.bf16.mxu0 0
    %1804 = vmatpush1.bf16.msra.mxu0 0
    %1805 = vmatprep.subr.bf16.mxu0 0
    %1806 = vmatpush1.bf16.msra.mxu0 0
    %1807 = vmatprep.subr.bf16.mxu0 0
    %1808 = vmatpush1.bf16.msra.mxu0 0
    %1809 = vmatprep.subr.bf16.mxu0 0
    %1810 = vmatpush1.bf16.msra.mxu0 0
    %1811 = vmatprep.subr.bf16.mxu0 0
    %1812 = vmatpush1.bf16.msra.mxu0 0
    %1813 = vmatprep.mubr.bf16.mxu0 0
    %1814 = vmatmul.mubr.bf16.gmra.mrb[0].mxu0 %v1779
    %v1815 = vpop.f32.mrb[0].mxu0
    %v1816 = vadd.f32 0.0, %v1815
    %v1817 = vpop.f32.mrb[0].mxu0
    %v1818 = vpop.f32.mrb[0].mxu0
    %v1819 = vadd.f32 0.0, %v1818
    %v1820 = vpop.f32.mrb[0].mxu0
    %1821 = vdwg.mxu0
    %v1822 = vpack.c.bf16 %v1690, %v1687
    %v1823 = vpack.c.bf16 %v1698, %v1695
    %1824 = vrot.lane.b32.xlu0 %v1701, 32
    %v1825 = vpop.permute.xlu0 %1824
    %v1827 = vsel %vm149, %v1825, 0
    %v1830 = vsel %vm149, %v1822, 0
    %v1833 = vsel %vm149, %v1823, 0
    %1835 = vmatprep.subr.bf16.mxu0 0
    %1836 = vmatpush1.bf16.xpose.msra.mxu0 %v1830
    %1837 = vmatprep.subr.bf16.mxu0 0
    %1838 = vmatpush1.bf16.xpose.msra.mxu0 %v1833
    %1839 = vmatprep.subr.bf16.mxu0 0
    %1840 = vmatpush1.bf16.xpose.msra.mxu0 0
    %1841 = vmatprep.subr.bf16.mxu0 0
    %1842 = vmatpush1.bf16.xpose.msra.mxu0 0
    %1843 = vmatprep.subr.bf16.mxu0 0
    %1844 = vmatpush1.bf16.xpose.msra.mxu0 0
    %1845 = vmatprep.subr.bf16.mxu0 0
    %1846 = vmatpush1.bf16.xpose.msra.mxu0 0
    %1847 = vmatprep.subr.bf16.mxu0 0
    %1848 = vmatpush1.bf16.xpose.msra.mxu0 0
    %1849 = vmatprep.subr.bf16.mxu0 0
    %1850 = vmatpush1.bf16.xpose.msra.mxu0 0
    %1851 = vmatprep.subr.bf16.mxu0 0
    %1852 = vmatpush1.bf16.xpose.msra.mxu0 0
    %1853 = vmatprep.subr.bf16.mxu0 0
    %1854 = vmatpush1.bf16.xpose.msra.mxu0 0
    %1855 = vmatprep.subr.bf16.mxu0 0
    %1856 = vmatpush1.bf16.xpose.msra.mxu0 0
    %1857 = vmatprep.subr.bf16.mxu0 0
    %1858 = vmatpush1.bf16.xpose.msra.mxu0 0
    %1859 = vmatprep.subr.bf16.mxu0 0
    %1860 = vmatpush1.bf16.xpose.msra.mxu0 0
    %1861 = vmatprep.subr.bf16.mxu0 0
    %1862 = vmatpush1.bf16.xpose.msra.mxu0 0
    %1863 = vmatprep.subr.bf16.mxu0 0
    %1864 = vmatpush1.bf16.xpose.msra.mxu0 0
    %1865 = vmatprep.subr.bf16.mxu0 0
    %1866 = vmatpush1.bf16.xpose.msra.mxu0 0
    %1867 = vmatprep.mubr.bf16.mxu0 0
    %1868 = vmatmul.mubr.bf16.gmra.mrb[0].mxu0 %v1827
    %v1869 = vpop.f32.mrb[0].mxu0
    %v1870 = vadd.f32 %v111, %v1869
    %v1871 = vpop.f32.mrb[0].mxu0
    %v1872 = vpop.f32.mrb[0].mxu0
    %v1873 = vadd.f32 %v112, %v1872
    %v1874 = vpop.f32.mrb[0].mxu0
    %1875 = vdwg.mxu0
    %v1876 = vsel %vm149, %v1870, -inf
    %1877 = vmax.xlane.f32.xlu0 %v1876
    %v1878 = vpop.xlane.xlu0 %1877
    %v1879 = vsel %vm149, %v1873, -inf
    %1880 = vmax.xlane.f32.xlu0 %v1879
    %v1881 = vpop.xlane.xlu0 %1880
    %v1882 = vsub.f32 %v1870, %v1878
    %v1883 = vsub.f32 %v1873, %v1881
    %v1884 = vmul.f32 %v1882, 1.442695
    %v1885 = vpow.pop %v1884
    %v1886 = vmul.f32 %v1883, 1.442695
    %v1887 = vpow.pop %v1886
    %v1888 = vsel %vm149, %v1885, 0.0
    %1889 = vadd.xlane.f32.xlu0 %v1888
    %v1890 = vpop.xlane.xlu0 %1889
    %v1891 = vsel %vm149, %v1887, 0.0
    %1892 = vadd.xlane.f32.xlu0 %v1891
    %v1893 = vpop.xlane.xlu0 %1892
    %v1894 = vrcp.pop %v1890
    %v1895 = vrcp.pop %v1893
    %v1896 = vmul.f32 %v1885, %v1894
    %v1897 = vmul.f32 %v1887, %v1895
    %v1898 = vpack.c.bf16 %v1897, %v1896
    %1901 = vrot.lane.b32.xlu0 %v1822, 96
    %v1902 = vpop.permute.xlu0 %1901
    %1903 = vrot.lane.b32.xlu0 %v1823, 96
    %v1904 = vpop.permute.xlu0 %1903
    %v1908 = vsel %vm149, %v1898, 0
    %1910 = vmatprep.subr.bf16.mxu0 0
    %1911 = vmatpush1.bf16.msra.mxu0 %v1902
    %1912 = vmatprep.subr.bf16.mxu0 0
    %1913 = vmatpush1.bf16.msra.mxu0 %v1904
    %1914 = vmatprep.subr.bf16.mxu0 0
    %1915 = vmatpush1.bf16.msra.mxu0 0
    %1916 = vmatprep.subr.bf16.mxu0 0
    %1917 = vmatpush1.bf16.msra.mxu0 0
    %1918 = vmatprep.subr.bf16.mxu0 0
    %1919 = vmatpush1.bf16.msra.mxu0 0
    %1920 = vmatprep.subr.bf16.mxu0 0
    %1921 = vmatpush1.bf16.msra.mxu0 0
    %1922 = vmatprep.subr.bf16.mxu0 0
    %1923 = vmatpush1.bf16.msra.mxu0 0
    %1924 = vmatprep.subr.bf16.mxu0 0
    %1925 = vmatpush1.bf16.msra.mxu0 0
    %1926 = vmatprep.subr.bf16.mxu0 0
    %1927 = vmatpush1.bf16.msra.mxu0 0
    %1928 = vmatprep.subr.bf16.mxu0 0
    %1929 = vmatpush1.bf16.msra.mxu0 0
    %1930 = vmatprep.subr.bf16.mxu0 0
    %1931 = vmatpush1.bf16.msra.mxu0 0
    %1932 = vmatprep.subr.bf16.mxu0 0
    %1933 = vmatpush1.bf16.msra.mxu0 0
    %1934 = vmatprep.subr.bf16.mxu0 0
    %1935 = vmatpush1.bf16.msra.mxu0 0
    %1936 = vmatprep.subr.bf16.mxu0 0
    %1937 = vmatpush1.bf16.msra.mxu0 0
    %1938 = vmatprep.subr.bf16.mxu0 0
    %1939 = vmatpush1.bf16.msra.mxu0 0
    %1940 = vmatprep.subr.bf16.mxu0 0
    %1941 = vmatpush1.bf16.msra.mxu0 0
    %1942 = vmatprep.mubr.bf16.mxu0 0
    %1943 = vmatmul.mubr.bf16.gmra.mrb[0].mxu0 %v1908
    %v1944 = vpop.f32.mrb[0].mxu0
    %v1945 = vadd.f32 0.0, %v1944
    %v1946 = vpop.f32.mrb[0].mxu0
    %v1947 = vpop.f32.mrb[0].mxu0
    %v1948 = vadd.f32 0.0, %v1947
    %v1949 = vpop.f32.mrb[0].mxu0
    %1950 = vdwg.mxu0
    %v1951 = vmax.f32 %v1628, 0.0
    %v1952 = vmax.f32 %v1632, 0.0
    %v1953 = vstv %s1557
    %v1954 = vmul.f32 %v1816, %v1953
    %v1955 = vmul.f32 %v1819, %v1953
    %v1956 = vstv %s1558
    %v1957 = vmul.f32 %v1945, %v1956
    %v1958 = vmul.f32 %v1948, %v1956
    %v1959 = vstv %s1559
    %v1960 = vmul.f32 %v1951, %v1959
    %v1961 = vmul.f32 %v1952, %v1959
    %1964 = vrot.lane.b32.xlu0 %v1957, 32
    %v1965 = vpop.permute.xlu0 %1964
    %1966 = vrot.lane.b32.xlu0 %v1958, 32
    %v1967 = vpop.permute.xlu0 %1966
    %1972 = vrot.lane.b32.xlu0 %v1960, 64
    %v1973 = vpop.permute.xlu0 %1972
    %1974 = vrot.lane.b32.xlu0 %v1961, 64
    %v1975 = vpop.permute.xlu0 %1974
    %v1978 = vsel %vm149, %v1954, %v1965
    %v1979 = vsel %vm149, %v1955, %v1967
    %v1980 = vsel %vm235, %v1978, %v1973
    %v1981 = vsel %vm235, %v1979, %v1975
    %v1982 = vmul.f32 %v1953, %v1556
    %v1983 = vmul.f32 %v1956, %v1556
    %v1985 = vrot.slane %v1983, 1
    %v1987 = vadd.f32 %v1982, %v1985
    %v1988 = vmul.f32 %v1959, %v1556
    %v1990 = vrot.slane %v1988, 2
    %v1992 = vadd.f32 %v1987, %v1990
    %v1993 = vpack.c.bf16 %v1981, %v1980
    %v1994 = vlaneseq
    %v1995 = vshrl.u32 %v1994, 7
    %v1996 = vsub.s32 0, %v1995
    %v1997 = vrot.slane %v1992, %v1996
    %v2014 = vunpack.c.l.b16 %v1539
    %v2015 = vunpack.c.l.b16 %v1540
    %v2016 = vunpack.c.l.b16 %v1541
    %v2017 = vunpack.c.l.b16 %v1542
    %v2018 = vunpack.c.l.b16 %v1543
    %v2019 = vunpack.c.l.b16 %v1544
    %v2020 = vunpack.c.l.b16 %v1545
    %v2021 = vunpack.c.l.b16 %v1546
    %v2022 = vunpack.c.l.b16 %v1547
    %v2023 = vunpack.c.l.b16 %v1548
    %v2024 = vunpack.c.l.b16 %v1549
    %v2025 = vunpack.c.l.b16 %v1550
    %v2026 = vunpack.c.l.b16 %v1551
    %v2027 = vunpack.c.l.b16 %v1552
    %v2028 = vunpack.c.l.b16 %v1553
    %v2029 = vunpack.c.l.b16 %v1554
    %v2030 = vpack.c.b16 %v2015, %v2014
    %v2031 = vpack.c.b16 %v2017, %v2016
    %v2032 = vpack.c.b16 %v2019, %v2018
    %v2033 = vpack.c.b16 %v2021, %v2020
    %v2034 = vpack.c.b16 %v2023, %v2022
    %v2035 = vpack.c.b16 %v2025, %v2024
    %v2036 = vpack.c.b16 %v2027, %v2026
    %v2037 = vpack.c.b16 %v2029, %v2028
    %2046 = vmatprep.subr.bf16.mxu0 0
    %2047 = vmatpush1.bf16.msra.mxu0 %v2030
    %2048 = vmatprep.subr.bf16.mxu0 0
    %2049 = vmatpush1.bf16.msra.mxu0 %v2031
    %2050 = vmatprep.subr.bf16.mxu0 0
    %2051 = vmatpush1.bf16.msra.mxu0 %v2032
    %2052 = vmatprep.subr.bf16.mxu0 0
    %2053 = vmatpush1.bf16.msra.mxu0 %v2033
    %2054 = vmatprep.subr.bf16.mxu0 0
    %2055 = vmatpush1.bf16.msra.mxu0 %v2034
    %2056 = vmatprep.subr.bf16.mxu0 0
    %2057 = vmatpush1.bf16.msra.mxu0 %v2035
    %2058 = vmatprep.subr.bf16.mxu0 0
    %2059 = vmatpush1.bf16.msra.mxu0 %v2036
    %2060 = vmatprep.subr.bf16.mxu0 0
    %2061 = vmatpush1.bf16.msra.mxu0 %v2037
    %2062 = vmatprep.subr.bf16.mxu0 0
    %2063 = vmatpush1.bf16.msra.mxu0 0
    %2064 = vmatprep.subr.bf16.mxu0 0
    %2065 = vmatpush1.bf16.msra.mxu0 0
    %2066 = vmatprep.subr.bf16.mxu0 0
    %2067 = vmatpush1.bf16.msra.mxu0 0
    %2068 = vmatprep.subr.bf16.mxu0 0
    %2069 = vmatpush1.bf16.msra.mxu0 0
    %2070 = vmatprep.subr.bf16.mxu0 0
    %2071 = vmatpush1.bf16.msra.mxu0 0
    %2072 = vmatprep.subr.bf16.mxu0 0
    %2073 = vmatpush1.bf16.msra.mxu0 0
    %2074 = vmatprep.subr.bf16.mxu0 0
    %2075 = vmatpush1.bf16.msra.mxu0 0
    %2076 = vmatprep.subr.bf16.mxu0 0
    %2077 = vmatpush1.bf16.msra.mxu0 0
    %2078 = vmatprep.mubr.bf16.mxu0 0
    %2079 = vmatmul.mubr.bf16.gmra.mrb[0].mxu0 %v1993
    %v2080 = vpop.f32.mrb[0].mxu0
    %v2081 = vadd.f32 %v1997, %v2080
    %v2082 = vpop.f32.mrb[0].mxu0
    %v2083 = vpop.f32.mrb[0].mxu0
    %v2084 = vadd.f32 %v1997, %v2083
    %v2085 = vpop.f32.mrb[0].mxu0
    %2086 = vdwg.mxu0
    %v2087 = vsel %vm149, %v1510, 0.0
    %2088 = vadd.xlane.f32.xlu0 %v2087
    %v2089 = vpop.xlane.xlu0 %2088
    %v2090 = vsel %vm149, %v1513, 0.0
    %2091 = vadd.xlane.f32.xlu0 %v2090
    %v2092 = vpop.xlane.xlu0 %2091
    %v2093 = vsel %vm149, %v1518, 0.0
    %2094 = vadd.xlane.f32.xlu0 %v2093
    %v2095 = vpop.xlane.xlu0 %2094
    %v2096 = vsel %vm149, %v1521, 0.0
    %2097 = vadd.xlane.f32.xlu0 %v2096
    %v2098 = vpop.xlane.xlu0 %2097
    %v2099 = vrcp.pop 32.0
    %v2100 = vmul.f32 %v2089, %v2099
    %v2101 = vmul.f32 %v2092, %v2099
    %v2102 = vmul.f32 %v2095, %v2099
    %v2103 = vmul.f32 %v2098, %v2099
    %v2104 = vsub.f32 %v1510, %v2100
    %v2105 = vsub.f32 %v1513, %v2101
    %v2106 = vsub.f32 %v1518, %v2102
    %v2107 = vsub.f32 %v1521, %v2103
    %v2108 = vmul.f32 %v2104, %v2104
    %v2109 = vmul.f32 %v2105, %v2105
    %v2110 = vmul.f32 %v2106, %v2106
    %v2111 = vmul.f32 %v2107, %v2107
    %v2112 = vsel %vm149, %v2108, 0.0
    %2113 = vadd.xlane.f32.xlu0 %v2112
    %v2114 = vpop.xlane.xlu0 %2113
    %v2115 = vsel %vm149, %v2109, 0.0
    %2116 = vadd.xlane.f32.xlu0 %v2115
    %v2117 = vpop.xlane.xlu0 %2116
    %v2118 = vsel %vm149, %v2110, 0.0
    %2119 = vadd.xlane.f32.xlu0 %v2118
    %v2120 = vpop.xlane.xlu0 %2119
    %v2121 = vsel %vm149, %v2111, 0.0
    %2122 = vadd.xlane.f32.xlu0 %v2121
    %v2123 = vpop.xlane.xlu0 %2122
    %v2124 = vmul.f32 %v2114, %v2099
    %v2125 = vmul.f32 %v2117, %v2099
    %v2126 = vmul.f32 %v2120, %v2099
    %v2127 = vmul.f32 %v2123, %v2099
    %v2128 = vadd.f32 %v2124, 1e-05
    %v2129 = vadd.f32 %v2125, 1e-05
    %v2130 = vadd.f32 %v2126, 1e-05
    %v2131 = vadd.f32 %v2127, 1e-05
    %v2132 = vrsqrt.pop %v2128
    %v2133 = vrsqrt.pop %v2129
    %v2134 = vrsqrt.pop %v2130
    %v2135 = vrsqrt.pop %v2131
    %v2136 = vmul.f32 %v2104, %v2132
    %v2137 = vmul.f32 %v2105, %v2133
    %v2138 = vmul.f32 %v2106, %v2134
    %v2139 = vmul.f32 %v2107, %v2135
    %v2140 = vsel %vm149, %v2081, 0.0
    %2141 = vadd.xlane.f32.xlu0 %v2140
    %v2142 = vpop.xlane.xlu0 %2141
    %v2143 = vsel %vm149, %v2084, 0.0
    %2144 = vadd.xlane.f32.xlu0 %v2143
    %v2145 = vpop.xlane.xlu0 %2144
    %v2146 = vmul.f32 %v2142, %v2099
    %v2147 = vmul.f32 %v2145, %v2099
    %v2148 = vsub.f32 %v2081, %v2146
    %v2149 = vsub.f32 %v2084, %v2147
    %v2150 = vmul.f32 %v2148, %v2148
    %v2151 = vmul.f32 %v2149, %v2149
    %v2152 = vsel %vm149, %v2150, 0.0
    %2153 = vadd.xlane.f32.xlu0 %v2152
    %v2154 = vpop.xlane.xlu0 %2153
    %v2155 = vsel %vm149, %v2151, 0.0
    %2156 = vadd.xlane.f32.xlu0 %v2155
    %v2157 = vpop.xlane.xlu0 %2156
    %v2158 = vmul.f32 %v2154, %v2099
    %v2159 = vmul.f32 %v2157, %v2099
    %v2160 = vadd.f32 %v2158, 1e-05
    %v2161 = vadd.f32 %v2159, 1e-05
    %v2162 = vrsqrt.pop %v2160
    %v2163 = vrsqrt.pop %v2161
    %v2164 = vmul.f32 %v2148, %v2162
    %v2165 = vmul.f32 %v2149, %v2163
    %s2166 = scalar_lea.vmem %s12, 64
    %v2167 = vld [vmem:[%s2166] sm:$0xff]
    %v2168 = vld [vmem:[%s2166 + $0x8] sm:$0xff]
    %v2169 = vld [vmem:[%s2166 + $0x10] sm:$0xff]
    %v2170 = vld [vmem:[%s2166 + $0x18] sm:$0xff]
    %s2171 = scalar_lea.vmem %s13, 4
    %v2172 = vld [vmem:[%s2171] sm:$0x3]
    %s2173 = scalar_lea.vmem %s14, 32
    %v2174 = vld [vmem:[%s2173] sm:$0xf]
    %v2175 = vld [vmem:[%s2173 + $0x4] sm:$0xf]
    %v2176 = vld [vmem:[%s2173 + $0x8] sm:$0xf]
    %v2177 = vld [vmem:[%s2173 + $0xc] sm:$0xf]
    %s2178 = scalar_lea.vmem %s15, 2
    %v2179 = vld [vmem:[%s2178] sm:$0x1]
    %s2180 = scalar_lea.vmem %s16, 128
    %v2181 = vld [vmem:[%s2180] sm:$0xf]
    %v2182 = vld [vmem:[%s2180 + $0x4] sm:$0xf]
    %v2183 = vld [vmem:[%s2180 + $0x8] sm:$0xf]
    %v2184 = vld [vmem:[%s2180 + $0xc] sm:$0xf]
    %v2185 = vld [vmem:[%s2180 + $0x10] sm:$0xf]
    %v2186 = vld [vmem:[%s2180 + $0x14] sm:$0xf]
    %v2187 = vld [vmem:[%s2180 + $0x18] sm:$0xf]
    %v2188 = vld [vmem:[%s2180 + $0x1c] sm:$0xf]
    %v2189 = vld [vmem:[%s2180 + $0x20] sm:$0xf]
    %v2190 = vld [vmem:[%s2180 + $0x24] sm:$0xf]
    %v2191 = vld [vmem:[%s2180 + $0x28] sm:$0xf]
    %v2192 = vld [vmem:[%s2180 + $0x2c] sm:$0xf]
    %v2193 = vld [vmem:[%s2180 + $0x30] sm:$0xf]
    %v2194 = vld [vmem:[%s2180 + $0x34] sm:$0xf]
    %v2195 = vld [vmem:[%s2180 + $0x38] sm:$0xf]
    %v2196 = vld [vmem:[%s2180 + $0x3c] sm:$0xf]
    %s2197 = scalar_lea.vmem %s17, 8
    %v2198 = vld [vmem:[%s2197] sm:$0x7]
    %s2199 = sld [smem:[#allocation2 + $0x80]]
    %s2200 = sld [smem:[#allocation2 + $0x81]]
    %s2201 = sld [smem:[#allocation2 + $0x82]]
    %v2203 = vlaneseq
    %v2204 = vshrl.u32 %v2203, 7
    %v2205 = vsub.s32 0, %v2204
    %v2206 = vrot.slane %v2172, %v2205
    %v2207 = vlaneseq
    %v2208 = vshrl.u32 %v2207, 7
    %v2209 = vsub.s32 1, %v2208
    %v2210 = vrot.slane %v2172, %v2209
    %v2217 = vunpack.c.l.b16 %v2167
    %v2218 = vunpack.c.h.b16 %v2167
    %v2219 = vunpack.c.l.b16 %v2168
    %v2220 = vunpack.c.h.b16 %v2168
    %v2221 = vunpack.c.l.b16 %v2169
    %v2222 = vunpack.c.h.b16 %v2169
    %v2223 = vunpack.c.l.b16 %v2170
    %v2224 = vunpack.c.h.b16 %v2170
    %v2225 = vpack.c.b16 %v2219, %v2217
    %v2226 = vpack.c.b16 %v2220, %v2218
    %v2227 = vpack.c.b16 %v2223, %v2221
    %v2228 = vpack.c.b16 %v2224, %v2222
    %2233 = vmatprep.subr.bf16.mxu0 %v2226
    %2234 = vmatpush1.bf16.msra.mxu0 %v2225
    %2235 = vmatprep.subr.bf16.mxu0 %v2228
    %2236 = vmatpush1.bf16.msra.mxu0 %v2227
    %2237 = vmatprep.subr.bf16.mxu0 0
    %2238 = vmatpush1.bf16.msra.mxu0 0
    %2239 = vmatprep.subr.bf16.mxu0 0
    %2240 = vmatpush1.bf16.msra.mxu0 0
    %2241 = vmatprep.subr.bf16.mxu0 0
    %2242 = vmatpush1.bf16.msra.mxu0 0
    %2243 = vmatprep.subr.bf16.mxu0 0
    %2244 = vmatpush1.bf16.msra.mxu0 0
    %2245 = vmatprep.subr.bf16.mxu0 0
    %2246 = vmatpush1.bf16.msra.mxu0 0
    %2247 = vmatprep.subr.bf16.mxu0 0
    %2248 = vmatpush1.bf16.msra.mxu0 0
    %2249 = vmatprep.subr.bf16.mxu0 0
    %2250 = vmatpush1.bf16.msra.mxu0 0
    %2251 = vmatprep.subr.bf16.mxu0 0
    %2252 = vmatpush1.bf16.msra.mxu0 0
    %2253 = vmatprep.subr.bf16.mxu0 0
    %2254 = vmatpush1.bf16.msra.mxu0 0
    %2255 = vmatprep.subr.bf16.mxu0 0
    %2256 = vmatpush1.bf16.msra.mxu0 0
    %2257 = vmatprep.subr.bf16.mxu0 0
    %2258 = vmatpush1.bf16.msra.mxu0 0
    %2259 = vmatprep.subr.bf16.mxu0 0
    %2260 = vmatpush1.bf16.msra.mxu0 0
    %2261 = vmatprep.subr.bf16.mxu0 0
    %2262 = vmatpush1.bf16.msra.mxu0 0
    %2263 = vmatprep.subr.bf16.mxu0 0
    %2264 = vmatpush1.bf16.msra.mxu0 0
    %2265 = vmatprep.mubr.bf16.mxu0 0
    %2266 = vmatmul.mubr.bf16.gmra.mrb[0].mxu0 %v885
    %v2267 = vpop.f32.mrb[0].mxu0
    %v2268 = vadd.f32 %v2206, %v2267
    %v2269 = vpop.f32.mrb[0].mxu0
    %v2270 = vadd.f32 %v2210, %v2269
    %v2271 = vpop.f32.mrb[0].mxu0
    %v2272 = vadd.f32 %v2206, %v2271
    %v2273 = vpop.f32.mrb[0].mxu0
    %v2274 = vadd.f32 %v2210, %v2273
    %2275 = vmatprep.mubr.bf16.mxu0 0
    %2276 = vmatmul.mubr.bf16.gmra.mrb[0].mxu0 %v888
    %v2277 = vpop.f32.mrb[0].mxu0
    %v2278 = vadd.f32 %v2206, %v2277
    %v2279 = vpop.f32.mrb[0].mxu0
    %v2280 = vadd.f32 %v2210, %v2279
    %v2281 = vpop.f32.mrb[0].mxu0
    %v2282 = vadd.f32 %v2206, %v2281
    %v2283 = vpop.f32.mrb[0].mxu0
    %v2284 = vadd.f32 %v2210, %v2283
    %2285 = vdwg.mxu0
    %v2287 = vlaneseq
    %v2288 = vshrl.u32 %v2287, 7
    %v2289 = vsub.s32 0, %v2288
    %v2290 = vrot.slane %v2179, %v2289
    %v2296 = vunpack.c.l.b16 %v2174
    %v2297 = vunpack.c.l.b16 %v2175
    %v2298 = vunpack.c.l.b16 %v2176
    %v2299 = vunpack.c.l.b16 %v2177
    %v2300 = vpack.c.b16 %v2297, %v2296
    %v2301 = vpack.c.b16 %v2299, %v2298
    %2304 = vmatprep.subr.bf16.mxu0 0
    %2305 = vmatpush1.bf16.msra.mxu0 %v2300
    %2306 = vmatprep.subr.bf16.mxu0 0
    %2307 = vmatpush1.bf16.msra.mxu0 %v2301
    %2308 = vmatprep.subr.bf16.mxu0 0
    %2309 = vmatpush1.bf16.msra.mxu0 0
    %2310 = vmatprep.subr.bf16.mxu0 0
    %2311 = vmatpush1.bf16.msra.mxu0 0
    %2312 = vmatprep.subr.bf16.mxu0 0
    %2313 = vmatpush1.bf16.msra.mxu0 0
    %2314 = vmatprep.subr.bf16.mxu0 0
    %2315 = vmatpush1.bf16.msra.mxu0 0
    %2316 = vmatprep.subr.bf16.mxu0 0
    %2317 = vmatpush1.bf16.msra.mxu0 0
    %2318 = vmatprep.subr.bf16.mxu0 0
    %2319 = vmatpush1.bf16.msra.mxu0 0
    %2320 = vmatprep.subr.bf16.mxu0 0
    %2321 = vmatpush1.bf16.msra.mxu0 0
    %2322 = vmatprep.subr.bf16.mxu0 0
    %2323 = vmatpush1.bf16.msra.mxu0 0
    %2324 = vmatprep.subr.bf16.mxu0 0
    %2325 = vmatpush1.bf16.msra.mxu0 0
    %2326 = vmatprep.subr.bf16.mxu0 0
    %2327 = vmatpush1.bf16.msra.mxu0 0
    %2328 = vmatprep.subr.bf16.mxu0 0
    %2329 = vmatpush1.bf16.msra.mxu0 0
    %2330 = vmatprep.subr.bf16.mxu0 0
    %2331 = vmatpush1.bf16.msra.mxu0 0
    %2332 = vmatprep.subr.bf16.mxu0 0
    %2333 = vmatpush1.bf16.msra.mxu0 0
    %2334 = vmatprep.subr.bf16.mxu0 0
    %2335 = vmatpush1.bf16.msra.mxu0 0
    %2336 = vmatprep.mubr.bf16.mxu0 0
    %2337 = vmatmul.mubr.bf16.gmra.mrb[0].mxu0 %v963
    %v2338 = vpop.f32.mrb[0].mxu0
    %v2339 = vadd.f32 %v2290, %v2338
    %v2340 = vpop.f32.mrb[0].mxu0
    %v2341 = vpop.f32.mrb[0].mxu0
    %v2342 = vadd.f32 %v2290, %v2341
    %v2343 = vpop.f32.mrb[0].mxu0
    %2344 = vdwg.mxu0
    %v2345 = vpack.c.bf16 %v2272, %v2268
    %v2346 = vpack.c.bf16 %v2282, %v2278
    %2349 = vrot.lane.b32.xlu0 %v2345, 96
    %v2350 = vpop.permute.xlu0 %2349
    %2351 = vrot.lane.b32.xlu0 %v2346, 96
    %v2352 = vpop.permute.xlu0 %2351
    %v2354 = vsel %vm149, %v2345, 0
    %v2357 = vsel %vm149, %v2346, 0
    %v2360 = vsel %vm149, %v2350, 0
    %v2363 = vsel %vm149, %v2352, 0
    %2365 = vmatprep.subr.bf16.mxu0 0
    %2366 = vmatpush1.bf16.xpose.msra.mxu0 %v2360
    %2367 = vmatprep.subr.bf16.mxu0 0
    %2368 = vmatpush1.bf16.xpose.msra.mxu0 %v2363
    %2369 = vmatprep.subr.bf16.mxu0 0
    %2370 = vmatpush1.bf16.xpose.msra.mxu0 0
    %2371 = vmatprep.subr.bf16.mxu0 0
    %2372 = vmatpush1.bf16.xpose.msra.mxu0 0
    %2373 = vmatprep.subr.bf16.mxu0 0
    %2374 = vmatpush1.bf16.xpose.msra.mxu0 0
    %2375 = vmatprep.subr.bf16.mxu0 0
    %2376 = vmatpush1.bf16.xpose.msra.mxu0 0
    %2377 = vmatprep.subr.bf16.mxu0 0
    %2378 = vmatpush1.bf16.xpose.msra.mxu0 0
    %2379 = vmatprep.subr.bf16.mxu0 0
    %2380 = vmatpush1.bf16.xpose.msra.mxu0 0
    %2381 = vmatprep.subr.bf16.mxu0 0
    %2382 = vmatpush1.bf16.xpose.msra.mxu0 0
    %2383 = vmatprep.subr.bf16.mxu0 0
    %2384 = vmatpush1.bf16.xpose.msra.mxu0 0
    %2385 = vmatprep.subr.bf16.mxu0 0
    %2386 = vmatpush1.bf16.xpose.msra.mxu0 0
    %2387 = vmatprep.subr.bf16.mxu0 0
    %2388 = vmatpush1.bf16.xpose.msra.mxu0 0
    %2389 = vmatprep.subr.bf16.mxu0 0
    %2390 = vmatpush1.bf16.xpose.msra.mxu0 0
    %2391 = vmatprep.subr.bf16.mxu0 0
    %2392 = vmatpush1.bf16.xpose.msra.mxu0 0
    %2393 = vmatprep.subr.bf16.mxu0 0
    %2394 = vmatpush1.bf16.xpose.msra.mxu0 0
    %2395 = vmatprep.subr.bf16.mxu0 0
    %2396 = vmatpush1.bf16.xpose.msra.mxu0 0
    %2397 = vmatprep.mubr.bf16.mxu0 0
    %2398 = vmatmul.mubr.bf16.gmra.mrb[0].mxu0 %v2354
    %v2399 = vpop.f32.mrb[0].mxu0
    %v2400 = vadd.f32 %v103, %v2399
    %v2401 = vpop.f32.mrb[0].mxu0
    %v2402 = vpop.f32.mrb[0].mxu0
    %v2403 = vadd.f32 %v104, %v2402
    %v2404 = vpop.f32.mrb[0].mxu0
    %2405 = vmatprep.mubr.bf16.mxu0 0
    %2406 = vmatmul.mubr.bf16.gmra.mrb[0].mxu0 %v2357
    %v2407 = vpop.f32.mrb[0].mxu0
    %v2408 = vadd.f32 %v105, %v2407
    %v2409 = vpop.f32.mrb[0].mxu0
    %v2410 = vpop.f32.mrb[0].mxu0
    %v2411 = vadd.f32 %v106, %v2410
    %v2412 = vpop.f32.mrb[0].mxu0
    %2413 = vdwg.mxu0
    %v2414 = vsel %vm149, %v2400, -inf
    %2415 = vmax.xlane.f32.xlu0 %v2414
    %v2416 = vpop.xlane.xlu0 %2415
    %v2417 = vsel %vm149, %v2403, -inf
    %2418 = vmax.xlane.f32.xlu0 %v2417
    %v2419 = vpop.xlane.xlu0 %2418
    %v2420 = vsel %vm149, %v2408, -inf
    %2421 = vmax.xlane.f32.xlu0 %v2420
    %v2422 = vpop.xlane.xlu0 %2421
    %v2423 = vsel %vm149, %v2411, -inf
    %2424 = vmax.xlane.f32.xlu0 %v2423
    %v2425 = vpop.xlane.xlu0 %2424
    %v2426 = vsub.f32 %v2400, %v2416
    %v2427 = vsub.f32 %v2403, %v2419
    %v2428 = vsub.f32 %v2408, %v2422
    %v2429 = vsub.f32 %v2411, %v2425
    %v2430 = vmul.f32 %v2426, 1.442695
    %v2431 = vpow.pop %v2430
    %v2432 = vmul.f32 %v2427, 1.442695
    %v2433 = vpow.pop %v2432
    %v2434 = vmul.f32 %v2428, 1.442695
    %v2435 = vpow.pop %v2434
    %v2436 = vmul.f32 %v2429, 1.442695
    %v2437 = vpow.pop %v2436
    %v2438 = vsel %vm149, %v2431, 0.0
    %2439 = vadd.xlane.f32.xlu0 %v2438
    %v2440 = vpop.xlane.xlu0 %2439
    %v2441 = vsel %vm149, %v2433, 0.0
    %2442 = vadd.xlane.f32.xlu0 %v2441
    %v2443 = vpop.xlane.xlu0 %2442
    %v2444 = vsel %vm149, %v2435, 0.0
    %2445 = vadd.xlane.f32.xlu0 %v2444
    %v2446 = vpop.xlane.xlu0 %2445
    %v2447 = vsel %vm149, %v2437, 0.0
    %2448 = vadd.xlane.f32.xlu0 %v2447
    %v2449 = vpop.xlane.xlu0 %2448
    %v2450 = vrcp.pop %v2440
    %v2451 = vrcp.pop %v2443
    %v2452 = vrcp.pop %v2446
    %v2453 = vrcp.pop %v2449
    %v2454 = vmul.f32 %v2431, %v2450
    %v2455 = vmul.f32 %v2433, %v2451
    %v2456 = vmul.f32 %v2435, %v2452
    %v2457 = vmul.f32 %v2437, %v2453
    %v2458 = vpack.c.bf16 %v2455, %v2454
    %v2459 = vpack.c.bf16 %v2457, %v2456
    %2460 = vrot.lane.b32.xlu0 %v2345, 64
    %v2461 = vpop.permute.xlu0 %2460
    %2462 = vrot.lane.b32.xlu0 %v2346, 64
    %v2463 = vpop.permute.xlu0 %2462
    %v2467 = vsel %vm149, %v2458, 0
    %v2470 = vsel %vm149, %v2459, 0
    %2472 = vmatprep.subr.bf16.mxu0 0
    %2473 = vmatpush1.bf16.msra.mxu0 %v2461
    %2474 = vmatprep.subr.bf16.mxu0 0
    %2475 = vmatpush1.bf16.msra.mxu0 %v2463
    %2476 = vmatprep.subr.bf16.mxu0 0
    %2477 = vmatpush1.bf16.msra.mxu0 0
    %2478 = vmatprep.subr.bf16.mxu0 0
    %2479 = vmatpush1.bf16.msra.mxu0 0
    %2480 = vmatprep.subr.bf16.mxu0 0
    %2481 = vmatpush1.bf16.msra.mxu0 0
    %2482 = vmatprep.subr.bf16.mxu0 0
    %2483 = vmatpush1.bf16.msra.mxu0 0
    %2484 = vmatprep.subr.bf16.mxu0 0
    %2485 = vmatpush1.bf16.msra.mxu0 0
    %2486 = vmatprep.subr.bf16.mxu0 0
    %2487 = vmatpush1.bf16.msra.mxu0 0
    %2488 = vmatprep.subr.bf16.mxu0 0
    %2489 = vmatpush1.bf16.msra.mxu0 0
    %2490 = vmatprep.subr.bf16.mxu0 0
    %2491 = vmatpush1.bf16.msra.mxu0 0
    %2492 = vmatprep.subr.bf16.mxu0 0
    %2493 = vmatpush1.bf16.msra.mxu0 0
    %2494 = vmatprep.subr.bf16.mxu0 0
    %2495 = vmatpush1.bf16.msra.mxu0 0
    %2496 = vmatprep.subr.bf16.mxu0 0
    %2497 = vmatpush1.bf16.msra.mxu0 0
    %2498 = vmatprep.subr.bf16.mxu0 0
    %2499 = vmatpush1.bf16.msra.mxu0 0
    %2500 = vmatprep.subr.bf16.mxu0 0
    %2501 = vmatpush1.bf16.msra.mxu0 0
    %2502 = vmatprep.subr.bf16.mxu0 0
    %2503 = vmatpush1.bf16.msra.mxu0 0
    %2504 = vmatprep.mubr.bf16.mxu0 0
    %2505 = vmatmul.mubr.bf16.gmra.mrb[0].mxu0 %v2467
    %v2506 = vpop.f32.mrb[0].mxu0
    %v2507 = vadd.f32 0.0, %v2506
    %v2508 = vpop.f32.mrb[0].mxu0
    %v2509 = vpop.f32.mrb[0].mxu0
    %v2510 = vadd.f32 0.0, %v2509
    %v2511 = vpop.f32.mrb[0].mxu0
    %2512 = vmatprep.mubr.bf16.mxu0 0
    %2513 = vmatmul.mubr.bf16.gmra.mrb[0].mxu0 %v2470
    %v2514 = vpop.f32.mrb[0].mxu0
    %v2515 = vadd.f32 0.0, %v2514
    %v2516 = vpop.f32.mrb[0].mxu0
    %v2517 = vpop.f32.mrb[0].mxu0
    %v2518 = vadd.f32 0.0, %v2517
    %v2519 = vpop.f32.mrb[0].mxu0
    %2520 = vdwg.mxu0
    %v2521 = vpack.c.bf16 %v2342, %v2339
    %2522 = vrot.lane.b32.xlu0 %v2345, 32
    %v2523 = vpop.permute.xlu0 %2522
    %2524 = vrot.lane.b32.xlu0 %v2346, 32
    %v2525 = vpop.permute.xlu0 %2524
    %v2527 = vsel %vm149, %v2523, 0
    %v2530 = vsel %vm149, %v2525, 0
    %v2533 = vsel %vm149, %v2521, 0
    %2535 = vmatprep.subr.bf16.mxu0 0
    %2536 = vmatpush1.bf16.xpose.msra.mxu0 %v2533
    %2537 = vmatprep.subr.bf16.mxu0 0
    %2538 = vmatpush1.bf16.xpose.msra.mxu0 0
    %2539 = vmatprep.subr.bf16.mxu0 0
    %2540 = vmatpush1.bf16.xpose.msra.mxu0 0
    %2541 = vmatprep.subr.bf16.mxu0 0
    %2542 = vmatpush1.bf16.xpose.msra.mxu0 0
    %2543 = vmatprep.subr.bf16.mxu0 0
    %2544 = vmatpush1.bf16.xpose.msra.mxu0 0
    %2545 = vmatprep.subr.bf16.mxu0 0
    %2546 = vmatpush1.bf16.xpose.msra.mxu0 0
    %2547 = vmatprep.subr.bf16.mxu0 0
    %2548 = vmatpush1.bf16.xpose.msra.mxu0 0
    %2549 = vmatprep.subr.bf16.mxu0 0
    %2550 = vmatpush1.bf16.xpose.msra.mxu0 0
    %2551 = vmatprep.subr.bf16.mxu0 0
    %2552 = vmatpush1.bf16.xpose.msra.mxu0 0
    %2553 = vmatprep.subr.bf16.mxu0 0
    %2554 = vmatpush1.bf16.xpose.msra.mxu0 0
    %2555 = vmatprep.subr.bf16.mxu0 0
    %2556 = vmatpush1.bf16.xpose.msra.mxu0 0
    %2557 = vmatprep.subr.bf16.mxu0 0
    %2558 = vmatpush1.bf16.xpose.msra.mxu0 0
    %2559 = vmatprep.subr.bf16.mxu0 0
    %2560 = vmatpush1.bf16.xpose.msra.mxu0 0
    %2561 = vmatprep.subr.bf16.mxu0 0
    %2562 = vmatpush1.bf16.xpose.msra.mxu0 0
    %2563 = vmatprep.subr.bf16.mxu0 0
    %2564 = vmatpush1.bf16.xpose.msra.mxu0 0
    %2565 = vmatprep.subr.bf16.mxu0 0
    %2566 = vmatpush1.bf16.xpose.msra.mxu0 0
    %2567 = vmatprep.mubr.bf16.mxu0 0
    %2568 = vmatmul.mubr.bf16.gmra.mrb[0].mxu0 %v2527
    %v2569 = vpop.f32.mrb[0].mxu0
    %v2570 = vadd.f32 %v107, %v2569
    %v2571 = vpop.f32.mrb[0].mxu0
    %v2572 = vpop.f32.mrb[0].mxu0
    %v2573 = vadd.f32 %v108, %v2572
    %v2574 = vpop.f32.mrb[0].mxu0
    %2575 = vmatprep.mubr.bf16.mxu0 0
    %2576 = vmatmul.mubr.bf16.gmra.mrb[0].mxu0 %v2530
    %v2577 = vpop.f32.mrb[0].mxu0
    %v2578 = vadd.f32 %v109, %v2577
    %v2579 = vpop.f32.mrb[0].mxu0
    %v2580 = vpop.f32.mrb[0].mxu0
    %v2581 = vadd.f32 %v110, %v2580
    %v2582 = vpop.f32.mrb[0].mxu0
    %2583 = vdwg.mxu0
    %v2584 = vsel %vm1245, %v2570, -inf
    %2585 = vmax.xlane.f32.xlu0 %v2584
    %v2586 = vpop.xlane.xlu0 %2585
    %v2587 = vsel %vm1245, %v2573, -inf
    %2588 = vmax.xlane.f32.xlu0 %v2587
    %v2589 = vpop.xlane.xlu0 %2588
    %v2590 = vsel %vm1245, %v2578, -inf
    %2591 = vmax.xlane.f32.xlu0 %v2590
    %v2592 = vpop.xlane.xlu0 %2591
    %v2593 = vsel %vm1245, %v2581, -inf
    %2594 = vmax.xlane.f32.xlu0 %v2593
    %v2595 = vpop.xlane.xlu0 %2594
    %v2596 = vsub.f32 %v2570, %v2586
    %v2597 = vsub.f32 %v2573, %v2589
    %v2598 = vsub.f32 %v2578, %v2592
    %v2599 = vsub.f32 %v2581, %v2595
    %v2600 = vmul.f32 %v2596, 1.442695
    %v2601 = vpow.pop %v2600
    %v2602 = vmul.f32 %v2597, 1.442695
    %v2603 = vpow.pop %v2602
    %v2604 = vmul.f32 %v2598, 1.442695
    %v2605 = vpow.pop %v2604
    %v2606 = vmul.f32 %v2599, 1.442695
    %v2607 = vpow.pop %v2606
    %v2608 = vsel %vm1245, %v2601, 0.0
    %2609 = vadd.xlane.f32.xlu0 %v2608
    %v2610 = vpop.xlane.xlu0 %2609
    %v2611 = vsel %vm1245, %v2603, 0.0
    %2612 = vadd.xlane.f32.xlu0 %v2611
    %v2613 = vpop.xlane.xlu0 %2612
    %v2614 = vsel %vm1245, %v2605, 0.0
    %2615 = vadd.xlane.f32.xlu0 %v2614
    %v2616 = vpop.xlane.xlu0 %2615
    %v2617 = vsel %vm1245, %v2607, 0.0
    %2618 = vadd.xlane.f32.xlu0 %v2617
    %v2619 = vpop.xlane.xlu0 %2618
    %v2620 = vrcp.pop %v2610
    %v2621 = vrcp.pop %v2613
    %v2622 = vrcp.pop %v2616
    %v2623 = vrcp.pop %v2619
    %v2624 = vmul.f32 %v2601, %v2620
    %v2625 = vmul.f32 %v2603, %v2621
    %v2626 = vmul.f32 %v2605, %v2622
    %v2627 = vmul.f32 %v2607, %v2623
    %v2628 = vpack.c.bf16 %v2625, %v2624
    %v2629 = vpack.c.bf16 %v2627, %v2626
    %2631 = vrot.lane.b32.xlu0 %v2521, 96
    %v2632 = vpop.permute.xlu0 %2631
    %v2635 = vsel %vm1245, %v2628, 0
    %v2638 = vsel %vm1245, %v2629, 0
    %2640 = vmatprep.subr.bf16.mxu0 0
    %2641 = vmatpush1.bf16.msra.mxu0 %v2632
    %2642 = vmatprep.subr.bf16.mxu0 0
    %2643 = vmatpush1.bf16.msra.mxu0 0
    %2644 = vmatprep.subr.bf16.mxu0 0
    %2645 = vmatpush1.bf16.msra.mxu0 0
    %2646 = vmatprep.subr.bf16.mxu0 0
    %2647 = vmatpush1.bf16.msra.mxu0 0
    %2648 = vmatprep.subr.bf16.mxu0 0
    %2649 = vmatpush1.bf16.msra.mxu0 0
    %2650 = vmatprep.subr.bf16.mxu0 0
    %2651 = vmatpush1.bf16.msra.mxu0 0
    %2652 = vmatprep.subr.bf16.mxu0 0
    %2653 = vmatpush1.bf16.msra.mxu0 0
    %2654 = vmatprep.subr.bf16.mxu0 0
    %2655 = vmatpush1.bf16.msra.mxu0 0
    %2656 = vmatprep.subr.bf16.mxu0 0
    %2657 = vmatpush1.bf16.msra.mxu0 0
    %2658 = vmatprep.subr.bf16.mxu0 0
    %2659 = vmatpush1.bf16.msra.mxu0 0
    %2660 = vmatprep.subr.bf16.mxu0 0
    %2661 = vmatpush1.bf16.msra.mxu0 0
    %2662 = vmatprep.subr.bf16.mxu0 0
    %2663 = vmatpush1.bf16.msra.mxu0 0
    %2664 = vmatprep.subr.bf16.mxu0 0
    %2665 = vmatpush1.bf16.msra.mxu0 0
    %2666 = vmatprep.subr.bf16.mxu0 0
    %2667 = vmatpush1.bf16.msra.mxu0 0
    %2668 = vmatprep.subr.bf16.mxu0 0
    %2669 = vmatpush1.bf16.msra.mxu0 0
    %2670 = vmatprep.subr.bf16.mxu0 0
    %2671 = vmatpush1.bf16.msra.mxu0 0
    %2672 = vmatprep.mubr.bf16.mxu0 0
    %2673 = vmatmul.mubr.bf16.gmra.mrb[0].mxu0 %v2635
    %v2674 = vpop.f32.mrb[0].mxu0
    %v2675 = vadd.f32 0.0, %v2674
    %v2676 = vpop.f32.mrb[0].mxu0
    %v2677 = vpop.f32.mrb[0].mxu0
    %v2678 = vadd.f32 0.0, %v2677
    %v2679 = vpop.f32.mrb[0].mxu0
    %2680 = vmatprep.mubr.bf16.mxu0 0
    %2681 = vmatmul.mubr.bf16.gmra.mrb[0].mxu0 %v2638
    %v2682 = vpop.f32.mrb[0].mxu0
    %v2683 = vadd.f32 0.0, %v2682
    %v2684 = vpop.f32.mrb[0].mxu0
    %v2685 = vpop.f32.mrb[0].mxu0
    %v2686 = vadd.f32 0.0, %v2685
    %v2687 = vpop.f32.mrb[0].mxu0
    %2688 = vdwg.mxu0
    %v2689 = vmax.f32 %v2270, 0.0
    %v2690 = vmax.f32 %v2274, 0.0
    %v2691 = vmax.f32 %v2280, 0.0
    %v2692 = vmax.f32 %v2284, 0.0
    %v2693 = vstv %s2199
    %v2694 = vmul.f32 %v2507, %v2693
    %v2695 = vmul.f32 %v2510, %v2693
    %v2696 = vmul.f32 %v2515, %v2693
    %v2697 = vmul.f32 %v2518, %v2693
    %v2698 = vstv %s2200
    %v2699 = vmul.f32 %v2675, %v2698
    %v2700 = vmul.f32 %v2678, %v2698
    %v2701 = vmul.f32 %v2683, %v2698
    %v2702 = vmul.f32 %v2686, %v2698
    %v2703 = vstv %s2201
    %v2704 = vmul.f32 %v2689, %v2703
    %v2705 = vmul.f32 %v2690, %v2703
    %v2706 = vmul.f32 %v2691, %v2703
    %v2707 = vmul.f32 %v2692, %v2703
    %2712 = vrot.lane.b32.xlu0 %v2699, 32
    %v2713 = vpop.permute.xlu0 %2712
    %2714 = vrot.lane.b32.xlu0 %v2700, 32
    %v2715 = vpop.permute.xlu0 %2714
    %2716 = vrot.lane.b32.xlu0 %v2701, 32
    %v2717 = vpop.permute.xlu0 %2716
    %2718 = vrot.lane.b32.xlu0 %v2702, 32
    %v2719 = vpop.permute.xlu0 %2718
    %2728 = vrot.lane.b32.xlu0 %v2704, 64
    %v2729 = vpop.permute.xlu0 %2728
    %2730 = vrot.lane.b32.xlu0 %v2705, 64
    %v2731 = vpop.permute.xlu0 %2730
    %2732 = vrot.lane.b32.xlu0 %v2706, 64
    %v2733 = vpop.permute.xlu0 %2732
    %2734 = vrot.lane.b32.xlu0 %v2707, 64
    %v2735 = vpop.permute.xlu0 %2734
    %v2740 = vsel %vm149, %v2694, %v2713
    %v2741 = vsel %vm149, %v2695, %v2715
    %v2742 = vsel %vm149, %v2696, %v2717
    %v2743 = vsel %vm149, %v2697, %v2719
    %v2744 = vsel %vm235, %v2740, %v2729
    %v2745 = vsel %vm235, %v2741, %v2731
    %v2746 = vsel %vm235, %v2742, %v2733
    %v2747 = vsel %vm235, %v2743, %v2735
    %v2748 = vmul.f32 %v2693, %v2198
    %v2749 = vmul.f32 %v2698, %v2198
    %v2751 = vrot.slane %v2749, 1
    %v2753 = vadd.f32 %v2748, %v2751
    %v2754 = vmul.f32 %v2703, %v2198
    %v2756 = vrot.slane %v2754, 2
    %v2758 = vadd.f32 %v2753, %v2756
    %v2759 = vpack.c.bf16 %v2745, %v2744
    %v2760 = vpack.c.bf16 %v2747, %v2746
    %v2761 = vlaneseq
    %v2762 = vshrl.u32 %v2761, 7
    %v2763 = vsub.s32 0, %v2762
    %v2764 = vrot.slane %v2758, %v2763
    %v2781 = vunpack.c.l.b16 %v2181
    %v2782 = vunpack.c.l.b16 %v2182
    %v2783 = vunpack.c.l.b16 %v2183
    %v2784 = vunpack.c.l.b16 %v2184
    %v2785 = vunpack.c.l.b16 %v2185
    %v2786 = vunpack.c.l.b16 %v2186
    %v2787 = vunpack.c.l.b16 %v2187
    %v2788 = vunpack.c.l.b16 %v2188
    %v2789 = vunpack.c.l.b16 %v2189
    %v2790 = vunpack.c.l.b16 %v2190
    %v2791 = vunpack.c.l.b16 %v2191
    %v2792 = vunpack.c.l.b16 %v2192
    %v2793 = vunpack.c.l.b16 %v2193
    %v2794 = vunpack.c.l.b16 %v2194
    %v2795 = vunpack.c.l.b16 %v2195
    %v2796 = vunpack.c.l.b16 %v2196
    %v2797 = vpack.c.b16 %v2782, %v2781
    %v2798 = vpack.c.b16 %v2784, %v2783
    %v2799 = vpack.c.b16 %v2786, %v2785
    %v2800 = vpack.c.b16 %v2788, %v2787
    %v2801 = vpack.c.b16 %v2790, %v2789
    %v2802 = vpack.c.b16 %v2792, %v2791
    %v2803 = vpack.c.b16 %v2794, %v2793
    %v2804 = vpack.c.b16 %v2796, %v2795
    %2813 = vmatprep.subr.bf16.mxu0 0
    %2814 = vmatpush1.bf16.msra.mxu0 %v2797
    %2815 = vmatprep.subr.bf16.mxu0 0
    %2816 = vmatpush1.bf16.msra.mxu0 %v2798
    %2817 = vmatprep.subr.bf16.mxu0 0
    %2818 = vmatpush1.bf16.msra.mxu0 %v2799
    %2819 = vmatprep.subr.bf16.mxu0 0
    %2820 = vmatpush1.bf16.msra.mxu0 %v2800
    %2821 = vmatprep.subr.bf16.mxu0 0
    %2822 = vmatpush1.bf16.msra.mxu0 %v2801
    %2823 = vmatprep.subr.bf16.mxu0 0
    %2824 = vmatpush1.bf16.msra.mxu0 %v2802
    %2825 = vmatprep.subr.bf16.mxu0 0
    %2826 = vmatpush1.bf16.msra.mxu0 %v2803
    %2827 = vmatprep.subr.bf16.mxu0 0
    %2828 = vmatpush1.bf16.msra.mxu0 %v2804
    %2829 = vmatprep.subr.bf16.mxu0 0
    %2830 = vmatpush1.bf16.msra.mxu0 0
    %2831 = vmatprep.subr.bf16.mxu0 0
    %2832 = vmatpush1.bf16.msra.mxu0 0
    %2833 = vmatprep.subr.bf16.mxu0 0
    %2834 = vmatpush1.bf16.msra.mxu0 0
    %2835 = vmatprep.subr.bf16.mxu0 0
    %2836 = vmatpush1.bf16.msra.mxu0 0
    %2837 = vmatprep.subr.bf16.mxu0 0
    %2838 = vmatpush1.bf16.msra.mxu0 0
    %2839 = vmatprep.subr.bf16.mxu0 0
    %2840 = vmatpush1.bf16.msra.mxu0 0
    %2841 = vmatprep.subr.bf16.mxu0 0
    %2842 = vmatpush1.bf16.msra.mxu0 0
    %2843 = vmatprep.subr.bf16.mxu0 0
    %2844 = vmatpush1.bf16.msra.mxu0 0
    %2845 = vmatprep.mubr.bf16.mxu0 0
    %2846 = vmatmul.mubr.bf16.gmra.mrb[0].mxu0 %v2759
    %v2847 = vpop.f32.mrb[0].mxu0
    %v2848 = vadd.f32 %v2764, %v2847
    %v2849 = vpop.f32.mrb[0].mxu0
    %v2850 = vpop.f32.mrb[0].mxu0
    %v2851 = vadd.f32 %v2764, %v2850
    %v2852 = vpop.f32.mrb[0].mxu0
    %2853 = vmatprep.mubr.bf16.mxu0 0
    %2854 = vmatmul.mubr.bf16.gmra.mrb[0].mxu0 %v2760
    %v2855 = vpop.f32.mrb[0].mxu0
    %v2856 = vadd.f32 %v2764, %v2855
    %v2857 = vpop.f32.mrb[0].mxu0
    %v2858 = vpop.f32.mrb[0].mxu0
    %v2859 = vadd.f32 %v2764, %v2858
    %v2860 = vpop.f32.mrb[0].mxu0
    %2861 = vdwg.mxu0
    %s2862 = scalar_lea.vmem %s12, 96
    %v2863 = vld [vmem:[%s2862] sm:$0xff]
    %v2864 = vld [vmem:[%s2862 + $0x8] sm:$0xff]
    %v2865 = vld [vmem:[%s2862 + $0x10] sm:$0xff]
    %v2866 = vld [vmem:[%s2862 + $0x18] sm:$0xff]
    %s2867 = scalar_lea.vmem %s13, 6
    %v2868 = vld [vmem:[%s2867] sm:$0x3]
    %s2869 = scalar_lea.vmem %s14, 48
    %v2870 = vld [vmem:[%s2869] sm:$0xf]
    %v2871 = vld [vmem:[%s2869 + $0x4] sm:$0xf]
    %v2872 = vld [vmem:[%s2869 + $0x8] sm:$0xf]
    %v2873 = vld [vmem:[%s2869 + $0xc] sm:$0xf]
    %s2874 = scalar_lea.vmem %s15, 3
    %v2875 = vld [vmem:[%s2874] sm:$0x1]
    %s2876 = scalar_lea.vmem %s16, 192
    %v2877 = vld [vmem:[%s2876] sm:$0xf]
    %v2878 = vld [vmem:[%s2876 + $0x4] sm:$0xf]
    %v2879 = vld [vmem:[%s2876 + $0x8] sm:$0xf]
    %v2880 = vld [vmem:[%s2876 + $0xc] sm:$0xf]
    %v2881 = vld [vmem:[%s2876 + $0x10] sm:$0xf]
    %v2882 = vld [vmem:[%s2876 + $0x14] sm:$0xf]
    %v2883 = vld [vmem:[%s2876 + $0x18] sm:$0xf]
    %v2884 = vld [vmem:[%s2876 + $0x1c] sm:$0xf]
    %v2885 = vld [vmem:[%s2876 + $0x20] sm:$0xf]
    %v2886 = vld [vmem:[%s2876 + $0x24] sm:$0xf]
    %v2887 = vld [vmem:[%s2876 + $0x28] sm:$0xf]
    %v2888 = vld [vmem:[%s2876 + $0x2c] sm:$0xf]
    %v2889 = vld [vmem:[%s2876 + $0x30] sm:$0xf]
    %v2890 = vld [vmem:[%s2876 + $0x34] sm:$0xf]
    %v2891 = vld [vmem:[%s2876 + $0x38] sm:$0xf]
    %v2892 = vld [vmem:[%s2876 + $0x3c] sm:$0xf]
    %s2893 = scalar_lea.vmem %s17, 12
    %v2894 = vld [vmem:[%s2893] sm:$0x7]
    %s2895 = sld [smem:[#allocation4 + $0x80]]
    %s2896 = sld [smem:[#allocation4 + $0x81]]
    %s2897 = sld [smem:[#allocation4 + $0x82]]
    %v2899 = vlaneseq
    %v2900 = vshrl.u32 %v2899, 7
    %v2901 = vsub.s32 0, %v2900
    %v2902 = vrot.slane %v2868, %v2901
    %v2903 = vlaneseq
    %v2904 = vshrl.u32 %v2903, 7
    %v2905 = vsub.s32 1, %v2904
    %v2906 = vrot.slane %v2868, %v2905
    %v2913 = vunpack.c.l.b16 %v2863
    %v2914 = vunpack.c.h.b16 %v2863
    %v2915 = vunpack.c.l.b16 %v2864
    %v2916 = vunpack.c.h.b16 %v2864
    %v2917 = vunpack.c.l.b16 %v2865
    %v2918 = vunpack.c.h.b16 %v2865
    %v2919 = vunpack.c.l.b16 %v2866
    %v2920 = vunpack.c.h.b16 %v2866
    %v2921 = vpack.c.b16 %v2915, %v2913
    %v2922 = vpack.c.b16 %v2916, %v2914
    %v2923 = vpack.c.b16 %v2919, %v2917
    %v2924 = vpack.c.b16 %v2920, %v2918
    %2929 = vmatprep.subr.bf16.mxu0 %v2922
    %2930 = vmatpush1.bf16.msra.mxu0 %v2921
    %2931 = vmatprep.subr.bf16.mxu0 %v2924
    %2932 = vmatpush1.bf16.msra.mxu0 %v2923
    %2933 = vmatprep.subr.bf16.mxu0 0
    %2934 = vmatpush1.bf16.msra.mxu0 0
    %2935 = vmatprep.subr.bf16.mxu0 0
    %2936 = vmatpush1.bf16.msra.mxu0 0
    %2937 = vmatprep.subr.bf16.mxu0 0
    %2938 = vmatpush1.bf16.msra.mxu0 0
    %2939 = vmatprep.subr.bf16.mxu0 0
    %2940 = vmatpush1.bf16.msra.mxu0 0
    %2941 = vmatprep.subr.bf16.mxu0 0
    %2942 = vmatpush1.bf16.msra.mxu0 0
    %2943 = vmatprep.subr.bf16.mxu0 0
    %2944 = vmatpush1.bf16.msra.mxu0 0
    %2945 = vmatprep.subr.bf16.mxu0 0
    %2946 = vmatpush1.bf16.msra.mxu0 0
    %2947 = vmatprep.subr.bf16.mxu0 0
    %2948 = vmatpush1.bf16.msra.mxu0 0
    %2949 = vmatprep.subr.bf16.mxu0 0
    %2950 = vmatpush1.bf16.msra.mxu0 0
    %2951 = vmatprep.subr.bf16.mxu0 0
    %2952 = vmatpush1.bf16.msra.mxu0 0
    %2953 = vmatprep.subr.bf16.mxu0 0
    %2954 = vmatpush1.bf16.msra.mxu0 0
    %2955 = vmatprep.subr.bf16.mxu0 0
    %2956 = vmatpush1.bf16.msra.mxu0 0
    %2957 = vmatprep.subr.bf16.mxu0 0
    %2958 = vmatpush1.bf16.msra.mxu0 0
    %2959 = vmatprep.subr.bf16.mxu0 0
    %2960 = vmatpush1.bf16.msra.mxu0 0
    %2961 = vmatprep.mubr.bf16.mxu0 0
    %2962 = vmatmul.mubr.bf16.gmra.mrb[0].mxu0 %v963
    %v2963 = vpop.f32.mrb[0].mxu0
    %v2964 = vadd.f32 %v2902, %v2963
    %v2965 = vpop.f32.mrb[0].mxu0
    %v2966 = vadd.f32 %v2906, %v2965
    %v2967 = vpop.f32.mrb[0].mxu0
    %v2968 = vadd.f32 %v2902, %v2967
    %v2969 = vpop.f32.mrb[0].mxu0
    %v2970 = vadd.f32 %v2906, %v2969
    %2971 = vdwg.mxu0
    %v2973 = vlaneseq
    %v2974 = vshrl.u32 %v2973, 7
    %v2975 = vsub.s32 0, %v2974
    %v2976 = vrot.slane %v2875, %v2975
    %v2982 = vunpack.c.l.b16 %v2870
    %v2983 = vunpack.c.l.b16 %v2871
    %v2984 = vunpack.c.l.b16 %v2872
    %v2985 = vunpack.c.l.b16 %v2873
    %v2986 = vpack.c.b16 %v2983, %v2982
    %v2987 = vpack.c.b16 %v2985, %v2984
    %2990 = vmatprep.subr.bf16.mxu0 0
    %2991 = vmatpush1.bf16.msra.mxu0 %v2986
    %2992 = vmatprep.subr.bf16.mxu0 0
    %2993 = vmatpush1.bf16.msra.mxu0 %v2987
    %2994 = vmatprep.subr.bf16.mxu0 0
    %2995 = vmatpush1.bf16.msra.mxu0 0
    %2996 = vmatprep.subr.bf16.mxu0 0
    %2997 = vmatpush1.bf16.msra.mxu0 0
    %2998 = vmatprep.subr.bf16.mxu0 0
    %2999 = vmatpush1.bf16.msra.mxu0 0
    %3000 = vmatprep.subr.bf16.mxu0 0
    %3001 = vmatpush1.bf16.msra.mxu0 0
    %3002 = vmatprep.subr.bf16.mxu0 0
    %3003 = vmatpush1.bf16.msra.mxu0 0
    %3004 = vmatprep.subr.bf16.mxu0 0
    %3005 = vmatpush1.bf16.msra.mxu0 0
    %3006 = vmatprep.subr.bf16.mxu0 0
    %3007 = vmatpush1.bf16.msra.mxu0 0
    %3008 = vmatprep.subr.bf16.mxu0 0
    %3009 = vmatpush1.bf16.msra.mxu0 0
    %3010 = vmatprep.subr.bf16.mxu0 0
    %3011 = vmatpush1.bf16.msra.mxu0 0
    %3012 = vmatprep.subr.bf16.mxu0 0
    %3013 = vmatpush1.bf16.msra.mxu0 0
    %3014 = vmatprep.subr.bf16.mxu0 0
    %3015 = vmatpush1.bf16.msra.mxu0 0
    %3016 = vmatprep.subr.bf16.mxu0 0
    %3017 = vmatpush1.bf16.msra.mxu0 0
    %3018 = vmatprep.subr.bf16.mxu0 0
    %3019 = vmatpush1.bf16.msra.mxu0 0
    %3020 = vmatprep.subr.bf16.mxu0 0
    %3021 = vmatpush1.bf16.msra.mxu0 0
    %3022 = vmatprep.mubr.bf16.mxu0 0
    %3023 = vmatmul.mubr.bf16.gmra.mrb[0].mxu0 %v885
    %v3024 = vpop.f32.mrb[0].mxu0
    %v3025 = vadd.f32 %v2976, %v3024
    %v3026 = vpop.f32.mrb[0].mxu0
    %v3027 = vpop.f32.mrb[0].mxu0
    %v3028 = vadd.f32 %v2976, %v3027
    %v3029 = vpop.f32.mrb[0].mxu0
    %3030 = vmatprep.mubr.bf16.mxu0 0
    %3031 = vmatmul.mubr.bf16.gmra.mrb[0].mxu0 %v888
    %v3032 = vpop.f32.mrb[0].mxu0
    %v3033 = vadd.f32 %v2976, %v3032
    %v3034 = vpop.f32.mrb[0].mxu0
    %v3035 = vpop.f32.mrb[0].mxu0
    %v3036 = vadd.f32 %v2976, %v3035
    %v3037 = vpop.f32.mrb[0].mxu0
    %3038 = vdwg.mxu0
    %v3039 = vpack.c.bf16 %v2968, %v2964
    %3041 = vrot.lane.b32.xlu0 %v3039, 96
    %v3042 = vpop.permute.xlu0 %3041
    %v3044 = vsel %vm149, %v3039, 0
    %v3047 = vsel %vm149, %v3042, 0
    %3049 = vmatprep.subr.bf16.mxu0 0
    %3050 = vmatpush1.bf16.xpose.msra.mxu0 %v3047
    %3051 = vmatprep.subr.bf16.mxu0 0
    %3052 = vmatpush1.bf16.xpose.msra.mxu0 0
    %3053 = vmatprep.subr.bf16.mxu0 0
    %3054 = vmatpush1.bf16.xpose.msra.mxu0 0
    %3055 = vmatprep.subr.bf16.mxu0 0
    %3056 = vmatpush1.bf16.xpose.msra.mxu0 0
    %3057 = vmatprep.subr.bf16.mxu0 0
    %3058 = vmatpush1.bf16.xpose.msra.mxu0 0
    %3059 = vmatprep.subr.bf16.mxu0 0
    %3060 = vmatpush1.bf16.xpose.msra.mxu0 0
    %3061 = vmatprep.subr.bf16.mxu0 0
    %3062 = vmatpush1.bf16.xpose.msra.mxu0 0
    %3063 = vmatprep.subr.bf16.mxu0 0
    %3064 = vmatpush1.bf16.xpose.msra.mxu0 0
    %3065 = vmatprep.subr.bf16.mxu0 0
    %3066 = vmatpush1.bf16.xpose.msra.mxu0 0
    %3067 = vmatprep.subr.bf16.mxu0 0
    %3068 = vmatpush1.bf16.xpose.msra.mxu0 0
    %3069 = vmatprep.subr.bf16.mxu0 0
    %3070 = vmatpush1.bf16.xpose.msra.mxu0 0
    %3071 = vmatprep.subr.bf16.mxu0 0
    %3072 = vmatpush1.bf16.xpose.msra.mxu0 0
    %3073 = vmatprep.subr.bf16.mxu0 0
    %3074 = vmatpush1.bf16.xpose.msra.mxu0 0
    %3075 = vmatprep.subr.bf16.mxu0 0
    %3076 = vmatpush1.bf16.xpose.msra.mxu0 0
    %3077 = vmatprep.subr.bf16.mxu0 0
    %3078 = vmatpush1.bf16.xpose.msra.mxu0 0
    %3079 = vmatprep.subr.bf16.mxu0 0
    %3080 = vmatpush1.bf16.xpose.msra.mxu0 0
    %3081 = vmatprep.mubr.bf16.mxu0 0
    %3082 = vmatmul.mubr.bf16.gmra.mrb[0].mxu0 %v3044
    %v3083 = vpop.f32.mrb[0].mxu0
    %v3084 = vadd.f32 %v113, %v3083
    %v3085 = vpop.f32.mrb[0].mxu0
    %v3086 = vpop.f32.mrb[0].mxu0
    %v3087 = vadd.f32 %v114, %v3086
    %v3088 = vpop.f32.mrb[0].mxu0
    %3089 = vdwg.mxu0
    %v3090 = vsel %vm1245, %v3084, -inf
    %3091 = vmax.xlane.f32.xlu0 %v3090
    %v3092 = vpop.xlane.xlu0 %3091
    %v3093 = vsel %vm1245, %v3087, -inf
    %3094 = vmax.xlane.f32.xlu0 %v3093
    %v3095 = vpop.xlane.xlu0 %3094
    %v3096 = vsub.f32 %v3084, %v3092
    %v3097 = vsub.f32 %v3087, %v3095
    %v3098 = vmul.f32 %v3096, 1.442695
    %v3099 = vpow.pop %v3098
    %v3100 = vmul.f32 %v3097, 1.442695
    %v3101 = vpow.pop %v3100
    %v3102 = vsel %vm1245, %v3099, 0.0
    %3103 = vadd.xlane.f32.xlu0 %v3102
    %v3104 = vpop.xlane.xlu0 %3103
    %v3105 = vsel %vm1245, %v3101, 0.0
    %3106 = vadd.xlane.f32.xlu0 %v3105
    %v3107 = vpop.xlane.xlu0 %3106
    %v3108 = vrcp.pop %v3104
    %v3109 = vrcp.pop %v3107
    %v3110 = vmul.f32 %v3099, %v3108
    %v3111 = vmul.f32 %v3101, %v3109
    %v3112 = vpack.c.bf16 %v3111, %v3110
    %3113 = vrot.lane.b32.xlu0 %v3039, 64
    %v3114 = vpop.permute.xlu0 %3113
    %v3117 = vsel %vm1245, %v3112, 0
    %3119 = vmatprep.subr.bf16.mxu0 0
    %3120 = vmatpush1.bf16.msra.mxu0 %v3114
    %3121 = vmatprep.subr.bf16.mxu0 0
    %3122 = vmatpush1.bf16.msra.mxu0 0
    %3123 = vmatprep.subr.bf16.mxu0 0
    %3124 = vmatpush1.bf16.msra.mxu0 0
    %3125 = vmatprep.subr.bf16.mxu0 0
    %3126 = vmatpush1.bf16.msra.mxu0 0
    %3127 = vmatprep.subr.bf16.mxu0 0
    %3128 = vmatpush1.bf16.msra.mxu0 0
    %3129 = vmatprep.subr.bf16.mxu0 0
    %3130 = vmatpush1.bf16.msra.mxu0 0
    %3131 = vmatprep.subr.bf16.mxu0 0
    %3132 = vmatpush1.bf16.msra.mxu0 0
    %3133 = vmatprep.subr.bf16.mxu0 0
    %3134 = vmatpush1.bf16.msra.mxu0 0
    %3135 = vmatprep.subr.bf16.mxu0 0
    %3136 = vmatpush1.bf16.msra.mxu0 0
    %3137 = vmatprep.subr.bf16.mxu0 0
    %3138 = vmatpush1.bf16.msra.mxu0 0
    %3139 = vmatprep.subr.bf16.mxu0 0
    %3140 = vmatpush1.bf16.msra.mxu0 0
    %3141 = vmatprep.subr.bf16.mxu0 0
    %3142 = vmatpush1.bf16.msra.mxu0 0
    %3143 = vmatprep.subr.bf16.mxu0 0
    %3144 = vmatpush1.bf16.msra.mxu0 0
    %3145 = vmatprep.subr.bf16.mxu0 0
    %3146 = vmatpush1.bf16.msra.mxu0 0
    %3147 = vmatprep.subr.bf16.mxu0 0
    %3148 = vmatpush1.bf16.msra.mxu0 0
    %3149 = vmatprep.subr.bf16.mxu0 0
    %3150 = vmatpush1.bf16.msra.mxu0 0
    %3151 = vmatprep.mubr.bf16.mxu0 0
    %3152 = vmatmul.mubr.bf16.gmra.mrb[0].mxu0 %v3117
    %v3153 = vpop.f32.mrb[0].mxu0
    %v3154 = vadd.f32 0.0, %v3153
    %v3155 = vpop.f32.mrb[0].mxu0
    %v3156 = vpop.f32.mrb[0].mxu0
    %v3157 = vadd.f32 0.0, %v3156
    %v3158 = vpop.f32.mrb[0].mxu0
    %3159 = vdwg.mxu0
    %v3160 = vpack.c.bf16 %v3028, %v3025
    %v3161 = vpack.c.bf16 %v3036, %v3033
    %3162 = vrot.lane.b32.xlu0 %v3039, 32
    %v3163 = vpop.permute.xlu0 %3162
    %v3165 = vsel %vm149, %v3163, 0
    %v3168 = vsel %vm149, %v3160, 0
    %v3171 = vsel %vm149, %v3161, 0
    %3173 = vmatprep.subr.bf16.mxu0 0
    %3174 = vmatpush1.bf16.xpose.msra.mxu0 %v3168
    %3175 = vmatprep.subr.bf16.mxu0 0
    %3176 = vmatpush1.bf16.xpose.msra.mxu0 %v3171
    %3177 = vmatprep.subr.bf16.mxu0 0
    %3178 = vmatpush1.bf16.xpose.msra.mxu0 0
    %3179 = vmatprep.subr.bf16.mxu0 0
    %3180 = vmatpush1.bf16.xpose.msra.mxu0 0
    %3181 = vmatprep.subr.bf16.mxu0 0
    %3182 = vmatpush1.bf16.xpose.msra.mxu0 0
    %3183 = vmatprep.subr.bf16.mxu0 0
    %3184 = vmatpush1.bf16.xpose.msra.mxu0 0
    %3185 = vmatprep.subr.bf16.mxu0 0
    %3186 = vmatpush1.bf16.xpose.msra.mxu0 0
    %3187 = vmatprep.subr.bf16.mxu0 0
    %3188 = vmatpush1.bf16.xpose.msra.mxu0 0
    %3189 = vmatprep.subr.bf16.mxu0 0
    %3190 = vmatpush1.bf16.xpose.msra.mxu0 0
    %3191 = vmatprep.subr.bf16.mxu0 0
    %3192 = vmatpush1.bf16.xpose.msra.mxu0 0
    %3193 = vmatprep.subr.bf16.mxu0 0
    %3194 = vmatpush1.bf16.xpose.msra.mxu0 0
    %3195 = vmatprep.subr.bf16.mxu0 0
    %3196 = vmatpush1.bf16.xpose.msra.mxu0 0
    %3197 = vmatprep.subr.bf16.mxu0 0
    %3198 = vmatpush1.bf16.xpose.msra.mxu0 0
    %3199 = vmatprep.subr.bf16.mxu0 0
    %3200 = vmatpush1.bf16.xpose.msra.mxu0 0
    %3201 = vmatprep.subr.bf16.mxu0 0
    %3202 = vmatpush1.bf16.xpose.msra.mxu0 0
    %3203 = vmatprep.subr.bf16.mxu0 0
    %3204 = vmatpush1.bf16.xpose.msra.mxu0 0
    %3205 = vmatprep.mubr.bf16.mxu0 0
    %3206 = vmatmul.mubr.bf16.gmra.mrb[0].mxu0 %v3165
    %v3207 = vpop.f32.mrb[0].mxu0
    %v3208 = vadd.f32 %v111, %v3207
    %v3209 = vpop.f32.mrb[0].mxu0
    %v3210 = vpop.f32.mrb[0].mxu0
    %v3211 = vadd.f32 %v112, %v3210
    %v3212 = vpop.f32.mrb[0].mxu0
    %3213 = vdwg.mxu0
    %v3214 = vsel %vm149, %v3208, -inf
    %3215 = vmax.xlane.f32.xlu0 %v3214
    %v3216 = vpop.xlane.xlu0 %3215
    %v3217 = vsel %vm149, %v3211, -inf
    %3218 = vmax.xlane.f32.xlu0 %v3217
    %v3219 = vpop.xlane.xlu0 %3218
    %v3220 = vsub.f32 %v3208, %v3216
    %v3221 = vsub.f32 %v3211, %v3219
    %v3222 = vmul.f32 %v3220, 1.442695
    %v3223 = vpow.pop %v3222
    %v3224 = vmul.f32 %v3221, 1.442695
    %v3225 = vpow.pop %v3224
    %v3226 = vsel %vm149, %v3223, 0.0
    %3227 = vadd.xlane.f32.xlu0 %v3226
    %v3228 = vpop.xlane.xlu0 %3227
    %v3229 = vsel %vm149, %v3225, 0.0
    %3230 = vadd.xlane.f32.xlu0 %v3229
    %v3231 = vpop.xlane.xlu0 %3230
    %v3232 = vrcp.pop %v3228
    %v3233 = vrcp.pop %v3231
    %v3234 = vmul.f32 %v3223, %v3232
    %v3235 = vmul.f32 %v3225, %v3233
    %v3236 = vpack.c.bf16 %v3235, %v3234
    %3239 = vrot.lane.b32.xlu0 %v3160, 96
    %v3240 = vpop.permute.xlu0 %3239
    %3241 = vrot.lane.b32.xlu0 %v3161, 96
    %v3242 = vpop.permute.xlu0 %3241
    %v3246 = vsel %vm149, %v3236, 0
    %3248 = vmatprep.subr.bf16.mxu0 0
    %3249 = vmatpush1.bf16.msra.mxu0 %v3240
    %3250 = vmatprep.subr.bf16.mxu0 0
    %3251 = vmatpush1.bf16.msra.mxu0 %v3242
    %3252 = vmatprep.subr.bf16.mxu0 0
    %3253 = vmatpush1.bf16.msra.mxu0 0
    %3254 = vmatprep.subr.bf16.mxu0 0
    %3255 = vmatpush1.bf16.msra.mxu0 0
    %3256 = vmatprep.subr.bf16.mxu0 0
    %3257 = vmatpush1.bf16.msra.mxu0 0
    %3258 = vmatprep.subr.bf16.mxu0 0
    %3259 = vmatpush1.bf16.msra.mxu0 0
    %3260 = vmatprep.subr.bf16.mxu0 0
    %3261 = vmatpush1.bf16.msra.mxu0 0
    %3262 = vmatprep.subr.bf16.mxu0 0
    %3263 = vmatpush1.bf16.msra.mxu0 0
    %3264 = vmatprep.subr.bf16.mxu0 0
    %3265 = vmatpush1.bf16.msra.mxu0 0
    %3266 = vmatprep.subr.bf16.mxu0 0
    %3267 = vmatpush1.bf16.msra.mxu0 0
    %3268 = vmatprep.subr.bf16.mxu0 0
    %3269 = vmatpush1.bf16.msra.mxu0 0
    %3270 = vmatprep.subr.bf16.mxu0 0
    %3271 = vmatpush1.bf16.msra.mxu0 0
    %3272 = vmatprep.subr.bf16.mxu0 0
    %3273 = vmatpush1.bf16.msra.mxu0 0
    %3274 = vmatprep.subr.bf16.mxu0 0
    %3275 = vmatpush1.bf16.msra.mxu0 0
    %3276 = vmatprep.subr.bf16.mxu0 0
    %3277 = vmatpush1.bf16.msra.mxu0 0
    %3278 = vmatprep.subr.bf16.mxu0 0
    %3279 = vmatpush1.bf16.msra.mxu0 0
    %3280 = vmatprep.mubr.bf16.mxu0 0
    %3281 = vmatmul.mubr.bf16.gmra.mrb[0].mxu0 %v3246
    %v3282 = vpop.f32.mrb[0].mxu0
    %v3283 = vadd.f32 0.0, %v3282
    %v3284 = vpop.f32.mrb[0].mxu0
    %v3285 = vpop.f32.mrb[0].mxu0
    %v3286 = vadd.f32 0.0, %v3285
    %v3287 = vpop.f32.mrb[0].mxu0
    %3288 = vdwg.mxu0
    %v3289 = vmax.f32 %v2966, 0.0
    %v3290 = vmax.f32 %v2970, 0.0
    %v3291 = vstv %s2895
    %v3292 = vmul.f32 %v3154, %v3291
    %v3293 = vmul.f32 %v3157, %v3291
    %v3294 = vstv %s2896
    %v3295 = vmul.f32 %v3283, %v3294
    %v3296 = vmul.f32 %v3286, %v3294
    %v3297 = vstv %s2897
    %v3298 = vmul.f32 %v3289, %v3297
    %v3299 = vmul.f32 %v3290, %v3297
    %3302 = vrot.lane.b32.xlu0 %v3295, 32
    %v3303 = vpop.permute.xlu0 %3302
    %3304 = vrot.lane.b32.xlu0 %v3296, 32
    %v3305 = vpop.permute.xlu0 %3304
    %3310 = vrot.lane.b32.xlu0 %v3298, 64
    %v3311 = vpop.permute.xlu0 %3310
    %3312 = vrot.lane.b32.xlu0 %v3299, 64
    %v3313 = vpop.permute.xlu0 %3312
    %v3316 = vsel %vm149, %v3292, %v3303
    %v3317 = vsel %vm149, %v3293, %v3305
    %v3318 = vsel %vm235, %v3316, %v3311
    %v3319 = vsel %vm235, %v3317, %v3313
    %v3320 = vmul.f32 %v3291, %v2894
    %v3321 = vmul.f32 %v3294, %v2894
    %v3323 = vrot.slane %v3321, 1
    %v3325 = vadd.f32 %v3320, %v3323
    %v3326 = vmul.f32 %v3297, %v2894
    %v3328 = vrot.slane %v3326, 2
    %v3330 = vadd.f32 %v3325, %v3328
    %v3331 = vpack.c.bf16 %v3319, %v3318
    %v3332 = vlaneseq
    %v3333 = vshrl.u32 %v3332, 7
    %v3334 = vsub.s32 0, %v3333
    %v3335 = vrot.slane %v3330, %v3334
    %v3352 = vunpack.c.l.b16 %v2877
    %v3353 = vunpack.c.l.b16 %v2878
    %v3354 = vunpack.c.l.b16 %v2879
    %v3355 = vunpack.c.l.b16 %v2880
    %v3356 = vunpack.c.l.b16 %v2881
    %v3357 = vunpack.c.l.b16 %v2882
    %v3358 = vunpack.c.l.b16 %v2883
    %v3359 = vunpack.c.l.b16 %v2884
    %v3360 = vunpack.c.l.b16 %v2885
    %v3361 = vunpack.c.l.b16 %v2886
    %v3362 = vunpack.c.l.b16 %v2887
    %v3363 = vunpack.c.l.b16 %v2888
    %v3364 = vunpack.c.l.b16 %v2889
    %v3365 = vunpack.c.l.b16 %v2890
    %v3366 = vunpack.c.l.b16 %v2891
    %v3367 = vunpack.c.l.b16 %v2892
    %v3368 = vpack.c.b16 %v3353, %v3352
    %v3369 = vpack.c.b16 %v3355, %v3354
    %v3370 = vpack.c.b16 %v3357, %v3356
    %v3371 = vpack.c.b16 %v3359, %v3358
    %v3372 = vpack.c.b16 %v3361, %v3360
    %v3373 = vpack.c.b16 %v3363, %v3362
    %v3374 = vpack.c.b16 %v3365, %v3364
    %v3375 = vpack.c.b16 %v3367, %v3366
    %3384 = vmatprep.subr.bf16.mxu0 0
    %3385 = vmatpush1.bf16.msra.mxu0 %v3368
    %3386 = vmatprep.subr.bf16.mxu0 0
    %3387 = vmatpush1.bf16.msra.mxu0 %v3369
    %3388 = vmatprep.subr.bf16.mxu0 0
    %3389 = vmatpush1.bf16.msra.mxu0 %v3370
    %3390 = vmatprep.subr.bf16.mxu0 0
    %3391 = vmatpush1.bf16.msra.mxu0 %v3371
    %3392 = vmatprep.subr.bf16.mxu0 0
    %3393 = vmatpush1.bf16.msra.mxu0 %v3372
    %3394 = vmatprep.subr.bf16.mxu0 0
    %3395 = vmatpush1.bf16.msra.mxu0 %v3373
    %3396 = vmatprep.subr.bf16.mxu0 0
    %3397 = vmatpush1.bf16.msra.mxu0 %v3374
    %3398 = vmatprep.subr.bf16.mxu0 0
    %3399 = vmatpush1.bf16.msra.mxu0 %v3375
    %3400 = vmatprep.subr.bf16.mxu0 0
    %3401 = vmatpush1.bf16.msra.mxu0 0
    %3402 = vmatprep.subr.bf16.mxu0 0
    %3403 = vmatpush1.bf16.msra.mxu0 0
    %3404 = vmatprep.subr.bf16.mxu0 0
    %3405 = vmatpush1.bf16.msra.mxu0 0
    %3406 = vmatprep.subr.bf16.mxu0 0
    %3407 = vmatpush1.bf16.msra.mxu0 0
    %3408 = vmatprep.subr.bf16.mxu0 0
    %3409 = vmatpush1.bf16.msra.mxu0 0
    %3410 = vmatprep.subr.bf16.mxu0 0
    %3411 = vmatpush1.bf16.msra.mxu0 0
    %3412 = vmatprep.subr.bf16.mxu0 0
    %3413 = vmatpush1.bf16.msra.mxu0 0
    %3414 = vmatprep.subr.bf16.mxu0 0
    %3415 = vmatpush1.bf16.msra.mxu0 0
    %3416 = vmatprep.mubr.bf16.mxu0 0
    %3417 = vmatmul.mubr.bf16.gmra.mrb[0].mxu0 %v3331
    %v3418 = vpop.f32.mrb[0].mxu0
    %v3419 = vadd.f32 %v3335, %v3418
    %v3420 = vpop.f32.mrb[0].mxu0
    %v3421 = vpop.f32.mrb[0].mxu0
    %v3422 = vadd.f32 %v3335, %v3421
    %v3423 = vpop.f32.mrb[0].mxu0
    %3424 = vdwg.mxu0
    %s3425 = scalar_lea.vmem %s12, 128
    %v3426 = vld [vmem:[%s3425] sm:$0xff]
    %v3427 = vld [vmem:[%s3425 + $0x8] sm:$0xff]
    %v3428 = vld [vmem:[%s3425 + $0x10] sm:$0xff]
    %v3429 = vld [vmem:[%s3425 + $0x18] sm:$0xff]
    %s3430 = scalar_lea.vmem %s13, 8
    %v3431 = vld [vmem:[%s3430] sm:$0x3]
    %s3432 = scalar_lea.vmem %s14, 64
    %v3433 = vld [vmem:[%s3432] sm:$0xf]
    %v3434 = vld [vmem:[%s3432 + $0x4] sm:$0xf]
    %v3435 = vld [vmem:[%s3432 + $0x8] sm:$0xf]
    %v3436 = vld [vmem:[%s3432 + $0xc] sm:$0xf]
    %s3437 = scalar_lea.vmem %s15, 4
    %v3438 = vld [vmem:[%s3437] sm:$0x1]
    %s3439 = scalar_lea.vmem %s16, 256
    %v3440 = vld [vmem:[%s3439] sm:$0xf]
    %v3441 = vld [vmem:[%s3439 + $0x4] sm:$0xf]
    %v3442 = vld [vmem:[%s3439 + $0x8] sm:$0xf]
    %v3443 = vld [vmem:[%s3439 + $0xc] sm:$0xf]
    %v3444 = vld [vmem:[%s3439 + $0x10] sm:$0xf]
    %v3445 = vld [vmem:[%s3439 + $0x14] sm:$0xf]
    %v3446 = vld [vmem:[%s3439 + $0x18] sm:$0xf]
    %v3447 = vld [vmem:[%s3439 + $0x1c] sm:$0xf]
    %v3448 = vld [vmem:[%s3439 + $0x20] sm:$0xf]
    %v3449 = vld [vmem:[%s3439 + $0x24] sm:$0xf]
    %v3450 = vld [vmem:[%s3439 + $0x28] sm:$0xf]
    %v3451 = vld [vmem:[%s3439 + $0x2c] sm:$0xf]
    %v3452 = vld [vmem:[%s3439 + $0x30] sm:$0xf]
    %v3453 = vld [vmem:[%s3439 + $0x34] sm:$0xf]
    %v3454 = vld [vmem:[%s3439 + $0x38] sm:$0xf]
    %v3455 = vld [vmem:[%s3439 + $0x3c] sm:$0xf]
    %s3456 = scalar_lea.vmem %s17, 16
    %v3457 = vld [vmem:[%s3456] sm:$0x7]
    %s3458 = sld [smem:[#allocation2 + $0x100]]
    %s3459 = sld [smem:[#allocation2 + $0x101]]
    %s3460 = sld [smem:[#allocation2 + $0x102]]
    %v3461 = vpack.c.bf16 %v2137, %v2136
    %v3462 = vpack.c.bf16 %v2139, %v2138
    %v3464 = vlaneseq
    %v3465 = vshrl.u32 %v3464, 7
    %v3466 = vsub.s32 0, %v3465
    %v3467 = vrot.slane %v3431, %v3466
    %v3468 = vlaneseq
    %v3469 = vshrl.u32 %v3468, 7
    %v3470 = vsub.s32 1, %v3469
    %v3471 = vrot.slane %v3431, %v3470
    %v3478 = vunpack.c.l.b16 %v3426
    %v3479 = vunpack.c.h.b16 %v3426
    %v3480 = vunpack.c.l.b16 %v3427
    %v3481 = vunpack.c.h.b16 %v3427
    %v3482 = vunpack.c.l.b16 %v3428
    %v3483 = vunpack.c.h.b16 %v3428
    %v3484 = vunpack.c.l.b16 %v3429
    %v3485 = vunpack.c.h.b16 %v3429
    %v3486 = vpack.c.b16 %v3480, %v3478
    %v3487 = vpack.c.b16 %v3481, %v3479
    %v3488 = vpack.c.b16 %v3484, %v3482
    %v3489 = vpack.c.b16 %v3485, %v3483
    %v3495 = vsel %vm149, %v3461, 0
    %v3498 = vsel %vm149, %v3462, 0
    %3500 = vmatprep.subr.bf16.mxu0 %v3487
    %3501 = vmatpush1.bf16.msra.mxu0 %v3486
    %3502 = vmatprep.subr.bf16.mxu0 %v3489
    %3503 = vmatpush1.bf16.msra.mxu0 %v3488
    %3504 = vmatprep.subr.bf16.mxu0 0
    %3505 = vmatpush1.bf16.msra.mxu0 0
    %3506 = vmatprep.subr.bf16.mxu0 0
    %3507 = vmatpush1.bf16.msra.mxu0 0
    %3508 = vmatprep.subr.bf16.mxu0 0
    %3509 = vmatpush1.bf16.msra.mxu0 0
    %3510 = vmatprep.subr.bf16.mxu0 0
    %3511 = vmatpush1.bf16.msra.mxu0 0
    %3512 = vmatprep.subr.bf16.mxu0 0
    %3513 = vmatpush1.bf16.msra.mxu0 0
    %3514 = vmatprep.subr.bf16.mxu0 0
    %3515 = vmatpush1.bf16.msra.mxu0 0
    %3516 = vmatprep.subr.bf16.mxu0 0
    %3517 = vmatpush1.bf16.msra.mxu0 0
    %3518 = vmatprep.subr.bf16.mxu0 0
    %3519 = vmatpush1.bf16.msra.mxu0 0
    %3520 = vmatprep.subr.bf16.mxu0 0
    %3521 = vmatpush1.bf16.msra.mxu0 0
    %3522 = vmatprep.subr.bf16.mxu0 0
    %3523 = vmatpush1.bf16.msra.mxu0 0
    %3524 = vmatprep.subr.bf16.mxu0 0
    %3525 = vmatpush1.bf16.msra.mxu0 0
    %3526 = vmatprep.subr.bf16.mxu0 0
    %3527 = vmatpush1.bf16.msra.mxu0 0
    %3528 = vmatprep.subr.bf16.mxu0 0
    %3529 = vmatpush1.bf16.msra.mxu0 0
    %3530 = vmatprep.subr.bf16.mxu0 0
    %3531 = vmatpush1.bf16.msra.mxu0 0
    %3532 = vmatprep.mubr.bf16.mxu0 0
    %3533 = vmatmul.mubr.bf16.gmra.mrb[0].mxu0 %v3495
    %v3534 = vpop.f32.mrb[0].mxu0
    %v3535 = vadd.f32 %v3467, %v3534
    %v3536 = vpop.f32.mrb[0].mxu0
    %v3537 = vadd.f32 %v3471, %v3536
    %v3538 = vpop.f32.mrb[0].mxu0
    %v3539 = vadd.f32 %v3467, %v3538
    %v3540 = vpop.f32.mrb[0].mxu0
    %v3541 = vadd.f32 %v3471, %v3540
    %3542 = vmatprep.mubr.bf16.mxu0 0
    %3543 = vmatmul.mubr.bf16.gmra.mrb[0].mxu0 %v3498
    %v3544 = vpop.f32.mrb[0].mxu0
    %v3545 = vadd.f32 %v3467, %v3544
    %v3546 = vpop.f32.mrb[0].mxu0
    %v3547 = vadd.f32 %v3471, %v3546
    %v3548 = vpop.f32.mrb[0].mxu0
    %v3549 = vadd.f32 %v3467, %v3548
    %v3550 = vpop.f32.mrb[0].mxu0
    %v3551 = vadd.f32 %v3471, %v3550
    %3552 = vdwg.mxu0
    %v3553 = vpack.c.bf16 %v2165, %v2164
    %v3555 = vlaneseq
    %v3556 = vshrl.u32 %v3555, 7
    %v3557 = vsub.s32 0, %v3556
    %v3558 = vrot.slane %v3438, %v3557
    %v3564 = vunpack.c.l.b16 %v3433
    %v3565 = vunpack.c.l.b16 %v3434
    %v3566 = vunpack.c.l.b16 %v3435
    %v3567 = vunpack.c.l.b16 %v3436
    %v3568 = vpack.c.b16 %v3565, %v3564
    %v3569 = vpack.c.b16 %v3567, %v3566
    %v3573 = vsel %vm149, %v3553, 0
    %3575 = vmatprep.subr.bf16.mxu0 0
    %3576 = vmatpush1.bf16.msra.mxu0 %v3568
    %3577 = vmatprep.subr.bf16.mxu0 0
    %3578 = vmatpush1.bf16.msra.mxu0 %v3569
    %3579 = vmatprep.subr.bf16.mxu0 0
    %3580 = vmatpush1.bf16.msra.mxu0 0
    %3581 = vmatprep.subr.bf16.mxu0 0
    %3582 = vmatpush1.bf16.msra.mxu0 0
    %3583 = vmatprep.subr.bf16.mxu0 0
    %3584 = vmatpush1.bf16.msra.mxu0 0
    %3585 = vmatprep.subr.bf16.mxu0 0
    %3586 = vmatpush1.bf16.msra.mxu0 0
    %3587 = vmatprep.subr.bf16.mxu0 0
    %3588 = vmatpush1.bf16.msra.mxu0 0
    %3589 = vmatprep.subr.bf16.mxu0 0
    %3590 = vmatpush1.bf16.msra.mxu0 0
    %3591 = vmatprep.subr.bf16.mxu0 0
    %3592 = vmatpush1.bf16.msra.mxu0 0
    %3593 = vmatprep.subr.bf16.mxu0 0
    %3594 = vmatpush1.bf16.msra.mxu0 0
    %3595 = vmatprep.subr.bf16.mxu0 0
    %3596 = vmatpush1.bf16.msra.mxu0 0
    %3597 = vmatprep.subr.bf16.mxu0 0
    %3598 = vmatpush1.bf16.msra.mxu0 0
    %3599 = vmatprep.subr.bf16.mxu0 0
    %3600 = vmatpush1.bf16.msra.mxu0 0
    %3601 = vmatprep.subr.bf16.mxu0 0
    %3602 = vmatpush1.bf16.msra.mxu0 0
    %3603 = vmatprep.subr.bf16.mxu0 0
    %3604 = vmatpush1.bf16.msra.mxu0 0
    %3605 = vmatprep.subr.bf16.mxu0 0
    %3606 = vmatpush1.bf16.msra.mxu0 0
    %3607 = vmatprep.mubr.bf16.mxu0 0
    %3608 = vmatmul.mubr.bf16.gmra.mrb[0].mxu0 %v3573
    %v3609 = vpop.f32.mrb[0].mxu0
    %v3610 = vadd.f32 %v3558, %v3609
    %v3611 = vpop.f32.mrb[0].mxu0
    %v3612 = vpop.f32.mrb[0].mxu0
    %v3613 = vadd.f32 %v3558, %v3612
    %v3614 = vpop.f32.mrb[0].mxu0
    %3615 = vdwg.mxu0
    %v3616 = vpack.c.bf16 %v3539, %v3535
    %v3617 = vpack.c.bf16 %v3549, %v3545
    %3620 = vrot.lane.b32.xlu0 %v3616, 96
    %v3621 = vpop.permute.xlu0 %3620
    %3622 = vrot.lane.b32.xlu0 %v3617, 96
    %v3623 = vpop.permute.xlu0 %3622
    %v3625 = vsel %vm149, %v3616, 0
    %v3628 = vsel %vm149, %v3617, 0
    %v3631 = vsel %vm149, %v3621, 0
    %v3634 = vsel %vm149, %v3623, 0
    %3636 = vmatprep.subr.bf16.mxu0 0
    %3637 = vmatpush1.bf16.xpose.msra.mxu0 %v3631
    %3638 = vmatprep.subr.bf16.mxu0 0
    %3639 = vmatpush1.bf16.xpose.msra.mxu0 %v3634
    %3640 = vmatprep.subr.bf16.mxu0 0
    %3641 = vmatpush1.bf16.xpose.msra.mxu0 0
    %3642 = vmatprep.subr.bf16.mxu0 0
    %3643 = vmatpush1.bf16.xpose.msra.mxu0 0
    %3644 = vmatprep.subr.bf16.mxu0 0
    %3645 = vmatpush1.bf16.xpose.msra.mxu0 0
    %3646 = vmatprep.subr.bf16.mxu0 0
    %3647 = vmatpush1.bf16.xpose.msra.mxu0 0
    %3648 = vmatprep.subr.bf16.mxu0 0
    %3649 = vmatpush1.bf16.xpose.msra.mxu0 0
    %3650 = vmatprep.subr.bf16.mxu0 0
    %3651 = vmatpush1.bf16.xpose.msra.mxu0 0
    %3652 = vmatprep.subr.bf16.mxu0 0
    %3653 = vmatpush1.bf16.xpose.msra.mxu0 0
    %3654 = vmatprep.subr.bf16.mxu0 0
    %3655 = vmatpush1.bf16.xpose.msra.mxu0 0
    %3656 = vmatprep.subr.bf16.mxu0 0
    %3657 = vmatpush1.bf16.xpose.msra.mxu0 0
    %3658 = vmatprep.subr.bf16.mxu0 0
    %3659 = vmatpush1.bf16.xpose.msra.mxu0 0
    %3660 = vmatprep.subr.bf16.mxu0 0
    %3661 = vmatpush1.bf16.xpose.msra.mxu0 0
    %3662 = vmatprep.subr.bf16.mxu0 0
    %3663 = vmatpush1.bf16.xpose.msra.mxu0 0
    %3664 = vmatprep.subr.bf16.mxu0 0
    %3665 = vmatpush1.bf16.xpose.msra.mxu0 0
    %3666 = vmatprep.subr.bf16.mxu0 0
    %3667 = vmatpush1.bf16.xpose.msra.mxu0 0
    %3668 = vmatprep.mubr.bf16.mxu0 0
    %3669 = vmatmul.mubr.bf16.gmra.mrb[0].mxu0 %v3625
    %v3670 = vpop.f32.mrb[0].mxu0
    %v3671 = vadd.f32 %v103, %v3670
    %v3672 = vpop.f32.mrb[0].mxu0
    %v3673 = vpop.f32.mrb[0].mxu0
    %v3674 = vadd.f32 %v104, %v3673
    %v3675 = vpop.f32.mrb[0].mxu0
    %3676 = vmatprep.mubr.bf16.mxu0 0
    %3677 = vmatmul.mubr.bf16.gmra.mrb[0].mxu0 %v3628
    %v3678 = vpop.f32.mrb[0].mxu0
    %v3679 = vadd.f32 %v105, %v3678
    %v3680 = vpop.f32.mrb[0].mxu0
    %v3681 = vpop.f32.mrb[0].mxu0
    %v3682 = vadd.f32 %v106, %v3681
    %v3683 = vpop.f32.mrb[0].mxu0
    %3684 = vdwg.mxu0
    %v3685 = vsel %vm149, %v3671, -inf
    %3686 = vmax.xlane.f32.xlu0 %v3685
    %v3687 = vpop.xlane.xlu0 %3686
    %v3688 = vsel %vm149, %v3674, -inf
    %3689 = vmax.xlane.f32.xlu0 %v3688
    %v3690 = vpop.xlane.xlu0 %3689
    %v3691 = vsel %vm149, %v3679, -inf
    %3692 = vmax.xlane.f32.xlu0 %v3691
    %v3693 = vpop.xlane.xlu0 %3692
    %v3694 = vsel %vm149, %v3682, -inf
    %3695 = vmax.xlane.f32.xlu0 %v3694
    %v3696 = vpop.xlane.xlu0 %3695
    %v3697 = vsub.f32 %v3671, %v3687
    %v3698 = vsub.f32 %v3674, %v3690
    %v3699 = vsub.f32 %v3679, %v3693
    %v3700 = vsub.f32 %v3682, %v3696
    %v3701 = vmul.f32 %v3697, 1.442695
    %v3702 = vpow.pop %v3701
    %v3703 = vmul.f32 %v3698, 1.442695
    %v3704 = vpow.pop %v3703
    %v3705 = vmul.f32 %v3699, 1.442695
    %v3706 = vpow.pop %v3705
    %v3707 = vmul.f32 %v3700, 1.442695
    %v3708 = vpow.pop %v3707
    %v3709 = vsel %vm149, %v3702, 0.0
    %3710 = vadd.xlane.f32.xlu0 %v3709
    %v3711 = vpop.xlane.xlu0 %3710
    %v3712 = vsel %vm149, %v3704, 0.0
    %3713 = vadd.xlane.f32.xlu0 %v3712
    %v3714 = vpop.xlane.xlu0 %3713
    %v3715 = vsel %vm149, %v3706, 0.0
    %3716 = vadd.xlane.f32.xlu0 %v3715
    %v3717 = vpop.xlane.xlu0 %3716
    %v3718 = vsel %vm149, %v3708, 0.0
    %3719 = vadd.xlane.f32.xlu0 %v3718
    %v3720 = vpop.xlane.xlu0 %3719
    %v3721 = vrcp.pop %v3711
    %v3722 = vrcp.pop %v3714
    %v3723 = vrcp.pop %v3717
    %v3724 = vrcp.pop %v3720
    %v3725 = vmul.f32 %v3702, %v3721
    %v3726 = vmul.f32 %v3704, %v3722
    %v3727 = vmul.f32 %v3706, %v3723
    %v3728 = vmul.f32 %v3708, %v3724
    %v3729 = vpack.c.bf16 %v3726, %v3725
    %v3730 = vpack.c.bf16 %v3728, %v3727
    %3731 = vrot.lane.b32.xlu0 %v3616, 64
    %v3732 = vpop.permute.xlu0 %3731
    %3733 = vrot.lane.b32.xlu0 %v3617, 64
    %v3734 = vpop.permute.xlu0 %3733
    %v3738 = vsel %vm149, %v3729, 0
    %v3741 = vsel %vm149, %v3730, 0
    %3743 = vmatprep.subr.bf16.mxu0 0
    %3744 = vmatpush1.bf16.msra.mxu0 %v3732
    %3745 = vmatprep.subr.bf16.mxu0 0
    %3746 = vmatpush1.bf16.msra.mxu0 %v3734
    %3747 = vmatprep.subr.bf16.mxu0 0
    %3748 = vmatpush1.bf16.msra.mxu0 0
    %3749 = vmatprep.subr.bf16.mxu0 0
    %3750 = vmatpush1.bf16.msra.mxu0 0
    %3751 = vmatprep.subr.bf16.mxu0 0
    %3752 = vmatpush1.bf16.msra.mxu0 0
    %3753 = vmatprep.subr.bf16.mxu0 0
    %3754 = vmatpush1.bf16.msra.mxu0 0
    %3755 = vmatprep.subr.bf16.mxu0 0
    %3756 = vmatpush1.bf16.msra.mxu0 0
    %3757 = vmatprep.subr.bf16.mxu0 0
    %3758 = vmatpush1.bf16.msra.mxu0 0
    %3759 = vmatprep.subr.bf16.mxu0 0
    %3760 = vmatpush1.bf16.msra.mxu0 0
    %3761 = vmatprep.subr.bf16.mxu0 0
    %3762 = vmatpush1.bf16.msra.mxu0 0
    %3763 = vmatprep.subr.bf16.mxu0 0
    %3764 = vmatpush1.bf16.msra.mxu0 0
    %3765 = vmatprep.subr.bf16.mxu0 0
    %3766 = vmatpush1.bf16.msra.mxu0 0
    %3767 = vmatprep.subr.bf16.mxu0 0
    %3768 = vmatpush1.bf16.msra.mxu0 0
    %3769 = vmatprep.subr.bf16.mxu0 0
    %3770 = vmatpush1.bf16.msra.mxu0 0
    %3771 = vmatprep.subr.bf16.mxu0 0
    %3772 = vmatpush1.bf16.msra.mxu0 0
    %3773 = vmatprep.subr.bf16.mxu0 0
    %3774 = vmatpush1.bf16.msra.mxu0 0
    %3775 = vmatprep.mubr.bf16.mxu0 0
    %3776 = vmatmul.mubr.bf16.gmra.mrb[0].mxu0 %v3738
    %v3777 = vpop.f32.mrb[0].mxu0
    %v3778 = vadd.f32 0.0, %v3777
    %v3779 = vpop.f32.mrb[0].mxu0
    %v3780 = vpop.f32.mrb[0].mxu0
    %v3781 = vadd.f32 0.0, %v3780
    %v3782 = vpop.f32.mrb[0].mxu0
    %3783 = vmatprep.mubr.bf16.mxu0 0
    %3784 = vmatmul.mubr.bf16.gmra.mrb[0].mxu0 %v3741
    %v3785 = vpop.f32.mrb[0].mxu0
    %v3786 = vadd.f32 0.0, %v3785
    %v3787 = vpop.f32.mrb[0].mxu0
    %v3788 = vpop.f32.mrb[0].mxu0
    %v3789 = vadd.f32 0.0, %v3788
    %v3790 = vpop.f32.mrb[0].mxu0
    %3791 = vdwg.mxu0
    %v3792 = vpack.c.bf16 %v3613, %v3610
    %3793 = vrot.lane.b32.xlu0 %v3616, 32
    %v3794 = vpop.permute.xlu0 %3793
    %3795 = vrot.lane.b32.xlu0 %v3617, 32
    %v3796 = vpop.permute.xlu0 %3795
    %v3798 = vsel %vm149, %v3794, 0
    %v3801 = vsel %vm149, %v3796, 0
    %v3804 = vsel %vm149, %v3792, 0
    %3806 = vmatprep.subr.bf16.mxu0 0
    %3807 = vmatpush1.bf16.xpose.msra.mxu0 %v3804
    %3808 = vmatprep.subr.bf16.mxu0 0
    %3809 = vmatpush1.bf16.xpose.msra.mxu0 0
    %3810 = vmatprep.subr.bf16.mxu0 0
    %3811 = vmatpush1.bf16.xpose.msra.mxu0 0
    %3812 = vmatprep.subr.bf16.mxu0 0
    %3813 = vmatpush1.bf16.xpose.msra.mxu0 0
    %3814 = vmatprep.subr.bf16.mxu0 0
    %3815 = vmatpush1.bf16.xpose.msra.mxu0 0
    %3816 = vmatprep.subr.bf16.mxu0 0
    %3817 = vmatpush1.bf16.xpose.msra.mxu0 0
    %3818 = vmatprep.subr.bf16.mxu0 0
    %3819 = vmatpush1.bf16.xpose.msra.mxu0 0
    %3820 = vmatprep.subr.bf16.mxu0 0
    %3821 = vmatpush1.bf16.xpose.msra.mxu0 0
    %3822 = vmatprep.subr.bf16.mxu0 0
    %3823 = vmatpush1.bf16.xpose.msra.mxu0 0
    %3824 = vmatprep.subr.bf16.mxu0 0
    %3825 = vmatpush1.bf16.xpose.msra.mxu0 0
    %3826 = vmatprep.subr.bf16.mxu0 0
    %3827 = vmatpush1.bf16.xpose.msra.mxu0 0
    %3828 = vmatprep.subr.bf16.mxu0 0
    %3829 = vmatpush1.bf16.xpose.msra.mxu0 0
    %3830 = vmatprep.subr.bf16.mxu0 0
    %3831 = vmatpush1.bf16.xpose.msra.mxu0 0
    %3832 = vmatprep.subr.bf16.mxu0 0
    %3833 = vmatpush1.bf16.xpose.msra.mxu0 0
    %3834 = vmatprep.subr.bf16.mxu0 0
    %3835 = vmatpush1.bf16.xpose.msra.mxu0 0
    %3836 = vmatprep.subr.bf16.mxu0 0
    %3837 = vmatpush1.bf16.xpose.msra.mxu0 0
    %3838 = vmatprep.mubr.bf16.mxu0 0
    %3839 = vmatmul.mubr.bf16.gmra.mrb[0].mxu0 %v3798
    %v3840 = vpop.f32.mrb[0].mxu0
    %v3841 = vadd.f32 %v107, %v3840
    %v3842 = vpop.f32.mrb[0].mxu0
    %v3843 = vpop.f32.mrb[0].mxu0
    %v3844 = vadd.f32 %v108, %v3843
    %v3845 = vpop.f32.mrb[0].mxu0
    %3846 = vmatprep.mubr.bf16.mxu0 0
    %3847 = vmatmul.mubr.bf16.gmra.mrb[0].mxu0 %v3801
    %v3848 = vpop.f32.mrb[0].mxu0
    %v3849 = vadd.f32 %v109, %v3848
    %v3850 = vpop.f32.mrb[0].mxu0
    %v3851 = vpop.f32.mrb[0].mxu0
    %v3852 = vadd.f32 %v110, %v3851
    %v3853 = vpop.f32.mrb[0].mxu0
    %3854 = vdwg.mxu0
    %v3855 = vsel %vm1245, %v3841, -inf
    %3856 = vmax.xlane.f32.xlu0 %v3855
    %v3857 = vpop.xlane.xlu0 %3856
    %v3858 = vsel %vm1245, %v3844, -inf
    %3859 = vmax.xlane.f32.xlu0 %v3858
    %v3860 = vpop.xlane.xlu0 %3859
    %v3861 = vsel %vm1245, %v3849, -inf
    %3862 = vmax.xlane.f32.xlu0 %v3861
    %v3863 = vpop.xlane.xlu0 %3862
    %v3864 = vsel %vm1245, %v3852, -inf
    %3865 = vmax.xlane.f32.xlu0 %v3864
    %v3866 = vpop.xlane.xlu0 %3865
    %v3867 = vsub.f32 %v3841, %v3857
    %v3868 = vsub.f32 %v3844, %v3860
    %v3869 = vsub.f32 %v3849, %v3863
    %v3870 = vsub.f32 %v3852, %v3866
    %v3871 = vmul.f32 %v3867, 1.442695
    %v3872 = vpow.pop %v3871
    %v3873 = vmul.f32 %v3868, 1.442695
    %v3874 = vpow.pop %v3873
    %v3875 = vmul.f32 %v3869, 1.442695
    %v3876 = vpow.pop %v3875
    %v3877 = vmul.f32 %v3870, 1.442695
    %v3878 = vpow.pop %v3877
    %v3879 = vsel %vm1245, %v3872, 0.0
    %3880 = vadd.xlane.f32.xlu0 %v3879
    %v3881 = vpop.xlane.xlu0 %3880
    %v3882 = vsel %vm1245, %v3874, 0.0
    %3883 = vadd.xlane.f32.xlu0 %v3882
    %v3884 = vpop.xlane.xlu0 %3883
    %v3885 = vsel %vm1245, %v3876, 0.0
    %3886 = vadd.xlane.f32.xlu0 %v3885
    %v3887 = vpop.xlane.xlu0 %3886
    %v3888 = vsel %vm1245, %v3878, 0.0
    %3889 = vadd.xlane.f32.xlu0 %v3888
    %v3890 = vpop.xlane.xlu0 %3889
    %v3891 = vrcp.pop %v3881
    %v3892 = vrcp.pop %v3884
    %v3893 = vrcp.pop %v3887
    %v3894 = vrcp.pop %v3890
    %v3895 = vmul.f32 %v3872, %v3891
    %v3896 = vmul.f32 %v3874, %v3892
    %v3897 = vmul.f32 %v3876, %v3893
    %v3898 = vmul.f32 %v3878, %v3894
    %v3899 = vpack.c.bf16 %v3896, %v3895
    %v3900 = vpack.c.bf16 %v3898, %v3897
    %3902 = vrot.lane.b32.xlu0 %v3792, 96
    %v3903 = vpop.permute.xlu0 %3902
    %v3906 = vsel %vm1245, %v3899, 0
    %v3909 = vsel %vm1245, %v3900, 0
    %3911 = vmatprep.subr.bf16.mxu0 0
    %3912 = vmatpush1.bf16.msra.mxu0 %v3903
    %3913 = vmatprep.subr.bf16.mxu0 0
    %3914 = vmatpush1.bf16.msra.mxu0 0
    %3915 = vmatprep.subr.bf16.mxu0 0
    %3916 = vmatpush1.bf16.msra.mxu0 0
    %3917 = vmatprep.subr.bf16.mxu0 0
    %3918 = vmatpush1.bf16.msra.mxu0 0
    %3919 = vmatprep.subr.bf16.mxu0 0
    %3920 = vmatpush1.bf16.msra.mxu0 0
    %3921 = vmatprep.subr.bf16.mxu0 0
    %3922 = vmatpush1.bf16.msra.mxu0 0
    %3923 = vmatprep.subr.bf16.mxu0 0
    %3924 = vmatpush1.bf16.msra.mxu0 0
    %3925 = vmatprep.subr.bf16.mxu0 0
    %3926 = vmatpush1.bf16.msra.mxu0 0
    %3927 = vmatprep.subr.bf16.mxu0 0
    %3928 = vmatpush1.bf16.msra.mxu0 0
    %3929 = vmatprep.subr.bf16.mxu0 0
    %3930 = vmatpush1.bf16.msra.mxu0 0
    %3931 = vmatprep.subr.bf16.mxu0 0
    %3932 = vmatpush1.bf16.msra.mxu0 0
    %3933 = vmatprep.subr.bf16.mxu0 0
    %3934 = vmatpush1.bf16.msra.mxu0 0
    %3935 = vmatprep.subr.bf16.mxu0 0
    %3936 = vmatpush1.bf16.msra.mxu0 0
    %3937 = vmatprep.subr.bf16.mxu0 0
    %3938 = vmatpush1.bf16.msra.mxu0 0
    %3939 = vmatprep.subr.bf16.mxu0 0
    %3940 = vmatpush1.bf16.msra.mxu0 0
    %3941 = vmatprep.subr.bf16.mxu0 0
    %3942 = vmatpush1.bf16.msra.mxu0 0
    %3943 = vmatprep.mubr.bf16.mxu0 0
    %3944 = vmatmul.mubr.bf16.gmra.mrb[0].mxu0 %v3906
    %v3945 = vpop.f32.mrb[0].mxu0
    %v3946 = vadd.f32 0.0, %v3945
    %v3947 = vpop.f32.mrb[0].mxu0
    %v3948 = vpop.f32.mrb[0].mxu0
    %v3949 = vadd.f32 0.0, %v3948
    %v3950 = vpop.f32.mrb[0].mxu0
    %3951 = vmatprep.mubr.bf16.mxu0 0
    %3952 = vmatmul.mubr.bf16.gmra.mrb[0].mxu0 %v3909
    %v3953 = vpop.f32.mrb[0].mxu0
    %v3954 = vadd.f32 0.0, %v3953
    %v3955 = vpop.f32.mrb[0].mxu0
    %v3956 = vpop.f32.mrb[0].mxu0
    %v3957 = vadd.f32 0.0, %v3956
    %v3958 = vpop.f32.mrb[0].mxu0
    %3959 = vdwg.mxu0
    %v3960 = vmax.f32 %v3537, 0.0
    %v3961 = vmax.f32 %v3541, 0.0
    %v3962 = vmax.f32 %v3547, 0.0
    %v3963 = vmax.f32 %v3551, 0.0
    %v3964 = vstv %s3458
    %v3965 = vmul.f32 %v3778, %v3964
    %v3966 = vmul.f32 %v3781, %v3964
    %v3967 = vmul.f32 %v3786, %v3964
    %v3968 = vmul.f32 %v3789, %v3964
    %v3969 = vstv %s3459
    %v3970 = vmul.f32 %v3946, %v3969
    %v3971 = vmul.f32 %v3949, %v3969
    %v3972 = vmul.f32 %v3954, %v3969
    %v3973 = vmul.f32 %v3957, %v3969
    %v3974 = vstv %s3460
    %v3975 = vmul.f32 %v3960, %v3974
    %v3976 = vmul.f32 %v3961, %v3974
    %v3977 = vmul.f32 %v3962, %v3974
    %v3978 = vmul.f32 %v3963, %v3974
    %3983 = vrot.lane.b32.xlu0 %v3970, 32
    %v3984 = vpop.permute.xlu0 %3983
    %3985 = vrot.lane.b32.xlu0 %v3971, 32
    %v3986 = vpop.permute.xlu0 %3985
    %3987 = vrot.lane.b32.xlu0 %v3972, 32
    %v3988 = vpop.permute.xlu0 %3987
    %3989 = vrot.lane.b32.xlu0 %v3973, 32
    %v3990 = vpop.permute.xlu0 %3989
    %3999 = vrot.lane.b32.xlu0 %v3975, 64
    %v4000 = vpop.permute.xlu0 %3999
    %4001 = vrot.lane.b32.xlu0 %v3976, 64
    %v4002 = vpop.permute.xlu0 %4001
    %4003 = vrot.lane.b32.xlu0 %v3977, 64
    %v4004 = vpop.permute.xlu0 %4003
    %4005 = vrot.lane.b32.xlu0 %v3978, 64
    %v4006 = vpop.permute.xlu0 %4005
    %v4011 = vsel %vm149, %v3965, %v3984
    %v4012 = vsel %vm149, %v3966, %v3986
    %v4013 = vsel %vm149, %v3967, %v3988
    %v4014 = vsel %vm149, %v3968, %v3990
    %v4015 = vsel %vm235, %v4011, %v4000
    %v4016 = vsel %vm235, %v4012, %v4002
    %v4017 = vsel %vm235, %v4013, %v4004
    %v4018 = vsel %vm235, %v4014, %v4006
    %v4019 = vmul.f32 %v3964, %v3457
    %v4020 = vmul.f32 %v3969, %v3457
    %v4022 = vrot.slane %v4020, 1
    %v4024 = vadd.f32 %v4019, %v4022
    %v4025 = vmul.f32 %v3974, %v3457
    %v4027 = vrot.slane %v4025, 2
    %v4029 = vadd.f32 %v4024, %v4027
    %v4030 = vpack.c.bf16 %v4016, %v4015
    %v4031 = vpack.c.bf16 %v4018, %v4017
    %v4032 = vlaneseq
    %v4033 = vshrl.u32 %v4032, 7
    %v4034 = vsub.s32 0, %v4033
    %v4035 = vrot.slane %v4029, %v4034
    %v4052 = vunpack.c.l.b16 %v3440
    %v4053 = vunpack.c.l.b16 %v3441
    %v4054 = vunpack.c.l.b16 %v3442
    %v4055 = vunpack.c.l.b16 %v3443
    %v4056 = vunpack.c.l.b16 %v3444
    %v4057 = vunpack.c.l.b16 %v3445
    %v4058 = vunpack.c.l.b16 %v3446
    %v4059 = vunpack.c.l.b16 %v3447
    %v4060 = vunpack.c.l.b16 %v3448
    %v4061 = vunpack.c.l.b16 %v3449
    %v4062 = vunpack.c.l.b16 %v3450
    %v4063 = vunpack.c.l.b16 %v3451
    %v4064 = vunpack.c.l.b16 %v3452
    %v4065 = vunpack.c.l.b16 %v3453
    %v4066 = vunpack.c.l.b16 %v3454
    %v4067 = vunpack.c.l.b16 %v3455
    %v4068 = vpack.c.b16 %v4053, %v4052
    %v4069 = vpack.c.b16 %v4055, %v4054
    %v4070 = vpack.c.b16 %v4057, %v4056
    %v4071 = vpack.c.b16 %v4059, %v4058
    %v4072 = vpack.c.b16 %v4061, %v4060
    %v4073 = vpack.c.b16 %v4063, %v4062
    %v4074 = vpack.c.b16 %v4065, %v4064
    %v4075 = vpack.c.b16 %v4067, %v4066
    %4084 = vmatprep.subr.bf16.mxu0 0
    %4085 = vmatpush1.bf16.msra.mxu0 %v4068
    %4086 = vmatprep.subr.bf16.mxu0 0
    %4087 = vmatpush1.bf16.msra.mxu0 %v4069
    %4088 = vmatprep.subr.bf16.mxu0 0
    %4089 = vmatpush1.bf16.msra.mxu0 %v4070
    %4090 = vmatprep.subr.bf16.mxu0 0
    %4091 = vmatpush1.bf16.msra.mxu0 %v4071
    %4092 = vmatprep.subr.bf16.mxu0 0
    %4093 = vmatpush1.bf16.msra.mxu0 %v4072
    %4094 = vmatprep.subr.bf16.mxu0 0
    %4095 = vmatpush1.bf16.msra.mxu0 %v4073
    %4096 = vmatprep.subr.bf16.mxu0 0
    %4097 = vmatpush1.bf16.msra.mxu0 %v4074
    %4098 = vmatprep.subr.bf16.mxu0 0
    %4099 = vmatpush1.bf16.msra.mxu0 %v4075
    %4100 = vmatprep.subr.bf16.mxu0 0
    %4101 = vmatpush1.bf16.msra.mxu0 0
    %4102 = vmatprep.subr.bf16.mxu0 0
    %4103 = vmatpush1.bf16.msra.mxu0 0
    %4104 = vmatprep.subr.bf16.mxu0 0
    %4105 = vmatpush1.bf16.msra.mxu0 0
    %4106 = vmatprep.subr.bf16.mxu0 0
    %4107 = vmatpush1.bf16.msra.mxu0 0
    %4108 = vmatprep.subr.bf16.mxu0 0
    %4109 = vmatpush1.bf16.msra.mxu0 0
    %4110 = vmatprep.subr.bf16.mxu0 0
    %4111 = vmatpush1.bf16.msra.mxu0 0
    %4112 = vmatprep.subr.bf16.mxu0 0
    %4113 = vmatpush1.bf16.msra.mxu0 0
    %4114 = vmatprep.subr.bf16.mxu0 0
    %4115 = vmatpush1.bf16.msra.mxu0 0
    %4116 = vmatprep.mubr.bf16.mxu0 0
    %4117 = vmatmul.mubr.bf16.gmra.mrb[0].mxu0 %v4030
    %v4118 = vpop.f32.mrb[0].mxu0
    %v4119 = vadd.f32 %v4035, %v4118
    %v4120 = vpop.f32.mrb[0].mxu0
    %v4121 = vpop.f32.mrb[0].mxu0
    %v4122 = vadd.f32 %v4035, %v4121
    %v4123 = vpop.f32.mrb[0].mxu0
    %4124 = vmatprep.mubr.bf16.mxu0 0
    %4125 = vmatmul.mubr.bf16.gmra.mrb[0].mxu0 %v4031
    %v4126 = vpop.f32.mrb[0].mxu0
    %v4127 = vadd.f32 %v4035, %v4126
    %v4128 = vpop.f32.mrb[0].mxu0
    %v4129 = vpop.f32.mrb[0].mxu0
    %v4130 = vadd.f32 %v4035, %v4129
    %v4131 = vpop.f32.mrb[0].mxu0
    %4132 = vdwg.mxu0
    %s4133 = scalar_lea.vmem %s12, 160
    %v4134 = vld [vmem:[%s4133] sm:$0xff]
    %v4135 = vld [vmem:[%s4133 + $0x8] sm:$0xff]
    %v4136 = vld [vmem:[%s4133 + $0x10] sm:$0xff]
    %v4137 = vld [vmem:[%s4133 + $0x18] sm:$0xff]
    %s4138 = scalar_lea.vmem %s13, 10
    %v4139 = vld [vmem:[%s4138] sm:$0x3]
    %s4140 = scalar_lea.vmem %s14, 80
    %v4141 = vld [vmem:[%s4140] sm:$0xf]
    %v4142 = vld [vmem:[%s4140 + $0x4] sm:$0xf]
    %v4143 = vld [vmem:[%s4140 + $0x8] sm:$0xf]
    %v4144 = vld [vmem:[%s4140 + $0xc] sm:$0xf]
    %s4145 = scalar_lea.vmem %s15, 5
    %v4146 = vld [vmem:[%s4145] sm:$0x1]
    %s4147 = scalar_lea.vmem %s16, 320
    %v4148 = vld [vmem:[%s4147] sm:$0xf]
    %v4149 = vld [vmem:[%s4147 + $0x4] sm:$0xf]
    %v4150 = vld [vmem:[%s4147 + $0x8] sm:$0xf]
    %v4151 = vld [vmem:[%s4147 + $0xc] sm:$0xf]
    %v4152 = vld [vmem:[%s4147 + $0x10] sm:$0xf]
    %v4153 = vld [vmem:[%s4147 + $0x14] sm:$0xf]
    %v4154 = vld [vmem:[%s4147 + $0x18] sm:$0xf]
    %v4155 = vld [vmem:[%s4147 + $0x1c] sm:$0xf]
    %v4156 = vld [vmem:[%s4147 + $0x20] sm:$0xf]
    %v4157 = vld [vmem:[%s4147 + $0x24] sm:$0xf]
    %v4158 = vld [vmem:[%s4147 + $0x28] sm:$0xf]
    %v4159 = vld [vmem:[%s4147 + $0x2c] sm:$0xf]
    %v4160 = vld [vmem:[%s4147 + $0x30] sm:$0xf]
    %v4161 = vld [vmem:[%s4147 + $0x34] sm:$0xf]
    %v4162 = vld [vmem:[%s4147 + $0x38] sm:$0xf]
    %v4163 = vld [vmem:[%s4147 + $0x3c] sm:$0xf]
    %s4164 = scalar_lea.vmem %s17, 20
    %v4165 = vld [vmem:[%s4164] sm:$0x7]
    %s4166 = sld [smem:[#allocation4 + $0x100]]
    %s4167 = sld [smem:[#allocation4 + $0x101]]
    %s4168 = sld [smem:[#allocation4 + $0x102]]
    %v4170 = vlaneseq
    %v4171 = vshrl.u32 %v4170, 7
    %v4172 = vsub.s32 0, %v4171
    %v4173 = vrot.slane %v4139, %v4172
    %v4174 = vlaneseq
    %v4175 = vshrl.u32 %v4174, 7
    %v4176 = vsub.s32 1, %v4175
    %v4177 = vrot.slane %v4139, %v4176
    %v4184 = vunpack.c.l.b16 %v4134
    %v4185 = vunpack.c.h.b16 %v4134
    %v4186 = vunpack.c.l.b16 %v4135
    %v4187 = vunpack.c.h.b16 %v4135
    %v4188 = vunpack.c.l.b16 %v4136
    %v4189 = vunpack.c.h.b16 %v4136
    %v4190 = vunpack.c.l.b16 %v4137
    %v4191 = vunpack.c.h.b16 %v4137
    %v4192 = vpack.c.b16 %v4186, %v4184
    %v4193 = vpack.c.b16 %v4187, %v4185
    %v4194 = vpack.c.b16 %v4190, %v4188
    %v4195 = vpack.c.b16 %v4191, %v4189
    %4200 = vmatprep.subr.bf16.mxu0 %v4193
    %4201 = vmatpush1.bf16.msra.mxu0 %v4192
    %4202 = vmatprep.subr.bf16.mxu0 %v4195
    %4203 = vmatpush1.bf16.msra.mxu0 %v4194
    %4204 = vmatprep.subr.bf16.mxu0 0
    %4205 = vmatpush1.bf16.msra.mxu0 0
    %4206 = vmatprep.subr.bf16.mxu0 0
    %4207 = vmatpush1.bf16.msra.mxu0 0
    %4208 = vmatprep.subr.bf16.mxu0 0
    %4209 = vmatpush1.bf16.msra.mxu0 0
    %4210 = vmatprep.subr.bf16.mxu0 0
    %4211 = vmatpush1.bf16.msra.mxu0 0
    %4212 = vmatprep.subr.bf16.mxu0 0
    %4213 = vmatpush1.bf16.msra.mxu0 0
    %4214 = vmatprep.subr.bf16.mxu0 0
    %4215 = vmatpush1.bf16.msra.mxu0 0
    %4216 = vmatprep.subr.bf16.mxu0 0
    %4217 = vmatpush1.bf16.msra.mxu0 0
    %4218 = vmatprep.subr.bf16.mxu0 0
    %4219 = vmatpush1.bf16.msra.mxu0 0
    %4220 = vmatprep.subr.bf16.mxu0 0
    %4221 = vmatpush1.bf16.msra.mxu0 0
    %4222 = vmatprep.subr.bf16.mxu0 0
    %4223 = vmatpush1.bf16.msra.mxu0 0
    %4224 = vmatprep.subr.bf16.mxu0 0
    %4225 = vmatpush1.bf16.msra.mxu0 0
    %4226 = vmatprep.subr.bf16.mxu0 0
    %4227 = vmatpush1.bf16.msra.mxu0 0
    %4228 = vmatprep.subr.bf16.mxu0 0
    %4229 = vmatpush1.bf16.msra.mxu0 0
    %4230 = vmatprep.subr.bf16.mxu0 0
    %4231 = vmatpush1.bf16.msra.mxu0 0
    %4232 = vmatprep.mubr.bf16.mxu0 0
    %4233 = vmatmul.mubr.bf16.gmra.mrb[0].mxu0 %v3573
    %v4234 = vpop.f32.mrb[0].mxu0
    %v4235 = vadd.f32 %v4173, %v4234
    %v4236 = vpop.f32.mrb[0].mxu0
    %v4237 = vadd.f32 %v4177, %v4236
    %v4238 = vpop.f32.mrb[0].mxu0
    %v4239 = vadd.f32 %v4173, %v4238
    %v4240 = vpop.f32.mrb[0].mxu0
    %v4241 = vadd.f32 %v4177, %v4240
    %4242 = vdwg.mxu0
    %v4244 = vlaneseq
    %v4245 = vshrl.u32 %v4244, 7
    %v4246 = vsub.s32 0, %v4245
    %v4247 = vrot.slane %v4146, %v4246
    %v4253 = vunpack.c.l.b16 %v4141
    %v4254 = vunpack.c.l.b16 %v4142
    %v4255 = vunpack.c.l.b16 %v4143
    %v4256 = vunpack.c.l.b16 %v4144
    %v4257 = vpack.c.b16 %v4254, %v4253
    %v4258 = vpack.c.b16 %v4256, %v4255
    %4261 = vmatprep.subr.bf16.mxu0 0
    %4262 = vmatpush1.bf16.msra.mxu0 %v4257
    %4263 = vmatprep.subr.bf16.mxu0 0
    %4264 = vmatpush1.bf16.msra.mxu0 %v4258
    %4265 = vmatprep.subr.bf16.mxu0 0
    %4266 = vmatpush1.bf16.msra.mxu0 0
    %4267 = vmatprep.subr.bf16.mxu0 0
    %4268 = vmatpush1.bf16.msra.mxu0 0
    %4269 = vmatprep.subr.bf16.mxu0 0
    %4270 = vmatpush1.bf16.msra.mxu0 0
    %4271 = vmatprep.subr.bf16.mxu0 0
    %4272 = vmatpush1.bf16.msra.mxu0 0
    %4273 = vmatprep.subr.bf16.mxu0 0
    %4274 = vmatpush1.bf16.msra.mxu0 0
    %4275 = vmatprep.subr.bf16.mxu0 0
    %4276 = vmatpush1.bf16.msra.mxu0 0
    %4277 = vmatprep.subr.bf16.mxu0 0
    %4278 = vmatpush1.bf16.msra.mxu0 0
    %4279 = vmatprep.subr.bf16.mxu0 0
    %4280 = vmatpush1.bf16.msra.mxu0 0
    %4281 = vmatprep.subr.bf16.mxu0 0
    %4282 = vmatpush1.bf16.msra.mxu0 0
    %4283 = vmatprep.subr.bf16.mxu0 0
    %4284 = vmatpush1.bf16.msra.mxu0 0
    %4285 = vmatprep.subr.bf16.mxu0 0
    %4286 = vmatpush1.bf16.msra.mxu0 0
    %4287 = vmatprep.subr.bf16.mxu0 0
    %4288 = vmatpush1.bf16.msra.mxu0 0
    %4289 = vmatprep.subr.bf16.mxu0 0
    %4290 = vmatpush1.bf16.msra.mxu0 0
    %4291 = vmatprep.subr.bf16.mxu0 0
    %4292 = vmatpush1.bf16.msra.mxu0 0
    %4293 = vmatprep.mubr.bf16.mxu0 0
    %4294 = vmatmul.mubr.bf16.gmra.mrb[0].mxu0 %v3495
    %v4295 = vpop.f32.mrb[0].mxu0
    %v4296 = vadd.f32 %v4247, %v4295
    %v4297 = vpop.f32.mrb[0].mxu0
    %v4298 = vpop.f32.mrb[0].mxu0
    %v4299 = vadd.f32 %v4247, %v4298
    %v4300 = vpop.f32.mrb[0].mxu0
    %4301 = vmatprep.mubr.bf16.mxu0 0
    %4302 = vmatmul.mubr.bf16.gmra.mrb[0].mxu0 %v3498
    %v4303 = vpop.f32.mrb[0].mxu0
    %v4304 = vadd.f32 %v4247, %v4303
    %v4305 = vpop.f32.mrb[0].mxu0
    %v4306 = vpop.f32.mrb[0].mxu0
    %v4307 = vadd.f32 %v4247, %v4306
    %v4308 = vpop.f32.mrb[0].mxu0
    %4309 = vdwg.mxu0
    %v4310 = vpack.c.bf16 %v4239, %v4235
    %4312 = vrot.lane.b32.xlu0 %v4310, 96
    %v4313 = vpop.permute.xlu0 %4312
    %v4315 = vsel %vm149, %v4310, 0
    %v4318 = vsel %vm149, %v4313, 0
    %4320 = vmatprep.subr.bf16.mxu0 0
    %4321 = vmatpush1.bf16.xpose.msra.mxu0 %v4318
    %4322 = vmatprep.subr.bf16.mxu0 0
    %4323 = vmatpush1.bf16.xpose.msra.mxu0 0
    %4324 = vmatprep.subr.bf16.mxu0 0
    %4325 = vmatpush1.bf16.xpose.msra.mxu0 0
    %4326 = vmatprep.subr.bf16.mxu0 0
    %4327 = vmatpush1.bf16.xpose.msra.mxu0 0
    %4328 = vmatprep.subr.bf16.mxu0 0
    %4329 = vmatpush1.bf16.xpose.msra.mxu0 0
    %4330 = vmatprep.subr.bf16.mxu0 0
    %4331 = vmatpush1.bf16.xpose.msra.mxu0 0
    %4332 = vmatprep.subr.bf16.mxu0 0
    %4333 = vmatpush1.bf16.xpose.msra.mxu0 0
    %4334 = vmatprep.subr.bf16.mxu0 0
    %4335 = vmatpush1.bf16.xpose.msra.mxu0 0
    %4336 = vmatprep.subr.bf16.mxu0 0
    %4337 = vmatpush1.bf16.xpose.msra.mxu0 0
    %4338 = vmatprep.subr.bf16.mxu0 0
    %4339 = vmatpush1.bf16.xpose.msra.mxu0 0
    %4340 = vmatprep.subr.bf16.mxu0 0
    %4341 = vmatpush1.bf16.xpose.msra.mxu0 0
    %4342 = vmatprep.subr.bf16.mxu0 0
    %4343 = vmatpush1.bf16.xpose.msra.mxu0 0
    %4344 = vmatprep.subr.bf16.mxu0 0
    %4345 = vmatpush1.bf16.xpose.msra.mxu0 0
    %4346 = vmatprep.subr.bf16.mxu0 0
    %4347 = vmatpush1.bf16.xpose.msra.mxu0 0
    %4348 = vmatprep.subr.bf16.mxu0 0
    %4349 = vmatpush1.bf16.xpose.msra.mxu0 0
    %4350 = vmatprep.subr.bf16.mxu0 0
    %4351 = vmatpush1.bf16.xpose.msra.mxu0 0
    %4352 = vmatprep.mubr.bf16.mxu0 0
    %4353 = vmatmul.mubr.bf16.gmra.mrb[0].mxu0 %v4315
    %v4354 = vpop.f32.mrb[0].mxu0
    %v4355 = vadd.f32 %v113, %v4354
    %v4356 = vpop.f32.mrb[0].mxu0
    %v4357 = vpop.f32.mrb[0].mxu0
    %v4358 = vadd.f32 %v114, %v4357
    %v4359 = vpop.f32.mrb[0].mxu0
    %4360 = vdwg.mxu0
    %v4361 = vsel %vm1245, %v4355, -inf
    %4362 = vmax.xlane.f32.xlu0 %v4361
    %v4363 = vpop.xlane.xlu0 %4362
    %v4364 = vsel %vm1245, %v4358, -inf
    %4365 = vmax.xlane.f32.xlu0 %v4364
    %v4366 = vpop.xlane.xlu0 %4365
    %v4367 = vsub.f32 %v4355, %v4363
    %v4368 = vsub.f32 %v4358, %v4366
    %v4369 = vmul.f32 %v4367, 1.442695
    %v4370 = vpow.pop %v4369
    %v4371 = vmul.f32 %v4368, 1.442695
    %v4372 = vpow.pop %v4371
    %v4373 = vsel %vm1245, %v4370, 0.0
    %4374 = vadd.xlane.f32.xlu0 %v4373
    %v4375 = vpop.xlane.xlu0 %4374
    %v4376 = vsel %vm1245, %v4372, 0.0
    %4377 = vadd.xlane.f32.xlu0 %v4376
    %v4378 = vpop.xlane.xlu0 %4377
    %v4379 = vrcp.pop %v4375
    %v4380 = vrcp.pop %v4378
    %v4381 = vmul.f32 %v4370, %v4379
    %v4382 = vmul.f32 %v4372, %v4380
    %v4383 = vpack.c.bf16 %v4382, %v4381
    %4384 = vrot.lane.b32.xlu0 %v4310, 64
    %v4385 = vpop.permute.xlu0 %4384
    %v4388 = vsel %vm1245, %v4383, 0
    %4390 = vmatprep.subr.bf16.mxu0 0
    %4391 = vmatpush1.bf16.msra.mxu0 %v4385
    %4392 = vmatprep.subr.bf16.mxu0 0
    %4393 = vmatpush1.bf16.msra.mxu0 0
    %4394 = vmatprep.subr.bf16.mxu0 0
    %4395 = vmatpush1.bf16.msra.mxu0 0
    %4396 = vmatprep.subr.bf16.mxu0 0
    %4397 = vmatpush1.bf16.msra.mxu0 0
    %4398 = vmatprep.subr.bf16.mxu0 0
    %4399 = vmatpush1.bf16.msra.mxu0 0
    %4400 = vmatprep.subr.bf16.mxu0 0
    %4401 = vmatpush1.bf16.msra.mxu0 0
    %4402 = vmatprep.subr.bf16.mxu0 0
    %4403 = vmatpush1.bf16.msra.mxu0 0
    %4404 = vmatprep.subr.bf16.mxu0 0
    %4405 = vmatpush1.bf16.msra.mxu0 0
    %4406 = vmatprep.subr.bf16.mxu0 0
    %4407 = vmatpush1.bf16.msra.mxu0 0
    %4408 = vmatprep.subr.bf16.mxu0 0
    %4409 = vmatpush1.bf16.msra.mxu0 0
    %4410 = vmatprep.subr.bf16.mxu0 0
    %4411 = vmatpush1.bf16.msra.mxu0 0
    %4412 = vmatprep.subr.bf16.mxu0 0
    %4413 = vmatpush1.bf16.msra.mxu0 0
    %4414 = vmatprep.subr.bf16.mxu0 0
    %4415 = vmatpush1.bf16.msra.mxu0 0
    %4416 = vmatprep.subr.bf16.mxu0 0
    %4417 = vmatpush1.bf16.msra.mxu0 0
    %4418 = vmatprep.subr.bf16.mxu0 0
    %4419 = vmatpush1.bf16.msra.mxu0 0
    %4420 = vmatprep.subr.bf16.mxu0 0
    %4421 = vmatpush1.bf16.msra.mxu0 0
    %4422 = vmatprep.mubr.bf16.mxu0 0
    %4423 = vmatmul.mubr.bf16.gmra.mrb[0].mxu0 %v4388
    %v4424 = vpop.f32.mrb[0].mxu0
    %v4425 = vadd.f32 0.0, %v4424
    %v4426 = vpop.f32.mrb[0].mxu0
    %v4427 = vpop.f32.mrb[0].mxu0
    %v4428 = vadd.f32 0.0, %v4427
    %v4429 = vpop.f32.mrb[0].mxu0
    %4430 = vdwg.mxu0
    %v4431 = vpack.c.bf16 %v4299, %v4296
    %v4432 = vpack.c.bf16 %v4307, %v4304
    %4433 = vrot.lane.b32.xlu0 %v4310, 32
    %v4434 = vpop.permute.xlu0 %4433
    %v4436 = vsel %vm149, %v4434, 0
    %v4439 = vsel %vm149, %v4431, 0
    %v4442 = vsel %vm149, %v4432, 0
    %4444 = vmatprep.subr.bf16.mxu0 0
    %4445 = vmatpush1.bf16.xpose.msra.mxu0 %v4439
    %4446 = vmatprep.subr.bf16.mxu0 0
    %4447 = vmatpush1.bf16.xpose.msra.mxu0 %v4442
    %4448 = vmatprep.subr.bf16.mxu0 0
    %4449 = vmatpush1.bf16.xpose.msra.mxu0 0
    %4450 = vmatprep.subr.bf16.mxu0 0
    %4451 = vmatpush1.bf16.xpose.msra.mxu0 0
    %4452 = vmatprep.subr.bf16.mxu0 0
    %4453 = vmatpush1.bf16.xpose.msra.mxu0 0
    %4454 = vmatprep.subr.bf16.mxu0 0
    %4455 = vmatpush1.bf16.xpose.msra.mxu0 0
    %4456 = vmatprep.subr.bf16.mxu0 0
    %4457 = vmatpush1.bf16.xpose.msra.mxu0 0
    %4458 = vmatprep.subr.bf16.mxu0 0
    %4459 = vmatpush1.bf16.xpose.msra.mxu0 0
    %4460 = vmatprep.subr.bf16.mxu0 0
    %4461 = vmatpush1.bf16.xpose.msra.mxu0 0
    %4462 = vmatprep.subr.bf16.mxu0 0
    %4463 = vmatpush1.bf16.xpose.msra.mxu0 0
    %4464 = vmatprep.subr.bf16.mxu0 0
    %4465 = vmatpush1.bf16.xpose.msra.mxu0 0
    %4466 = vmatprep.subr.bf16.mxu0 0
    %4467 = vmatpush1.bf16.xpose.msra.mxu0 0
    %4468 = vmatprep.subr.bf16.mxu0 0
    %4469 = vmatpush1.bf16.xpose.msra.mxu0 0
    %4470 = vmatprep.subr.bf16.mxu0 0
    %4471 = vmatpush1.bf16.xpose.msra.mxu0 0
    %4472 = vmatprep.subr.bf16.mxu0 0
    %4473 = vmatpush1.bf16.xpose.msra.mxu0 0
    %4474 = vmatprep.subr.bf16.mxu0 0
    %4475 = vmatpush1.bf16.xpose.msra.mxu0 0
    %4476 = vmatprep.mubr.bf16.mxu0 0
    %4477 = vmatmul.mubr.bf16.gmra.mrb[0].mxu0 %v4436
    %v4478 = vpop.f32.mrb[0].mxu0
    %v4479 = vadd.f32 %v111, %v4478
    %v4480 = vpop.f32.mrb[0].mxu0
    %v4481 = vpop.f32.mrb[0].mxu0
    %v4482 = vadd.f32 %v112, %v4481
    %v4483 = vpop.f32.mrb[0].mxu0
    %4484 = vdwg.mxu0
    %v4485 = vsel %vm149, %v4479, -inf
    %4486 = vmax.xlane.f32.xlu0 %v4485
    %v4487 = vpop.xlane.xlu0 %4486
    %v4488 = vsel %vm149, %v4482, -inf
    %4489 = vmax.xlane.f32.xlu0 %v4488
    %v4490 = vpop.xlane.xlu0 %4489
    %v4491 = vsub.f32 %v4479, %v4487
    %v4492 = vsub.f32 %v4482, %v4490
    %v4493 = vmul.f32 %v4491, 1.442695
    %v4494 = vpow.pop %v4493
    %v4495 = vmul.f32 %v4492, 1.442695
    %v4496 = vpow.pop %v4495
    %v4497 = vsel %vm149, %v4494, 0.0
    %4498 = vadd.xlane.f32.xlu0 %v4497
    %v4499 = vpop.xlane.xlu0 %4498
    %v4500 = vsel %vm149, %v4496, 0.0
    %4501 = vadd.xlane.f32.xlu0 %v4500
    %v4502 = vpop.xlane.xlu0 %4501
    %v4503 = vrcp.pop %v4499
    %v4504 = vrcp.pop %v4502
    %v4505 = vmul.f32 %v4494, %v4503
    %v4506 = vmul.f32 %v4496, %v4504
    %v4507 = vpack.c.bf16 %v4506, %v4505
    %4510 = vrot.lane.b32.xlu0 %v4431, 96
    %v4511 = vpop.permute.xlu0 %4510
    %4512 = vrot.lane.b32.xlu0 %v4432, 96
    %v4513 = vpop.permute.xlu0 %4512
    %v4517 = vsel %vm149, %v4507, 0
    %4519 = vmatprep.subr.bf16.mxu0 0
    %4520 = vmatpush1.bf16.msra.mxu0 %v4511
    %4521 = vmatprep.subr.bf16.mxu0 0
    %4522 = vmatpush1.bf16.msra.mxu0 %v4513
    %4523 = vmatprep.subr.bf16.mxu0 0
    %4524 = vmatpush1.bf16.msra.mxu0 0
    %4525 = vmatprep.subr.bf16.mxu0 0
    %4526 = vmatpush1.bf16.msra.mxu0 0
    %4527 = vmatprep.subr.bf16.mxu0 0
    %4528 = vmatpush1.bf16.msra.mxu0 0
    %4529 = vmatprep.subr.bf16.mxu0 0
    %4530 = vmatpush1.bf16.msra.mxu0 0
    %4531 = vmatprep.subr.bf16.mxu0 0
    %4532 = vmatpush1.bf16.msra.mxu0 0
    %4533 = vmatprep.subr.bf16.mxu0 0
    %4534 = vmatpush1.bf16.msra.mxu0 0
    %4535 = vmatprep.subr.bf16.mxu0 0
    %4536 = vmatpush1.bf16.msra.mxu0 0
    %4537 = vmatprep.subr.bf16.mxu0 0
    %4538 = vmatpush1.bf16.msra.mxu0 0
    %4539 = vmatprep.subr.bf16.mxu0 0
    %4540 = vmatpush1.bf16.msra.mxu0 0
    %4541 = vmatprep.subr.bf16.mxu0 0
    %4542 = vmatpush1.bf16.msra.mxu0 0
    %4543 = vmatprep.subr.bf16.mxu0 0
    %4544 = vmatpush1.bf16.msra.mxu0 0
    %4545 = vmatprep.subr.bf16.mxu0 0
    %4546 = vmatpush1.bf16.msra.mxu0 0
    %4547 = vmatprep.subr.bf16.mxu0 0
    %4548 = vmatpush1.bf16.msra.mxu0 0
    %4549 = vmatprep.subr.bf16.mxu0 0
    %4550 = vmatpush1.bf16.msra.mxu0 0
    %4551 = vmatprep.mubr.bf16.mxu0 0
    %4552 = vmatmul.mubr.bf16.gmra.mrb[0].mxu0 %v4517
    %v4553 = vpop.f32.mrb[0].mxu0
    %v4554 = vadd.f32 0.0, %v4553
    %v4555 = vpop.f32.mrb[0].mxu0
    %v4556 = vpop.f32.mrb[0].mxu0
    %v4557 = vadd.f32 0.0, %v4556
    %v4558 = vpop.f32.mrb[0].mxu0
    %4559 = vdwg.mxu0
    %v4560 = vmax.f32 %v4237, 0.0
    %v4561 = vmax.f32 %v4241, 0.0
    %v4562 = vstv %s4166
    %v4563 = vmul.f32 %v4425, %v4562
    %v4564 = vmul.f32 %v4428, %v4562
    %v4565 = vstv %s4167
    %v4566 = vmul.f32 %v4554, %v4565
    %v4567 = vmul.f32 %v4557, %v4565
    %v4568 = vstv %s4168
    %v4569 = vmul.f32 %v4560, %v4568
    %v4570 = vmul.f32 %v4561, %v4568
    %4573 = vrot.lane.b32.xlu0 %v4566, 32
    %v4574 = vpop.permute.xlu0 %4573
    %4575 = vrot.lane.b32.xlu0 %v4567, 32
    %v4576 = vpop.permute.xlu0 %4575
    %4581 = vrot.lane.b32.xlu0 %v4569, 64
    %v4582 = vpop.permute.xlu0 %4581
    %4583 = vrot.lane.b32.xlu0 %v4570, 64
    %v4584 = vpop.permute.xlu0 %4583
    %v4587 = vsel %vm149, %v4563, %v4574
    %v4588 = vsel %vm149, %v4564, %v4576
    %v4589 = vsel %vm235, %v4587, %v4582
    %v4590 = vsel %vm235, %v4588, %v4584
    %v4591 = vmul.f32 %v4562, %v4165
    %v4592 = vmul.f32 %v4565, %v4165
    %v4594 = vrot.slane %v4592, 1
    %v4596 = vadd.f32 %v4591, %v4594
    %v4597 = vmul.f32 %v4568, %v4165
    %v4599 = vrot.slane %v4597, 2
    %v4601 = vadd.f32 %v4596, %v4599
    %v4602 = vpack.c.bf16 %v4590, %v4589
    %v4603 = vlaneseq
    %v4604 = vshrl.u32 %v4603, 7
    %v4605 = vsub.s32 0, %v4604
    %v4606 = vrot.slane %v4601, %v4605
    %v4623 = vunpack.c.l.b16 %v4148
    %v4624 = vunpack.c.l.b16 %v4149
    %v4625 = vunpack.c.l.b16 %v4150
    %v4626 = vunpack.c.l.b16 %v4151
    %v4627 = vunpack.c.l.b16 %v4152
    %v4628 = vunpack.c.l.b16 %v4153
    %v4629 = vunpack.c.l.b16 %v4154
    %v4630 = vunpack.c.l.b16 %v4155
    %v4631 = vunpack.c.l.b16 %v4156
    %v4632 = vunpack.c.l.b16 %v4157
    %v4633 = vunpack.c.l.b16 %v4158
    %v4634 = vunpack.c.l.b16 %v4159
    %v4635 = vunpack.c.l.b16 %v4160
    %v4636 = vunpack.c.l.b16 %v4161
    %v4637 = vunpack.c.l.b16 %v4162
    %v4638 = vunpack.c.l.b16 %v4163
    %v4639 = vpack.c.b16 %v4624, %v4623
    %v4640 = vpack.c.b16 %v4626, %v4625
    %v4641 = vpack.c.b16 %v4628, %v4627
    %v4642 = vpack.c.b16 %v4630, %v4629
    %v4643 = vpack.c.b16 %v4632, %v4631
    %v4644 = vpack.c.b16 %v4634, %v4633
    %v4645 = vpack.c.b16 %v4636, %v4635
    %v4646 = vpack.c.b16 %v4638, %v4637
    %4655 = vmatprep.subr.bf16.mxu0 0
    %4656 = vmatpush1.bf16.msra.mxu0 %v4639
    %4657 = vmatprep.subr.bf16.mxu0 0
    %4658 = vmatpush1.bf16.msra.mxu0 %v4640
    %4659 = vmatprep.subr.bf16.mxu0 0
    %4660 = vmatpush1.bf16.msra.mxu0 %v4641
    %4661 = vmatprep.subr.bf16.mxu0 0
    %4662 = vmatpush1.bf16.msra.mxu0 %v4642
    %4663 = vmatprep.subr.bf16.mxu0 0
    %4664 = vmatpush1.bf16.msra.mxu0 %v4643
    %4665 = vmatprep.subr.bf16.mxu0 0
    %4666 = vmatpush1.bf16.msra.mxu0 %v4644
    %4667 = vmatprep.subr.bf16.mxu0 0
    %4668 = vmatpush1.bf16.msra.mxu0 %v4645
    %4669 = vmatprep.subr.bf16.mxu0 0
    %4670 = vmatpush1.bf16.msra.mxu0 %v4646
    %4671 = vmatprep.subr.bf16.mxu0 0
    %4672 = vmatpush1.bf16.msra.mxu0 0
    %4673 = vmatprep.subr.bf16.mxu0 0
    %4674 = vmatpush1.bf16.msra.mxu0 0
    %4675 = vmatprep.subr.bf16.mxu0 0
    %4676 = vmatpush1.bf16.msra.mxu0 0
    %4677 = vmatprep.subr.bf16.mxu0 0
    %4678 = vmatpush1.bf16.msra.mxu0 0
    %4679 = vmatprep.subr.bf16.mxu0 0
    %4680 = vmatpush1.bf16.msra.mxu0 0
    %4681 = vmatprep.subr.bf16.mxu0 0
    %4682 = vmatpush1.bf16.msra.mxu0 0
    %4683 = vmatprep.subr.bf16.mxu0 0
    %4684 = vmatpush1.bf16.msra.mxu0 0
    %4685 = vmatprep.subr.bf16.mxu0 0
    %4686 = vmatpush1.bf16.msra.mxu0 0
    %4687 = vmatprep.mubr.bf16.mxu0 0
    %4688 = vmatmul.mubr.bf16.gmra.mrb[0].mxu0 %v4602
    %v4689 = vpop.f32.mrb[0].mxu0
    %v4690 = vadd.f32 %v4606, %v4689
    %v4691 = vpop.f32.mrb[0].mxu0
    %v4692 = vpop.f32.mrb[0].mxu0
    %v4693 = vadd.f32 %v4606, %v4692
    %v4694 = vpop.f32.mrb[0].mxu0
    %4695 = vdwg.mxu0
    %v4696 = vadd.f32 %v2848, %v4119
    %v4697 = vadd.f32 %v2851, %v4122
    %v4698 = vadd.f32 %v2856, %v4127
    %v4699 = vadd.f32 %v2859, %v4130
    %v4700 = vadd.f32 %v3419, %v4690
    %v4701 = vadd.f32 %v3422, %v4693
    %v4702 = vsel %vm149, %v4696, 0.0
    %4703 = vadd.xlane.f32.xlu0 %v4702
    %v4704 = vpop.xlane.xlu0 %4703
    %v4705 = vsel %vm149, %v4697, 0.0
    %4706 = vadd.xlane.f32.xlu0 %v4705
    %v4707 = vpop.xlane.xlu0 %4706
    %v4708 = vsel %vm149, %v4698, 0.0
    %4709 = vadd.xlane.f32.xlu0 %v4708
    %v4710 = vpop.xlane.xlu0 %4709
    %v4711 = vsel %vm149, %v4699, 0.0
    %4712 = vadd.xlane.f32.xlu0 %v4711
    %v4713 = vpop.xlane.xlu0 %4712
    %v4714 = vmul.f32 %v4704, %v2099
    %v4715 = vmul.f32 %v4707, %v2099
    %v4716 = vmul.f32 %v4710, %v2099
    %v4717 = vmul.f32 %v4713, %v2099
    %v4718 = vsub.f32 %v4696, %v4714
    %v4719 = vsub.f32 %v4697, %v4715
    %v4720 = vsub.f32 %v4698, %v4716
    %v4721 = vsub.f32 %v4699, %v4717
    %v4722 = vmul.f32 %v4718, %v4718
    %v4723 = vmul.f32 %v4719, %v4719
    %v4724 = vmul.f32 %v4720, %v4720
    %v4725 = vmul.f32 %v4721, %v4721
    %v4726 = vsel %vm149, %v4722, 0.0
    %4727 = vadd.xlane.f32.xlu0 %v4726
    %v4728 = vpop.xlane.xlu0 %4727
    %v4729 = vsel %vm149, %v4723, 0.0
    %4730 = vadd.xlane.f32.xlu0 %v4729
    %v4731 = vpop.xlane.xlu0 %4730
    %v4732 = vsel %vm149, %v4724, 0.0
    %4733 = vadd.xlane.f32.xlu0 %v4732
    %v4734 = vpop.xlane.xlu0 %4733
    %v4735 = vsel %vm149, %v4725, 0.0
    %4736 = vadd.xlane.f32.xlu0 %v4735
    %v4737 = vpop.xlane.xlu0 %4736
    %v4738 = vmul.f32 %v4728, %v2099
    %v4739 = vmul.f32 %v4731, %v2099
    %v4740 = vmul.f32 %v4734, %v2099
    %v4741 = vmul.f32 %v4737, %v2099
    %v4742 = vadd.f32 %v4738, 1e-05
    %v4743 = vadd.f32 %v4739, 1e-05
    %v4744 = vadd.f32 %v4740, 1e-05
    %v4745 = vadd.f32 %v4741, 1e-05
    %v4746 = vrsqrt.pop %v4742
    %v4747 = vrsqrt.pop %v4743
    %v4748 = vrsqrt.pop %v4744
    %v4749 = vrsqrt.pop %v4745
    %v4750 = vmul.f32 %v4718, %v4746
    %v4751 = vmul.f32 %v4719, %v4747
    %v4752 = vmul.f32 %v4720, %v4748
    %v4753 = vmul.f32 %v4721, %v4749
    %v4754 = vsel %vm149, %v4700, 0.0
    %4755 = vadd.xlane.f32.xlu0 %v4754
    %v4756 = vpop.xlane.xlu0 %4755
    %v4757 = vsel %vm149, %v4701, 0.0
    %4758 = vadd.xlane.f32.xlu0 %v4757
    %v4759 = vpop.xlane.xlu0 %4758
    %v4760 = vmul.f32 %v4756, %v2099
    %v4761 = vmul.f32 %v4759, %v2099
    %v4762 = vsub.f32 %v4700, %v4760
    %v4763 = vsub.f32 %v4701, %v4761
    %v4764 = vmul.f32 %v4762, %v4762
    %v4765 = vmul.f32 %v4763, %v4763
    %v4766 = vsel %vm149, %v4764, 0.0
    %4767 = vadd.xlane.f32.xlu0 %v4766
    %v4768 = vpop.xlane.xlu0 %4767
    %v4769 = vsel %vm149, %v4765, 0.0
    %4770 = vadd.xlane.f32.xlu0 %v4769
    %v4771 = vpop.xlane.xlu0 %4770
    %v4772 = vmul.f32 %v4768, %v2099
    %v4773 = vmul.f32 %v4771, %v2099
    %v4774 = vadd.f32 %v4772, 1e-05
    %v4775 = vadd.f32 %v4773, 1e-05
    %v4776 = vrsqrt.pop %v4774
    %v4777 = vrsqrt.pop %v4775
    %v4778 = vmul.f32 %v4762, %v4776
    %v4779 = vmul.f32 %v4763, %v4777
    %v4780 = vadd.f32 %v2136, %v4750
    %v4781 = vadd.f32 %v2137, %v4751
    %v4782 = vadd.f32 %v2138, %v4752
    %v4783 = vadd.f32 %v2139, %v4753
    %v4784 = vadd.f32 %v2164, %v4778
    %v4785 = vadd.f32 %v2165, %v4779
    %v4786 = vmul.f32 %v4780, 0.5
    %v4787 = vmul.f32 %v4781, 0.5
    %v4788 = vmul.f32 %v4782, 0.5
    %v4789 = vmul.f32 %v4783, 0.5
    %v4790 = vmul.f32 %v4784, 0.5
    %v4791 = vmul.f32 %v4785, 0.5
    %v4792 = vld [vmem:[%s18] sm:$0xf]
    %v4793 = vld [vmem:[%s18 + $0x4] sm:$0xf]
    %v4794 = vld [vmem:[%s18 + $0x8] sm:$0xf]
    %v4795 = vld [vmem:[%s18 + $0xc] sm:$0xf]
    %v4796 = vld [vmem:[%s19] sm:$0x1]
    %v4797 = vld [vmem:[%s20] sm:$0xf]
    %v4798 = vld [vmem:[%s20 + $0x4] sm:$0xf]
    %v4799 = vld [vmem:[%s20 + $0x8] sm:$0xf]
    %v4800 = vld [vmem:[%s20 + $0xc] sm:$0xf]
    %v4801 = vld [vmem:[%s20 + $0x10] sm:$0xf]
    %v4802 = vld [vmem:[%s20 + $0x14] sm:$0xf]
    %v4803 = vld [vmem:[%s20 + $0x18] sm:$0xf]
    %v4804 = vld [vmem:[%s20 + $0x1c] sm:$0xf]
    %v4805 = vld [vmem:[%s21] sm:$0x1]
    %v4806 = vpack.c.bf16 %v4787, %v4786
    %v4807 = vpack.c.bf16 %v4789, %v4788
    %v4809 = vlaneseq
    %v4810 = vshrl.u32 %v4809, 7
    %v4811 = vsub.s32 0, %v4810
    %v4812 = vrot.slane %v4796, %v4811
    %v4818 = vunpack.c.l.b16 %v4792
    %v4819 = vunpack.c.l.b16 %v4793
    %v4820 = vunpack.c.l.b16 %v4794
    %v4821 = vunpack.c.l.b16 %v4795
    %v4822 = vpack.c.b16 %v4819, %v4818
    %v4823 = vpack.c.b16 %v4821, %v4820
    %v4827 = vsel %vm149, %v4806, 0
    %v4830 = vsel %vm149, %v4807, 0
    %4832 = vmatprep.subr.bf16.mxu0 0
    %4833 = vmatpush1.bf16.msra.mxu0 %v4822
    %4834 = vmatprep.subr.bf16.mxu0 0
    %4835 = vmatpush1.bf16.msra.mxu0 %v4823
    %4836 = vmatprep.subr.bf16.mxu0 0
    %4837 = vmatpush1.bf16.msra.mxu0 0
    %4838 = vmatprep.subr.bf16.mxu0 0
    %4839 = vmatpush1.bf16.msra.mxu0 0
    %4840 = vmatprep.subr.bf16.mxu0 0
    %4841 = vmatpush1.bf16.msra.mxu0 0
    %4842 = vmatprep.subr.bf16.mxu0 0
    %4843 = vmatpush1.bf16.msra.mxu0 0
    %4844 = vmatprep.subr.bf16.mxu0 0
    %4845 = vmatpush1.bf16.msra.mxu0 0
    %4846 = vmatprep.subr.bf16.mxu0 0
    %4847 = vmatpush1.bf16.msra.mxu0 0
    %4848 = vmatprep.subr.bf16.mxu0 0
    %4849 = vmatpush1.bf16.msra.mxu0 0
    %4850 = vmatprep.subr.bf16.mxu0 0
    %4851 = vmatpush1.bf16.msra.mxu0 0
    %4852 = vmatprep.subr.bf16.mxu0 0
    %4853 = vmatpush1.bf16.msra.mxu0 0
    %4854 = vmatprep.subr.bf16.mxu0 0
    %4855 = vmatpush1.bf16.msra.mxu0 0
    %4856 = vmatprep.subr.bf16.mxu0 0
    %4857 = vmatpush1.bf16.msra.mxu0 0
    %4858 = vmatprep.subr.bf16.mxu0 0
    %4859 = vmatpush1.bf16.msra.mxu0 0
    %4860 = vmatprep.subr.bf16.mxu0 0
    %4861 = vmatpush1.bf16.msra.mxu0 0
    %4862 = vmatprep.subr.bf16.mxu0 0
    %4863 = vmatpush1.bf16.msra.mxu0 0
    %4864 = vmatprep.mubr.bf16.mxu0 0
    %4865 = vmatmul.mubr.bf16.gmra.mrb[0].mxu0 %v4827
    %v4866 = vpop.f32.mrb[0].mxu0
    %v4867 = vadd.f32 %v4812, %v4866
    %v4868 = vpop.f32.mrb[0].mxu0
    %v4869 = vpop.f32.mrb[0].mxu0
    %v4870 = vadd.f32 %v4812, %v4869
    %v4871 = vpop.f32.mrb[0].mxu0
    %4872 = vmatprep.mubr.bf16.mxu0 0
    %4873 = vmatmul.mubr.bf16.gmra.mrb[0].mxu0 %v4830
    %v4874 = vpop.f32.mrb[0].mxu0
    %v4875 = vadd.f32 %v4812, %v4874
    %v4876 = vpop.f32.mrb[0].mxu0
    %v4877 = vpop.f32.mrb[0].mxu0
    %v4878 = vadd.f32 %v4812, %v4877
    %v4879 = vpop.f32.mrb[0].mxu0
    %4880 = vdwg.mxu0
    %v4881 = vmax.f32 %v4867, 0.0
    %v4882 = vmax.f32 %v4870, 0.0
    %v4883 = vmax.f32 %v4875, 0.0
    %v4884 = vmax.f32 %v4878, 0.0
    %v4885 = vpack.c.bf16 %v4882, %v4881
    %v4886 = vpack.c.bf16 %v4884, %v4883
    %v4895 = vunpack.c.l.b16 %v4797
    %v4896 = vunpack.c.l.b16 %v4798
    %v4897 = vunpack.c.l.b16 %v4799
    %v4898 = vunpack.c.l.b16 %v4800
    %v4899 = vunpack.c.l.b16 %v4801
    %v4900 = vunpack.c.l.b16 %v4802
    %v4901 = vunpack.c.l.b16 %v4803
    %v4902 = vunpack.c.l.b16 %v4804
    %v4903 = vpack.c.b16 %v4896, %v4895
    %v4904 = vpack.c.b16 %v4898, %v4897
    %v4905 = vpack.c.b16 %v4900, %v4899
    %v4906 = vpack.c.b16 %v4902, %v4901
    %v4912 = vsel %vm235, %v4885, 0
    %v4915 = vsel %vm235, %v4886, 0
    %4917 = vmatprep.subr.bf16.mxu0 0
    %4918 = vmatpush1.bf16.msra.mxu0 %v4903
    %4919 = vmatprep.subr.bf16.mxu0 0
    %4920 = vmatpush1.bf16.msra.mxu0 %v4904
    %4921 = vmatprep.subr.bf16.mxu0 0
    %4922 = vmatpush1.bf16.msra.mxu0 %v4905
    %4923 = vmatprep.subr.bf16.mxu0 0
    %4924 = vmatpush1.bf16.msra.mxu0 %v4906
    %4925 = vmatprep.subr.bf16.mxu0 0
    %4926 = vmatpush1.bf16.msra.mxu0 0
    %4927 = vmatprep.subr.bf16.mxu0 0
    %4928 = vmatpush1.bf16.msra.mxu0 0
    %4929 = vmatprep.subr.bf16.mxu0 0
    %4930 = vmatpush1.bf16.msra.mxu0 0
    %4931 = vmatprep.subr.bf16.mxu0 0
    %4932 = vmatpush1.bf16.msra.mxu0 0
    %4933 = vmatprep.subr.bf16.mxu0 0
    %4934 = vmatpush1.bf16.msra.mxu0 0
    %4935 = vmatprep.subr.bf16.mxu0 0
    %4936 = vmatpush1.bf16.msra.mxu0 0
    %4937 = vmatprep.subr.bf16.mxu0 0
    %4938 = vmatpush1.bf16.msra.mxu0 0
    %4939 = vmatprep.subr.bf16.mxu0 0
    %4940 = vmatpush1.bf16.msra.mxu0 0
    %4941 = vmatprep.subr.bf16.mxu0 0
    %4942 = vmatpush1.bf16.msra.mxu0 0
    %4943 = vmatprep.subr.bf16.mxu0 0
    %4944 = vmatpush1.bf16.msra.mxu0 0
    %4945 = vmatprep.subr.bf16.mxu0 0
    %4946 = vmatpush1.bf16.msra.mxu0 0
    %4947 = vmatprep.subr.bf16.mxu0 0
    %4948 = vmatpush1.bf16.msra.mxu0 0
    %4949 = vmatprep.mubr.bf16.mxu0 0
    %4950 = vmatmul.mubr.bf16.gmra.mrb[0].mxu0 %v4912
    %v4951 = vpop.f32.mrb[0].mxu0
    %v4952 = vadd.f32 0.0, %v4951
    %v4953 = vpop.f32.mrb[0].mxu0
    %v4954 = vpop.f32.mrb[0].mxu0
    %v4955 = vadd.f32 0.0, %v4954
    %v4956 = vpop.f32.mrb[0].mxu0
    %4957 = vmatprep.mubr.bf16.mxu0 0
    %4958 = vmatmul.mubr.bf16.gmra.mrb[0].mxu0 %v4915
    %v4959 = vpop.f32.mrb[0].mxu0
    %v4960 = vadd.f32 0.0, %v4959
    %v4961 = vpop.f32.mrb[0].mxu0
    %v4962 = vpop.f32.mrb[0].mxu0
    %v4963 = vadd.f32 0.0, %v4962
    %v4964 = vpop.f32.mrb[0].mxu0
    %4965 = vdwg.mxu0
    %v4966 = vadd.f32 %v4786, %v4952
    %v4967 = vadd.f32 %v4787, %v4955
    %v4968 = vadd.f32 %v4788, %v4960
    %v4969 = vadd.f32 %v4789, %v4963
    %v4971 = vlaneseq
    %v4972 = vshrl.u32 %v4971, 7
    %v4973 = vsub.s32 0, %v4972
    %v4974 = vrot.slane %v4805, %v4973
    %v4976 = vadd.f32 %v4966, %v4974
    %v4977 = vadd.f32 %v4967, %v4974
    %v4978 = vadd.f32 %v4968, %v4974
    %v4979 = vadd.f32 %v4969, %v4974
    %s4980 = scalar_lea.vmem %s18, 16
    %v4981 = vld [vmem:[%s4980] sm:$0xf]
    %v4982 = vld [vmem:[%s4980 + $0x4] sm:$0xf]
    %v4983 = vld [vmem:[%s4980 + $0x8] sm:$0xf]
    %v4984 = vld [vmem:[%s4980 + $0xc] sm:$0xf]
    %s4985 = scalar_lea.vmem %s19, 1
    %v4986 = vld [vmem:[%s4985] sm:$0x1]
    %s4987 = scalar_lea.vmem %s20, 32
    %v4988 = vld [vmem:[%s4987] sm:$0xf]
    %v4989 = vld [vmem:[%s4987 + $0x4] sm:$0xf]
    %v4990 = vld [vmem:[%s4987 + $0x8] sm:$0xf]
    %v4991 = vld [vmem:[%s4987 + $0xc] sm:$0xf]
    %v4992 = vld [vmem:[%s4987 + $0x10] sm:$0xf]
    %v4993 = vld [vmem:[%s4987 + $0x14] sm:$0xf]
    %v4994 = vld [vmem:[%s4987 + $0x18] sm:$0xf]
    %v4995 = vld [vmem:[%s4987 + $0x1c] sm:$0xf]
    %s4996 = scalar_lea.vmem %s21, 1
    %v4997 = vld [vmem:[%s4996] sm:$0x1]
    %v4998 = vpack.c.bf16 %v4791, %v4790
    %v5000 = vlaneseq
    %v5001 = vshrl.u32 %v5000, 7
    %v5002 = vsub.s32 0, %v5001
    %v5003 = vrot.slane %v4986, %v5002
    %v5009 = vunpack.c.l.b16 %v4981
    %v5010 = vunpack.c.l.b16 %v4982
    %v5011 = vunpack.c.l.b16 %v4983
    %v5012 = vunpack.c.l.b16 %v4984
    %v5013 = vpack.c.b16 %v5010, %v5009
    %v5014 = vpack.c.b16 %v5012, %v5011
    %v5018 = vsel %vm149, %v4998, 0
    %5020 = vmatprep.subr.bf16.mxu0 0
    %5021 = vmatpush1.bf16.msra.mxu0 %v5013
    %5022 = vmatprep.subr.bf16.mxu0 0
    %5023 = vmatpush1.bf16.msra.mxu0 %v5014
    %5024 = vmatprep.subr.bf16.mxu0 0
    %5025 = vmatpush1.bf16.msra.mxu0 0
    %5026 = vmatprep.subr.bf16.mxu0 0
    %5027 = vmatpush1.bf16.msra.mxu0 0
    %5028 = vmatprep.subr.bf16.mxu0 0
    %5029 = vmatpush1.bf16.msra.mxu0 0
    %5030 = vmatprep.subr.bf16.mxu0 0
    %5031 = vmatpush1.bf16.msra.mxu0 0
    %5032 = vmatprep.subr.bf16.mxu0 0
    %5033 = vmatpush1.bf16.msra.mxu0 0
    %5034 = vmatprep.subr.bf16.mxu0 0
    %5035 = vmatpush1.bf16.msra.mxu0 0
    %5036 = vmatprep.subr.bf16.mxu0 0
    %5037 = vmatpush1.bf16.msra.mxu0 0
    %5038 = vmatprep.subr.bf16.mxu0 0
    %5039 = vmatpush1.bf16.msra.mxu0 0
    %5040 = vmatprep.subr.bf16.mxu0 0
    %5041 = vmatpush1.bf16.msra.mxu0 0
    %5042 = vmatprep.subr.bf16.mxu0 0
    %5043 = vmatpush1.bf16.msra.mxu0 0
    %5044 = vmatprep.subr.bf16.mxu0 0
    %5045 = vmatpush1.bf16.msra.mxu0 0
    %5046 = vmatprep.subr.bf16.mxu0 0
    %5047 = vmatpush1.bf16.msra.mxu0 0
    %5048 = vmatprep.subr.bf16.mxu0 0
    %5049 = vmatpush1.bf16.msra.mxu0 0
    %5050 = vmatprep.subr.bf16.mxu0 0
    %5051 = vmatpush1.bf16.msra.mxu0 0
    %5052 = vmatprep.mubr.bf16.mxu0 0
    %5053 = vmatmul.mubr.bf16.gmra.mrb[0].mxu0 %v5018
    %v5054 = vpop.f32.mrb[0].mxu0
    %v5055 = vadd.f32 %v5003, %v5054
    %v5056 = vpop.f32.mrb[0].mxu0
    %v5057 = vpop.f32.mrb[0].mxu0
    %v5058 = vadd.f32 %v5003, %v5057
    %v5059 = vpop.f32.mrb[0].mxu0
    %5060 = vdwg.mxu0
    %v5061 = vmax.f32 %v5055, 0.0
    %v5062 = vmax.f32 %v5058, 0.0
    %v5063 = vpack.c.bf16 %v5062, %v5061
    %v5072 = vunpack.c.l.b16 %v4988
    %v5073 = vunpack.c.l.b16 %v4989
    %v5074 = vunpack.c.l.b16 %v4990
    %v5075 = vunpack.c.l.b16 %v4991
    %v5076 = vunpack.c.l.b16 %v4992
    %v5077 = vunpack.c.l.b16 %v4993
    %v5078 = vunpack.c.l.b16 %v4994
    %v5079 = vunpack.c.l.b16 %v4995
    %v5080 = vpack.c.b16 %v5073, %v5072
    %v5081 = vpack.c.b16 %v5075, %v5074
    %v5082 = vpack.c.b16 %v5077, %v5076
    %v5083 = vpack.c.b16 %v5079, %v5078
    %v5089 = vsel %vm235, %v5063, 0
    %5091 = vmatprep.subr.bf16.mxu0 0
    %5092 = vmatpush1.bf16.msra.mxu0 %v5080
    %5093 = vmatprep.subr.bf16.mxu0 0
    %5094 = vmatpush1.bf16.msra.mxu0 %v5081
    %5095 = vmatprep.subr.bf16.mxu0 0
    %5096 = vmatpush1.bf16.msra.mxu0 %v5082
    %5097 = vmatprep.subr.bf16.mxu0 0
    %5098 = vmatpush1.bf16.msra.mxu0 %v5083
    %5099 = vmatprep.subr.bf16.mxu0 0
    %5100 = vmatpush1.bf16.msra.mxu0 0
    %5101 = vmatprep.subr.bf16.mxu0 0
    %5102 = vmatpush1.bf16.msra.mxu0 0
    %5103 = vmatprep.subr.bf16.mxu0 0
    %5104 = vmatpush1.bf16.msra.mxu0 0
    %5105 = vmatprep.subr.bf16.mxu0 0
    %5106 = vmatpush1.bf16.msra.mxu0 0
    %5107 = vmatprep.subr.bf16.mxu0 0
    %5108 = vmatpush1.bf16.msra.mxu0 0
    %5109 = vmatprep.subr.bf16.mxu0 0
    %5110 = vmatpush1.bf16.msra.mxu0 0
    %5111 = vmatprep.subr.bf16.mxu0 0
    %5112 = vmatpush1.bf16.msra.mxu0 0
    %5113 = vmatprep.subr.bf16.mxu0 0
    %5114 = vmatpush1.bf16.msra.mxu0 0
    %5115 = vmatprep.subr.bf16.mxu0 0
    %5116 = vmatpush1.bf16.msra.mxu0 0
    %5117 = vmatprep.subr.bf16.mxu0 0
    %5118 = vmatpush1.bf16.msra.mxu0 0
    %5119 = vmatprep.subr.bf16.mxu0 0
    %5120 = vmatpush1.bf16.msra.mxu0 0
    %5121 = vmatprep.subr.bf16.mxu0 0
    %5122 = vmatpush1.bf16.msra.mxu0 0
    %5123 = vmatprep.mubr.bf16.mxu0 0
    %5124 = vmatmul.mubr.bf16.gmra.mrb[0].mxu0 %v5089
    %v5125 = vpop.f32.mrb[0].mxu0
    %v5126 = vadd.f32 0.0, %v5125
    %v5127 = vpop.f32.mrb[0].mxu0
    %v5128 = vpop.f32.mrb[0].mxu0
    %v5129 = vadd.f32 0.0, %v5128
    %v5130 = vpop.f32.mrb[0].mxu0
    %5131 = vdwg.mxu0
    %v5132 = vadd.f32 %v4790, %v5126
    %v5133 = vadd.f32 %v4791, %v5129
    %v5135 = vlaneseq
    %v5136 = vshrl.u32 %v5135, 7
    %v5137 = vsub.s32 0, %v5136
    %v5138 = vrot.slane %v4997, %v5137
    %v5140 = vadd.f32 %v5132, %v5138
    %v5141 = vadd.f32 %v5133, %v5138
    %v5142 = vsel %vm149, %v4976, 0.0
    %v5143 = vsel %vm149, %v4977, 0.0
    %v5144 = vsel %vm149, %v4978, 0.0
    %v5145 = vsel %vm149, %v4979, 0.0
    %5146 = vst [vmem:[%s22] sm:$0xff] %v5142
    %5147 = vst [vmem:[%s22 + $0x8] sm:$0xff] %v5143
    %5148 = vst [vmem:[%s22 + $0x10] sm:$0xff] %v5144
    %5149 = vst [vmem:[%s22 + $0x18] sm:$0xff] %v5145
    %v5150 = vsel %vm149, %v5140, 0.0
    %v5151 = vsel %vm149, %v5141, 0.0
    %5152 = vst [vmem:[%s22 + $0x20] sm:$0xff] %v5150
    %5153 = vst [vmem:[%s22 + $0x28] sm:$0xff] %v5151
    // Predicated region
    $region98: #{backbone_forward.1} parent=1 // pred_check
      _
    $region99: #{backbone_forward.1} parent=1 // pred_check_branch
      %5155 = sbr.rel (0) target = $region101
    $region100: #{backbone_forward.1} parent=1 // pred_region
      _
    $region101: #{backbone_forward.1} parent=1 // pred_fallthru
      _
    // Predicated region
    $region102: #{backbone_forward.1} parent=1 // pred_check
      _
    $region103: #{backbone_forward.1} parent=1 // pred_check_branch
      %5157 = sbr.rel (0) target = $region105
    $region104: #{backbone_forward.1} parent=1 // pred_region
      _
    $region105: #{backbone_forward.1} parent=1 // pred_fallthru
      _
    %5158 = vsyncpa [#allocation3], 1
    %5159 = vsyncpa [#allocation5], 1

</llo_original>
